<compile_context>
chip_gen: v7x
topology: tpu7x:2x2x1
jax: 0.10.0
libtpu: 0.0.40
codegen_flags: <defaults>
</compile_context>

<pallas_src>
import jax
import jax.numpy as jnp
from jax import lax
from jax.experimental import pallas as pl
from jax.experimental.pallas import tpu as pltpu

EPS = 1e-5  # nn.BatchNorm2d default eps
# Raised above the 32 MiB scoped default (v6e) while staying well under the
# 64 MiB physical VMEM of v7x; per-tile live VMEM here is far smaller.
_VMEM_LIMIT = 48 * 1024 * 1024


def _pick_tile(total, target, quantum=1):
    """Largest divisor of `total` that is <= target and a multiple of quantum."""
    for cand in range(min(target, total), 0, -1):
        if total % cand == 0 and cand % quantum == 0:
            return cand
    return total


def _cparams(grid_rank):
    return pltpu.CompilerParams(
        dimension_semantics=("parallel",) * grid_rank,   # megacore (v7x: 2 TCs)
        vmem_limit_bytes=_VMEM_LIMIT,
    )


def _partial_stats(v):
    """Per-channel sum and sum-of-squares of a (..., C) tile, broadcast to the
    8-sublane partial-stats block layout (8, C)."""
    c = v.shape[-1]
    red_axes = tuple(range(v.ndim - 1))
    s = jnp.sum(v, axis=red_axes)
    sq = jnp.sum(v * v, axis=red_axes)
    return (jnp.broadcast_to(s[None, :], (8, c)),
            jnp.broadcast_to(sq[None, :], (8, c)))


# ------------------------- K1: stats of x (for BN1) ---------------------------
def _stats_kernel(x_ref, ps_ref, pss_ref):
    s, sq = _partial_stats(x_ref[...])
    ps_ref[0] = s
    pss_ref[0] = sq


# --------------- K2: bn1 + relu + conv1(1x1), + stats of h1 -------------------
def _conv1_kernel(x_ref, sc1_ref, sh1_ref, w1_ref, cb1_ref,
                  h1_ref, ps_ref, pss_ref):
    a = jnp.maximum(x_ref[...] * sc1_ref[...] + sh1_ref[...], 0.0)
    h1 = jnp.dot(a, w1_ref[...], preferred_element_type=jnp.float32) + cb1_ref[...]
    h1_ref[...] = h1
    s, sq = _partial_stats(h1)
    ps_ref[0] = s
    pss_ref[0] = sq


# --------- K3: bn2 + relu + conv2(3x3, pad=1 in-kernel), + stats of h2 --------
def _conv2_kernel(mid_ref, up_ref, dn_ref, sc2_ref, sh2_ref, w2_ref, cb2_ref,
                  h2_ref, ps_ref, pss_ref, pad_ref):
    t = pl.program_id(1)
    n_row_tiles = pl.num_programs(1)
    th_p2, w_p2, p = pad_ref.shape
    th, w = th_p2 - 2, w_p2 - 2
    sc2 = sc2_ref[...]          # (1, P): broadcasts over (..., W, P)
    sh2 = sh2_ref[...]

    def bn_relu_wpad(v):        # relu(bn2(v)), zero-padded along W (axis 1)
        a = jnp.maximum(v * sc2 + sh2, 0.0)
        z = jnp.zeros((v.shape[0], 1, p), jnp.float32)
        return jnp.concatenate([z, a, z], axis=1)

    # Padded activation tile lives in a VMEM scratch ("padding=1" in kernel).
    # Ref stores are only sliced along the major (row) axis.
    zero_row = jnp.zeros((1, w + 2, p), jnp.float32)
    pad_ref[0:1] = zero_row
    pad_ref[th + 1:th + 2] = zero_row
    pad_ref[1:th + 1] = bn_relu_wpad(mid_ref[...])

    @pl.when(t > 0)                         # halo row above this tile
    def _():
        pad_ref[0:1] = bn_relu_wpad(up_ref[...])

    @pl.when(t < n_row_tiles - 1)           # halo row below this tile
    def _():
        pad_ref[th + 1:th + 2] = bn_relu_wpad(dn_ref[...])

    w2 = w2_ref[...]                        # (3, 3, P, P)  HWIO
    cb2 = cb2_ref[...]                      # (1, P)

    # 3x3 conv as a row loop: only a 3-row window is live per output row.
    for h in range(th):                     # static, fully unrolled
        win = pad_ref[h:h + 3]              # (3, W+2, P)
        acc = jnp.zeros((w, p), jnp.float32)
        for dy in range(3):
            for dx in range(3):
                acc = acc + jnp.dot(win[dy, dx:dx + w, :], w2[dy, dx],
                                    preferred_element_type=jnp.float32)
        h2_ref[h] = acc + cb2

    s, sq = _partial_stats(h2_ref[...])     # partial per-channel stats for BN3
    ps_ref[0] = s
    pss_ref[0] = sq


# ----------------- K4: bn3 + relu + conv3(1x1) + residual add -----------------
def _conv3_kernel(h2_ref, x_ref, sc3_ref, sh3_ref, w3_ref, cb3_ref, o_ref):
    a = jnp.maximum(h2_ref[...] * sc3_ref[...] + sh3_ref[...], 0.0)
    o_ref[...] = (jnp.dot(a, w3_ref[...], preferred_element_type=jnp.float32)
                  + cb3_ref[...] + x_ref[...])


def _fold_bn(psum, psumsq, count, gamma, beta):
    """Tiled partial sums -> training-mode BN folded into per-channel affine."""
    s = jnp.sum(psum[:, 0, :], axis=0)
    sq = jnp.sum(psumsq[:, 0, :], axis=0)
    mean = s / count
    var = jnp.maximum(sq / count - mean * mean, 0.0)   # one-pass, biased
    scale = gamma.reshape(-1) * lax.rsqrt(var + EPS)
    shift = beta.reshape(-1) - mean * scale
    return scale.reshape(1, -1), shift.reshape(1, -1)


def bottleneck_forward(x_nhwc, params, *, tile_m=256, tile_h=8):
    N, H, W, Cin = x_nhwc.shape
    P = params["w1"].shape[1]
    Cout = params["w3"].shape[1]
    assert Cin == Cout, "downsample is None -> residual needs inplanes == 2*planes"
    M = N * H * W
    count = float(M)

    tm = _pick_tile(M, tile_m, quantum=8)    # rows per tile for the 1x1 passes
    nt = M // tm
    th = _pick_tile(H, tile_h)               # image rows per tile for the 3x3 pass
    T = H // th

    x2d = x_nhwc.reshape(M, Cin).astype(jnp.float32)

    # ---- K1: per-channel stats of x (tiled reduction, parallel grid) ----
    ps1, pss1 = pl.pallas_call(
        _stats_kernel,
        grid=(nt,),
        in_specs=[pl.BlockSpec((tm, Cin), lambda i: (i, 0))],
        out_specs=(pl.BlockSpec((1, 8, Cin), lambda i: (i, 0, 0)),
                   pl.BlockSpec((1, 8, Cin), lambda i: (i, 0, 0))),
        out_shape=(jax.ShapeDtypeStruct((nt, 8, Cin), jnp.float32),
                   jax.ShapeDtypeStruct((nt, 8, Cin), jnp.float32)),
        compiler_params=_cparams(1),
    )(x2d)
    scale1, shift1 = _fold_bn(ps1, pss1, count, params["g1"], params["b1"])

    # ---- K2: bn1 + relu + conv1 (1x1), fused stats of h1 ----
    h1_2d, ps2, pss2 = pl.pallas_call(
        _conv1_kernel,
        grid=(nt,),
        in_specs=[
            pl.BlockSpec((tm, Cin), lambda i: (i, 0)),
            pl.BlockSpec((1, Cin), lambda i: (0, 0)),
            pl.BlockSpec((1, Cin), lambda i: (0, 0)),
            pl.BlockSpec((Cin, P), lambda i: (0, 0)),
            pl.BlockSpec((1, P), lambda i: (0, 0)),
        ],
        out_specs=(pl.BlockSpec((tm, P), lambda i: (i, 0)),
                   pl.BlockSpec((1, 8, P), lambda i: (i, 0, 0)),
                   pl.BlockSpec((1, 8, P), lambda i: (i, 0, 0))),
        out_shape=(jax.ShapeDtypeStruct((M, P), jnp.float32),
                   jax.ShapeDtypeStruct((nt, 8, P), jnp.float32),
                   jax.ShapeDtypeStruct((nt, 8, P), jnp.float32)),
        compiler_params=_cparams(1),
    )(x2d, scale1, shift1, params["w1"], params["cb1"])
    scale2, shift2 = _fold_bn(ps2, pss2, count, params["g2"], params["b2"])

    # ---- K3: bn2 + relu + conv2 (3x3, SAME) with in-kernel padding ----
    h1_4d = h1_2d.reshape(N, H, W, P)
    h2_4d, ps3, pss3 = pl.pallas_call(
        _conv2_kernel,
        grid=(N, T),
        in_specs=[
            # main row-tile of h1
            pl.BlockSpec((None, th, W, P), lambda n, t: (n, t, 0, 0)),
            # single halo row above / below (clamped; zeroed in-kernel at image edges)
            pl.BlockSpec((None, 1, W, P),
                         lambda n, t: (n, jnp.maximum(t * th - 1, 0), 0, 0)),
            pl.BlockSpec((None, 1, W, P),
                         lambda n, t: (n, jnp.minimum((t + 1) * th, H - 1), 0, 0)),
            pl.BlockSpec((1, P), lambda n, t: (0, 0)),
            pl.BlockSpec((1, P), lambda n, t: (0, 0)),
            pl.BlockSpec((3, 3, P, P), lambda n, t: (0, 0, 0, 0)),
            pl.BlockSpec((1, P), lambda n, t: (0, 0)),
        ],
        out_specs=(pl.BlockSpec((None, th, W, P), lambda n, t: (n, t, 0, 0)),
                   pl.BlockSpec((1, 8, P), lambda n, t: (n * T + t, 0, 0)),
                   pl.BlockSpec((1, 8, P), lambda n, t: (n * T + t, 0, 0))),
        out_shape=(jax.ShapeDtypeStruct((N, H, W, P), jnp.float32),
                   jax.ShapeDtypeStruct((N * T, 8, P), jnp.float32),
                   jax.ShapeDtypeStruct((N * T, 8, P), jnp.float32)),
        scratch_shapes=[pltpu.VMEM((th + 2, W + 2, P), jnp.float32)],
        compiler_params=_cparams(2),
    )(h1_4d, h1_4d, h1_4d, scale2, shift2, params["w2"], params["cb2"])
    scale3, shift3 = _fold_bn(ps3, pss3, count, params["g3"], params["b3"])

    # ---- K4: bn3 + relu + conv3 (1x1) + residual ----
    h2_2d = h2_4d.reshape(M, P)
    out2d = pl.pallas_call(
        _conv3_kernel,
        grid=(nt,),
        in_specs=[
            pl.BlockSpec((tm, P), lambda i: (i, 0)),
            pl.BlockSpec((tm, Cout), lambda i: (i, 0)),
            pl.BlockSpec((1, P), lambda i: (0, 0)),
            pl.BlockSpec((1, P), lambda i: (0, 0)),
            pl.BlockSpec((P, Cout), lambda i: (0, 0)),
            pl.BlockSpec((1, Cout), lambda i: (0, 0)),
        ],
        out_specs=pl.BlockSpec((tm, Cout), lambda i: (i, 0)),
        out_shape=jax.ShapeDtypeStruct((M, Cout), jnp.float32),
        compiler_params=_cparams(1),
    )(h2_2d, x2d, scale3, shift3, params["w3"], params["cb3"])

    return out2d.reshape(N, H, W, Cout)


# --------------------------- pure-JAX reference -------------------------------
def bottleneck_reference(x, params):
    def bn(t, g, b):
        m = jnp.mean(t, axis=(0, 1, 2), keepdims=True)
        v = jnp.mean((t - m) ** 2, axis=(0, 1, 2), keepdims=True)
        return (t - m) * lax.rsqrt(v + EPS) * g.reshape(1, 1, 1, -1) + b.reshape(1, 1, 1, -1)

    def conv(t, w, b, pad):
        y = lax.conv_general_dilated(t, w, (1, 1), pad,
                                     dimension_numbers=("NHWC", "HWIO", "NHWC"))
        return y + b.reshape(1, 1, 1, -1)

    out = jax.nn.relu(bn(x, params["g1"], params["b1"]))
    out = conv(out, params["w1"].reshape(1, 1, *params["w1"].shape), params["cb1"], "VALID")
    out = jax.nn.relu(bn(out, params["g2"], params["b2"]))
    out = conv(out, params["w2"], params["cb2"], "SAME")
    out = jax.nn.relu(bn(out, params["g3"], params["b3"]))
    out = conv(out, params["w3"].reshape(1, 1, *params["w3"].shape), params["cb3"], "VALID")
    return out + x


if __name__ == "__main__":
    N, H, W = 2, 16, 16
    planes = 4
    inplanes = 2 * planes  # expansion=2, downsample=None -> inplanes == planes*2

    key = jax.random.PRNGKey(0)
    ks = jax.random.split(key, 13)
    x = jax.random.normal(ks[0], (N, H, W, inplanes), jnp.float32)

    params = dict(
        g1=1.0 + 0.1 * jax.random.normal(ks[1], (1, inplanes), jnp.float32),
        b1=0.1 * jax.random.normal(ks[2], (1, inplanes), jnp.float32),
        w1=0.2 * jax.random.normal(ks[3], (inplanes, planes), jnp.float32),
        cb1=0.1 * jax.random.normal(ks[4], (1, planes), jnp.float32),
        g2=1.0 + 0.1 * jax.random.normal(ks[5], (1, planes), jnp.float32),
        b2=0.1 * jax.random.normal(ks[6], (1, planes), jnp.float32),
        w2=0.2 * jax.random.normal(ks[7], (3, 3, planes, planes), jnp.float32),
        cb2=0.1 * jax.random.normal(ks[8], (1, planes), jnp.float32),
        g3=1.0 + 0.1 * jax.random.normal(ks[9], (1, planes), jnp.float32),
        b3=0.1 * jax.random.normal(ks[10], (1, planes), jnp.float32),
        w3=0.2 * jax.random.normal(ks[11], (planes, 2 * planes), jnp.float32),
        cb3=0.1 * jax.random.normal(ks[12], (1, 2 * planes), jnp.float32),
    )

    fwd = jax.jit(bottleneck_forward)
    out = jax.block_until_ready(fwd(x, params))
    ref = jax.block_until_ready(bottleneck_reference(x, params))

    assert out.shape == (N, H, W, 2 * planes), out.shape
    max_err = float(jnp.max(jnp.abs(out - ref)))
    assert jnp.allclose(out, ref, atol=2e-3, rtol=2e-3), f"max_err={max_err}"
    print("KERNEL_OK")
</pallas_src>

<mosaic_0001>
module attributes {stable_mosaic.version = 11 : i64} {
  func.func @_stats_kernel(%arg0: i32, %arg1: memref<256x8xf32, #tpu.memory_space<vmem>>, %arg2: memref<1x8x8xf32, #tpu.memory_space<vmem>>, %arg3: memref<1x8x8xf32, #tpu.memory_space<vmem>>) attributes {dimension_semantics = [#tpu.dimension_semantics<parallel>], iteration_bounds = array<i64: 2>, scalar_prefetch = 0 : i64, scratch_operands = 0 : i64, tpu.core_type = #tpu.core_type<tc>, window_params = [{transform_indices = @transform_0, window_bounds = array<i64: 256, 8>}, {transform_indices = @transform_1, window_bounds = array<i64: 1, 8, 8>}, {transform_indices = @transform_2, window_bounds = array<i64: 1, 8, 8>}]} {
    %c0 = arith.constant 0 : index
    %c0_0 = arith.constant 0 : index
    %0 = vector.load %arg1[%c0, %c0_0] : memref<256x8xf32, #tpu.memory_space<vmem>>, vector<256x8xf32>
    %cst = arith.constant dense<0.000000e+00> : vector<8xf32>
    %1 = vector.multi_reduction <add>, %0, %cst [0] : vector<256x8xf32> to vector<8xf32>
    %2 = arith.mulf %0, %0 : vector<256x8xf32>
    %cst_1 = arith.constant dense<0.000000e+00> : vector<8xf32>
    %3 = vector.multi_reduction <add>, %2, %cst_1 [0] : vector<256x8xf32> to vector<8xf32>
    %4 = vector.shape_cast %1 : vector<8xf32> to vector<1x8xf32>
    %5 = vector.shape_cast %4 : vector<1x8xf32> to vector<1x8xf32>
    %6 = vector.broadcast %5 : vector<1x8xf32> to vector<8x8xf32>
    %7 = vector.shape_cast %3 : vector<8xf32> to vector<1x8xf32>
    %8 = vector.shape_cast %7 : vector<1x8xf32> to vector<1x8xf32>
    %9 = vector.broadcast %8 : vector<1x8xf32> to vector<8x8xf32>
    %c0_2 = arith.constant 0 : index
    %c0_3 = arith.constant 0 : index
    %c0_4 = arith.constant 0 : index
    %10 = vector.load %arg2[%c0_2, %c0_3, %c0_4] : memref<1x8x8xf32, #tpu.memory_space<vmem>>, vector<1x8x8xf32>
    %11 = vector.shape_cast %10 : vector<1x8x8xf32> to vector<8x8xf32>
    %12 = vector.shape_cast %6 : vector<8x8xf32> to vector<1x8x8xf32>
    tpu.vector_store %arg2[%c0_2, %c0_3, %c0_4], %12 {strides = array<i32>} : memref<1x8x8xf32, #tpu.memory_space<vmem>>, vector<1x8x8xf32>,
    %c0_5 = arith.constant 0 : index
    %c0_6 = arith.constant 0 : index
    %c0_7 = arith.constant 0 : index
    %13 = vector.load %arg3[%c0_5, %c0_6, %c0_7] : memref<1x8x8xf32, #tpu.memory_space<vmem>>, vector<1x8x8xf32>
    %14 = vector.shape_cast %13 : vector<1x8x8xf32> to vector<8x8xf32>
    %15 = vector.shape_cast %9 : vector<8x8xf32> to vector<1x8x8xf32>
    tpu.vector_store %arg3[%c0_5, %c0_6, %c0_7], %15 {strides = array<i32>} : memref<1x8x8xf32, #tpu.memory_space<vmem>>, vector<1x8x8xf32>,
    return
  }
  func.func @transform_0(%arg0: i32) -> (i32, i32) {
    %c0_i32 = arith.constant 0 : i32
    %c0_i32_0 = arith.constant 0 : i32
    return %arg0, %c0_i32 : i32, i32
  }
  func.func @transform_1(%arg0: i32) -> (i32, i32, i32) {
    %c0_i32 = arith.constant 0 : i32
    %c0_i32_0 = arith.constant 0 : i32
    %c0_i32_1 = arith.constant 0 : i32
    return %arg0, %c0_i32, %c0_i32_0 : i32, i32, i32
  }
  func.func @transform_2(%arg0: i32) -> (i32, i32, i32) {
    %c0_i32 = arith.constant 0 : i32
    %c0_i32_0 = arith.constant 0 : i32
    %c0_i32_1 = arith.constant 0 : i32
    return %arg0, %c0_i32, %c0_i32_0 : i32, i32, i32
  }
}

module attributes {stable_mosaic.version = 11 : i64} {
  func.func @_conv1_kernel(%arg0: i32, %arg1: memref<256x8xf32, #tpu.memory_space<vmem>>, %arg2: memref<1x8xf32, #tpu.memory_space<vmem>>, %arg3: memref<1x8xf32, #tpu.memory_space<vmem>>, %arg4: memref<8x4xf32, #tpu.memory_space<vmem>>, %arg5: memref<1x4xf32, #tpu.memory_space<vmem>>, %arg6: memref<256x4xf32, #tpu.memory_space<vmem>>, %arg7: memref<1x8x4xf32, #tpu.memory_space<vmem>>, %arg8: memref<1x8x4xf32, #tpu.memory_space<vmem>>) attributes {dimension_semantics = [#tpu.dimension_semantics<parallel>], iteration_bounds = array<i64: 2>, scalar_prefetch = 0 : i64, scratch_operands = 0 : i64, tpu.core_type = #tpu.core_type<tc>, window_params = [{transform_indices = @transform_0, window_bounds = array<i64: 256, 8>}, {pipeline_mode = #tpu.pipeline_mode<synchronous>, transform_indices = @transform_1, window_bounds = array<i64: 1, 8>}, {pipeline_mode = #tpu.pipeline_mode<synchronous>, transform_indices = @transform_2, window_bounds = array<i64: 1, 8>}, {pipeline_mode = #tpu.pipeline_mode<synchronous>, transform_indices = @transform_3, window_bounds = array<i64: 8, 4>}, {pipeline_mode = #tpu.pipeline_mode<synchronous>, transform_indices = @transform_4, window_bounds = array<i64: 1, 4>}, {transform_indices = @transform_5, window_bounds = array<i64: 256, 4>}, {transform_indices = @transform_6, window_bounds = array<i64: 1, 8, 4>}, {transform_indices = @transform_7, window_bounds = array<i64: 1, 8, 4>}]} {
    %c0 = arith.constant 0 : index
    %c0_0 = arith.constant 0 : index
    %0 = vector.load %arg1[%c0, %c0_0] : memref<256x8xf32, #tpu.memory_space<vmem>>, vector<256x8xf32>
    %c0_1 = arith.constant 0 : index
    %c0_2 = arith.constant 0 : index
    %1 = vector.load %arg2[%c0_1, %c0_2] : memref<1x8xf32, #tpu.memory_space<vmem>>, vector<1x8xf32>
    %2 = vector.broadcast %1 : vector<1x8xf32> to vector<256x8xf32>
    %3 = arith.mulf %0, %2 : vector<256x8xf32>
    %c0_3 = arith.constant 0 : index
    %c0_4 = arith.constant 0 : index
    %4 = vector.load %arg3[%c0_3, %c0_4] : memref<1x8xf32, #tpu.memory_space<vmem>>, vector<1x8xf32>
    %5 = vector.broadcast %4 : vector<1x8xf32> to vector<256x8xf32>
    %6 = arith.addf %3, %5 : vector<256x8xf32>
    %cst = arith.constant 0.000000e+00 : f32
    %7 = vector.broadcast %cst : f32 to vector<256x8xf32>
    %8 = arith.maximumf %6, %7 : vector<256x8xf32>
    %c0_5 = arith.constant 0 : index
    %c0_6 = arith.constant 0 : index
    %9 = vector.load %arg4[%c0_5, %c0_6] : memref<8x4xf32, #tpu.memory_space<vmem>>, vector<8x4xf32>
    %cst_7 = arith.constant dense<0.000000e+00> : vector<256x4xf32>
    %10 = tpu.matmul %8, %9, %cst_7 {dimension_numbers = #tpu.dot_dimension_numbers<[1], [0], [0], [1], [0, 0, 1, 1], [], []>} : vector<256x8xf32>, vector<8x4xf32>, vector<256x4xf32> -> vector<256x4xf32>
    %c0_8 = arith.constant 0 : index
    %c0_9 = arith.constant 0 : index
    %11 = vector.load %arg5[%c0_8, %c0_9] : memref<1x4xf32, #tpu.memory_space<vmem>>, vector<1x4xf32>
    %12 = vector.broadcast %11 : vector<1x4xf32> to vector<256x4xf32>
    %13 = arith.addf %10, %12 : vector<256x4xf32>
    %c0_10 = arith.constant 0 : index
    %c0_11 = arith.constant 0 : index
    %14 = vector.load %arg6[%c0_10, %c0_11] : memref<256x4xf32, #tpu.memory_space<vmem>>, vector<256x4xf32>
    tpu.vector_store %arg6[%c0_10, %c0_11], %13 {strides = array<i32>} : memref<256x4xf32, #tpu.memory_space<vmem>>, vector<256x4xf32>,
    %cst_12 = arith.constant dense<0.000000e+00> : vector<4xf32>
    %15 = vector.multi_reduction <add>, %13, %cst_12 [0] : vector<256x4xf32> to vector<4xf32>
    %16 = arith.mulf %13, %13 : vector<256x4xf32>
    %cst_13 = arith.constant dense<0.000000e+00> : vector<4xf32>
    %17 = vector.multi_reduction <add>, %16, %cst_13 [0] : vector<256x4xf32> to vector<4xf32>
    %18 = vector.shape_cast %15 : vector<4xf32> to vector<1x4xf32>
    %19 = vector.shape_cast %18 : vector<1x4xf32> to vector<1x4xf32>
    %20 = vector.broadcast %19 : vector<1x4xf32> to vector<8x4xf32>
    %21 = vector.shape_cast %17 : vector<4xf32> to vector<1x4xf32>
    %22 = vector.shape_cast %21 : vector<1x4xf32> to vector<1x4xf32>
    %23 = vector.broadcast %22 : vector<1x4xf32> to vector<8x4xf32>
    %c0_14 = arith.constant 0 : index
    %c0_15 = arith.constant 0 : index
    %c0_16 = arith.constant 0 : index
    %24 = vector.load %arg7[%c0_14, %c0_15, %c0_16] : memref<1x8x4xf32, #tpu.memory_space<vmem>>, vector<1x8x4xf32>
    %25 = vector.shape_cast %24 : vector<1x8x4xf32> to vector<8x4xf32>
    %26 = vector.shape_cast %20 : vector<8x4xf32> to vector<1x8x4xf32>
    tpu.vector_store %arg7[%c0_14, %c0_15, %c0_16], %26 {strides = array<i32>} : memref<1x8x4xf32, #tpu.memory_space<vmem>>, vector<1x8x4xf32>,
    %c0_17 = arith.constant 0 : index
    %c0_18 = arith.constant 0 : index
    %c0_19 = arith.constant 0 : index
    %27 = vector.load %arg8[%c0_17, %c0_18, %c0_19] : memref<1x8x4xf32, #tpu.memory_space<vmem>>, vector<1x8x4xf32>
    %28 = vector.shape_cast %27 : vector<1x8x4xf32> to vector<8x4xf32>
    %29 = vector.shape_cast %23 : vector<8x4xf32> to vector<1x8x4xf32>
    tpu.vector_store %arg8[%c0_17, %c0_18, %c0_19], %29 {strides = array<i32>} : memref<1x8x4xf32, #tpu.memory_space<vmem>>, vector<1x8x4xf32>,
    return
  }
  func.func @transform_0(%arg0: i32) -> (i32, i32) {
    %c0_i32 = arith.constant 0 : i32
    %c0_i32_0 = arith.constant 0 : i32
    return %arg0, %c0_i32 : i32, i32
  }
  func.func @transform_1(%arg0: i32) -> (i32, i32) {
    %c0_i32 = arith.constant 0 : i32
    %c0_i32_0 = arith.constant 0 : i32
    %c0_i32_1 = arith.constant 0 : i32
    return %c0_i32, %c0_i32_0 : i32, i32
  }
  func.func @transform_2(%arg0: i32) -> (i32, i32) {
    %c0_i32 = arith.constant 0 : i32
    %c0_i32_0 = arith.constant 0 : i32
    %c0_i32_1 = arith.constant 0 : i32
    return %c0_i32, %c0_i32_0 : i32, i32
  }
  func.func @transform_3(%arg0: i32) -> (i32, i32) {
    %c0_i32 = arith.constant 0 : i32
    %c0_i32_0 = arith.constant 0 : i32
    %c0_i32_1 = arith.constant 0 : i32
    return %c0_i32, %c0_i32_0 : i32, i32
  }
  func.func @transform_4(%arg0: i32) -> (i32, i32) {
    %c0_i32 = arith.constant 0 : i32
    %c0_i32_0 = arith.constant 0 : i32
    %c0_i32_1 = arith.constant 0 : i32
    return %c0_i32, %c0_i32_0 : i32, i32
  }
  func.func @transform_5(%arg0: i32) -> (i32, i32) {
    %c0_i32 = arith.constant 0 : i32
    %c0_i32_0 = arith.constant 0 : i32
    return %arg0, %c0_i32 : i32, i32
  }
  func.func @transform_6(%arg0: i32) -> (i32, i32, i32) {
    %c0_i32 = arith.constant 0 : i32
    %c0_i32_0 = arith.constant 0 : i32
    %c0_i32_1 = arith.constant 0 : i32
    return %arg0, %c0_i32, %c0_i32_0 : i32, i32, i32
  }
  func.func @transform_7(%arg0: i32) -> (i32, i32, i32) {
    %c0_i32 = arith.constant 0 : i32
    %c0_i32_0 = arith.constant 0 : i32
    %c0_i32_1 = arith.constant 0 : i32
    return %arg0, %c0_i32, %c0_i32_0 : i32, i32, i32
  }
}

module attributes {stable_mosaic.version = 11 : i64} {
  func.func @_conv3_kernel(%arg0: i32, %arg1: memref<256x4xf32, #tpu.memory_space<vmem>>, %arg2: memref<256x8xf32, #tpu.memory_space<vmem>>, %arg3: memref<1x4xf32, #tpu.memory_space<vmem>>, %arg4: memref<1x4xf32, #tpu.memory_space<vmem>>, %arg5: memref<4x8xf32, #tpu.memory_space<vmem>>, %arg6: memref<1x8xf32, #tpu.memory_space<vmem>>, %arg7: memref<256x8xf32, #tpu.memory_space<vmem>>) attributes {dimension_semantics = [#tpu.dimension_semantics<parallel>], iteration_bounds = array<i64: 2>, scalar_prefetch = 0 : i64, scratch_operands = 0 : i64, tpu.core_type = #tpu.core_type<tc>, window_params = [{transform_indices = @transform_0, window_bounds = array<i64: 256, 4>}, {transform_indices = @transform_1, window_bounds = array<i64: 256, 8>}, {pipeline_mode = #tpu.pipeline_mode<synchronous>, transform_indices = @transform_2, window_bounds = array<i64: 1, 4>}, {pipeline_mode = #tpu.pipeline_mode<synchronous>, transform_indices = @transform_3, window_bounds = array<i64: 1, 4>}, {pipeline_mode = #tpu.pipeline_mode<synchronous>, transform_indices = @transform_4, window_bounds = array<i64: 4, 8>}, {pipeline_mode = #tpu.pipeline_mode<synchronous>, transform_indices = @transform_5, window_bounds = array<i64: 1, 8>}, {transform_indices = @transform_6, window_bounds = array<i64: 256, 8>}]} {
    %c0 = arith.constant 0 : index
    %c0_0 = arith.constant 0 : index
    %0 = vector.load %arg1[%c0, %c0_0] : memref<256x4xf32, #tpu.memory_space<vmem>>, vector<256x4xf32>
    %c0_1 = arith.constant 0 : index
    %c0_2 = arith.constant 0 : index
    %1 = vector.load %arg3[%c0_1, %c0_2] : memref<1x4xf32, #tpu.memory_space<vmem>>, vector<1x4xf32>
    %2 = vector.broadcast %1 : vector<1x4xf32> to vector<256x4xf32>
    %3 = arith.mulf %0, %2 : vector<256x4xf32>
    %c0_3 = arith.constant 0 : index
    %c0_4 = arith.constant 0 : index
    %4 = vector.load %arg4[%c0_3, %c0_4] : memref<1x4xf32, #tpu.memory_space<vmem>>, vector<1x4xf32>
    %5 = vector.broadcast %4 : vector<1x4xf32> to vector<256x4xf32>
    %6 = arith.addf %3, %5 : vector<256x4xf32>
    %cst = arith.constant 0.000000e+00 : f32
    %7 = vector.broadcast %cst : f32 to vector<256x4xf32>
    %8 = arith.maximumf %6, %7 : vector<256x4xf32>
    %c0_5 = arith.constant 0 : index
    %c0_6 = arith.constant 0 : index
    %9 = vector.load %arg5[%c0_5, %c0_6] : memref<4x8xf32, #tpu.memory_space<vmem>>, vector<4x8xf32>
    %cst_7 = arith.constant dense<0.000000e+00> : vector<256x8xf32>
    %10 = tpu.matmul %8, %9, %cst_7 {dimension_numbers = #tpu.dot_dimension_numbers<[1], [0], [0], [1], [0, 0, 1, 1], [], []>} : vector<256x4xf32>, vector<4x8xf32>, vector<256x8xf32> -> vector<256x8xf32>
    %c0_8 = arith.constant 0 : index
    %c0_9 = arith.constant 0 : index
    %11 = vector.load %arg6[%c0_8, %c0_9] : memref<1x8xf32, #tpu.memory_space<vmem>>, vector<1x8xf32>
    %12 = vector.broadcast %11 : vector<1x8xf32> to vector<256x8xf32>
    %13 = arith.addf %10, %12 : vector<256x8xf32>
    %c0_10 = arith.constant 0 : index
    %c0_11 = arith.constant 0 : index
    %14 = vector.load %arg2[%c0_10, %c0_11] : memref<256x8xf32, #tpu.memory_space<vmem>>, vector<256x8xf32>
    %15 = arith.addf %13, %14 : vector<256x8xf32>
    %c0_12 = arith.constant 0 : index
    %c0_13 = arith.constant 0 : index
    %16 = vector.load %arg7[%c0_12, %c0_13] : memref<256x8xf32, #tpu.memory_space<vmem>>, vector<256x8xf32>
    tpu.vector_store %arg7[%c0_12, %c0_13], %15 {strides = array<i32>} : memref<256x8xf32, #tpu.memory_space<vmem>>, vector<256x8xf32>,
    return
  }
  func.func @transform_0(%arg0: i32) -> (i32, i32) {
    %c0_i32 = arith.constant 0 : i32
    %c0_i32_0 = arith.constant 0 : i32
    return %arg0, %c0_i32 : i32, i32
  }
  func.func @transform_1(%arg0: i32) -> (i32, i32) {
    %c0_i32 = arith.constant 0 : i32
    %c0_i32_0 = arith.constant 0 : i32
    return %arg0, %c0_i32 : i32, i32
  }
  func.func @transform_2(%arg0: i32) -> (i32, i32) {
    %c0_i32 = arith.constant 0 : i32
    %c0_i32_0 = arith.constant 0 : i32
    %c0_i32_1 = arith.constant 0 : i32
    return %c0_i32, %c0_i32_0 : i32, i32
  }
  func.func @transform_3(%arg0: i32) -> (i32, i32) {
    %c0_i32 = arith.constant 0 : i32
    %c0_i32_0 = arith.constant 0 : i32
    %c0_i32_1 = arith.constant 0 : i32
    return %c0_i32, %c0_i32_0 : i32, i32
  }
  func.func @transform_4(%arg0: i32) -> (i32, i32) {
    %c0_i32 = arith.constant 0 : i32
    %c0_i32_0 = arith.constant 0 : i32
    %c0_i32_1 = arith.constant 0 : i32
    return %c0_i32, %c0_i32_0 : i32, i32
  }
  func.func @transform_5(%arg0: i32) -> (i32, i32) {
    %c0_i32 = arith.constant 0 : i32
    %c0_i32_0 = arith.constant 0 : i32
    %c0_i32_1 = arith.constant 0 : i32
    return %c0_i32, %c0_i32_0 : i32, i32
  }
  func.func @transform_6(%arg0: i32) -> (i32, i32) {
    %c0_i32 = arith.constant 0 : i32
    %c0_i32_0 = arith.constant 0 : i32
    return %arg0, %c0_i32 : i32, i32
  }
}

module attributes {stable_mosaic.version = 11 : i64} {
  func.func @_conv2_kernel(%arg0: i32, %arg1: i32, %arg2: memref<1x8x16x4xf32, #tpu.memory_space<vmem>>, %arg3: memref<1x1x16x4xf32, #tpu.memory_space<vmem>>, %arg4: memref<1x1x16x4xf32, #tpu.memory_space<vmem>>, %arg5: memref<1x4xf32, #tpu.memory_space<vmem>>, %arg6: memref<1x4xf32, #tpu.memory_space<vmem>>, %arg7: memref<3x3x4x4xf32, #tpu.memory_space<vmem>>, %arg8: memref<1x4xf32, #tpu.memory_space<vmem>>, %arg9: memref<1x8x16x4xf32, #tpu.memory_space<vmem>>, %arg10: memref<1x8x4xf32, #tpu.memory_space<vmem>>, %arg11: memref<1x8x4xf32, #tpu.memory_space<vmem>>, %arg12: memref<10x18x4xf32, #tpu.memory_space<vmem>>) attributes {dimension_semantics = [#tpu.dimension_semantics<parallel>, #tpu.dimension_semantics<parallel>], iteration_bounds = array<i64: 2, 2>, scalar_prefetch = 0 : i64, scratch_operands = 1 : i64, tpu.core_type = #tpu.core_type<tc>, window_params = [{transform_indices = @transform_0, window_bounds = array<i64: 1, 8, 16, 4>}, {transform_indices = @transform_1, window_bounds = array<i64: 1, 1, 16, 4>}, {transform_indices = @transform_2, window_bounds = array<i64: 1, 1, 16, 4>}, {pipeline_mode = #tpu.pipeline_mode<synchronous>, transform_indices = @transform_3, window_bounds = array<i64: 1, 4>}, {pipeline_mode = #tpu.pipeline_mode<synchronous>, transform_indices = @transform_4, window_bounds = array<i64: 1, 4>}, {pipeline_mode = #tpu.pipeline_mode<synchronous>, transform_indices = @transform_5, window_bounds = array<i64: 3, 3, 4, 4>}, {pipeline_mode = #tpu.pipeline_mode<synchronous>, transform_indices = @transform_6, window_bounds = array<i64: 1, 4>}, {transform_indices = @transform_7, window_bounds = array<i64: 1, 8, 16, 4>}, {transform_indices = @transform_8, window_bounds = array<i64: 1, 8, 4>}, {transform_indices = @transform_9, window_bounds = array<i64: 1, 8, 4>}]} {
    %c0 = arith.constant 0 : index
    %c0_0 = arith.constant 0 : index
    %0 = vector.load %arg5[%c0, %c0_0] : memref<1x4xf32, #tpu.memory_space<vmem>>, vector<1x4xf32>
    %c0_1 = arith.constant 0 : index
    %c0_2 = arith.constant 0 : index
    %1 = vector.load %arg6[%c0_1, %c0_2] : memref<1x4xf32, #tpu.memory_space<vmem>>, vector<1x4xf32>
    %cst = arith.constant 0.000000e+00 : f32
    %2 = vector.broadcast %cst : f32 to vector<1x18x4xf32>
    %c0_3 = arith.constant 0 : index
    %c0_4 = arith.constant 0 : index
    %c0_5 = arith.constant 0 : index
    %3 = vector.load %arg12[%c0_3, %c0_4, %c0_5] : memref<10x18x4xf32, #tpu.memory_space<vmem>>, vector<1x18x4xf32>
    tpu.vector_store %arg12[%c0_3, %c0_4, %c0_5], %2 {strides = array<i32>} : memref<10x18x4xf32, #tpu.memory_space<vmem>>, vector<1x18x4xf32>,
    %c9 = arith.constant 9 : index
    %c0_6 = arith.constant 0 : index
    %c0_7 = arith.constant 0 : index
    %4 = vector.load %arg12[%c9, %c0_6, %c0_7] : memref<10x18x4xf32, #tpu.memory_space<vmem>>, vector<1x18x4xf32>
    tpu.vector_store %arg12[%c9, %c0_6, %c0_7], %2 {strides = array<i32>} : memref<10x18x4xf32, #tpu.memory_space<vmem>>, vector<1x18x4xf32>,
    %c0_8 = arith.constant 0 : index
    %c0_9 = arith.constant 0 : index
    %c0_10 = arith.constant 0 : index
    %c0_11 = arith.constant 0 : index
    %5 = vector.load %arg2[%c0_8, %c0_9, %c0_10, %c0_11] : memref<1x8x16x4xf32, #tpu.memory_space<vmem>>, vector<1x8x16x4xf32>
    %6 = vector.shape_cast %5 : vector<1x8x16x4xf32> to vector<8x16x4xf32>
    %7 = vector.shape_cast %0 : vector<1x4xf32> to vector<1x1x4xf32>
    %8 = vector.broadcast %7 : vector<1x1x4xf32> to vector<8x16x4xf32>
    %9 = arith.mulf %6, %8 : vector<8x16x4xf32>
    %10 = vector.shape_cast %1 : vector<1x4xf32> to vector<1x1x4xf32>
    %11 = vector.broadcast %10 : vector<1x1x4xf32> to vector<8x16x4xf32>
    %12 = arith.addf %9, %11 : vector<8x16x4xf32>
    %cst_12 = arith.constant 0.000000e+00 : f32
    %13 = vector.broadcast %cst_12 : f32 to vector<8x16x4xf32>
    %14 = arith.maximumf %12, %13 : vector<8x16x4xf32>
    %cst_13 = arith.constant 0.000000e+00 : f32
    %15 = vector.broadcast %cst_13 : f32 to vector<8x1x4xf32>
    %16 = tpu.concatenate %15, %14, %15 in 1 : vector<8x1x4xf32>, vector<8x16x4xf32>, vector<8x1x4xf32> -> vector<8x18x4xf32>
    %c1 = arith.constant 1 : index
    %c0_14 = arith.constant 0 : index
    %c0_15 = arith.constant 0 : index
    %17 = vector.load %arg12[%c1, %c0_14, %c0_15] : memref<10x18x4xf32, #tpu.memory_space<vmem>>, vector<8x18x4xf32>
    tpu.vector_store %arg12[%c1, %c0_14, %c0_15], %16 {strides = array<i32>} : memref<10x18x4xf32, #tpu.memory_space<vmem>>, vector<8x18x4xf32>,
    %c0_i32 = arith.constant 0 : i32
    %18 = arith.cmpi sgt, %arg1, %c0_i32 : i32
    %19 = arith.extui %18 : i1 to i32
    %c0_i32_16 = arith.constant 0 : i32
    %20 = arith.cmpi ne, %19, %c0_i32_16 : i32
    scf.if %20 {
      %c0_166 = arith.constant 0 : index
      %c0_167 = arith.constant 0 : index
      %c0_168 = arith.constant 0 : index
      %c0_169 = arith.constant 0 : index
      %531 = vector.load %arg3[%c0_166, %c0_167, %c0_168, %c0_169] : memref<1x1x16x4xf32, #tpu.memory_space<vmem>>, vector<1x1x16x4xf32>
      %532 = vector.shape_cast %531 : vector<1x1x16x4xf32> to vector<1x16x4xf32>
      %533 = vector.shape_cast %0 : vector<1x4xf32> to vector<1x1x4xf32>
      %534 = vector.broadcast %533 : vector<1x1x4xf32> to vector<1x16x4xf32>
      %535 = arith.mulf %532, %534 : vector<1x16x4xf32>
      %536 = vector.shape_cast %1 : vector<1x4xf32> to vector<1x1x4xf32>
      %537 = vector.broadcast %536 : vector<1x1x4xf32> to vector<1x16x4xf32>
      %538 = arith.addf %535, %537 : vector<1x16x4xf32>
      %cst_170 = arith.constant 0.000000e+00 : f32
      %539 = vector.broadcast %cst_170 : f32 to vector<1x16x4xf32>
      %540 = arith.maximumf %538, %539 : vector<1x16x4xf32>
      %cst_171 = arith.constant 0.000000e+00 : f32
      %541 = vector.broadcast %cst_171 : f32 to vector<1x1x4xf32>
      %542 = tpu.concatenate %541, %540, %541 in 1 : vector<1x1x4xf32>, vector<1x16x4xf32>, vector<1x1x4xf32> -> vector<1x18x4xf32>
      %c0_172 = arith.constant 0 : index
      %c0_173 = arith.constant 0 : index
      %c0_174 = arith.constant 0 : index
      %543 = vector.load %arg12[%c0_172, %c0_173, %c0_174] : memref<10x18x4xf32, #tpu.memory_space<vmem>>, vector<1x18x4xf32>
      tpu.vector_store %arg12[%c0_172, %c0_173, %c0_174], %542 {strides = array<i32>} : memref<10x18x4xf32, #tpu.memory_space<vmem>>, vector<1x18x4xf32>,
    } else {
    }
    %c1_i32 = arith.constant 1 : i32
    %21 = arith.cmpi slt, %arg1, %c1_i32 : i32
    %22 = arith.extui %21 : i1 to i32
    %c0_i32_17 = arith.constant 0 : i32
    %23 = arith.cmpi ne, %22, %c0_i32_17 : i32
    scf.if %23 {
      %c0_166 = arith.constant 0 : index
      %c0_167 = arith.constant 0 : index
      %c0_168 = arith.constant 0 : index
      %c0_169 = arith.constant 0 : index
      %531 = vector.load %arg4[%c0_166, %c0_167, %c0_168, %c0_169] : memref<1x1x16x4xf32, #tpu.memory_space<vmem>>, vector<1x1x16x4xf32>
      %532 = vector.shape_cast %531 : vector<1x1x16x4xf32> to vector<1x16x4xf32>
      %533 = vector.shape_cast %0 : vector<1x4xf32> to vector<1x1x4xf32>
      %534 = vector.broadcast %533 : vector<1x1x4xf32> to vector<1x16x4xf32>
      %535 = arith.mulf %532, %534 : vector<1x16x4xf32>
      %536 = vector.shape_cast %1 : vector<1x4xf32> to vector<1x1x4xf32>
      %537 = vector.broadcast %536 : vector<1x1x4xf32> to vector<1x16x4xf32>
      %538 = arith.addf %535, %537 : vector<1x16x4xf32>
      %cst_170 = arith.constant 0.000000e+00 : f32
      %539 = vector.broadcast %cst_170 : f32 to vector<1x16x4xf32>
      %540 = arith.maximumf %538, %539 : vector<1x16x4xf32>
      %cst_171 = arith.constant 0.000000e+00 : f32
      %541 = vector.broadcast %cst_171 : f32 to vector<1x1x4xf32>
      %542 = tpu.concatenate %541, %540, %541 in 1 : vector<1x1x4xf32>, vector<1x16x4xf32>, vector<1x1x4xf32> -> vector<1x18x4xf32>
      %c9_172 = arith.constant 9 : index
      %c0_173 = arith.constant 0 : index
      %c0_174 = arith.constant 0 : index
      %543 = vector.load %arg12[%c9_172, %c0_173, %c0_174] : memref<10x18x4xf32, #tpu.memory_space<vmem>>, vector<1x18x4xf32>
      tpu.vector_store %arg12[%c9_172, %c0_173, %c0_174], %542 {strides = array<i32>} : memref<10x18x4xf32, #tpu.memory_space<vmem>>, vector<1x18x4xf32>,
    } else {
    }
    %c0_18 = arith.constant 0 : index
    %c0_19 = arith.constant 0 : index
    %c0_20 = arith.constant 0 : index
    %c0_21 = arith.constant 0 : index
    %24 = vector.load %arg7[%c0_18, %c0_19, %c0_20, %c0_21] : memref<3x3x4x4xf32, #tpu.memory_space<vmem>>, vector<3x3x4x4xf32>
    %c0_22 = arith.constant 0 : index
    %c0_23 = arith.constant 0 : index
    %25 = vector.load %arg8[%c0_22, %c0_23] : memref<1x4xf32, #tpu.memory_space<vmem>>, vector<1x4xf32>
    %c0_24 = arith.constant 0 : index
    %c0_25 = arith.constant 0 : index
    %c0_26 = arith.constant 0 : index
    %26 = vector.load %arg12[%c0_24, %c0_25, %c0_26] : memref<10x18x4xf32, #tpu.memory_space<vmem>>, vector<3x18x4xf32>
    %cst_27 = arith.constant 0.000000e+00 : f32
    %27 = vector.broadcast %cst_27 : f32 to vector<16x4xf32>
    %28 = vector.extract_strided_slice %26 {offsets = [0, 0, 0], sizes = [1, 16, 4], strides = [1, 1, 1]} : vector<3x18x4xf32> to vector<1x16x4xf32>
    %29 = vector.shape_cast %28 : vector<1x16x4xf32> to vector<16x4xf32>
    %30 = vector.extract_strided_slice %24 {offsets = [0, 0, 0, 0], sizes = [1, 1, 4, 4], strides = [1, 1, 1, 1]} : vector<3x3x4x4xf32> to vector<1x1x4x4xf32>
    %31 = vector.shape_cast %30 : vector<1x1x4x4xf32> to vector<4x4xf32>
    %cst_28 = arith.constant dense<0.000000e+00> : vector<16x4xf32>
    %32 = tpu.matmul %29, %31, %cst_28 {dimension_numbers = #tpu.dot_dimension_numbers<[1], [0], [0], [1], [0, 0, 1, 1], [], []>} : vector<16x4xf32>, vector<4x4xf32>, vector<16x4xf32> -> vector<16x4xf32>
    %33 = arith.addf %27, %32 : vector<16x4xf32>
    %34 = vector.extract_strided_slice %26 {offsets = [0, 1, 0], sizes = [1, 16, 4], strides = [1, 1, 1]} : vector<3x18x4xf32> to vector<1x16x4xf32>
    %35 = vector.shape_cast %34 : vector<1x16x4xf32> to vector<16x4xf32>
    %36 = vector.extract_strided_slice %24 {offsets = [0, 1, 0, 0], sizes = [1, 1, 4, 4], strides = [1, 1, 1, 1]} : vector<3x3x4x4xf32> to vector<1x1x4x4xf32>
    %37 = vector.shape_cast %36 : vector<1x1x4x4xf32> to vector<4x4xf32>
    %cst_29 = arith.constant dense<0.000000e+00> : vector<16x4xf32>
    %38 = tpu.matmul %35, %37, %cst_29 {dimension_numbers = #tpu.dot_dimension_numbers<[1], [0], [0], [1], [0, 0, 1, 1], [], []>} : vector<16x4xf32>, vector<4x4xf32>, vector<16x4xf32> -> vector<16x4xf32>
    %39 = arith.addf %33, %38 : vector<16x4xf32>
    %40 = vector.extract_strided_slice %26 {offsets = [0, 2, 0], sizes = [1, 16, 4], strides = [1, 1, 1]} : vector<3x18x4xf32> to vector<1x16x4xf32>
    %41 = vector.shape_cast %40 : vector<1x16x4xf32> to vector<16x4xf32>
    %42 = vector.extract_strided_slice %24 {offsets = [0, 2, 0, 0], sizes = [1, 1, 4, 4], strides = [1, 1, 1, 1]} : vector<3x3x4x4xf32> to vector<1x1x4x4xf32>
    %43 = vector.shape_cast %42 : vector<1x1x4x4xf32> to vector<4x4xf32>
    %cst_30 = arith.constant dense<0.000000e+00> : vector<16x4xf32>
    %44 = tpu.matmul %41, %43, %cst_30 {dimension_numbers = #tpu.dot_dimension_numbers<[1], [0], [0], [1], [0, 0, 1, 1], [], []>} : vector<16x4xf32>, vector<4x4xf32>, vector<16x4xf32> -> vector<16x4xf32>
    %45 = arith.addf %39, %44 : vector<16x4xf32>
    %46 = vector.extract_strided_slice %26 {offsets = [1, 0, 0], sizes = [1, 16, 4], strides = [1, 1, 1]} : vector<3x18x4xf32> to vector<1x16x4xf32>
    %47 = vector.shape_cast %46 : vector<1x16x4xf32> to vector<16x4xf32>
    %48 = vector.extract_strided_slice %24 {offsets = [1, 0, 0, 0], sizes = [1, 1, 4, 4], strides = [1, 1, 1, 1]} : vector<3x3x4x4xf32> to vector<1x1x4x4xf32>
    %49 = vector.shape_cast %48 : vector<1x1x4x4xf32> to vector<4x4xf32>
    %cst_31 = arith.constant dense<0.000000e+00> : vector<16x4xf32>
    %50 = tpu.matmul %47, %49, %cst_31 {dimension_numbers = #tpu.dot_dimension_numbers<[1], [0], [0], [1], [0, 0, 1, 1], [], []>} : vector<16x4xf32>, vector<4x4xf32>, vector<16x4xf32> -> vector<16x4xf32>
    %51 = arith.addf %45, %50 : vector<16x4xf32>
    %52 = vector.extract_strided_slice %26 {offsets = [1, 1, 0], sizes = [1, 16, 4], strides = [1, 1, 1]} : vector<3x18x4xf32> to vector<1x16x4xf32>
    %53 = vector.shape_cast %52 : vector<1x16x4xf32> to vector<16x4xf32>
    %54 = vector.extract_strided_slice %24 {offsets = [1, 1, 0, 0], sizes = [1, 1, 4, 4], strides = [1, 1, 1, 1]} : vector<3x3x4x4xf32> to vector<1x1x4x4xf32>
    %55 = vector.shape_cast %54 : vector<1x1x4x4xf32> to vector<4x4xf32>
    %cst_32 = arith.constant dense<0.000000e+00> : vector<16x4xf32>
    %56 = tpu.matmul %53, %55, %cst_32 {dimension_numbers = #tpu.dot_dimension_numbers<[1], [0], [0], [1], [0, 0, 1, 1], [], []>} : vector<16x4xf32>, vector<4x4xf32>, vector<16x4xf32> -> vector<16x4xf32>
    %57 = arith.addf %51, %56 : vector<16x4xf32>
    %58 = vector.extract_strided_slice %26 {offsets = [1, 2, 0], sizes = [1, 16, 4], strides = [1, 1, 1]} : vector<3x18x4xf32> to vector<1x16x4xf32>
    %59 = vector.shape_cast %58 : vector<1x16x4xf32> to vector<16x4xf32>
    %60 = vector.extract_strided_slice %24 {offsets = [1, 2, 0, 0], sizes = [1, 1, 4, 4], strides = [1, 1, 1, 1]} : vector<3x3x4x4xf32> to vector<1x1x4x4xf32>
    %61 = vector.shape_cast %60 : vector<1x1x4x4xf32> to vector<4x4xf32>
    %cst_33 = arith.constant dense<0.000000e+00> : vector<16x4xf32>
    %62 = tpu.matmul %59, %61, %cst_33 {dimension_numbers = #tpu.dot_dimension_numbers<[1], [0], [0], [1], [0, 0, 1, 1], [], []>} : vector<16x4xf32>, vector<4x4xf32>, vector<16x4xf32> -> vector<16x4xf32>
    %63 = arith.addf %57, %62 : vector<16x4xf32>
    %64 = vector.extract_strided_slice %26 {offsets = [2, 0, 0], sizes = [1, 16, 4], strides = [1, 1, 1]} : vector<3x18x4xf32> to vector<1x16x4xf32>
    %65 = vector.shape_cast %64 : vector<1x16x4xf32> to vector<16x4xf32>
    %66 = vector.extract_strided_slice %24 {offsets = [2, 0, 0, 0], sizes = [1, 1, 4, 4], strides = [1, 1, 1, 1]} : vector<3x3x4x4xf32> to vector<1x1x4x4xf32>
    %67 = vector.shape_cast %66 : vector<1x1x4x4xf32> to vector<4x4xf32>
    %cst_34 = arith.constant dense<0.000000e+00> : vector<16x4xf32>
    %68 = tpu.matmul %65, %67, %cst_34 {dimension_numbers = #tpu.dot_dimension_numbers<[1], [0], [0], [1], [0, 0, 1, 1], [], []>} : vector<16x4xf32>, vector<4x4xf32>, vector<16x4xf32> -> vector<16x4xf32>
    %69 = arith.addf %63, %68 : vector<16x4xf32>
    %70 = vector.extract_strided_slice %26 {offsets = [2, 1, 0], sizes = [1, 16, 4], strides = [1, 1, 1]} : vector<3x18x4xf32> to vector<1x16x4xf32>
    %71 = vector.shape_cast %70 : vector<1x16x4xf32> to vector<16x4xf32>
    %72 = vector.extract_strided_slice %24 {offsets = [2, 1, 0, 0], sizes = [1, 1, 4, 4], strides = [1, 1, 1, 1]} : vector<3x3x4x4xf32> to vector<1x1x4x4xf32>
    %73 = vector.shape_cast %72 : vector<1x1x4x4xf32> to vector<4x4xf32>
    %cst_35 = arith.constant dense<0.000000e+00> : vector<16x4xf32>
    %74 = tpu.matmul %71, %73, %cst_35 {dimension_numbers = #tpu.dot_dimension_numbers<[1], [0], [0], [1], [0, 0, 1, 1], [], []>} : vector<16x4xf32>, vector<4x4xf32>, vector<16x4xf32> -> vector<16x4xf32>
    %75 = arith.addf %69, %74 : vector<16x4xf32>
    %76 = vector.extract_strided_slice %26 {offsets = [2, 2, 0], sizes = [1, 16, 4], strides = [1, 1, 1]} : vector<3x18x4xf32> to vector<1x16x4xf32>
    %77 = vector.shape_cast %76 : vector<1x16x4xf32> to vector<16x4xf32>
    %78 = vector.extract_strided_slice %24 {offsets = [2, 2, 0, 0], sizes = [1, 1, 4, 4], strides = [1, 1, 1, 1]} : vector<3x3x4x4xf32> to vector<1x1x4x4xf32>
    %79 = vector.shape_cast %78 : vector<1x1x4x4xf32> to vector<4x4xf32>
    %cst_36 = arith.constant dense<0.000000e+00> : vector<16x4xf32>
    %80 = tpu.matmul %77, %79, %cst_36 {dimension_numbers = #tpu.dot_dimension_numbers<[1], [0], [0], [1], [0, 0, 1, 1], [], []>} : vector<16x4xf32>, vector<4x4xf32>, vector<16x4xf32> -> vector<16x4xf32>
    %81 = arith.addf %75, %80 : vector<16x4xf32>
    %82 = vector.broadcast %25 : vector<1x4xf32> to vector<16x4xf32>
    %83 = arith.addf %81, %82 : vector<16x4xf32>
    %c0_37 = arith.constant 0 : index
    %c0_38 = arith.constant 0 : index
    %c0_39 = arith.constant 0 : index
    %c0_40 = arith.constant 0 : index
    %84 = vector.load %arg9[%c0_37, %c0_38, %c0_39, %c0_40] : memref<1x8x16x4xf32, #tpu.memory_space<vmem>>, vector<1x1x16x4xf32>
    %85 = vector.shape_cast %84 : vector<1x1x16x4xf32> to vector<16x4xf32>
    %86 = vector.shape_cast %83 : vector<16x4xf32> to vector<1x1x16x4xf32>
    tpu.vector_store %arg9[%c0_37, %c0_38, %c0_39, %c0_40], %86 {strides = array<i32>} : memref<1x8x16x4xf32, #tpu.memory_space<vmem>>, vector<1x1x16x4xf32>,
    %c1_41 = arith.constant 1 : index
    %c0_42 = arith.constant 0 : index
    %c0_43 = arith.constant 0 : index
    %87 = vector.load %arg12[%c1_41, %c0_42, %c0_43] : memref<10x18x4xf32, #tpu.memory_space<vmem>>, vector<3x18x4xf32>
    %cst_44 = arith.constant 0.000000e+00 : f32
    %88 = vector.broadcast %cst_44 : f32 to vector<16x4xf32>
    %89 = vector.extract_strided_slice %87 {offsets = [0, 0, 0], sizes = [1, 16, 4], strides = [1, 1, 1]} : vector<3x18x4xf32> to vector<1x16x4xf32>
    %90 = vector.shape_cast %89 : vector<1x16x4xf32> to vector<16x4xf32>
    %91 = vector.extract_strided_slice %24 {offsets = [0, 0, 0, 0], sizes = [1, 1, 4, 4], strides = [1, 1, 1, 1]} : vector<3x3x4x4xf32> to vector<1x1x4x4xf32>
    %92 = vector.shape_cast %91 : vector<1x1x4x4xf32> to vector<4x4xf32>
    %cst_45 = arith.constant dense<0.000000e+00> : vector<16x4xf32>
    %93 = tpu.matmul %90, %92, %cst_45 {dimension_numbers = #tpu.dot_dimension_numbers<[1], [0], [0], [1], [0, 0, 1, 1], [], []>} : vector<16x4xf32>, vector<4x4xf32>, vector<16x4xf32> -> vector<16x4xf32>
    %94 = arith.addf %88, %93 : vector<16x4xf32>
    %95 = vector.extract_strided_slice %87 {offsets = [0, 1, 0], sizes = [1, 16, 4], strides = [1, 1, 1]} : vector<3x18x4xf32> to vector<1x16x4xf32>
    %96 = vector.shape_cast %95 : vector<1x16x4xf32> to vector<16x4xf32>
    %97 = vector.extract_strided_slice %24 {offsets = [0, 1, 0, 0], sizes = [1, 1, 4, 4], strides = [1, 1, 1, 1]} : vector<3x3x4x4xf32> to vector<1x1x4x4xf32>
    %98 = vector.shape_cast %97 : vector<1x1x4x4xf32> to vector<4x4xf32>
    %cst_46 = arith.constant dense<0.000000e+00> : vector<16x4xf32>
    %99 = tpu.matmul %96, %98, %cst_46 {dimension_numbers = #tpu.dot_dimension_numbers<[1], [0], [0], [1], [0, 0, 1, 1], [], []>} : vector<16x4xf32>, vector<4x4xf32>, vector<16x4xf32> -> vector<16x4xf32>
    %100 = arith.addf %94, %99 : vector<16x4xf32>
    %101 = vector.extract_strided_slice %87 {offsets = [0, 2, 0], sizes = [1, 16, 4], strides = [1, 1, 1]} : vector<3x18x4xf32> to vector<1x16x4xf32>
    %102 = vector.shape_cast %101 : vector<1x16x4xf32> to vector<16x4xf32>
    %103 = vector.extract_strided_slice %24 {offsets = [0, 2, 0, 0], sizes = [1, 1, 4, 4], strides = [1, 1, 1, 1]} : vector<3x3x4x4xf32> to vector<1x1x4x4xf32>
    %104 = vector.shape_cast %103 : vector<1x1x4x4xf32> to vector<4x4xf32>
    %cst_47 = arith.constant dense<0.000000e+00> : vector<16x4xf32>
    %105 = tpu.matmul %102, %104, %cst_47 {dimension_numbers = #tpu.dot_dimension_numbers<[1], [0], [0], [1], [0, 0, 1, 1], [], []>} : vector<16x4xf32>, vector<4x4xf32>, vector<16x4xf32> -> vector<16x4xf32>
    %106 = arith.addf %100, %105 : vector<16x4xf32>
    %107 = vector.extract_strided_slice %87 {offsets = [1, 0, 0], sizes = [1, 16, 4], strides = [1, 1, 1]} : vector<3x18x4xf32> to vector<1x16x4xf32>
    %108 = vector.shape_cast %107 : vector<1x16x4xf32> to vector<16x4xf32>
    %109 = vector.extract_strided_slice %24 {offsets = [1, 0, 0, 0], sizes = [1, 1, 4, 4], strides = [1, 1, 1, 1]} : vector<3x3x4x4xf32> to vector<1x1x4x4xf32>
    %110 = vector.shape_cast %109 : vector<1x1x4x4xf32> to vector<4x4xf32>
    %cst_48 = arith.constant dense<0.000000e+00> : vector<16x4xf32>
    %111 = tpu.matmul %108, %110, %cst_48 {dimension_numbers = #tpu.dot_dimension_numbers<[1], [0], [0], [1], [0, 0, 1, 1], [], []>} : vector<16x4xf32>, vector<4x4xf32>, vector<16x4xf32> -> vector<16x4xf32>
    %112 = arith.addf %106, %111 : vector<16x4xf32>
    %113 = vector.extract_strided_slice %87 {offsets = [1, 1, 0], sizes = [1, 16, 4], strides = [1, 1, 1]} : vector<3x18x4xf32> to vector<1x16x4xf32>
    %114 = vector.shape_cast %113 : vector<1x16x4xf32> to vector<16x4xf32>
    %115 = vector.extract_strided_slice %24 {offsets = [1, 1, 0, 0], sizes = [1, 1, 4, 4], strides = [1, 1, 1, 1]} : vector<3x3x4x4xf32> to vector<1x1x4x4xf32>
    %116 = vector.shape_cast %115 : vector<1x1x4x4xf32> to vector<4x4xf32>
    %cst_49 = arith.constant dense<0.000000e+00> : vector<16x4xf32>
    %117 = tpu.matmul %114, %116, %cst_49 {dimension_numbers = #tpu.dot_dimension_numbers<[1], [0], [0], [1], [0, 0, 1, 1], [], []>} : vector<16x4xf32>, vector<4x4xf32>, vector<16x4xf32> -> vector<16x4xf32>
    %118 = arith.addf %112, %117 : vector<16x4xf32>
    %119 = vector.extract_strided_slice %87 {offsets = [1, 2, 0], sizes = [1, 16, 4], strides = [1, 1, 1]} : vector<3x18x4xf32> to vector<1x16x4xf32>
    %120 = vector.shape_cast %119 : vector<1x16x4xf32> to vector<16x4xf32>
    %121 = vector.extract_strided_slice %24 {offsets = [1, 2, 0, 0], sizes = [1, 1, 4, 4], strides = [1, 1, 1, 1]} : vector<3x3x4x4xf32> to vector<1x1x4x4xf32>
    %122 = vector.shape_cast %121 : vector<1x1x4x4xf32> to vector<4x4xf32>
    %cst_50 = arith.constant dense<0.000000e+00> : vector<16x4xf32>
    %123 = tpu.matmul %120, %122, %cst_50 {dimension_numbers = #tpu.dot_dimension_numbers<[1], [0], [0], [1], [0, 0, 1, 1], [], []>} : vector<16x4xf32>, vector<4x4xf32>, vector<16x4xf32> -> vector<16x4xf32>
    %124 = arith.addf %118, %123 : vector<16x4xf32>
    %125 = vector.extract_strided_slice %87 {offsets = [2, 0, 0], sizes = [1, 16, 4], strides = [1, 1, 1]} : vector<3x18x4xf32> to vector<1x16x4xf32>
    %126 = vector.shape_cast %125 : vector<1x16x4xf32> to vector<16x4xf32>
    %127 = vector.extract_strided_slice %24 {offsets = [2, 0, 0, 0], sizes = [1, 1, 4, 4], strides = [1, 1, 1, 1]} : vector<3x3x4x4xf32> to vector<1x1x4x4xf32>
    %128 = vector.shape_cast %127 : vector<1x1x4x4xf32> to vector<4x4xf32>
    %cst_51 = arith.constant dense<0.000000e+00> : vector<16x4xf32>
    %129 = tpu.matmul %126, %128, %cst_51 {dimension_numbers = #tpu.dot_dimension_numbers<[1], [0], [0], [1], [0, 0, 1, 1], [], []>} : vector<16x4xf32>, vector<4x4xf32>, vector<16x4xf32> -> vector<16x4xf32>
    %130 = arith.addf %124, %129 : vector<16x4xf32>
    %131 = vector.extract_strided_slice %87 {offsets = [2, 1, 0], sizes = [1, 16, 4], strides = [1, 1, 1]} : vector<3x18x4xf32> to vector<1x16x4xf32>
    %132 = vector.shape_cast %131 : vector<1x16x4xf32> to vector<16x4xf32>
    %133 = vector.extract_strided_slice %24 {offsets = [2, 1, 0, 0], sizes = [1, 1, 4, 4], strides = [1, 1, 1, 1]} : vector<3x3x4x4xf32> to vector<1x1x4x4xf32>
    %134 = vector.shape_cast %133 : vector<1x1x4x4xf32> to vector<4x4xf32>
    %cst_52 = arith.constant dense<0.000000e+00> : vector<16x4xf32>
    %135 = tpu.matmul %132, %134, %cst_52 {dimension_numbers = #tpu.dot_dimension_numbers<[1], [0], [0], [1], [0, 0, 1, 1], [], []>} : vector<16x4xf32>, vector<4x4xf32>, vector<16x4xf32> -> vector<16x4xf32>
    %136 = arith.addf %130, %135 : vector<16x4xf32>
    %137 = vector.extract_strided_slice %87 {offsets = [2, 2, 0], sizes = [1, 16, 4], strides = [1, 1, 1]} : vector<3x18x4xf32> to vector<1x16x4xf32>
    %138 = vector.shape_cast %137 : vector<1x16x4xf32> to vector<16x4xf32>
    %139 = vector.extract_strided_slice %24 {offsets = [2, 2, 0, 0], sizes = [1, 1, 4, 4], strides = [1, 1, 1, 1]} : vector<3x3x4x4xf32> to vector<1x1x4x4xf32>
    %140 = vector.shape_cast %139 : vector<1x1x4x4xf32> to vector<4x4xf32>
    %cst_53 = arith.constant dense<0.000000e+00> : vector<16x4xf32>
    %141 = tpu.matmul %138, %140, %cst_53 {dimension_numbers = #tpu.dot_dimension_numbers<[1], [0], [0], [1], [0, 0, 1, 1], [], []>} : vector<16x4xf32>, vector<4x4xf32>, vector<16x4xf32> -> vector<16x4xf32>
    %142 = arith.addf %136, %141 : vector<16x4xf32>
    %143 = vector.broadcast %25 : vector<1x4xf32> to vector<16x4xf32>
    %144 = arith.addf %142, %143 : vector<16x4xf32>
    %c0_54 = arith.constant 0 : index
    %c1_55 = arith.constant 1 : index
    %c0_56 = arith.constant 0 : index
    %c0_57 = arith.constant 0 : index
    %145 = vector.load %arg9[%c0_54, %c1_55, %c0_56, %c0_57] : memref<1x8x16x4xf32, #tpu.memory_space<vmem>>, vector<1x1x16x4xf32>
    %146 = vector.shape_cast %145 : vector<1x1x16x4xf32> to vector<16x4xf32>
    %147 = vector.shape_cast %144 : vector<16x4xf32> to vector<1x1x16x4xf32>
    tpu.vector_store %arg9[%c0_54, %c1_55, %c0_56, %c0_57], %147 {strides = array<i32>} : memref<1x8x16x4xf32, #tpu.memory_space<vmem>>, vector<1x1x16x4xf32>,
    %c2 = arith.constant 2 : index
    %c0_58 = arith.constant 0 : index
    %c0_59 = arith.constant 0 : index
    %148 = vector.load %arg12[%c2, %c0_58, %c0_59] : memref<10x18x4xf32, #tpu.memory_space<vmem>>, vector<3x18x4xf32>
    %cst_60 = arith.constant 0.000000e+00 : f32
    %149 = vector.broadcast %cst_60 : f32 to vector<16x4xf32>
    %150 = vector.extract_strided_slice %148 {offsets = [0, 0, 0], sizes = [1, 16, 4], strides = [1, 1, 1]} : vector<3x18x4xf32> to vector<1x16x4xf32>
    %151 = vector.shape_cast %150 : vector<1x16x4xf32> to vector<16x4xf32>
    %152 = vector.extract_strided_slice %24 {offsets = [0, 0, 0, 0], sizes = [1, 1, 4, 4], strides = [1, 1, 1, 1]} : vector<3x3x4x4xf32> to vector<1x1x4x4xf32>
    %153 = vector.shape_cast %152 : vector<1x1x4x4xf32> to vector<4x4xf32>
    %cst_61 = arith.constant dense<0.000000e+00> : vector<16x4xf32>
    %154 = tpu.matmul %151, %153, %cst_61 {dimension_numbers = #tpu.dot_dimension_numbers<[1], [0], [0], [1], [0, 0, 1, 1], [], []>} : vector<16x4xf32>, vector<4x4xf32>, vector<16x4xf32> -> vector<16x4xf32>
    %155 = arith.addf %149, %154 : vector<16x4xf32>
    %156 = vector.extract_strided_slice %148 {offsets = [0, 1, 0], sizes = [1, 16, 4], strides = [1, 1, 1]} : vector<3x18x4xf32> to vector<1x16x4xf32>
    %157 = vector.shape_cast %156 : vector<1x16x4xf32> to vector<16x4xf32>
    %158 = vector.extract_strided_slice %24 {offsets = [0, 1, 0, 0], sizes = [1, 1, 4, 4], strides = [1, 1, 1, 1]} : vector<3x3x4x4xf32> to vector<1x1x4x4xf32>
    %159 = vector.shape_cast %158 : vector<1x1x4x4xf32> to vector<4x4xf32>
    %cst_62 = arith.constant dense<0.000000e+00> : vector<16x4xf32>
    %160 = tpu.matmul %157, %159, %cst_62 {dimension_numbers = #tpu.dot_dimension_numbers<[1], [0], [0], [1], [0, 0, 1, 1], [], []>} : vector<16x4xf32>, vector<4x4xf32>, vector<16x4xf32> -> vector<16x4xf32>
    %161 = arith.addf %155, %160 : vector<16x4xf32>
    %162 = vector.extract_strided_slice %148 {offsets = [0, 2, 0], sizes = [1, 16, 4], strides = [1, 1, 1]} : vector<3x18x4xf32> to vector<1x16x4xf32>
    %163 = vector.shape_cast %162 : vector<1x16x4xf32> to vector<16x4xf32>
    %164 = vector.extract_strided_slice %24 {offsets = [0, 2, 0, 0], sizes = [1, 1, 4, 4], strides = [1, 1, 1, 1]} : vector<3x3x4x4xf32> to vector<1x1x4x4xf32>
    %165 = vector.shape_cast %164 : vector<1x1x4x4xf32> to vector<4x4xf32>
    %cst_63 = arith.constant dense<0.000000e+00> : vector<16x4xf32>
    %166 = tpu.matmul %163, %165, %cst_63 {dimension_numbers = #tpu.dot_dimension_numbers<[1], [0], [0], [1], [0, 0, 1, 1], [], []>} : vector<16x4xf32>, vector<4x4xf32>, vector<16x4xf32> -> vector<16x4xf32>
    %167 = arith.addf %161, %166 : vector<16x4xf32>
    %168 = vector.extract_strided_slice %148 {offsets = [1, 0, 0], sizes = [1, 16, 4], strides = [1, 1, 1]} : vector<3x18x4xf32> to vector<1x16x4xf32>
    %169 = vector.shape_cast %168 : vector<1x16x4xf32> to vector<16x4xf32>
    %170 = vector.extract_strided_slice %24 {offsets = [1, 0, 0, 0], sizes = [1, 1, 4, 4], strides = [1, 1, 1, 1]} : vector<3x3x4x4xf32> to vector<1x1x4x4xf32>
    %171 = vector.shape_cast %170 : vector<1x1x4x4xf32> to vector<4x4xf32>
    %cst_64 = arith.constant dense<0.000000e+00> : vector<16x4xf32>
    %172 = tpu.matmul %169, %171, %cst_64 {dimension_numbers = #tpu.dot_dimension_numbers<[1], [0], [0], [1], [0, 0, 1, 1], [], []>} : vector<16x4xf32>, vector<4x4xf32>, vector<16x4xf32> -> vector<16x4xf32>
    %173 = arith.addf %167, %172 : vector<16x4xf32>
    %174 = vector.extract_strided_slice %148 {offsets = [1, 1, 0], sizes = [1, 16, 4], strides = [1, 1, 1]} : vector<3x18x4xf32> to vector<1x16x4xf32>
    %175 = vector.shape_cast %174 : vector<1x16x4xf32> to vector<16x4xf32>
    %176 = vector.extract_strided_slice %24 {offsets = [1, 1, 0, 0], sizes = [1, 1, 4, 4], strides = [1, 1, 1, 1]} : vector<3x3x4x4xf32> to vector<1x1x4x4xf32>
    %177 = vector.shape_cast %176 : vector<1x1x4x4xf32> to vector<4x4xf32>
    %cst_65 = arith.constant dense<0.000000e+00> : vector<16x4xf32>
    %178 = tpu.matmul %175, %177, %cst_65 {dimension_numbers = #tpu.dot_dimension_numbers<[1], [0], [0], [1], [0, 0, 1, 1], [], []>} : vector<16x4xf32>, vector<4x4xf32>, vector<16x4xf32> -> vector<16x4xf32>
    %179 = arith.addf %173, %178 : vector<16x4xf32>
    %180 = vector.extract_strided_slice %148 {offsets = [1, 2, 0], sizes = [1, 16, 4], strides = [1, 1, 1]} : vector<3x18x4xf32> to vector<1x16x4xf32>
    %181 = vector.shape_cast %180 : vector<1x16x4xf32> to vector<16x4xf32>
    %182 = vector.extract_strided_slice %24 {offsets = [1, 2, 0, 0], sizes = [1, 1, 4, 4], strides = [1, 1, 1, 1]} : vector<3x3x4x4xf32> to vector<1x1x4x4xf32>
    %183 = vector.shape_cast %182 : vector<1x1x4x4xf32> to vector<4x4xf32>
    %cst_66 = arith.constant dense<0.000000e+00> : vector<16x4xf32>
    %184 = tpu.matmul %181, %183, %cst_66 {dimension_numbers = #tpu.dot_dimension_numbers<[1], [0], [0], [1], [0, 0, 1, 1], [], []>} : vector<16x4xf32>, vector<4x4xf32>, vector<16x4xf32> -> vector<16x4xf32>
    %185 = arith.addf %179, %184 : vector<16x4xf32>
    %186 = vector.extract_strided_slice %148 {offsets = [2, 0, 0], sizes = [1, 16, 4], strides = [1, 1, 1]} : vector<3x18x4xf32> to vector<1x16x4xf32>
    %187 = vector.shape_cast %186 : vector<1x16x4xf32> to vector<16x4xf32>
    %188 = vector.extract_strided_slice %24 {offsets = [2, 0, 0, 0], sizes = [1, 1, 4, 4], strides = [1, 1, 1, 1]} : vector<3x3x4x4xf32> to vector<1x1x4x4xf32>
    %189 = vector.shape_cast %188 : vector<1x1x4x4xf32> to vector<4x4xf32>
    %cst_67 = arith.constant dense<0.000000e+00> : vector<16x4xf32>
    %190 = tpu.matmul %187, %189, %cst_67 {dimension_numbers = #tpu.dot_dimension_numbers<[1], [0], [0], [1], [0, 0, 1, 1], [], []>} : vector<16x4xf32>, vector<4x4xf32>, vector<16x4xf32> -> vector<16x4xf32>
    %191 = arith.addf %185, %190 : vector<16x4xf32>
    %192 = vector.extract_strided_slice %148 {offsets = [2, 1, 0], sizes = [1, 16, 4], strides = [1, 1, 1]} : vector<3x18x4xf32> to vector<1x16x4xf32>
    %193 = vector.shape_cast %192 : vector<1x16x4xf32> to vector<16x4xf32>
    %194 = vector.extract_strided_slice %24 {offsets = [2, 1, 0, 0], sizes = [1, 1, 4, 4], strides = [1, 1, 1, 1]} : vector<3x3x4x4xf32> to vector<1x1x4x4xf32>
    %195 = vector.shape_cast %194 : vector<1x1x4x4xf32> to vector<4x4xf32>
    %cst_68 = arith.constant dense<0.000000e+00> : vector<16x4xf32>
    %196 = tpu.matmul %193, %195, %cst_68 {dimension_numbers = #tpu.dot_dimension_numbers<[1], [0], [0], [1], [0, 0, 1, 1], [], []>} : vector<16x4xf32>, vector<4x4xf32>, vector<16x4xf32> -> vector<16x4xf32>
    %197 = arith.addf %191, %196 : vector<16x4xf32>
    %198 = vector.extract_strided_slice %148 {offsets = [2, 2, 0], sizes = [1, 16, 4], strides = [1, 1, 1]} : vector<3x18x4xf32> to vector<1x16x4xf32>
    %199 = vector.shape_cast %198 : vector<1x16x4xf32> to vector<16x4xf32>
    %200 = vector.extract_strided_slice %24 {offsets = [2, 2, 0, 0], sizes = [1, 1, 4, 4], strides = [1, 1, 1, 1]} : vector<3x3x4x4xf32> to vector<1x1x4x4xf32>
    %201 = vector.shape_cast %200 : vector<1x1x4x4xf32> to vector<4x4xf32>
    %cst_69 = arith.constant dense<0.000000e+00> : vector<16x4xf32>
    %202 = tpu.matmul %199, %201, %cst_69 {dimension_numbers = #tpu.dot_dimension_numbers<[1], [0], [0], [1], [0, 0, 1, 1], [], []>} : vector<16x4xf32>, vector<4x4xf32>, vector<16x4xf32> -> vector<16x4xf32>
    %203 = arith.addf %197, %202 : vector<16x4xf32>
    %204 = vector.broadcast %25 : vector<1x4xf32> to vector<16x4xf32>
    %205 = arith.addf %203, %204 : vector<16x4xf32>
    %c0_70 = arith.constant 0 : index
    %c2_71 = arith.constant 2 : index
    %c0_72 = arith.constant 0 : index
    %c0_73 = arith.constant 0 : index
    %206 = vector.load %arg9[%c0_70, %c2_71, %c0_72, %c0_73] : memref<1x8x16x4xf32, #tpu.memory_space<vmem>>, vector<1x1x16x4xf32>
    %207 = vector.shape_cast %206 : vector<1x1x16x4xf32> to vector<16x4xf32>
    %208 = vector.shape_cast %205 : vector<16x4xf32> to vector<1x1x16x4xf32>
    tpu.vector_store %arg9[%c0_70, %c2_71, %c0_72, %c0_73], %208 {strides = array<i32>} : memref<1x8x16x4xf32, #tpu.memory_space<vmem>>, vector<1x1x16x4xf32>,
    %c3 = arith.constant 3 : index
    %c0_74 = arith.constant 0 : index
    %c0_75 = arith.constant 0 : index
    %209 = vector.load %arg12[%c3, %c0_74, %c0_75] : memref<10x18x4xf32, #tpu.memory_space<vmem>>, vector<3x18x4xf32>
    %cst_76 = arith.constant 0.000000e+00 : f32
    %210 = vector.broadcast %cst_76 : f32 to vector<16x4xf32>
    %211 = vector.extract_strided_slice %209 {offsets = [0, 0, 0], sizes = [1, 16, 4], strides = [1, 1, 1]} : vector<3x18x4xf32> to vector<1x16x4xf32>
    %212 = vector.shape_cast %211 : vector<1x16x4xf32> to vector<16x4xf32>
    %213 = vector.extract_strided_slice %24 {offsets = [0, 0, 0, 0], sizes = [1, 1, 4, 4], strides = [1, 1, 1, 1]} : vector<3x3x4x4xf32> to vector<1x1x4x4xf32>
    %214 = vector.shape_cast %213 : vector<1x1x4x4xf32> to vector<4x4xf32>
    %cst_77 = arith.constant dense<0.000000e+00> : vector<16x4xf32>
    %215 = tpu.matmul %212, %214, %cst_77 {dimension_numbers = #tpu.dot_dimension_numbers<[1], [0], [0], [1], [0, 0, 1, 1], [], []>} : vector<16x4xf32>, vector<4x4xf32>, vector<16x4xf32> -> vector<16x4xf32>
    %216 = arith.addf %210, %215 : vector<16x4xf32>
    %217 = vector.extract_strided_slice %209 {offsets = [0, 1, 0], sizes = [1, 16, 4], strides = [1, 1, 1]} : vector<3x18x4xf32> to vector<1x16x4xf32>
    %218 = vector.shape_cast %217 : vector<1x16x4xf32> to vector<16x4xf32>
    %219 = vector.extract_strided_slice %24 {offsets = [0, 1, 0, 0], sizes = [1, 1, 4, 4], strides = [1, 1, 1, 1]} : vector<3x3x4x4xf32> to vector<1x1x4x4xf32>
    %220 = vector.shape_cast %219 : vector<1x1x4x4xf32> to vector<4x4xf32>
    %cst_78 = arith.constant dense<0.000000e+00> : vector<16x4xf32>
    %221 = tpu.matmul %218, %220, %cst_78 {dimension_numbers = #tpu.dot_dimension_numbers<[1], [0], [0], [1], [0, 0, 1, 1], [], []>} : vector<16x4xf32>, vector<4x4xf32>, vector<16x4xf32> -> vector<16x4xf32>
    %222 = arith.addf %216, %221 : vector<16x4xf32>
    %223 = vector.extract_strided_slice %209 {offsets = [0, 2, 0], sizes = [1, 16, 4], strides = [1, 1, 1]} : vector<3x18x4xf32> to vector<1x16x4xf32>
    %224 = vector.shape_cast %223 : vector<1x16x4xf32> to vector<16x4xf32>
    %225 = vector.extract_strided_slice %24 {offsets = [0, 2, 0, 0], sizes = [1, 1, 4, 4], strides = [1, 1, 1, 1]} : vector<3x3x4x4xf32> to vector<1x1x4x4xf32>
    %226 = vector.shape_cast %225 : vector<1x1x4x4xf32> to vector<4x4xf32>
    %cst_79 = arith.constant dense<0.000000e+00> : vector<16x4xf32>
    %227 = tpu.matmul %224, %226, %cst_79 {dimension_numbers = #tpu.dot_dimension_numbers<[1], [0], [0], [1], [0, 0, 1, 1], [], []>} : vector<16x4xf32>, vector<4x4xf32>, vector<16x4xf32> -> vector<16x4xf32>
    %228 = arith.addf %222, %227 : vector<16x4xf32>
    %229 = vector.extract_strided_slice %209 {offsets = [1, 0, 0], sizes = [1, 16, 4], strides = [1, 1, 1]} : vector<3x18x4xf32> to vector<1x16x4xf32>
    %230 = vector.shape_cast %229 : vector<1x16x4xf32> to vector<16x4xf32>
    %231 = vector.extract_strided_slice %24 {offsets = [1, 0, 0, 0], sizes = [1, 1, 4, 4], strides = [1, 1, 1, 1]} : vector<3x3x4x4xf32> to vector<1x1x4x4xf32>
    %232 = vector.shape_cast %231 : vector<1x1x4x4xf32> to vector<4x4xf32>
    %cst_80 = arith.constant dense<0.000000e+00> : vector<16x4xf32>
    %233 = tpu.matmul %230, %232, %cst_80 {dimension_numbers = #tpu.dot_dimension_numbers<[1], [0], [0], [1], [0, 0, 1, 1], [], []>} : vector<16x4xf32>, vector<4x4xf32>, vector<16x4xf32> -> vector<16x4xf32>
    %234 = arith.addf %228, %233 : vector<16x4xf32>
    %235 = vector.extract_strided_slice %209 {offsets = [1, 1, 0], sizes = [1, 16, 4], strides = [1, 1, 1]} : vector<3x18x4xf32> to vector<1x16x4xf32>
    %236 = vector.shape_cast %235 : vector<1x16x4xf32> to vector<16x4xf32>
    %237 = vector.extract_strided_slice %24 {offsets = [1, 1, 0, 0], sizes = [1, 1, 4, 4], strides = [1, 1, 1, 1]} : vector<3x3x4x4xf32> to vector<1x1x4x4xf32>
    %238 = vector.shape_cast %237 : vector<1x1x4x4xf32> to vector<4x4xf32>
    %cst_81 = arith.constant dense<0.000000e+00> : vector<16x4xf32>
    %239 = tpu.matmul %236, %238, %cst_81 {dimension_numbers = #tpu.dot_dimension_numbers<[1], [0], [0], [1], [0, 0, 1, 1], [], []>} : vector<16x4xf32>, vector<4x4xf32>, vector<16x4xf32> -> vector<16x4xf32>
    %240 = arith.addf %234, %239 : vector<16x4xf32>
    %241 = vector.extract_strided_slice %209 {offsets = [1, 2, 0], sizes = [1, 16, 4], strides = [1, 1, 1]} : vector<3x18x4xf32> to vector<1x16x4xf32>
    %242 = vector.shape_cast %241 : vector<1x16x4xf32> to vector<16x4xf32>
    %243 = vector.extract_strided_slice %24 {offsets = [1, 2, 0, 0], sizes = [1, 1, 4, 4], strides = [1, 1, 1, 1]} : vector<3x3x4x4xf32> to vector<1x1x4x4xf32>
    %244 = vector.shape_cast %243 : vector<1x1x4x4xf32> to vector<4x4xf32>
    %cst_82 = arith.constant dense<0.000000e+00> : vector<16x4xf32>
    %245 = tpu.matmul %242, %244, %cst_82 {dimension_numbers = #tpu.dot_dimension_numbers<[1], [0], [0], [1], [0, 0, 1, 1], [], []>} : vector<16x4xf32>, vector<4x4xf32>, vector<16x4xf32> -> vector<16x4xf32>
    %246 = arith.addf %240, %245 : vector<16x4xf32>
    %247 = vector.extract_strided_slice %209 {offsets = [2, 0, 0], sizes = [1, 16, 4], strides = [1, 1, 1]} : vector<3x18x4xf32> to vector<1x16x4xf32>
    %248 = vector.shape_cast %247 : vector<1x16x4xf32> to vector<16x4xf32>
    %249 = vector.extract_strided_slice %24 {offsets = [2, 0, 0, 0], sizes = [1, 1, 4, 4], strides = [1, 1, 1, 1]} : vector<3x3x4x4xf32> to vector<1x1x4x4xf32>
    %250 = vector.shape_cast %249 : vector<1x1x4x4xf32> to vector<4x4xf32>
    %cst_83 = arith.constant dense<0.000000e+00> : vector<16x4xf32>
    %251 = tpu.matmul %248, %250, %cst_83 {dimension_numbers = #tpu.dot_dimension_numbers<[1], [0], [0], [1], [0, 0, 1, 1], [], []>} : vector<16x4xf32>, vector<4x4xf32>, vector<16x4xf32> -> vector<16x4xf32>
    %252 = arith.addf %246, %251 : vector<16x4xf32>
    %253 = vector.extract_strided_slice %209 {offsets = [2, 1, 0], sizes = [1, 16, 4], strides = [1, 1, 1]} : vector<3x18x4xf32> to vector<1x16x4xf32>
    %254 = vector.shape_cast %253 : vector<1x16x4xf32> to vector<16x4xf32>
    %255 = vector.extract_strided_slice %24 {offsets = [2, 1, 0, 0], sizes = [1, 1, 4, 4], strides = [1, 1, 1, 1]} : vector<3x3x4x4xf32> to vector<1x1x4x4xf32>
    %256 = vector.shape_cast %255 : vector<1x1x4x4xf32> to vector<4x4xf32>
    %cst_84 = arith.constant dense<0.000000e+00> : vector<16x4xf32>
    %257 = tpu.matmul %254, %256, %cst_84 {dimension_numbers = #tpu.dot_dimension_numbers<[1], [0], [0], [1], [0, 0, 1, 1], [], []>} : vector<16x4xf32>, vector<4x4xf32>, vector<16x4xf32> -> vector<16x4xf32>
    %258 = arith.addf %252, %257 : vector<16x4xf32>
    %259 = vector.extract_strided_slice %209 {offsets = [2, 2, 0], sizes = [1, 16, 4], strides = [1, 1, 1]} : vector<3x18x4xf32> to vector<1x16x4xf32>
    %260 = vector.shape_cast %259 : vector<1x16x4xf32> to vector<16x4xf32>
    %261 = vector.extract_strided_slice %24 {offsets = [2, 2, 0, 0], sizes = [1, 1, 4, 4], strides = [1, 1, 1, 1]} : vector<3x3x4x4xf32> to vector<1x1x4x4xf32>
    %262 = vector.shape_cast %261 : vector<1x1x4x4xf32> to vector<4x4xf32>
    %cst_85 = arith.constant dense<0.000000e+00> : vector<16x4xf32>
    %263 = tpu.matmul %260, %262, %cst_85 {dimension_numbers = #tpu.dot_dimension_numbers<[1], [0], [0], [1], [0, 0, 1, 1], [], []>} : vector<16x4xf32>, vector<4x4xf32>, vector<16x4xf32> -> vector<16x4xf32>
    %264 = arith.addf %258, %263 : vector<16x4xf32>
    %265 = vector.broadcast %25 : vector<1x4xf32> to vector<16x4xf32>
    %266 = arith.addf %264, %265 : vector<16x4xf32>
    %c0_86 = arith.constant 0 : index
    %c3_87 = arith.constant 3 : index
    %c0_88 = arith.constant 0 : index
    %c0_89 = arith.constant 0 : index
    %267 = vector.load %arg9[%c0_86, %c3_87, %c0_88, %c0_89] : memref<1x8x16x4xf32, #tpu.memory_space<vmem>>, vector<1x1x16x4xf32>
    %268 = vector.shape_cast %267 : vector<1x1x16x4xf32> to vector<16x4xf32>
    %269 = vector.shape_cast %266 : vector<16x4xf32> to vector<1x1x16x4xf32>
    tpu.vector_store %arg9[%c0_86, %c3_87, %c0_88, %c0_89], %269 {strides = array<i32>} : memref<1x8x16x4xf32, #tpu.memory_space<vmem>>, vector<1x1x16x4xf32>,
    %c4 = arith.constant 4 : index
    %c0_90 = arith.constant 0 : index
    %c0_91 = arith.constant 0 : index
    %270 = vector.load %arg12[%c4, %c0_90, %c0_91] : memref<10x18x4xf32, #tpu.memory_space<vmem>>, vector<3x18x4xf32>
    %cst_92 = arith.constant 0.000000e+00 : f32
    %271 = vector.broadcast %cst_92 : f32 to vector<16x4xf32>
    %272 = vector.extract_strided_slice %270 {offsets = [0, 0, 0], sizes = [1, 16, 4], strides = [1, 1, 1]} : vector<3x18x4xf32> to vector<1x16x4xf32>
    %273 = vector.shape_cast %272 : vector<1x16x4xf32> to vector<16x4xf32>
    %274 = vector.extract_strided_slice %24 {offsets = [0, 0, 0, 0], sizes = [1, 1, 4, 4], strides = [1, 1, 1, 1]} : vector<3x3x4x4xf32> to vector<1x1x4x4xf32>
    %275 = vector.shape_cast %274 : vector<1x1x4x4xf32> to vector<4x4xf32>
    %cst_93 = arith.constant dense<0.000000e+00> : vector<16x4xf32>
    %276 = tpu.matmul %273, %275, %cst_93 {dimension_numbers = #tpu.dot_dimension_numbers<[1], [0], [0], [1], [0, 0, 1, 1], [], []>} : vector<16x4xf32>, vector<4x4xf32>, vector<16x4xf32> -> vector<16x4xf32>
    %277 = arith.addf %271, %276 : vector<16x4xf32>
    %278 = vector.extract_strided_slice %270 {offsets = [0, 1, 0], sizes = [1, 16, 4], strides = [1, 1, 1]} : vector<3x18x4xf32> to vector<1x16x4xf32>
    %279 = vector.shape_cast %278 : vector<1x16x4xf32> to vector<16x4xf32>
    %280 = vector.extract_strided_slice %24 {offsets = [0, 1, 0, 0], sizes = [1, 1, 4, 4], strides = [1, 1, 1, 1]} : vector<3x3x4x4xf32> to vector<1x1x4x4xf32>
    %281 = vector.shape_cast %280 : vector<1x1x4x4xf32> to vector<4x4xf32>
    %cst_94 = arith.constant dense<0.000000e+00> : vector<16x4xf32>
    %282 = tpu.matmul %279, %281, %cst_94 {dimension_numbers = #tpu.dot_dimension_numbers<[1], [0], [0], [1], [0, 0, 1, 1], [], []>} : vector<16x4xf32>, vector<4x4xf32>, vector<16x4xf32> -> vector<16x4xf32>
    %283 = arith.addf %277, %282 : vector<16x4xf32>
    %284 = vector.extract_strided_slice %270 {offsets = [0, 2, 0], sizes = [1, 16, 4], strides = [1, 1, 1]} : vector<3x18x4xf32> to vector<1x16x4xf32>
    %285 = vector.shape_cast %284 : vector<1x16x4xf32> to vector<16x4xf32>
    %286 = vector.extract_strided_slice %24 {offsets = [0, 2, 0, 0], sizes = [1, 1, 4, 4], strides = [1, 1, 1, 1]} : vector<3x3x4x4xf32> to vector<1x1x4x4xf32>
    %287 = vector.shape_cast %286 : vector<1x1x4x4xf32> to vector<4x4xf32>
    %cst_95 = arith.constant dense<0.000000e+00> : vector<16x4xf32>
    %288 = tpu.matmul %285, %287, %cst_95 {dimension_numbers = #tpu.dot_dimension_numbers<[1], [0], [0], [1], [0, 0, 1, 1], [], []>} : vector<16x4xf32>, vector<4x4xf32>, vector<16x4xf32> -> vector<16x4xf32>
    %289 = arith.addf %283, %288 : vector<16x4xf32>
    %290 = vector.extract_strided_slice %270 {offsets = [1, 0, 0], sizes = [1, 16, 4], strides = [1, 1, 1]} : vector<3x18x4xf32> to vector<1x16x4xf32>
    %291 = vector.shape_cast %290 : vector<1x16x4xf32> to vector<16x4xf32>
    %292 = vector.extract_strided_slice %24 {offsets = [1, 0, 0, 0], sizes = [1, 1, 4, 4], strides = [1, 1, 1, 1]} : vector<3x3x4x4xf32> to vector<1x1x4x4xf32>
    %293 = vector.shape_cast %292 : vector<1x1x4x4xf32> to vector<4x4xf32>
    %cst_96 = arith.constant dense<0.000000e+00> : vector<16x4xf32>
    %294 = tpu.matmul %291, %293, %cst_96 {dimension_numbers = #tpu.dot_dimension_numbers<[1], [0], [0], [1], [0, 0, 1, 1], [], []>} : vector<16x4xf32>, vector<4x4xf32>, vector<16x4xf32> -> vector<16x4xf32>
    %295 = arith.addf %289, %294 : vector<16x4xf32>
    %296 = vector.extract_strided_slice %270 {offsets = [1, 1, 0], sizes = [1, 16, 4], strides = [1, 1, 1]} : vector<3x18x4xf32> to vector<1x16x4xf32>
    %297 = vector.shape_cast %296 : vector<1x16x4xf32> to vector<16x4xf32>
    %298 = vector.extract_strided_slice %24 {offsets = [1, 1, 0, 0], sizes = [1, 1, 4, 4], strides = [1, 1, 1, 1]} : vector<3x3x4x4xf32> to vector<1x1x4x4xf32>
    %299 = vector.shape_cast %298 : vector<1x1x4x4xf32> to vector<4x4xf32>
    %cst_97 = arith.constant dense<0.000000e+00> : vector<16x4xf32>
    %300 = tpu.matmul %297, %299, %cst_97 {dimension_numbers = #tpu.dot_dimension_numbers<[1], [0], [0], [1], [0, 0, 1, 1], [], []>} : vector<16x4xf32>, vector<4x4xf32>, vector<16x4xf32> -> vector<16x4xf32>
    %301 = arith.addf %295, %300 : vector<16x4xf32>
    %302 = vector.extract_strided_slice %270 {offsets = [1, 2, 0], sizes = [1, 16, 4], strides = [1, 1, 1]} : vector<3x18x4xf32> to vector<1x16x4xf32>
    %303 = vector.shape_cast %302 : vector<1x16x4xf32> to vector<16x4xf32>
    %304 = vector.extract_strided_slice %24 {offsets = [1, 2, 0, 0], sizes = [1, 1, 4, 4], strides = [1, 1, 1, 1]} : vector<3x3x4x4xf32> to vector<1x1x4x4xf32>
    %305 = vector.shape_cast %304 : vector<1x1x4x4xf32> to vector<4x4xf32>
    %cst_98 = arith.constant dense<0.000000e+00> : vector<16x4xf32>
    %306 = tpu.matmul %303, %305, %cst_98 {dimension_numbers = #tpu.dot_dimension_numbers<[1], [0], [0], [1], [0, 0, 1, 1], [], []>} : vector<16x4xf32>, vector<4x4xf32>, vector<16x4xf32> -> vector<16x4xf32>
    %307 = arith.addf %301, %306 : vector<16x4xf32>
    %308 = vector.extract_strided_slice %270 {offsets = [2, 0, 0], sizes = [1, 16, 4], strides = [1, 1, 1]} : vector<3x18x4xf32> to vector<1x16x4xf32>
    %309 = vector.shape_cast %308 : vector<1x16x4xf32> to vector<16x4xf32>
    %310 = vector.extract_strided_slice %24 {offsets = [2, 0, 0, 0], sizes = [1, 1, 4, 4], strides = [1, 1, 1, 1]} : vector<3x3x4x4xf32> to vector<1x1x4x4xf32>
    %311 = vector.shape_cast %310 : vector<1x1x4x4xf32> to vector<4x4xf32>
    %cst_99 = arith.constant dense<0.000000e+00> : vector<16x4xf32>
    %312 = tpu.matmul %309, %311, %cst_99 {dimension_numbers = #tpu.dot_dimension_numbers<[1], [0], [0], [1], [0, 0, 1, 1], [], []>} : vector<16x4xf32>, vector<4x4xf32>, vector<16x4xf32> -> vector<16x4xf32>
    %313 = arith.addf %307, %312 : vector<16x4xf32>
    %314 = vector.extract_strided_slice %270 {offsets = [2, 1, 0], sizes = [1, 16, 4], strides = [1, 1, 1]} : vector<3x18x4xf32> to vector<1x16x4xf32>
    %315 = vector.shape_cast %314 : vector<1x16x4xf32> to vector<16x4xf32>
    %316 = vector.extract_strided_slice %24 {offsets = [2, 1, 0, 0], sizes = [1, 1, 4, 4], strides = [1, 1, 1, 1]} : vector<3x3x4x4xf32> to vector<1x1x4x4xf32>
    %317 = vector.shape_cast %316 : vector<1x1x4x4xf32> to vector<4x4xf32>
    %cst_100 = arith.constant dense<0.000000e+00> : vector<16x4xf32>
    %318 = tpu.matmul %315, %317, %cst_100 {dimension_numbers = #tpu.dot_dimension_numbers<[1], [0], [0], [1], [0, 0, 1, 1], [], []>} : vector<16x4xf32>, vector<4x4xf32>, vector<16x4xf32> -> vector<16x4xf32>
    %319 = arith.addf %313, %318 : vector<16x4xf32>
    %320 = vector.extract_strided_slice %270 {offsets = [2, 2, 0], sizes = [1, 16, 4], strides = [1, 1, 1]} : vector<3x18x4xf32> to vector<1x16x4xf32>
    %321 = vector.shape_cast %320 : vector<1x16x4xf32> to vector<16x4xf32>
    %322 = vector.extract_strided_slice %24 {offsets = [2, 2, 0, 0], sizes = [1, 1, 4, 4], strides = [1, 1, 1, 1]} : vector<3x3x4x4xf32> to vector<1x1x4x4xf32>
    %323 = vector.shape_cast %322 : vector<1x1x4x4xf32> to vector<4x4xf32>
    %cst_101 = arith.constant dense<0.000000e+00> : vector<16x4xf32>
    %324 = tpu.matmul %321, %323, %cst_101 {dimension_numbers = #tpu.dot_dimension_numbers<[1], [0], [0], [1], [0, 0, 1, 1], [], []>} : vector<16x4xf32>, vector<4x4xf32>, vector<16x4xf32> -> vector<16x4xf32>
    %325 = arith.addf %319, %324 : vector<16x4xf32>
    %326 = vector.broadcast %25 : vector<1x4xf32> to vector<16x4xf32>
    %327 = arith.addf %325, %326 : vector<16x4xf32>
    %c0_102 = arith.constant 0 : index
    %c4_103 = arith.constant 4 : index
    %c0_104 = arith.constant 0 : index
    %c0_105 = arith.constant 0 : index
    %328 = vector.load %arg9[%c0_102, %c4_103, %c0_104, %c0_105] : memref<1x8x16x4xf32, #tpu.memory_space<vmem>>, vector<1x1x16x4xf32>
    %329 = vector.shape_cast %328 : vector<1x1x16x4xf32> to vector<16x4xf32>
    %330 = vector.shape_cast %327 : vector<16x4xf32> to vector<1x1x16x4xf32>
    tpu.vector_store %arg9[%c0_102, %c4_103, %c0_104, %c0_105], %330 {strides = array<i32>} : memref<1x8x16x4xf32, #tpu.memory_space<vmem>>, vector<1x1x16x4xf32>,
    %c5 = arith.constant 5 : index
    %c0_106 = arith.constant 0 : index
    %c0_107 = arith.constant 0 : index
    %331 = vector.load %arg12[%c5, %c0_106, %c0_107] : memref<10x18x4xf32, #tpu.memory_space<vmem>>, vector<3x18x4xf32>
    %cst_108 = arith.constant 0.000000e+00 : f32
    %332 = vector.broadcast %cst_108 : f32 to vector<16x4xf32>
    %333 = vector.extract_strided_slice %331 {offsets = [0, 0, 0], sizes = [1, 16, 4], strides = [1, 1, 1]} : vector<3x18x4xf32> to vector<1x16x4xf32>
    %334 = vector.shape_cast %333 : vector<1x16x4xf32> to vector<16x4xf32>
    %335 = vector.extract_strided_slice %24 {offsets = [0, 0, 0, 0], sizes = [1, 1, 4, 4], strides = [1, 1, 1, 1]} : vector<3x3x4x4xf32> to vector<1x1x4x4xf32>
    %336 = vector.shape_cast %335 : vector<1x1x4x4xf32> to vector<4x4xf32>
    %cst_109 = arith.constant dense<0.000000e+00> : vector<16x4xf32>
    %337 = tpu.matmul %334, %336, %cst_109 {dimension_numbers = #tpu.dot_dimension_numbers<[1], [0], [0], [1], [0, 0, 1, 1], [], []>} : vector<16x4xf32>, vector<4x4xf32>, vector<16x4xf32> -> vector<16x4xf32>
    %338 = arith.addf %332, %337 : vector<16x4xf32>
    %339 = vector.extract_strided_slice %331 {offsets = [0, 1, 0], sizes = [1, 16, 4], strides = [1, 1, 1]} : vector<3x18x4xf32> to vector<1x16x4xf32>
    %340 = vector.shape_cast %339 : vector<1x16x4xf32> to vector<16x4xf32>
    %341 = vector.extract_strided_slice %24 {offsets = [0, 1, 0, 0], sizes = [1, 1, 4, 4], strides = [1, 1, 1, 1]} : vector<3x3x4x4xf32> to vector<1x1x4x4xf32>
    %342 = vector.shape_cast %341 : vector<1x1x4x4xf32> to vector<4x4xf32>
    %cst_110 = arith.constant dense<0.000000e+00> : vector<16x4xf32>
    %343 = tpu.matmul %340, %342, %cst_110 {dimension_numbers = #tpu.dot_dimension_numbers<[1], [0], [0], [1], [0, 0, 1, 1], [], []>} : vector<16x4xf32>, vector<4x4xf32>, vector<16x4xf32> -> vector<16x4xf32>
    %344 = arith.addf %338, %343 : vector<16x4xf32>
    %345 = vector.extract_strided_slice %331 {offsets = [0, 2, 0], sizes = [1, 16, 4], strides = [1, 1, 1]} : vector<3x18x4xf32> to vector<1x16x4xf32>
    %346 = vector.shape_cast %345 : vector<1x16x4xf32> to vector<16x4xf32>
    %347 = vector.extract_strided_slice %24 {offsets = [0, 2, 0, 0], sizes = [1, 1, 4, 4], strides = [1, 1, 1, 1]} : vector<3x3x4x4xf32> to vector<1x1x4x4xf32>
    %348 = vector.shape_cast %347 : vector<1x1x4x4xf32> to vector<4x4xf32>
    %cst_111 = arith.constant dense<0.000000e+00> : vector<16x4xf32>
    %349 = tpu.matmul %346, %348, %cst_111 {dimension_numbers = #tpu.dot_dimension_numbers<[1], [0], [0], [1], [0, 0, 1, 1], [], []>} : vector<16x4xf32>, vector<4x4xf32>, vector<16x4xf32> -> vector<16x4xf32>
    %350 = arith.addf %344, %349 : vector<16x4xf32>
    %351 = vector.extract_strided_slice %331 {offsets = [1, 0, 0], sizes = [1, 16, 4], strides = [1, 1, 1]} : vector<3x18x4xf32> to vector<1x16x4xf32>
    %352 = vector.shape_cast %351 : vector<1x16x4xf32> to vector<16x4xf32>
    %353 = vector.extract_strided_slice %24 {offsets = [1, 0, 0, 0], sizes = [1, 1, 4, 4], strides = [1, 1, 1, 1]} : vector<3x3x4x4xf32> to vector<1x1x4x4xf32>
    %354 = vector.shape_cast %353 : vector<1x1x4x4xf32> to vector<4x4xf32>
    %cst_112 = arith.constant dense<0.000000e+00> : vector<16x4xf32>
    %355 = tpu.matmul %352, %354, %cst_112 {dimension_numbers = #tpu.dot_dimension_numbers<[1], [0], [0], [1], [0, 0, 1, 1], [], []>} : vector<16x4xf32>, vector<4x4xf32>, vector<16x4xf32> -> vector<16x4xf32>
    %356 = arith.addf %350, %355 : vector<16x4xf32>
    %357 = vector.extract_strided_slice %331 {offsets = [1, 1, 0], sizes = [1, 16, 4], strides = [1, 1, 1]} : vector<3x18x4xf32> to vector<1x16x4xf32>
    %358 = vector.shape_cast %357 : vector<1x16x4xf32> to vector<16x4xf32>
    %359 = vector.extract_strided_slice %24 {offsets = [1, 1, 0, 0], sizes = [1, 1, 4, 4], strides = [1, 1, 1, 1]} : vector<3x3x4x4xf32> to vector<1x1x4x4xf32>
    %360 = vector.shape_cast %359 : vector<1x1x4x4xf32> to vector<4x4xf32>
    %cst_113 = arith.constant dense<0.000000e+00> : vector<16x4xf32>
    %361 = tpu.matmul %358, %360, %cst_113 {dimension_numbers = #tpu.dot_dimension_numbers<[1], [0], [0], [1], [0, 0, 1, 1], [], []>} : vector<16x4xf32>, vector<4x4xf32>, vector<16x4xf32> -> vector<16x4xf32>
    %362 = arith.addf %356, %361 : vector<16x4xf32>
    %363 = vector.extract_strided_slice %331 {offsets = [1, 2, 0], sizes = [1, 16, 4], strides = [1, 1, 1]} : vector<3x18x4xf32> to vector<1x16x4xf32>
    %364 = vector.shape_cast %363 : vector<1x16x4xf32> to vector<16x4xf32>
    %365 = vector.extract_strided_slice %24 {offsets = [1, 2, 0, 0], sizes = [1, 1, 4, 4], strides = [1, 1, 1, 1]} : vector<3x3x4x4xf32> to vector<1x1x4x4xf32>
    %366 = vector.shape_cast %365 : vector<1x1x4x4xf32> to vector<4x4xf32>
    %cst_114 = arith.constant dense<0.000000e+00> : vector<16x4xf32>
    %367 = tpu.matmul %364, %366, %cst_114 {dimension_numbers = #tpu.dot_dimension_numbers<[1], [0], [0], [1], [0, 0, 1, 1], [], []>} : vector<16x4xf32>, vector<4x4xf32>, vector<16x4xf32> -> vector<16x4xf32>
    %368 = arith.addf %362, %367 : vector<16x4xf32>
    %369 = vector.extract_strided_slice %331 {offsets = [2, 0, 0], sizes = [1, 16, 4], strides = [1, 1, 1]} : vector<3x18x4xf32> to vector<1x16x4xf32>
    %370 = vector.shape_cast %369 : vector<1x16x4xf32> to vector<16x4xf32>
    %371 = vector.extract_strided_slice %24 {offsets = [2, 0, 0, 0], sizes = [1, 1, 4, 4], strides = [1, 1, 1, 1]} : vector<3x3x4x4xf32> to vector<1x1x4x4xf32>
    %372 = vector.shape_cast %371 : vector<1x1x4x4xf32> to vector<4x4xf32>
    %cst_115 = arith.constant dense<0.000000e+00> : vector<16x4xf32>
    %373 = tpu.matmul %370, %372, %cst_115 {dimension_numbers = #tpu.dot_dimension_numbers<[1], [0], [0], [1], [0, 0, 1, 1], [], []>} : vector<16x4xf32>, vector<4x4xf32>, vector<16x4xf32> -> vector<16x4xf32>
    %374 = arith.addf %368, %373 : vector<16x4xf32>
    %375 = vector.extract_strided_slice %331 {offsets = [2, 1, 0], sizes = [1, 16, 4], strides = [1, 1, 1]} : vector<3x18x4xf32> to vector<1x16x4xf32>
    %376 = vector.shape_cast %375 : vector<1x16x4xf32> to vector<16x4xf32>
    %377 = vector.extract_strided_slice %24 {offsets = [2, 1, 0, 0], sizes = [1, 1, 4, 4], strides = [1, 1, 1, 1]} : vector<3x3x4x4xf32> to vector<1x1x4x4xf32>
    %378 = vector.shape_cast %377 : vector<1x1x4x4xf32> to vector<4x4xf32>
    %cst_116 = arith.constant dense<0.000000e+00> : vector<16x4xf32>
    %379 = tpu.matmul %376, %378, %cst_116 {dimension_numbers = #tpu.dot_dimension_numbers<[1], [0], [0], [1], [0, 0, 1, 1], [], []>} : vector<16x4xf32>, vector<4x4xf32>, vector<16x4xf32> -> vector<16x4xf32>
    %380 = arith.addf %374, %379 : vector<16x4xf32>
    %381 = vector.extract_strided_slice %331 {offsets = [2, 2, 0], sizes = [1, 16, 4], strides = [1, 1, 1]} : vector<3x18x4xf32> to vector<1x16x4xf32>
    %382 = vector.shape_cast %381 : vector<1x16x4xf32> to vector<16x4xf32>
    %383 = vector.extract_strided_slice %24 {offsets = [2, 2, 0, 0], sizes = [1, 1, 4, 4], strides = [1, 1, 1, 1]} : vector<3x3x4x4xf32> to vector<1x1x4x4xf32>
    %384 = vector.shape_cast %383 : vector<1x1x4x4xf32> to vector<4x4xf32>
    %cst_117 = arith.constant dense<0.000000e+00> : vector<16x4xf32>
    %385 = tpu.matmul %382, %384, %cst_117 {dimension_numbers = #tpu.dot_dimension_numbers<[1], [0], [0], [1], [0, 0, 1, 1], [], []>} : vector<16x4xf32>, vector<4x4xf32>, vector<16x4xf32> -> vector<16x4xf32>
    %386 = arith.addf %380, %385 : vector<16x4xf32>
    %387 = vector.broadcast %25 : vector<1x4xf32> to vector<16x4xf32>
    %388 = arith.addf %386, %387 : vector<16x4xf32>
    %c0_118 = arith.constant 0 : index
    %c5_119 = arith.constant 5 : index
    %c0_120 = arith.constant 0 : index
    %c0_121 = arith.constant 0 : index
    %389 = vector.load %arg9[%c0_118, %c5_119, %c0_120, %c0_121] : memref<1x8x16x4xf32, #tpu.memory_space<vmem>>, vector<1x1x16x4xf32>
    %390 = vector.shape_cast %389 : vector<1x1x16x4xf32> to vector<16x4xf32>
    %391 = vector.shape_cast %388 : vector<16x4xf32> to vector<1x1x16x4xf32>
    tpu.vector_store %arg9[%c0_118, %c5_119, %c0_120, %c0_121], %391 {strides = array<i32>} : memref<1x8x16x4xf32, #tpu.memory_space<vmem>>, vector<1x1x16x4xf32>,
    %c6 = arith.constant 6 : index
    %c0_122 = arith.constant 0 : index
    %c0_123 = arith.constant 0 : index
    %392 = vector.load %arg12[%c6, %c0_122, %c0_123] : memref<10x18x4xf32, #tpu.memory_space<vmem>>, vector<3x18x4xf32>
    %cst_124 = arith.constant 0.000000e+00 : f32
    %393 = vector.broadcast %cst_124 : f32 to vector<16x4xf32>
    %394 = vector.extract_strided_slice %392 {offsets = [0, 0, 0], sizes = [1, 16, 4], strides = [1, 1, 1]} : vector<3x18x4xf32> to vector<1x16x4xf32>
    %395 = vector.shape_cast %394 : vector<1x16x4xf32> to vector<16x4xf32>
    %396 = vector.extract_strided_slice %24 {offsets = [0, 0, 0, 0], sizes = [1, 1, 4, 4], strides = [1, 1, 1, 1]} : vector<3x3x4x4xf32> to vector<1x1x4x4xf32>
    %397 = vector.shape_cast %396 : vector<1x1x4x4xf32> to vector<4x4xf32>
    %cst_125 = arith.constant dense<0.000000e+00> : vector<16x4xf32>
    %398 = tpu.matmul %395, %397, %cst_125 {dimension_numbers = #tpu.dot_dimension_numbers<[1], [0], [0], [1], [0, 0, 1, 1], [], []>} : vector<16x4xf32>, vector<4x4xf32>, vector<16x4xf32> -> vector<16x4xf32>
    %399 = arith.addf %393, %398 : vector<16x4xf32>
    %400 = vector.extract_strided_slice %392 {offsets = [0, 1, 0], sizes = [1, 16, 4], strides = [1, 1, 1]} : vector<3x18x4xf32> to vector<1x16x4xf32>
    %401 = vector.shape_cast %400 : vector<1x16x4xf32> to vector<16x4xf32>
    %402 = vector.extract_strided_slice %24 {offsets = [0, 1, 0, 0], sizes = [1, 1, 4, 4], strides = [1, 1, 1, 1]} : vector<3x3x4x4xf32> to vector<1x1x4x4xf32>
    %403 = vector.shape_cast %402 : vector<1x1x4x4xf32> to vector<4x4xf32>
    %cst_126 = arith.constant dense<0.000000e+00> : vector<16x4xf32>
    %404 = tpu.matmul %401, %403, %cst_126 {dimension_numbers = #tpu.dot_dimension_numbers<[1], [0], [0], [1], [0, 0, 1, 1], [], []>} : vector<16x4xf32>, vector<4x4xf32>, vector<16x4xf32> -> vector<16x4xf32>
    %405 = arith.addf %399, %404 : vector<16x4xf32>
    %406 = vector.extract_strided_slice %392 {offsets = [0, 2, 0], sizes = [1, 16, 4], strides = [1, 1, 1]} : vector<3x18x4xf32> to vector<1x16x4xf32>
    %407 = vector.shape_cast %406 : vector<1x16x4xf32> to vector<16x4xf32>
    %408 = vector.extract_strided_slice %24 {offsets = [0, 2, 0, 0], sizes = [1, 1, 4, 4], strides = [1, 1, 1, 1]} : vector<3x3x4x4xf32> to vector<1x1x4x4xf32>
    %409 = vector.shape_cast %408 : vector<1x1x4x4xf32> to vector<4x4xf32>
    %cst_127 = arith.constant dense<0.000000e+00> : vector<16x4xf32>
    %410 = tpu.matmul %407, %409, %cst_127 {dimension_numbers = #tpu.dot_dimension_numbers<[1], [0], [0], [1], [0, 0, 1, 1], [], []>} : vector<16x4xf32>, vector<4x4xf32>, vector<16x4xf32> -> vector<16x4xf32>
    %411 = arith.addf %405, %410 : vector<16x4xf32>
    %412 = vector.extract_strided_slice %392 {offsets = [1, 0, 0], sizes = [1, 16, 4], strides = [1, 1, 1]} : vector<3x18x4xf32> to vector<1x16x4xf32>
    %413 = vector.shape_cast %412 : vector<1x16x4xf32> to vector<16x4xf32>
    %414 = vector.extract_strided_slice %24 {offsets = [1, 0, 0, 0], sizes = [1, 1, 4, 4], strides = [1, 1, 1, 1]} : vector<3x3x4x4xf32> to vector<1x1x4x4xf32>
    %415 = vector.shape_cast %414 : vector<1x1x4x4xf32> to vector<4x4xf32>
    %cst_128 = arith.constant dense<0.000000e+00> : vector<16x4xf32>
    %416 = tpu.matmul %413, %415, %cst_128 {dimension_numbers = #tpu.dot_dimension_numbers<[1], [0], [0], [1], [0, 0, 1, 1], [], []>} : vector<16x4xf32>, vector<4x4xf32>, vector<16x4xf32> -> vector<16x4xf32>
    %417 = arith.addf %411, %416 : vector<16x4xf32>
    %418 = vector.extract_strided_slice %392 {offsets = [1, 1, 0], sizes = [1, 16, 4], strides = [1, 1, 1]} : vector<3x18x4xf32> to vector<1x16x4xf32>
    %419 = vector.shape_cast %418 : vector<1x16x4xf32> to vector<16x4xf32>
    %420 = vector.extract_strided_slice %24 {offsets = [1, 1, 0, 0], sizes = [1, 1, 4, 4], strides = [1, 1, 1, 1]} : vector<3x3x4x4xf32> to vector<1x1x4x4xf32>
    %421 = vector.shape_cast %420 : vector<1x1x4x4xf32> to vector<4x4xf32>
    %cst_129 = arith.constant dense<0.000000e+00> : vector<16x4xf32>
    %422 = tpu.matmul %419, %421, %cst_129 {dimension_numbers = #tpu.dot_dimension_numbers<[1], [0], [0], [1], [0, 0, 1, 1], [], []>} : vector<16x4xf32>, vector<4x4xf32>, vector<16x4xf32> -> vector<16x4xf32>
    %423 = arith.addf %417, %422 : vector<16x4xf32>
    %424 = vector.extract_strided_slice %392 {offsets = [1, 2, 0], sizes = [1, 16, 4], strides = [1, 1, 1]} : vector<3x18x4xf32> to vector<1x16x4xf32>
    %425 = vector.shape_cast %424 : vector<1x16x4xf32> to vector<16x4xf32>
    %426 = vector.extract_strided_slice %24 {offsets = [1, 2, 0, 0], sizes = [1, 1, 4, 4], strides = [1, 1, 1, 1]} : vector<3x3x4x4xf32> to vector<1x1x4x4xf32>
    %427 = vector.shape_cast %426 : vector<1x1x4x4xf32> to vector<4x4xf32>
    %cst_130 = arith.constant dense<0.000000e+00> : vector<16x4xf32>
    %428 = tpu.matmul %425, %427, %cst_130 {dimension_numbers = #tpu.dot_dimension_numbers<[1], [0], [0], [1], [0, 0, 1, 1], [], []>} : vector<16x4xf32>, vector<4x4xf32>, vector<16x4xf32> -> vector<16x4xf32>
    %429 = arith.addf %423, %428 : vector<16x4xf32>
    %430 = vector.extract_strided_slice %392 {offsets = [2, 0, 0], sizes = [1, 16, 4], strides = [1, 1, 1]} : vector<3x18x4xf32> to vector<1x16x4xf32>
    %431 = vector.shape_cast %430 : vector<1x16x4xf32> to vector<16x4xf32>
    %432 = vector.extract_strided_slice %24 {offsets = [2, 0, 0, 0], sizes = [1, 1, 4, 4], strides = [1, 1, 1, 1]} : vector<3x3x4x4xf32> to vector<1x1x4x4xf32>
    %433 = vector.shape_cast %432 : vector<1x1x4x4xf32> to vector<4x4xf32>
    %cst_131 = arith.constant dense<0.000000e+00> : vector<16x4xf32>
    %434 = tpu.matmul %431, %433, %cst_131 {dimension_numbers = #tpu.dot_dimension_numbers<[1], [0], [0], [1], [0, 0, 1, 1], [], []>} : vector<16x4xf32>, vector<4x4xf32>, vector<16x4xf32> -> vector<16x4xf32>
    %435 = arith.addf %429, %434 : vector<16x4xf32>
    %436 = vector.extract_strided_slice %392 {offsets = [2, 1, 0], sizes = [1, 16, 4], strides = [1, 1, 1]} : vector<3x18x4xf32> to vector<1x16x4xf32>
    %437 = vector.shape_cast %436 : vector<1x16x4xf32> to vector<16x4xf32>
    %438 = vector.extract_strided_slice %24 {offsets = [2, 1, 0, 0], sizes = [1, 1, 4, 4], strides = [1, 1, 1, 1]} : vector<3x3x4x4xf32> to vector<1x1x4x4xf32>
    %439 = vector.shape_cast %438 : vector<1x1x4x4xf32> to vector<4x4xf32>
    %cst_132 = arith.constant dense<0.000000e+00> : vector<16x4xf32>
    %440 = tpu.matmul %437, %439, %cst_132 {dimension_numbers = #tpu.dot_dimension_numbers<[1], [0], [0], [1], [0, 0, 1, 1], [], []>} : vector<16x4xf32>, vector<4x4xf32>, vector<16x4xf32> -> vector<16x4xf32>
    %441 = arith.addf %435, %440 : vector<16x4xf32>
    %442 = vector.extract_strided_slice %392 {offsets = [2, 2, 0], sizes = [1, 16, 4], strides = [1, 1, 1]} : vector<3x18x4xf32> to vector<1x16x4xf32>
    %443 = vector.shape_cast %442 : vector<1x16x4xf32> to vector<16x4xf32>
    %444 = vector.extract_strided_slice %24 {offsets = [2, 2, 0, 0], sizes = [1, 1, 4, 4], strides = [1, 1, 1, 1]} : vector<3x3x4x4xf32> to vector<1x1x4x4xf32>
    %445 = vector.shape_cast %444 : vector<1x1x4x4xf32> to vector<4x4xf32>
    %cst_133 = arith.constant dense<0.000000e+00> : vector<16x4xf32>
    %446 = tpu.matmul %443, %445, %cst_133 {dimension_numbers = #tpu.dot_dimension_numbers<[1], [0], [0], [1], [0, 0, 1, 1], [], []>} : vector<16x4xf32>, vector<4x4xf32>, vector<16x4xf32> -> vector<16x4xf32>
    %447 = arith.addf %441, %446 : vector<16x4xf32>
    %448 = vector.broadcast %25 : vector<1x4xf32> to vector<16x4xf32>
    %449 = arith.addf %447, %448 : vector<16x4xf32>
    %c0_134 = arith.constant 0 : index
    %c6_135 = arith.constant 6 : index
    %c0_136 = arith.constant 0 : index
    %c0_137 = arith.constant 0 : index
    %450 = vector.load %arg9[%c0_134, %c6_135, %c0_136, %c0_137] : memref<1x8x16x4xf32, #tpu.memory_space<vmem>>, vector<1x1x16x4xf32>
    %451 = vector.shape_cast %450 : vector<1x1x16x4xf32> to vector<16x4xf32>
    %452 = vector.shape_cast %449 : vector<16x4xf32> to vector<1x1x16x4xf32>
    tpu.vector_store %arg9[%c0_134, %c6_135, %c0_136, %c0_137], %452 {strides = array<i32>} : memref<1x8x16x4xf32, #tpu.memory_space<vmem>>, vector<1x1x16x4xf32>,
    %c7 = arith.constant 7 : index
    %c0_138 = arith.constant 0 : index
    %c0_139 = arith.constant 0 : index
    %453 = vector.load %arg12[%c7, %c0_138, %c0_139] : memref<10x18x4xf32, #tpu.memory_space<vmem>>, vector<3x18x4xf32>
    %cst_140 = arith.constant 0.000000e+00 : f32
    %454 = vector.broadcast %cst_140 : f32 to vector<16x4xf32>
    %455 = vector.extract_strided_slice %453 {offsets = [0, 0, 0], sizes = [1, 16, 4], strides = [1, 1, 1]} : vector<3x18x4xf32> to vector<1x16x4xf32>
    %456 = vector.shape_cast %455 : vector<1x16x4xf32> to vector<16x4xf32>
    %457 = vector.extract_strided_slice %24 {offsets = [0, 0, 0, 0], sizes = [1, 1, 4, 4], strides = [1, 1, 1, 1]} : vector<3x3x4x4xf32> to vector<1x1x4x4xf32>
    %458 = vector.shape_cast %457 : vector<1x1x4x4xf32> to vector<4x4xf32>
    %cst_141 = arith.constant dense<0.000000e+00> : vector<16x4xf32>
    %459 = tpu.matmul %456, %458, %cst_141 {dimension_numbers = #tpu.dot_dimension_numbers<[1], [0], [0], [1], [0, 0, 1, 1], [], []>} : vector<16x4xf32>, vector<4x4xf32>, vector<16x4xf32> -> vector<16x4xf32>
    %460 = arith.addf %454, %459 : vector<16x4xf32>
    %461 = vector.extract_strided_slice %453 {offsets = [0, 1, 0], sizes = [1, 16, 4], strides = [1, 1, 1]} : vector<3x18x4xf32> to vector<1x16x4xf32>
    %462 = vector.shape_cast %461 : vector<1x16x4xf32> to vector<16x4xf32>
    %463 = vector.extract_strided_slice %24 {offsets = [0, 1, 0, 0], sizes = [1, 1, 4, 4], strides = [1, 1, 1, 1]} : vector<3x3x4x4xf32> to vector<1x1x4x4xf32>
    %464 = vector.shape_cast %463 : vector<1x1x4x4xf32> to vector<4x4xf32>
    %cst_142 = arith.constant dense<0.000000e+00> : vector<16x4xf32>
    %465 = tpu.matmul %462, %464, %cst_142 {dimension_numbers = #tpu.dot_dimension_numbers<[1], [0], [0], [1], [0, 0, 1, 1], [], []>} : vector<16x4xf32>, vector<4x4xf32>, vector<16x4xf32> -> vector<16x4xf32>
    %466 = arith.addf %460, %465 : vector<16x4xf32>
    %467 = vector.extract_strided_slice %453 {offsets = [0, 2, 0], sizes = [1, 16, 4], strides = [1, 1, 1]} : vector<3x18x4xf32> to vector<1x16x4xf32>
    %468 = vector.shape_cast %467 : vector<1x16x4xf32> to vector<16x4xf32>
    %469 = vector.extract_strided_slice %24 {offsets = [0, 2, 0, 0], sizes = [1, 1, 4, 4], strides = [1, 1, 1, 1]} : vector<3x3x4x4xf32> to vector<1x1x4x4xf32>
    %470 = vector.shape_cast %469 : vector<1x1x4x4xf32> to vector<4x4xf32>
    %cst_143 = arith.constant dense<0.000000e+00> : vector<16x4xf32>
    %471 = tpu.matmul %468, %470, %cst_143 {dimension_numbers = #tpu.dot_dimension_numbers<[1], [0], [0], [1], [0, 0, 1, 1], [], []>} : vector<16x4xf32>, vector<4x4xf32>, vector<16x4xf32> -> vector<16x4xf32>
    %472 = arith.addf %466, %471 : vector<16x4xf32>
    %473 = vector.extract_strided_slice %453 {offsets = [1, 0, 0], sizes = [1, 16, 4], strides = [1, 1, 1]} : vector<3x18x4xf32> to vector<1x16x4xf32>
    %474 = vector.shape_cast %473 : vector<1x16x4xf32> to vector<16x4xf32>
    %475 = vector.extract_strided_slice %24 {offsets = [1, 0, 0, 0], sizes = [1, 1, 4, 4], strides = [1, 1, 1, 1]} : vector<3x3x4x4xf32> to vector<1x1x4x4xf32>
    %476 = vector.shape_cast %475 : vector<1x1x4x4xf32> to vector<4x4xf32>
    %cst_144 = arith.constant dense<0.000000e+00> : vector<16x4xf32>
    %477 = tpu.matmul %474, %476, %cst_144 {dimension_numbers = #tpu.dot_dimension_numbers<[1], [0], [0], [1], [0, 0, 1, 1], [], []>} : vector<16x4xf32>, vector<4x4xf32>, vector<16x4xf32> -> vector<16x4xf32>
    %478 = arith.addf %472, %477 : vector<16x4xf32>
    %479 = vector.extract_strided_slice %453 {offsets = [1, 1, 0], sizes = [1, 16, 4], strides = [1, 1, 1]} : vector<3x18x4xf32> to vector<1x16x4xf32>
    %480 = vector.shape_cast %479 : vector<1x16x4xf32> to vector<16x4xf32>
    %481 = vector.extract_strided_slice %24 {offsets = [1, 1, 0, 0], sizes = [1, 1, 4, 4], strides = [1, 1, 1, 1]} : vector<3x3x4x4xf32> to vector<1x1x4x4xf32>
    %482 = vector.shape_cast %481 : vector<1x1x4x4xf32> to vector<4x4xf32>
    %cst_145 = arith.constant dense<0.000000e+00> : vector<16x4xf32>
    %483 = tpu.matmul %480, %482, %cst_145 {dimension_numbers = #tpu.dot_dimension_numbers<[1], [0], [0], [1], [0, 0, 1, 1], [], []>} : vector<16x4xf32>, vector<4x4xf32>, vector<16x4xf32> -> vector<16x4xf32>
    %484 = arith.addf %478, %483 : vector<16x4xf32>
    %485 = vector.extract_strided_slice %453 {offsets = [1, 2, 0], sizes = [1, 16, 4], strides = [1, 1, 1]} : vector<3x18x4xf32> to vector<1x16x4xf32>
    %486 = vector.shape_cast %485 : vector<1x16x4xf32> to vector<16x4xf32>
    %487 = vector.extract_strided_slice %24 {offsets = [1, 2, 0, 0], sizes = [1, 1, 4, 4], strides = [1, 1, 1, 1]} : vector<3x3x4x4xf32> to vector<1x1x4x4xf32>
    %488 = vector.shape_cast %487 : vector<1x1x4x4xf32> to vector<4x4xf32>
    %cst_146 = arith.constant dense<0.000000e+00> : vector<16x4xf32>
    %489 = tpu.matmul %486, %488, %cst_146 {dimension_numbers = #tpu.dot_dimension_numbers<[1], [0], [0], [1], [0, 0, 1, 1], [], []>} : vector<16x4xf32>, vector<4x4xf32>, vector<16x4xf32> -> vector<16x4xf32>
    %490 = arith.addf %484, %489 : vector<16x4xf32>
    %491 = vector.extract_strided_slice %453 {offsets = [2, 0, 0], sizes = [1, 16, 4], strides = [1, 1, 1]} : vector<3x18x4xf32> to vector<1x16x4xf32>
    %492 = vector.shape_cast %491 : vector<1x16x4xf32> to vector<16x4xf32>
    %493 = vector.extract_strided_slice %24 {offsets = [2, 0, 0, 0], sizes = [1, 1, 4, 4], strides = [1, 1, 1, 1]} : vector<3x3x4x4xf32> to vector<1x1x4x4xf32>
    %494 = vector.shape_cast %493 : vector<1x1x4x4xf32> to vector<4x4xf32>
    %cst_147 = arith.constant dense<0.000000e+00> : vector<16x4xf32>
    %495 = tpu.matmul %492, %494, %cst_147 {dimension_numbers = #tpu.dot_dimension_numbers<[1], [0], [0], [1], [0, 0, 1, 1], [], []>} : vector<16x4xf32>, vector<4x4xf32>, vector<16x4xf32> -> vector<16x4xf32>
    %496 = arith.addf %490, %495 : vector<16x4xf32>
    %497 = vector.extract_strided_slice %453 {offsets = [2, 1, 0], sizes = [1, 16, 4], strides = [1, 1, 1]} : vector<3x18x4xf32> to vector<1x16x4xf32>
    %498 = vector.shape_cast %497 : vector<1x16x4xf32> to vector<16x4xf32>
    %499 = vector.extract_strided_slice %24 {offsets = [2, 1, 0, 0], sizes = [1, 1, 4, 4], strides = [1, 1, 1, 1]} : vector<3x3x4x4xf32> to vector<1x1x4x4xf32>
    %500 = vector.shape_cast %499 : vector<1x1x4x4xf32> to vector<4x4xf32>
    %cst_148 = arith.constant dense<0.000000e+00> : vector<16x4xf32>
    %501 = tpu.matmul %498, %500, %cst_148 {dimension_numbers = #tpu.dot_dimension_numbers<[1], [0], [0], [1], [0, 0, 1, 1], [], []>} : vector<16x4xf32>, vector<4x4xf32>, vector<16x4xf32> -> vector<16x4xf32>
    %502 = arith.addf %496, %501 : vector<16x4xf32>
    %503 = vector.extract_strided_slice %453 {offsets = [2, 2, 0], sizes = [1, 16, 4], strides = [1, 1, 1]} : vector<3x18x4xf32> to vector<1x16x4xf32>
    %504 = vector.shape_cast %503 : vector<1x16x4xf32> to vector<16x4xf32>
    %505 = vector.extract_strided_slice %24 {offsets = [2, 2, 0, 0], sizes = [1, 1, 4, 4], strides = [1, 1, 1, 1]} : vector<3x3x4x4xf32> to vector<1x1x4x4xf32>
    %506 = vector.shape_cast %505 : vector<1x1x4x4xf32> to vector<4x4xf32>
    %cst_149 = arith.constant dense<0.000000e+00> : vector<16x4xf32>
    %507 = tpu.matmul %504, %506, %cst_149 {dimension_numbers = #tpu.dot_dimension_numbers<[1], [0], [0], [1], [0, 0, 1, 1], [], []>} : vector<16x4xf32>, vector<4x4xf32>, vector<16x4xf32> -> vector<16x4xf32>
    %508 = arith.addf %502, %507 : vector<16x4xf32>
    %509 = vector.broadcast %25 : vector<1x4xf32> to vector<16x4xf32>
    %510 = arith.addf %508, %509 : vector<16x4xf32>
    %c0_150 = arith.constant 0 : index
    %c7_151 = arith.constant 7 : index
    %c0_152 = arith.constant 0 : index
    %c0_153 = arith.constant 0 : index
    %511 = vector.load %arg9[%c0_150, %c7_151, %c0_152, %c0_153] : memref<1x8x16x4xf32, #tpu.memory_space<vmem>>, vector<1x1x16x4xf32>
    %512 = vector.shape_cast %511 : vector<1x1x16x4xf32> to vector<16x4xf32>
    %513 = vector.shape_cast %510 : vector<16x4xf32> to vector<1x1x16x4xf32>
    tpu.vector_store %arg9[%c0_150, %c7_151, %c0_152, %c0_153], %513 {strides = array<i32>} : memref<1x8x16x4xf32, #tpu.memory_space<vmem>>, vector<1x1x16x4xf32>,
    %c0_154 = arith.constant 0 : index
    %c0_155 = arith.constant 0 : index
    %c0_156 = arith.constant 0 : index
    %c0_157 = arith.constant 0 : index
    %514 = vector.load %arg9[%c0_154, %c0_155, %c0_156, %c0_157] : memref<1x8x16x4xf32, #tpu.memory_space<vmem>>, vector<1x8x16x4xf32>
    %515 = vector.shape_cast %514 : vector<1x8x16x4xf32> to vector<8x16x4xf32>
    %cst_158 = arith.constant dense<0.000000e+00> : vector<4xf32>
    %516 = vector.multi_reduction <add>, %515, %cst_158 [0, 1] : vector<8x16x4xf32> to vector<4xf32>
    %517 = arith.mulf %515, %515 : vector<8x16x4xf32>
    %cst_159 = arith.constant dense<0.000000e+00> : vector<4xf32>
    %518 = vector.multi_reduction <add>, %517, %cst_159 [0, 1] : vector<8x16x4xf32> to vector<4xf32>
    %519 = vector.shape_cast %516 : vector<4xf32> to vector<1x4xf32>
    %520 = vector.shape_cast %519 : vector<1x4xf32> to vector<1x4xf32>
    %521 = vector.broadcast %520 : vector<1x4xf32> to vector<8x4xf32>
    %522 = vector.shape_cast %518 : vector<4xf32> to vector<1x4xf32>
    %523 = vector.shape_cast %522 : vector<1x4xf32> to vector<1x4xf32>
    %524 = vector.broadcast %523 : vector<1x4xf32> to vector<8x4xf32>
    %c0_160 = arith.constant 0 : index
    %c0_161 = arith.constant 0 : index
    %c0_162 = arith.constant 0 : index
    %525 = vector.load %arg10[%c0_160, %c0_161, %c0_162] : memref<1x8x4xf32, #tpu.memory_space<vmem>>, vector<1x8x4xf32>
    %526 = vector.shape_cast %525 : vector<1x8x4xf32> to vector<8x4xf32>
    %527 = vector.shape_cast %521 : vector<8x4xf32> to vector<1x8x4xf32>
    tpu.vector_store %arg10[%c0_160, %c0_161, %c0_162], %527 {strides = array<i32>} : memref<1x8x4xf32, #tpu.memory_space<vmem>>, vector<1x8x4xf32>,
    %c0_163 = arith.constant 0 : index
    %c0_164 = arith.constant 0 : index
    %c0_165 = arith.constant 0 : index
    %528 = vector.load %arg11[%c0_163, %c0_164, %c0_165] : memref<1x8x4xf32, #tpu.memory_space<vmem>>, vector<1x8x4xf32>
    %529 = vector.shape_cast %528 : vector<1x8x4xf32> to vector<8x4xf32>
    %530 = vector.shape_cast %524 : vector<8x4xf32> to vector<1x8x4xf32>
    tpu.vector_store %arg11[%c0_163, %c0_164, %c0_165], %530 {strides = array<i32>} : memref<1x8x4xf32, #tpu.memory_space<vmem>>, vector<1x8x4xf32>,
    return
  }
  func.func @transform_0(%arg0: i32, %arg1: i32) -> (i32, i32, i32, i32) {
    %c0_i32 = arith.constant 0 : i32
    %c0_i32_0 = arith.constant 0 : i32
    %c0_i32_1 = arith.constant 0 : i32
    return %arg0, %arg1, %c0_i32, %c0_i32_0 : i32, i32, i32, i32
  }
  func.func @transform_1(%arg0: i32, %arg1: i32) -> (i32, i32, i32, i32) {
    %c8_i32 = arith.constant 8 : i32
    %0 = arith.muli %arg1, %c8_i32 : i32
    %c1_i32 = arith.constant 1 : i32
    %1 = arith.subi %0, %c1_i32 : i32
    %c0_i32 = arith.constant 0 : i32
    %2 = arith.maxsi %1, %c0_i32 : i32
    %c0_i32_0 = arith.constant 0 : i32
    %c0_i32_1 = arith.constant 0 : i32
    %c0_i32_2 = arith.constant 0 : i32
    return %arg0, %2, %c0_i32_0, %c0_i32_1 : i32, i32, i32, i32
  }
  func.func @transform_2(%arg0: i32, %arg1: i32) -> (i32, i32, i32, i32) {
    %c1_i32 = arith.constant 1 : i32
    %0 = arith.addi %arg1, %c1_i32 : i32
    %c8_i32 = arith.constant 8 : i32
    %1 = arith.muli %0, %c8_i32 : i32
    %c15_i32 = arith.constant 15 : i32
    %2 = arith.minsi %1, %c15_i32 : i32
    %c0_i32 = arith.constant 0 : i32
    %c0_i32_0 = arith.constant 0 : i32
    %c0_i32_1 = arith.constant 0 : i32
    return %arg0, %2, %c0_i32, %c0_i32_0 : i32, i32, i32, i32
  }
  func.func @transform_3(%arg0: i32, %arg1: i32) -> (i32, i32) {
    %c0_i32 = arith.constant 0 : i32
    %c0_i32_0 = arith.constant 0 : i32
    %c0_i32_1 = arith.constant 0 : i32
    return %c0_i32, %c0_i32_0 : i32, i32
  }
  func.func @transform_4(%arg0: i32, %arg1: i32) -> (i32, i32) {
    %c0_i32 = arith.constant 0 : i32
    %c0_i32_0 = arith.constant 0 : i32
    %c0_i32_1 = arith.constant 0 : i32
    return %c0_i32, %c0_i32_0 : i32, i32
  }
  func.func @transform_5(%arg0: i32, %arg1: i32) -> (i32, i32, i32, i32) {
    %c0_i32 = arith.constant 0 : i32
    %c0_i32_0 = arith.constant 0 : i32
    %c0_i32_1 = arith.constant 0 : i32
    %c0_i32_2 = arith.constant 0 : i32
    %c0_i32_3 = arith.constant 0 : i32
    return %c0_i32, %c0_i32_0, %c0_i32_1, %c0_i32_2 : i32, i32, i32, i32
  }
  func.func @transform_6(%arg0: i32, %arg1: i32) -> (i32, i32) {
    %c0_i32 = arith.constant 0 : i32
    %c0_i32_0 = arith.constant 0 : i32
    %c0_i32_1 = arith.constant 0 : i32
    return %c0_i32, %c0_i32_0 : i32, i32
  }
  func.func @transform_7(%arg0: i32, %arg1: i32) -> (i32, i32, i32, i32) {
    %c0_i32 = arith.constant 0 : i32
    %c0_i32_0 = arith.constant 0 : i32
    %c0_i32_1 = arith.constant 0 : i32
    return %arg0, %arg1, %c0_i32, %c0_i32_0 : i32, i32, i32, i32
  }
  func.func @transform_8(%arg0: i32, %arg1: i32) -> (i32, i32, i32) {
    %c2_i32 = arith.constant 2 : i32
    %0 = arith.muli %arg0, %c2_i32 : i32
    %1 = arith.addi %0, %arg1 : i32
    %c0_i32 = arith.constant 0 : i32
    %c0_i32_0 = arith.constant 0 : i32
    %c0_i32_1 = arith.constant 0 : i32
    return %1, %c0_i32, %c0_i32_0 : i32, i32, i32
  }
  func.func @transform_9(%arg0: i32, %arg1: i32) -> (i32, i32, i32) {
    %c2_i32 = arith.constant 2 : i32
    %0 = arith.muli %arg0, %c2_i32 : i32
    %1 = arith.addi %0, %arg1 : i32
    %c0_i32 = arith.constant 0 : i32
    %c0_i32_0 = arith.constant 0 : i32
    %c0_i32_1 = arith.constant 0 : i32
    return %1, %c0_i32, %c0_i32_0 : i32, i32, i32
  }
}

</mosaic_0001>

<llo_original>
// kernel: bottleneck_forward.4
$region0: #{bottleneck_forward.4}
  #allocation0 [shape = 'u32[]', space=smem, size = 0x4, offset = 0x4, fixed_abs, tag = 'smem constant byte address 0x4 - core index']
  #allocation1 [shape = 'u32[144,128]{1,0:T(1,128)}', space=vmem, size = 0x12000, scoped, tag = 'internal scratch']
  %s0 = inlined_call_operand.vmem [shape: f32[512,8], index: 0, kind: input, shape index: {}]
  %s1 = inlined_call_operand.vmem [shape: f32[2,8,8], index: 1, kind: output, shape index: {0}]
  %s2 = inlined_call_operand.vmem [shape: f32[2,8,8], index: 2, kind: output, shape index: {1}]
  %3 = xla_tuple %s1, %s2
  %s4 = sld [smem:[#allocation0]]
  $region45: #{bottleneck_forward.4} parent=0
    _
  %s6 = ssub.s32 1, %s4
  %s7 = scalar_select 0, %s6, %s4
  loop: start=0, step=1, limit=4
  $region2: #{bottleneck_forward.4} parent=0 // loop_pre_header
    _
  $region3: #{bottleneck_forward.4} parent=0 // loop_header
    %s9 = sphi 0, %s13
    %p10 = scmp.ge.s32.totalorder %s9, 4
    %s19 = sphi 0, %s21
    %s22 = sphi 0, %s19
    %s23 = sphi 0, %s22
    %s39 = sphi 0, %s23
    %s45 = sphi 0, %s47
    %s48 = sphi 0, %s45
    %s49 = sphi 0, %s48
    %s65 = sphi 0, %s49
    %s71 = sphi 0, %s73
    %s74 = sphi 0, %s71
    %s75 = sphi 0, %s74
    %s91 = sphi 0, %s75
  $region4: #{bottleneck_forward.4} parent=0 // loop_header_branch
    %12 = sbr.rel (%p10) target = $region8
  $region5: #{bottleneck_forward.4} parent=0 // loop_body
    %s14 = ssub.s32 %s9, 1
    %s15 = ssub.s32 %s9, 2
    %s16 = sadd.s32 %s9, 1
    %s17 = ssub.s32 %s9, %s16
    %p18 = scmp.eq.s32.totalorder %s17, 0
    %s20 = sadd.s32 %s19, 1
    %s21 = scalar_select %p18, %s19, %s20
    %p24 = pneg %p18
    %p25 = scmp.eq.s32.totalorder %s9, 1
    %p26 = por %p24, %p25
    %p27 = scmp.ne.s32.totalorder %s19, %s22
    %p28 = scmp.eq.s32.totalorder %s9, 0
    %p29 = por %p27, %p28
    %p30 = scmp.ne.s32.totalorder %s19, %s22
    %p31 = scmp.eq.s32.totalorder %s14, 1
    %p32 = por %p30, %p31
    %p33 = scmp.ne.s32.totalorder %s22, %s23
    %p34 = scmp.eq.s32.totalorder %s14, 0
    %p35 = por %p33, %p34
    %p36 = scmp.ne.s32.totalorder %s22, %s23
    %p37 = scmp.eq.s32.totalorder %s15, 1
    %p38 = por %p36, %p37
    %p40 = scmp.ne.s32.totalorder %s23, %s39
    %p41 = scmp.eq.s32.totalorder %s15, 0
    %p42 = por %p40, %p41
    %s43 = ssub.s32 %s9, %s16
    %p44 = scmp.eq.s32.totalorder %s43, 0
    %s46 = sadd.s32 %s45, 1
    %s47 = scalar_select %p44, %s45, %s46
    %p50 = pneg %p44
    %p51 = scmp.eq.s32.totalorder %s9, 1
    %p52 = por %p50, %p51
    %p53 = scmp.ne.s32.totalorder %s45, %s48
    %p54 = scmp.eq.s32.totalorder %s9, 0
    %p55 = por %p53, %p54
    %p56 = scmp.ne.s32.totalorder %s45, %s48
    %p57 = scmp.eq.s32.totalorder %s14, 1
    %p58 = por %p56, %p57
    %p59 = scmp.ne.s32.totalorder %s48, %s49
    %p60 = scmp.eq.s32.totalorder %s14, 0
    %p61 = por %p59, %p60
    %p62 = scmp.ne.s32.totalorder %s48, %s49
    %p63 = scmp.eq.s32.totalorder %s15, 1
    %p64 = por %p62, %p63
    %p66 = scmp.ne.s32.totalorder %s49, %s65
    %p67 = scmp.eq.s32.totalorder %s15, 0
    %p68 = por %p66, %p67
    %s69 = ssub.s32 %s9, %s16
    %p70 = scmp.eq.s32.totalorder %s69, 0
    %s72 = sadd.s32 %s71, 1
    %s73 = scalar_select %p70, %s71, %s72
    %p76 = pneg %p70
    %p77 = scmp.eq.s32.totalorder %s9, 1
    %p78 = por %p76, %p77
    %p79 = scmp.ne.s32.totalorder %s71, %s74
    %p80 = scmp.eq.s32.totalorder %s9, 0
    %p81 = por %p79, %p80
    %p82 = scmp.ne.s32.totalorder %s71, %s74
    %p83 = scmp.eq.s32.totalorder %s14, 1
    %p84 = por %p82, %p83
    %p85 = scmp.ne.s32.totalorder %s74, %s75
    %p86 = scmp.eq.s32.totalorder %s14, 0
    %p87 = por %p85, %p86
    %p88 = scmp.ne.s32.totalorder %s74, %s75
    %p89 = scmp.eq.s32.totalorder %s15, 1
    %p90 = por %p88, %p89
    %p92 = scmp.ne.s32.totalorder %s75, %s91
    %p93 = scmp.eq.s32.totalorder %s15, 0
    %p94 = por %p92, %p93
    %p95 = scmp.le.s32.totalorder 1, %s9
    %p96 = scmp.lt.s32.totalorder %s9, 3
    %p97 = pnand %p95, %p96
    %p98 = pneg %p97
    // Predicated region
    $region9: #{bottleneck_forward.4} parent=5 // pred_check
      _
    $region10: #{bottleneck_forward.4} parent=5 // pred_check_branch
      %100 = sbr.rel (%p97) target = $region12
    $region11: #{bottleneck_forward.4} parent=5 // pred_region
      %s101 = ssub.s32 %s9, 1
    $region12: #{bottleneck_forward.4} parent=5 // pred_fallthru
      _
    %p102 = scmp.lt.s32.totalorder %s9, 2
    // Predicated region
    $region13: #{bottleneck_forward.4} parent=5 // pred_check
      %p103 = pneg %p102
    $region14: #{bottleneck_forward.4} parent=5 // pred_check_branch
      %105 = sbr.rel (%p103) target = $region16
    $region15: #{bottleneck_forward.4} parent=5 // pred_region
      // Predicated region
      $region17: #{bottleneck_forward.4} parent=15 // pred_check
        %p106 = pneg %p29
      $region18: #{bottleneck_forward.4} parent=15 // pred_check_branch
        %108 = sbr.rel (%p106) target = $region20
      $region19: #{bottleneck_forward.4} parent=15 // pred_region
        %s109 = smul.u32 32, %s9
        %p110 = scmp.lt.s32.totalorder %s109, 63
        %s111 = scalar_select %p110, %s109, 63
        %s112 = smul.addr %s111, 8
        %s113 = scalar_lea.vmem %s0, %s112
        %s114 = smul.u32 32, %s9
      $region20: #{bottleneck_forward.4} parent=15 // pred_fallthru
        _
    $region16: #{bottleneck_forward.4} parent=5 // pred_fallthru
      _
    %p115 = scmp.le.s32.totalorder 1, %s9
    %p116 = scmp.lt.s32.totalorder %s9, 3
    %p117 = pnand %p115, %p116
    %p118 = pneg %p117
    // Predicated region
    $region21: #{bottleneck_forward.4} parent=5 // pred_check
      _
    $region22: #{bottleneck_forward.4} parent=5 // pred_check_branch
      %120 = sbr.rel (%p117) target = $region24
    $region23: #{bottleneck_forward.4} parent=5 // pred_region
      %s121 = ssub.s32 %s9, 1
      %s122 = smul.u32 32, %s14
      %p123 = scmp.lt.s32.totalorder %s122, 63
      %s124 = scalar_select %p123, %s122, 63
      %s125 = smul.addr %s124, 8
      %s126 = scalar_lea.vmem %s0, %s125
      %p127 = pneg %p35
      %p128 = pneg %p32
      %p129 = pneg %p61
      %p130 = pneg %p58
      %p131 = scmp.lt.s32.totalorder %s14, 1
      %s132 = scalar_select %p131, %s14, 1
      %s133 = smul.addr %s132, 8
      %s134 = scalar_lea.vmem %s1, %s133
      %p135 = pneg %p87
      %p136 = pneg %p84
      %p137 = scmp.lt.s32.totalorder %s14, 1
      %s138 = scalar_select %p137, %s14, 1
      %s139 = smul.addr %s138, 8
      %s140 = scalar_lea.vmem %s2, %s139
      %s141 = smul.u32 32, %s14
      %p142 = scmp.lt.s32.totalorder %s141, 63
      %s143 = scalar_select %p142, %s141, 63
      %s144 = smul.addr %s143, 8
      %s145 = scalar_lea.vmem %s0, %s144
      %s146 = smul.u32 32, %s14
      %p147 = scmp.lt.s32.totalorder %s14, 1
      %s148 = scalar_select %p147, %s14, 1
      %s149 = smul.addr %s148, 8
      %s150 = scalar_lea.vmem %s1, %s149
      %p151 = scmp.lt.s32.totalorder %s14, 1
      %s152 = scalar_select %p151, %s14, 1
      %s153 = smul.addr %s152, 8
      %s154 = scalar_lea.vmem %s2, %s153
      %v155 = vld [vmem:[%s145] sm:$0xff]
      %v156 = vld [vmem:[%s145 + $0x8] sm:$0xff]
      %v157 = vld [vmem:[%s145 + $0x10] sm:$0xff]
      %v158 = vld [vmem:[%s145 + $0x18] sm:$0xff]
      %v159 = vld [vmem:[%s145 + $0x20] sm:$0xff]
      %v160 = vld [vmem:[%s145 + $0x28] sm:$0xff]
      %v161 = vld [vmem:[%s145 + $0x30] sm:$0xff]
      %v162 = vld [vmem:[%s145 + $0x38] sm:$0xff]
      %v163 = vld [vmem:[%s145 + $0x40] sm:$0xff]
      %v164 = vld [vmem:[%s145 + $0x48] sm:$0xff]
      %v165 = vld [vmem:[%s145 + $0x50] sm:$0xff]
      %v166 = vld [vmem:[%s145 + $0x58] sm:$0xff]
      %v167 = vld [vmem:[%s145 + $0x60] sm:$0xff]
      %v168 = vld [vmem:[%s145 + $0x68] sm:$0xff]
      %v169 = vld [vmem:[%s145 + $0x70] sm:$0xff]
      %v170 = vld [vmem:[%s145 + $0x78] sm:$0xff]
      %v171 = vld [vmem:[%s145 + $0x80] sm:$0xff]
      %v172 = vld [vmem:[%s145 + $0x88] sm:$0xff]
      %v173 = vld [vmem:[%s145 + $0x90] sm:$0xff]
      %v174 = vld [vmem:[%s145 + $0x98] sm:$0xff]
      %v175 = vld [vmem:[%s145 + $0xa0] sm:$0xff]
      %v176 = vld [vmem:[%s145 + $0xa8] sm:$0xff]
      %v177 = vld [vmem:[%s145 + $0xb0] sm:$0xff]
      %v178 = vld [vmem:[%s145 + $0xb8] sm:$0xff]
      %v179 = vld [vmem:[%s145 + $0xc0] sm:$0xff]
      %v180 = vld [vmem:[%s145 + $0xc8] sm:$0xff]
      %v181 = vld [vmem:[%s145 + $0xd0] sm:$0xff]
      %v182 = vld [vmem:[%s145 + $0xd8] sm:$0xff]
      %v183 = vld [vmem:[%s145 + $0xe0] sm:$0xff]
      %v184 = vld [vmem:[%s145 + $0xe8] sm:$0xff]
      %v185 = vld [vmem:[%s145 + $0xf0] sm:$0xff]
      %v186 = vld [vmem:[%s145 + $0xf8] sm:$0xff]
      %vm187 = vcmask 64512
      %v188 = vsel %vm187, %v155, 0.0
      %v189 = vsel %vm187, %v156, 0.0
      %v190 = vadd.f32 %v188, %v189
      %v191 = vsel %vm187, %v157, 0.0
      %v192 = vadd.f32 %v190, %v191
      %v193 = vsel %vm187, %v158, 0.0
      %v194 = vadd.f32 %v192, %v193
      %v195 = vsel %vm187, %v159, 0.0
      %v196 = vadd.f32 %v194, %v195
      %v197 = vsel %vm187, %v160, 0.0
      %v198 = vadd.f32 %v196, %v197
      %v199 = vsel %vm187, %v161, 0.0
      %v200 = vadd.f32 %v198, %v199
      %v201 = vsel %vm187, %v162, 0.0
      %v202 = vadd.f32 %v200, %v201
      %v203 = vsel %vm187, %v163, 0.0
      %v204 = vadd.f32 %v202, %v203
      %v205 = vsel %vm187, %v164, 0.0
      %v206 = vadd.f32 %v204, %v205
      %v207 = vsel %vm187, %v165, 0.0
      %v208 = vadd.f32 %v206, %v207
      %v209 = vsel %vm187, %v166, 0.0
      %v210 = vadd.f32 %v208, %v209
      %v211 = vsel %vm187, %v167, 0.0
      %v212 = vadd.f32 %v210, %v211
      %v213 = vsel %vm187, %v168, 0.0
      %v214 = vadd.f32 %v212, %v213
      %v215 = vsel %vm187, %v169, 0.0
      %v216 = vadd.f32 %v214, %v215
      %v217 = vsel %vm187, %v170, 0.0
      %v218 = vadd.f32 %v216, %v217
      %v219 = vsel %vm187, %v171, 0.0
      %v220 = vadd.f32 %v218, %v219
      %v221 = vsel %vm187, %v172, 0.0
      %v222 = vadd.f32 %v220, %v221
      %v223 = vsel %vm187, %v173, 0.0
      %v224 = vadd.f32 %v222, %v223
      %v225 = vsel %vm187, %v174, 0.0
      %v226 = vadd.f32 %v224, %v225
      %v227 = vsel %vm187, %v175, 0.0
      %v228 = vadd.f32 %v226, %v227
      %v229 = vsel %vm187, %v176, 0.0
      %v230 = vadd.f32 %v228, %v229
      %v231 = vsel %vm187, %v177, 0.0
      %v232 = vadd.f32 %v230, %v231
      %v233 = vsel %vm187, %v178, 0.0
      %v234 = vadd.f32 %v232, %v233
      %v235 = vsel %vm187, %v179, 0.0
      %v236 = vadd.f32 %v234, %v235
      %v237 = vsel %vm187, %v180, 0.0
      %v238 = vadd.f32 %v236, %v237
      %v239 = vsel %vm187, %v181, 0.0
      %v240 = vadd.f32 %v238, %v239
      %v241 = vsel %vm187, %v182, 0.0
      %v242 = vadd.f32 %v240, %v241
      %v243 = vsel %vm187, %v183, 0.0
      %v244 = vadd.f32 %v242, %v243
      %v245 = vsel %vm187, %v184, 0.0
      %v246 = vadd.f32 %v244, %v245
      %v247 = vsel %vm187, %v185, 0.0
      %v248 = vadd.f32 %v246, %v247
      %v249 = vsel %vm187, %v186, 0.0
      %v250 = vadd.f32 %v248, %v249
      %v251 = vrot.slane %v250, 4
      %v252 = vadd.f32 %v250, %v251
      %v253 = vrot.slane %v252, 2
      %v254 = vadd.f32 %v252, %v253
      %v255 = vrot.slane %v254, 1
      %v256 = vadd.f32 %v254, %v255
      %v257 = vmul.f32 %v155, %v155
      %v258 = vmul.f32 %v156, %v156
      %v259 = vmul.f32 %v157, %v157
      %v260 = vmul.f32 %v158, %v158
      %v261 = vmul.f32 %v159, %v159
      %v262 = vmul.f32 %v160, %v160
      %v263 = vmul.f32 %v161, %v161
      %v264 = vmul.f32 %v162, %v162
      %v265 = vmul.f32 %v163, %v163
      %v266 = vmul.f32 %v164, %v164
      %v267 = vmul.f32 %v165, %v165
      %v268 = vmul.f32 %v166, %v166
      %v269 = vmul.f32 %v167, %v167
      %v270 = vmul.f32 %v168, %v168
      %v271 = vmul.f32 %v169, %v169
      %v272 = vmul.f32 %v170, %v170
      %v273 = vmul.f32 %v171, %v171
      %v274 = vmul.f32 %v172, %v172
      %v275 = vmul.f32 %v173, %v173
      %v276 = vmul.f32 %v174, %v174
      %v277 = vmul.f32 %v175, %v175
      %v278 = vmul.f32 %v176, %v176
      %v279 = vmul.f32 %v177, %v177
      %v280 = vmul.f32 %v178, %v178
      %v281 = vmul.f32 %v179, %v179
      %v282 = vmul.f32 %v180, %v180
      %v283 = vmul.f32 %v181, %v181
      %v284 = vmul.f32 %v182, %v182
      %v285 = vmul.f32 %v183, %v183
      %v286 = vmul.f32 %v184, %v184
      %v287 = vmul.f32 %v185, %v185
      %v288 = vmul.f32 %v186, %v186
      %v289 = vsel %vm187, %v257, 0.0
      %v290 = vsel %vm187, %v258, 0.0
      %v291 = vadd.f32 %v289, %v290
      %v292 = vsel %vm187, %v259, 0.0
      %v293 = vadd.f32 %v291, %v292
      %v294 = vsel %vm187, %v260, 0.0
      %v295 = vadd.f32 %v293, %v294
      %v296 = vsel %vm187, %v261, 0.0
      %v297 = vadd.f32 %v295, %v296
      %v298 = vsel %vm187, %v262, 0.0
      %v299 = vadd.f32 %v297, %v298
      %v300 = vsel %vm187, %v263, 0.0
      %v301 = vadd.f32 %v299, %v300
      %v302 = vsel %vm187, %v264, 0.0
      %v303 = vadd.f32 %v301, %v302
      %v304 = vsel %vm187, %v265, 0.0
      %v305 = vadd.f32 %v303, %v304
      %v306 = vsel %vm187, %v266, 0.0
      %v307 = vadd.f32 %v305, %v306
      %v308 = vsel %vm187, %v267, 0.0
      %v309 = vadd.f32 %v307, %v308
      %v310 = vsel %vm187, %v268, 0.0
      %v311 = vadd.f32 %v309, %v310
      %v312 = vsel %vm187, %v269, 0.0
      %v313 = vadd.f32 %v311, %v312
      %v314 = vsel %vm187, %v270, 0.0
      %v315 = vadd.f32 %v313, %v314
      %v316 = vsel %vm187, %v271, 0.0
      %v317 = vadd.f32 %v315, %v316
      %v318 = vsel %vm187, %v272, 0.0
      %v319 = vadd.f32 %v317, %v318
      %v320 = vsel %vm187, %v273, 0.0
      %v321 = vadd.f32 %v319, %v320
      %v322 = vsel %vm187, %v274, 0.0
      %v323 = vadd.f32 %v321, %v322
      %v324 = vsel %vm187, %v275, 0.0
      %v325 = vadd.f32 %v323, %v324
      %v326 = vsel %vm187, %v276, 0.0
      %v327 = vadd.f32 %v325, %v326
      %v328 = vsel %vm187, %v277, 0.0
      %v329 = vadd.f32 %v327, %v328
      %v330 = vsel %vm187, %v278, 0.0
      %v331 = vadd.f32 %v329, %v330
      %v332 = vsel %vm187, %v279, 0.0
      %v333 = vadd.f32 %v331, %v332
      %v334 = vsel %vm187, %v280, 0.0
      %v335 = vadd.f32 %v333, %v334
      %v336 = vsel %vm187, %v281, 0.0
      %v337 = vadd.f32 %v335, %v336
      %v338 = vsel %vm187, %v282, 0.0
      %v339 = vadd.f32 %v337, %v338
      %v340 = vsel %vm187, %v283, 0.0
      %v341 = vadd.f32 %v339, %v340
      %v342 = vsel %vm187, %v284, 0.0
      %v343 = vadd.f32 %v341, %v342
      %v344 = vsel %vm187, %v285, 0.0
      %v345 = vadd.f32 %v343, %v344
      %v346 = vsel %vm187, %v286, 0.0
      %v347 = vadd.f32 %v345, %v346
      %v348 = vsel %vm187, %v287, 0.0
      %v349 = vadd.f32 %v347, %v348
      %v350 = vsel %vm187, %v288, 0.0
      %v351 = vadd.f32 %v349, %v350
      %v352 = vrot.slane %v351, 4
      %v353 = vadd.f32 %v351, %v352
      %v354 = vrot.slane %v353, 2
      %v355 = vadd.f32 %v353, %v354
      %v356 = vrot.slane %v355, 1
      %v357 = vadd.f32 %v355, %v356
      %358 = vst.msk [vmem:[%s150] sm:$0xff] %vm187, %v256
      %359 = vst.msk [vmem:[%s154] sm:$0xff] %vm187, %v357
      %p360 = scmp.lt.s32.totalorder %s14, 1
      %s361 = scalar_select %p360, %s14, 1
      %s362 = smul.addr %s361, 8
      %s363 = scalar_lea.vmem %s1, %s362
      %p364 = scmp.lt.s32.totalorder %s14, 1
      %s365 = scalar_select %p364, %s14, 1
      %s366 = smul.addr %s365, 8
      %s367 = scalar_lea.vmem %s2, %s366
      // Predicated region
      $region25: #{bottleneck_forward.4} parent=23 // pred_check
        %p368 = pneg %p58
      $region26: #{bottleneck_forward.4} parent=23 // pred_check_branch
        %370 = sbr.rel (%p368) target = $region28
      $region27: #{bottleneck_forward.4} parent=23 // pred_region
        _
      $region28: #{bottleneck_forward.4} parent=23 // pred_fallthru
        _
      // Predicated region
      $region29: #{bottleneck_forward.4} parent=23 // pred_check
        %p371 = pneg %p84
      $region30: #{bottleneck_forward.4} parent=23 // pred_check_branch
        %373 = sbr.rel (%p371) target = $region32
      $region31: #{bottleneck_forward.4} parent=23 // pred_region
        _
      $region32: #{bottleneck_forward.4} parent=23 // pred_fallthru
        _
    $region24: #{bottleneck_forward.4} parent=5 // pred_fallthru
      _
    %p374 = scmp.le.s32.totalorder 2, %s9
    // Predicated region
    $region33: #{bottleneck_forward.4} parent=5 // pred_check
      %p375 = pneg %p374
    $region34: #{bottleneck_forward.4} parent=5 // pred_check_branch
      %377 = sbr.rel (%p375) target = $region36
    $region35: #{bottleneck_forward.4} parent=5 // pred_region
      %s378 = ssub.s32 %s9, 2
      // Predicated region
      $region37: #{bottleneck_forward.4} parent=35 // pred_check
        %p379 = pneg %p64
      $region38: #{bottleneck_forward.4} parent=35 // pred_check_branch
        %381 = sbr.rel (%p379) target = $region40
      $region39: #{bottleneck_forward.4} parent=35 // pred_region
        %p382 = scmp.lt.s32.totalorder %s15, 1
        %s383 = scalar_select %p382, %s15, 1
        %s384 = smul.addr %s383, 8
        %s385 = scalar_lea.vmem %s1, %s384
      $region40: #{bottleneck_forward.4} parent=35 // pred_fallthru
        _
      // Predicated region
      $region41: #{bottleneck_forward.4} parent=35 // pred_check
        %p386 = pneg %p90
      $region42: #{bottleneck_forward.4} parent=35 // pred_check_branch
        %388 = sbr.rel (%p386) target = $region44
      $region43: #{bottleneck_forward.4} parent=35 // pred_region
        %p389 = scmp.lt.s32.totalorder %s15, 1
        %s390 = scalar_select %p389, %s15, 1
        %s391 = smul.addr %s390, 8
        %s392 = scalar_lea.vmem %s2, %s391
      $region44: #{bottleneck_forward.4} parent=35 // pred_fallthru
        _
    $region36: #{bottleneck_forward.4} parent=5 // pred_fallthru
      _
  $region6: #{bottleneck_forward.4} parent=0 // loop_footer
    %s13 = sadd.s32 1, %s9
  $region7: #{bottleneck_forward.4} parent=0 // loop_footer_branch
    %8 = sbr.rel target = $region3
  $region8: #{bottleneck_forward.4} parent=0 // loop_exit
    _

// kernel: bottleneck_forward.5
$region0: #{bottleneck_forward.5}
  #allocation0 [shape = 'u32[]', space=smem, size = 0x4, offset = 0x4, fixed_abs, tag = 'smem constant byte address 0x4 - core index']
  #allocation1 [shape = 'u32[144,128]{1,0:T(1,128)}', space=vmem, size = 0x12000, scoped, tag = 'internal scratch']
  %s0 = inlined_call_operand.vmem [shape: f32[512,8], index: 0, kind: input, shape index: {}]
  %s1 = inlined_call_operand.vmem [shape: f32[1,8], index: 1, kind: input, shape index: {}]
  %s2 = inlined_call_operand.vmem [shape: f32[1,8], index: 2, kind: input, shape index: {}]
  %s3 = inlined_call_operand.vmem [shape: f32[8,4], index: 3, kind: input, shape index: {}]
  %s4 = inlined_call_operand.vmem [shape: f32[1,4], index: 4, kind: input, shape index: {}]
  %s5 = inlined_call_operand.vmem [shape: f32[512,4], index: 5, kind: output, shape index: {0}]
  %s6 = inlined_call_operand.vmem [shape: f32[2,8,4], index: 6, kind: output, shape index: {1}]
  %s7 = inlined_call_operand.vmem [shape: f32[2,8,4], index: 7, kind: output, shape index: {2}]
  %8 = xla_tuple %s5, %s6, %s7
  %s9 = sld [smem:[#allocation0]]
  $region69: #{bottleneck_forward.5} parent=0
    _
  %s11 = ssub.s32 1, %s9
  %s12 = scalar_select 0, %s11, %s9
  loop: start=0, step=1, limit=4
  $region2: #{bottleneck_forward.5} parent=0 // loop_pre_header
    _
  $region3: #{bottleneck_forward.5} parent=0 // loop_header
    %s14 = sphi 0, %s18
    %p15 = scmp.ge.s32.totalorder %s14, 4
    %s24 = sphi 0, %s26
    %s27 = sphi 0, %s24
    %s28 = sphi 0, %s27
    %s44 = sphi 0, %s28
    %s48 = sphi 0, %s48
    %s50 = sphi 0, %s48
    %s51 = sphi 0, %s50
    %s65 = sphi 0, %s51
    %s69 = sphi 0, %s69
    %s71 = sphi 0, %s69
    %s72 = sphi 0, %s71
    %s86 = sphi 0, %s72
    %s90 = sphi 0, %s90
    %s92 = sphi 0, %s90
    %s93 = sphi 0, %s92
    %s107 = sphi 0, %s93
    %s111 = sphi 0, %s111
    %s113 = sphi 0, %s111
    %s114 = sphi 0, %s113
    %s128 = sphi 0, %s114
    %s134 = sphi 0, %s136
    %s137 = sphi 0, %s134
    %s138 = sphi 0, %s137
    %s154 = sphi 0, %s138
    %s160 = sphi 0, %s162
    %s163 = sphi 0, %s160
    %s164 = sphi 0, %s163
    %s180 = sphi 0, %s164
    %s186 = sphi 0, %s188
    %s189 = sphi 0, %s186
    %s190 = sphi 0, %s189
    %s206 = sphi 0, %s190
  $region4: #{bottleneck_forward.5} parent=0 // loop_header_branch
    %17 = sbr.rel (%p15) target = $region8
  $region5: #{bottleneck_forward.5} parent=0 // loop_body
    %s19 = ssub.s32 %s14, 1
    %s20 = ssub.s32 %s14, 2
    %s21 = sadd.s32 %s14, 1
    %s22 = ssub.s32 %s14, %s21
    %p23 = scmp.eq.s32.totalorder %s22, 0
    %s25 = sadd.s32 %s24, 1
    %s26 = scalar_select %p23, %s24, %s25
    %p29 = pneg %p23
    %p30 = scmp.eq.s32.totalorder %s14, 1
    %p31 = por %p29, %p30
    %p32 = scmp.ne.s32.totalorder %s24, %s27
    %p33 = scmp.eq.s32.totalorder %s14, 0
    %p34 = por %p32, %p33
    %p35 = scmp.ne.s32.totalorder %s24, %s27
    %p36 = scmp.eq.s32.totalorder %s19, 1
    %p37 = por %p35, %p36
    %p38 = scmp.ne.s32.totalorder %s27, %s28
    %p39 = scmp.eq.s32.totalorder %s19, 0
    %p40 = por %p38, %p39
    %p41 = scmp.ne.s32.totalorder %s27, %s28
    %p42 = scmp.eq.s32.totalorder %s20, 1
    %p43 = por %p41, %p42
    %p45 = scmp.ne.s32.totalorder %s28, %s44
    %p46 = scmp.eq.s32.totalorder %s20, 0
    %p47 = por %p45, %p46
    %s49 = sadd.s32 %s48, 1
    %p52 = scmp.eq.s32.totalorder %s14, 1
    %p53 = scmp.ne.s32.totalorder %s48, %s50
    %p54 = scmp.eq.s32.totalorder %s14, 0
    %p55 = por %p53, %p54
    %p56 = scmp.ne.s32.totalorder %s48, %s50
    %p57 = scmp.eq.s32.totalorder %s19, 1
    %p58 = por %p56, %p57
    %p59 = scmp.ne.s32.totalorder %s50, %s51
    %p60 = scmp.eq.s32.totalorder %s19, 0
    %p61 = por %p59, %p60
    %p62 = scmp.ne.s32.totalorder %s50, %s51
    %p63 = scmp.eq.s32.totalorder %s20, 1
    %p64 = por %p62, %p63
    %p66 = scmp.ne.s32.totalorder %s51, %s65
    %p67 = scmp.eq.s32.totalorder %s20, 0
    %p68 = por %p66, %p67
    %s70 = sadd.s32 %s69, 1
    %p73 = scmp.eq.s32.totalorder %s14, 1
    %p74 = scmp.ne.s32.totalorder %s69, %s71
    %p75 = scmp.eq.s32.totalorder %s14, 0
    %p76 = por %p74, %p75
    %p77 = scmp.ne.s32.totalorder %s69, %s71
    %p78 = scmp.eq.s32.totalorder %s19, 1
    %p79 = por %p77, %p78
    %p80 = scmp.ne.s32.totalorder %s71, %s72
    %p81 = scmp.eq.s32.totalorder %s19, 0
    %p82 = por %p80, %p81
    %p83 = scmp.ne.s32.totalorder %s71, %s72
    %p84 = scmp.eq.s32.totalorder %s20, 1
    %p85 = por %p83, %p84
    %p87 = scmp.ne.s32.totalorder %s72, %s86
    %p88 = scmp.eq.s32.totalorder %s20, 0
    %p89 = por %p87, %p88
    %s91 = sadd.s32 %s90, 1
    %p94 = scmp.eq.s32.totalorder %s14, 1
    %p95 = scmp.ne.s32.totalorder %s90, %s92
    %p96 = scmp.eq.s32.totalorder %s14, 0
    %p97 = por %p95, %p96
    %p98 = scmp.ne.s32.totalorder %s90, %s92
    %p99 = scmp.eq.s32.totalorder %s19, 1
    %p100 = por %p98, %p99
    %p101 = scmp.ne.s32.totalorder %s92, %s93
    %p102 = scmp.eq.s32.totalorder %s19, 0
    %p103 = por %p101, %p102
    %p104 = scmp.ne.s32.totalorder %s92, %s93
    %p105 = scmp.eq.s32.totalorder %s20, 1
    %p106 = por %p104, %p105
    %p108 = scmp.ne.s32.totalorder %s93, %s107
    %p109 = scmp.eq.s32.totalorder %s20, 0
    %p110 = por %p108, %p109
    %s112 = sadd.s32 %s111, 1
    %p115 = scmp.eq.s32.totalorder %s14, 1
    %p116 = scmp.ne.s32.totalorder %s111, %s113
    %p117 = scmp.eq.s32.totalorder %s14, 0
    %p118 = por %p116, %p117
    %p119 = scmp.ne.s32.totalorder %s111, %s113
    %p120 = scmp.eq.s32.totalorder %s19, 1
    %p121 = por %p119, %p120
    %p122 = scmp.ne.s32.totalorder %s113, %s114
    %p123 = scmp.eq.s32.totalorder %s19, 0
    %p124 = por %p122, %p123
    %p125 = scmp.ne.s32.totalorder %s113, %s114
    %p126 = scmp.eq.s32.totalorder %s20, 1
    %p127 = por %p125, %p126
    %p129 = scmp.ne.s32.totalorder %s114, %s128
    %p130 = scmp.eq.s32.totalorder %s20, 0
    %p131 = por %p129, %p130
    %s132 = ssub.s32 %s14, %s21
    %p133 = scmp.eq.s32.totalorder %s132, 0
    %s135 = sadd.s32 %s134, 1
    %s136 = scalar_select %p133, %s134, %s135
    %p139 = pneg %p133
    %p140 = scmp.eq.s32.totalorder %s14, 1
    %p141 = por %p139, %p140
    %p142 = scmp.ne.s32.totalorder %s134, %s137
    %p143 = scmp.eq.s32.totalorder %s14, 0
    %p144 = por %p142, %p143
    %p145 = scmp.ne.s32.totalorder %s134, %s137
    %p146 = scmp.eq.s32.totalorder %s19, 1
    %p147 = por %p145, %p146
    %p148 = scmp.ne.s32.totalorder %s137, %s138
    %p149 = scmp.eq.s32.totalorder %s19, 0
    %p150 = por %p148, %p149
    %p151 = scmp.ne.s32.totalorder %s137, %s138
    %p152 = scmp.eq.s32.totalorder %s20, 1
    %p153 = por %p151, %p152
    %p155 = scmp.ne.s32.totalorder %s138, %s154
    %p156 = scmp.eq.s32.totalorder %s20, 0
    %p157 = por %p155, %p156
    %s158 = ssub.s32 %s14, %s21
    %p159 = scmp.eq.s32.totalorder %s158, 0
    %s161 = sadd.s32 %s160, 1
    %s162 = scalar_select %p159, %s160, %s161
    %p165 = pneg %p159
    %p166 = scmp.eq.s32.totalorder %s14, 1
    %p167 = por %p165, %p166
    %p168 = scmp.ne.s32.totalorder %s160, %s163
    %p169 = scmp.eq.s32.totalorder %s14, 0
    %p170 = por %p168, %p169
    %p171 = scmp.ne.s32.totalorder %s160, %s163
    %p172 = scmp.eq.s32.totalorder %s19, 1
    %p173 = por %p171, %p172
    %p174 = scmp.ne.s32.totalorder %s163, %s164
    %p175 = scmp.eq.s32.totalorder %s19, 0
    %p176 = por %p174, %p175
    %p177 = scmp.ne.s32.totalorder %s163, %s164
    %p178 = scmp.eq.s32.totalorder %s20, 1
    %p179 = por %p177, %p178
    %p181 = scmp.ne.s32.totalorder %s164, %s180
    %p182 = scmp.eq.s32.totalorder %s20, 0
    %p183 = por %p181, %p182
    %s184 = ssub.s32 %s14, %s21
    %p185 = scmp.eq.s32.totalorder %s184, 0
    %s187 = sadd.s32 %s186, 1
    %s188 = scalar_select %p185, %s186, %s187
    %p191 = pneg %p185
    %p192 = scmp.eq.s32.totalorder %s14, 1
    %p193 = por %p191, %p192
    %p194 = scmp.ne.s32.totalorder %s186, %s189
    %p195 = scmp.eq.s32.totalorder %s14, 0
    %p196 = por %p194, %p195
    %p197 = scmp.ne.s32.totalorder %s186, %s189
    %p198 = scmp.eq.s32.totalorder %s19, 1
    %p199 = por %p197, %p198
    %p200 = scmp.ne.s32.totalorder %s189, %s190
    %p201 = scmp.eq.s32.totalorder %s19, 0
    %p202 = por %p200, %p201
    %p203 = scmp.ne.s32.totalorder %s189, %s190
    %p204 = scmp.eq.s32.totalorder %s20, 1
    %p205 = por %p203, %p204
    %p207 = scmp.ne.s32.totalorder %s190, %s206
    %p208 = scmp.eq.s32.totalorder %s20, 0
    %p209 = por %p207, %p208
    %p210 = scmp.le.s32.totalorder 1, %s14
    %p211 = scmp.lt.s32.totalorder %s14, 3
    %p212 = pnand %p210, %p211
    %p213 = pneg %p212
    // Predicated region
    $region9: #{bottleneck_forward.5} parent=5 // pred_check
      _
    $region10: #{bottleneck_forward.5} parent=5 // pred_check_branch
      %215 = sbr.rel (%p212) target = $region12
    $region11: #{bottleneck_forward.5} parent=5 // pred_region
      %s216 = ssub.s32 %s14, 1
      // Predicated region
      $region13: #{bottleneck_forward.5} parent=11 // pred_check
        %p217 = pneg %p61
      $region14: #{bottleneck_forward.5} parent=11 // pred_check_branch
        %219 = sbr.rel (%p217) target = $region16
      $region15: #{bottleneck_forward.5} parent=11 // pred_region
        _
      $region16: #{bottleneck_forward.5} parent=11 // pred_fallthru
        _
      // Predicated region
      $region17: #{bottleneck_forward.5} parent=11 // pred_check
        %p220 = pneg %p82
      $region18: #{bottleneck_forward.5} parent=11 // pred_check_branch
        %222 = sbr.rel (%p220) target = $region20
      $region19: #{bottleneck_forward.5} parent=11 // pred_region
        _
      $region20: #{bottleneck_forward.5} parent=11 // pred_fallthru
        _
      // Predicated region
      $region21: #{bottleneck_forward.5} parent=11 // pred_check
        %p223 = pneg %p103
      $region22: #{bottleneck_forward.5} parent=11 // pred_check_branch
        %225 = sbr.rel (%p223) target = $region24
      $region23: #{bottleneck_forward.5} parent=11 // pred_region
        _
      $region24: #{bottleneck_forward.5} parent=11 // pred_fallthru
        _
      // Predicated region
      $region25: #{bottleneck_forward.5} parent=11 // pred_check
        %p226 = pneg %p124
      $region26: #{bottleneck_forward.5} parent=11 // pred_check_branch
        %228 = sbr.rel (%p226) target = $region28
      $region27: #{bottleneck_forward.5} parent=11 // pred_region
        _
      $region28: #{bottleneck_forward.5} parent=11 // pred_fallthru
        _
    $region12: #{bottleneck_forward.5} parent=5 // pred_fallthru
      _
    %p229 = scmp.lt.s32.totalorder %s14, 2
    // Predicated region
    $region29: #{bottleneck_forward.5} parent=5 // pred_check
      %p230 = pneg %p229
    $region30: #{bottleneck_forward.5} parent=5 // pred_check_branch
      %232 = sbr.rel (%p230) target = $region32
    $region31: #{bottleneck_forward.5} parent=5 // pred_region
      // Predicated region
      $region33: #{bottleneck_forward.5} parent=31 // pred_check
        %p233 = pneg %p34
      $region34: #{bottleneck_forward.5} parent=31 // pred_check_branch
        %235 = sbr.rel (%p233) target = $region36
      $region35: #{bottleneck_forward.5} parent=31 // pred_region
        %s236 = smul.u32 32, %s14
        %p237 = scmp.lt.s32.totalorder %s236, 63
        %s238 = scalar_select %p237, %s236, 63
        %s239 = smul.addr %s238, 8
        %s240 = scalar_lea.vmem %s0, %s239
        %s241 = smul.u32 32, %s14
      $region36: #{bottleneck_forward.5} parent=31 // pred_fallthru
        _
    $region32: #{bottleneck_forward.5} parent=5 // pred_fallthru
      _
    %p242 = scmp.le.s32.totalorder 1, %s14
    %p243 = scmp.lt.s32.totalorder %s14, 3
    %p244 = pnand %p242, %p243
    %p245 = pneg %p244
    // Predicated region
    $region37: #{bottleneck_forward.5} parent=5 // pred_check
      _
    $region38: #{bottleneck_forward.5} parent=5 // pred_check_branch
      %247 = sbr.rel (%p244) target = $region40
    $region39: #{bottleneck_forward.5} parent=5 // pred_region
      %s248 = ssub.s32 %s14, 1
      %s249 = smul.u32 32, %s19
      %p250 = scmp.lt.s32.totalorder %s249, 63
      %s251 = scalar_select %p250, %s249, 63
      %s252 = smul.addr %s251, 8
      %s253 = scalar_lea.vmem %s0, %s252
      %p254 = pneg %p40
      %p255 = pneg %p37
      %p256 = pneg %p61
      %p257 = pneg %p58
      %p258 = pneg %p82
      %p259 = pneg %p79
      %p260 = pneg %p103
      %p261 = pneg %p100
      %p262 = pneg %p124
      %p263 = pneg %p121
      %p264 = pneg %p150
      %p265 = pneg %p147
      %s266 = smul.u32 32, %s19
      %p267 = scmp.lt.s32.totalorder %s266, 63
      %s268 = scalar_select %p267, %s266, 63
      %s269 = smul.addr %s268, 8
      %s270 = scalar_lea.vmem %s5, %s269
      %p271 = pneg %p176
      %p272 = pneg %p173
      %p273 = scmp.lt.s32.totalorder %s19, 1
      %s274 = scalar_select %p273, %s19, 1
      %s275 = smul.addr %s274, 8
      %s276 = scalar_lea.vmem %s6, %s275
      %p277 = pneg %p202
      %p278 = pneg %p199
      %p279 = scmp.lt.s32.totalorder %s19, 1
      %s280 = scalar_select %p279, %s19, 1
      %s281 = smul.addr %s280, 8
      %s282 = scalar_lea.vmem %s7, %s281
      %s283 = smul.u32 32, %s19
      %p284 = scmp.lt.s32.totalorder %s283, 63
      %s285 = scalar_select %p284, %s283, 63
      %s286 = smul.addr %s285, 8
      %s287 = scalar_lea.vmem %s0, %s286
      %s288 = smul.u32 32, %s19
      %s289 = smul.u32 32, %s19
      %p290 = scmp.lt.s32.totalorder %s289, 63
      %s291 = scalar_select %p290, %s289, 63
      %s292 = smul.addr %s291, 8
      %s293 = scalar_lea.vmem %s5, %s292
      %s294 = smul.u32 32, %s19
      %p295 = scmp.lt.s32.totalorder %s19, 1
      %s296 = scalar_select %p295, %s19, 1
      %s297 = smul.addr %s296, 8
      %s298 = scalar_lea.vmem %s6, %s297
      %p299 = scmp.lt.s32.totalorder %s19, 1
      %s300 = scalar_select %p299, %s19, 1
      %s301 = smul.addr %s300, 8
      %s302 = scalar_lea.vmem %s7, %s301
      %v303 = vld [vmem:[%s287] sm:$0xff]
      %v304 = vld [vmem:[%s287 + $0x8] sm:$0xff]
      %v305 = vld [vmem:[%s287 + $0x10] sm:$0xff]
      %v306 = vld [vmem:[%s287 + $0x18] sm:$0xff]
      %v307 = vld [vmem:[%s287 + $0x20] sm:$0xff]
      %v308 = vld [vmem:[%s287 + $0x28] sm:$0xff]
      %v309 = vld [vmem:[%s287 + $0x30] sm:$0xff]
      %v310 = vld [vmem:[%s287 + $0x38] sm:$0xff]
      %v311 = vld [vmem:[%s287 + $0x40] sm:$0xff]
      %v312 = vld [vmem:[%s287 + $0x48] sm:$0xff]
      %v313 = vld [vmem:[%s287 + $0x50] sm:$0xff]
      %v314 = vld [vmem:[%s287 + $0x58] sm:$0xff]
      %v315 = vld [vmem:[%s287 + $0x60] sm:$0xff]
      %v316 = vld [vmem:[%s287 + $0x68] sm:$0xff]
      %v317 = vld [vmem:[%s287 + $0x70] sm:$0xff]
      %v318 = vld [vmem:[%s287 + $0x78] sm:$0xff]
      %v319 = vld [vmem:[%s287 + $0x80] sm:$0xff]
      %v320 = vld [vmem:[%s287 + $0x88] sm:$0xff]
      %v321 = vld [vmem:[%s287 + $0x90] sm:$0xff]
      %v322 = vld [vmem:[%s287 + $0x98] sm:$0xff]
      %v323 = vld [vmem:[%s287 + $0xa0] sm:$0xff]
      %v324 = vld [vmem:[%s287 + $0xa8] sm:$0xff]
      %v325 = vld [vmem:[%s287 + $0xb0] sm:$0xff]
      %v326 = vld [vmem:[%s287 + $0xb8] sm:$0xff]
      %v327 = vld [vmem:[%s287 + $0xc0] sm:$0xff]
      %v328 = vld [vmem:[%s287 + $0xc8] sm:$0xff]
      %v329 = vld [vmem:[%s287 + $0xd0] sm:$0xff]
      %v330 = vld [vmem:[%s287 + $0xd8] sm:$0xff]
      %v331 = vld [vmem:[%s287 + $0xe0] sm:$0xff]
      %v332 = vld [vmem:[%s287 + $0xe8] sm:$0xff]
      %v333 = vld [vmem:[%s287 + $0xf0] sm:$0xff]
      %v334 = vld [vmem:[%s287 + $0xf8] sm:$0xff]
      %v335 = vld [vmem:[%s1] sm:$0x1]
      %v337 = vlaneseq
      %v338 = vshrl.u32 %v337, 7
      %v339 = vsub.s32 0, %v338
      %v340 = vrot.slane %v335, %v339
      %v342 = vmul.f32 %v303, %v340
      %v343 = vmul.f32 %v304, %v340
      %v344 = vmul.f32 %v305, %v340
      %v345 = vmul.f32 %v306, %v340
      %v346 = vmul.f32 %v307, %v340
      %v347 = vmul.f32 %v308, %v340
      %v348 = vmul.f32 %v309, %v340
      %v349 = vmul.f32 %v310, %v340
      %v350 = vmul.f32 %v311, %v340
      %v351 = vmul.f32 %v312, %v340
      %v352 = vmul.f32 %v313, %v340
      %v353 = vmul.f32 %v314, %v340
      %v354 = vmul.f32 %v315, %v340
      %v355 = vmul.f32 %v316, %v340
      %v356 = vmul.f32 %v317, %v340
      %v357 = vmul.f32 %v318, %v340
      %v358 = vmul.f32 %v319, %v340
      %v359 = vmul.f32 %v320, %v340
      %v360 = vmul.f32 %v321, %v340
      %v361 = vmul.f32 %v322, %v340
      %v362 = vmul.f32 %v323, %v340
      %v363 = vmul.f32 %v324, %v340
      %v364 = vmul.f32 %v325, %v340
      %v365 = vmul.f32 %v326, %v340
      %v366 = vmul.f32 %v327, %v340
      %v367 = vmul.f32 %v328, %v340
      %v368 = vmul.f32 %v329, %v340
      %v369 = vmul.f32 %v330, %v340
      %v370 = vmul.f32 %v331, %v340
      %v371 = vmul.f32 %v332, %v340
      %v372 = vmul.f32 %v333, %v340
      %v373 = vmul.f32 %v334, %v340
      %v374 = vld [vmem:[%s2] sm:$0x1]
      %v376 = vlaneseq
      %v377 = vshrl.u32 %v376, 7
      %v378 = vsub.s32 0, %v377
      %v379 = vrot.slane %v374, %v378
      %v381 = vadd.f32 %v342, %v379
      %v382 = vadd.f32 %v343, %v379
      %v383 = vadd.f32 %v344, %v379
      %v384 = vadd.f32 %v345, %v379
      %v385 = vadd.f32 %v346, %v379
      %v386 = vadd.f32 %v347, %v379
      %v387 = vadd.f32 %v348, %v379
      %v388 = vadd.f32 %v349, %v379
      %v389 = vadd.f32 %v350, %v379
      %v390 = vadd.f32 %v351, %v379
      %v391 = vadd.f32 %v352, %v379
      %v392 = vadd.f32 %v353, %v379
      %v393 = vadd.f32 %v354, %v379
      %v394 = vadd.f32 %v355, %v379
      %v395 = vadd.f32 %v356, %v379
      %v396 = vadd.f32 %v357, %v379
      %v397 = vadd.f32 %v358, %v379
      %v398 = vadd.f32 %v359, %v379
      %v399 = vadd.f32 %v360, %v379
      %v400 = vadd.f32 %v361, %v379
      %v401 = vadd.f32 %v362, %v379
      %v402 = vadd.f32 %v363, %v379
      %v403 = vadd.f32 %v364, %v379
      %v404 = vadd.f32 %v365, %v379
      %v405 = vadd.f32 %v366, %v379
      %v406 = vadd.f32 %v367, %v379
      %v407 = vadd.f32 %v368, %v379
      %v408 = vadd.f32 %v369, %v379
      %v409 = vadd.f32 %v370, %v379
      %v410 = vadd.f32 %v371, %v379
      %v411 = vadd.f32 %v372, %v379
      %v412 = vadd.f32 %v373, %v379
      %v413 = vmax.f32 %v381, 0.0
      %v414 = vmax.f32 %v382, 0.0
      %v415 = vmax.f32 %v383, 0.0
      %v416 = vmax.f32 %v384, 0.0
      %v417 = vmax.f32 %v385, 0.0
      %v418 = vmax.f32 %v386, 0.0
      %v419 = vmax.f32 %v387, 0.0
      %v420 = vmax.f32 %v388, 0.0
      %v421 = vmax.f32 %v389, 0.0
      %v422 = vmax.f32 %v390, 0.0
      %v423 = vmax.f32 %v391, 0.0
      %v424 = vmax.f32 %v392, 0.0
      %v425 = vmax.f32 %v393, 0.0
      %v426 = vmax.f32 %v394, 0.0
      %v427 = vmax.f32 %v395, 0.0
      %v428 = vmax.f32 %v396, 0.0
      %v429 = vmax.f32 %v397, 0.0
      %v430 = vmax.f32 %v398, 0.0
      %v431 = vmax.f32 %v399, 0.0
      %v432 = vmax.f32 %v400, 0.0
      %v433 = vmax.f32 %v401, 0.0
      %v434 = vmax.f32 %v402, 0.0
      %v435 = vmax.f32 %v403, 0.0
      %v436 = vmax.f32 %v404, 0.0
      %v437 = vmax.f32 %v405, 0.0
      %v438 = vmax.f32 %v406, 0.0
      %v439 = vmax.f32 %v407, 0.0
      %v440 = vmax.f32 %v408, 0.0
      %v441 = vmax.f32 %v409, 0.0
      %v442 = vmax.f32 %v410, 0.0
      %v443 = vmax.f32 %v411, 0.0
      %v444 = vmax.f32 %v412, 0.0
      %v445 = vld [vmem:[%s3] sm:$0xff]
      %v446 = vld [vmem:[%s4] sm:$0x1]
      %v448 = vlaneseq
      %v449 = vshrl.u32 %v448, 7
      %v450 = vsub.s32 0, %v449
      %v451 = vrot.slane %v446, %v450
      %vm453 = vcmask 64512
      %v455 = vsel %vm453, %v413, 0
      %v458 = vsel %vm453, %v414, 0
      %v461 = vsel %vm453, %v415, 0
      %v464 = vsel %vm453, %v416, 0
      %v467 = vsel %vm453, %v417, 0
      %v470 = vsel %vm453, %v418, 0
      %v473 = vsel %vm453, %v419, 0
      %v476 = vsel %vm453, %v420, 0
      %v479 = vsel %vm453, %v421, 0
      %v482 = vsel %vm453, %v422, 0
      %v485 = vsel %vm453, %v423, 0
      %v488 = vsel %vm453, %v424, 0
      %v491 = vsel %vm453, %v425, 0
      %v494 = vsel %vm453, %v426, 0
      %v497 = vsel %vm453, %v427, 0
      %v500 = vsel %vm453, %v428, 0
      %v503 = vsel %vm453, %v429, 0
      %v506 = vsel %vm453, %v430, 0
      %v509 = vsel %vm453, %v431, 0
      %v512 = vsel %vm453, %v432, 0
      %v515 = vsel %vm453, %v433, 0
      %v518 = vsel %vm453, %v434, 0
      %v521 = vsel %vm453, %v435, 0
      %v524 = vsel %vm453, %v436, 0
      %v527 = vsel %vm453, %v437, 0
      %v530 = vsel %vm453, %v438, 0
      %v533 = vsel %vm453, %v439, 0
      %v536 = vsel %vm453, %v440, 0
      %v539 = vsel %vm453, %v441, 0
      %v542 = vsel %vm453, %v442, 0
      %v545 = vsel %vm453, %v443, 0
      %v548 = vsel %vm453, %v444, 0
      %550 = vmatprep.subr.mxu0 0.0
      %551 = vmatpush1.msra.mxu0 %v445
      %552 = vmatprep.subr.mxu0 0.0
      %553 = vmatpush1.msra.mxu0 0.0
      %554 = vmatprep.subr.mxu0 0.0
      %555 = vmatpush1.msra.mxu0 0.0
      %556 = vmatprep.subr.mxu0 0.0
      %557 = vmatpush1.msra.mxu0 0.0
      %558 = vmatprep.subr.mxu0 0.0
      %559 = vmatpush1.msra.mxu0 0.0
      %560 = vmatprep.subr.mxu0 0.0
      %561 = vmatpush1.msra.mxu0 0.0
      %562 = vmatprep.subr.mxu0 0.0
      %563 = vmatpush1.msra.mxu0 0.0
      %564 = vmatprep.subr.mxu0 0.0
      %565 = vmatpush1.msra.mxu0 0.0
      %566 = vmatprep.subr.mxu0 0.0
      %567 = vmatpush1.msra.mxu0 0.0
      %568 = vmatprep.subr.mxu0 0.0
      %569 = vmatpush1.msra.mxu0 0.0
      %570 = vmatprep.subr.mxu0 0.0
      %571 = vmatpush1.msra.mxu0 0.0
      %572 = vmatprep.subr.mxu0 0.0
      %573 = vmatpush1.msra.mxu0 0.0
      %574 = vmatprep.subr.mxu0 0.0
      %575 = vmatpush1.msra.mxu0 0.0
      %576 = vmatprep.subr.mxu0 0.0
      %577 = vmatpush1.msra.mxu0 0.0
      %578 = vmatprep.subr.mxu0 0.0
      %579 = vmatpush1.msra.mxu0 0.0
      %580 = vmatprep.subr.mxu0 0.0
      %581 = vmatpush1.msra.mxu0 0.0
      %582 = vmatprep.subr.mxu0 0.0
      %583 = vmatpush1.msra.mxu0 0.0
      %584 = vmatprep.subr.mxu0 0.0
      %585 = vmatpush1.msra.mxu0 0.0
      %586 = vmatprep.subr.mxu0 0.0
      %587 = vmatpush1.msra.mxu0 0.0
      %588 = vmatprep.subr.mxu0 0.0
      %589 = vmatpush1.msra.mxu0 0.0
      %590 = vmatprep.subr.mxu0 0.0
      %591 = vmatpush1.msra.mxu0 0.0
      %592 = vmatprep.subr.mxu0 0.0
      %593 = vmatpush1.msra.mxu0 0.0
      %594 = vmatprep.subr.mxu0 0.0
      %595 = vmatpush1.msra.mxu0 0.0
      %596 = vmatprep.subr.mxu0 0.0
      %597 = vmatpush1.msra.mxu0 0.0
      %598 = vmatprep.subr.mxu0 0.0
      %599 = vmatpush1.msra.mxu0 0.0
      %600 = vmatprep.subr.mxu0 0.0
      %601 = vmatpush1.msra.mxu0 0.0
      %602 = vmatprep.subr.mxu0 0.0
      %603 = vmatpush1.msra.mxu0 0.0
      %604 = vmatprep.subr.mxu0 0.0
      %605 = vmatpush1.msra.mxu0 0.0
      %606 = vmatprep.subr.mxu0 0.0
      %607 = vmatpush1.msra.mxu0 0.0
      %608 = vmatprep.subr.mxu0 0.0
      %609 = vmatpush1.msra.mxu0 0.0
      %610 = vmatprep.subr.mxu0 0.0
      %611 = vmatpush1.msra.mxu0 0.0
      %612 = vmatprep.subr.mxu0 0.0
      %613 = vmatpush1.msra.mxu0 0.0
      %614 = vmatprep.mubr.f32.mxu0 0.0
      %615 = vmatmul.mubr.f32.gmra.mrb[0].mxu0 %v455
      %v616 = vpop.f32.mrb[0].mxu0
      %v617 = vadd.f32 %v451, %v616
      %v618 = vpop.f32.mrb[0].mxu0
      %619 = vmatprep.mubr.f32.mxu0 0.0
      %620 = vmatmul.mubr.f32.gmra.mrb[0].mxu0 %v458
      %v621 = vpop.f32.mrb[0].mxu0
      %v622 = vadd.f32 %v451, %v621
      %v623 = vpop.f32.mrb[0].mxu0
      %624 = vmatprep.mubr.f32.mxu0 0.0
      %625 = vmatmul.mubr.f32.gmra.mrb[0].mxu0 %v461
      %v626 = vpop.f32.mrb[0].mxu0
      %v627 = vadd.f32 %v451, %v626
      %v628 = vpop.f32.mrb[0].mxu0
      %629 = vmatprep.mubr.f32.mxu0 0.0
      %630 = vmatmul.mubr.f32.gmra.mrb[0].mxu0 %v464
      %v631 = vpop.f32.mrb[0].mxu0
      %v632 = vadd.f32 %v451, %v631
      %v633 = vpop.f32.mrb[0].mxu0
      %634 = vmatprep.mubr.f32.mxu0 0.0
      %635 = vmatmul.mubr.f32.gmra.mrb[0].mxu0 %v467
      %v636 = vpop.f32.mrb[0].mxu0
      %v637 = vadd.f32 %v451, %v636
      %v638 = vpop.f32.mrb[0].mxu0
      %639 = vmatprep.mubr.f32.mxu0 0.0
      %640 = vmatmul.mubr.f32.gmra.mrb[0].mxu0 %v470
      %v641 = vpop.f32.mrb[0].mxu0
      %v642 = vadd.f32 %v451, %v641
      %v643 = vpop.f32.mrb[0].mxu0
      %644 = vmatprep.mubr.f32.mxu0 0.0
      %645 = vmatmul.mubr.f32.gmra.mrb[0].mxu0 %v473
      %v646 = vpop.f32.mrb[0].mxu0
      %v647 = vadd.f32 %v451, %v646
      %v648 = vpop.f32.mrb[0].mxu0
      %649 = vmatprep.mubr.f32.mxu0 0.0
      %650 = vmatmul.mubr.f32.gmra.mrb[0].mxu0 %v476
      %v651 = vpop.f32.mrb[0].mxu0
      %v652 = vadd.f32 %v451, %v651
      %v653 = vpop.f32.mrb[0].mxu0
      %654 = vmatprep.mubr.f32.mxu0 0.0
      %655 = vmatmul.mubr.f32.gmra.mrb[0].mxu0 %v479
      %v656 = vpop.f32.mrb[0].mxu0
      %v657 = vadd.f32 %v451, %v656
      %v658 = vpop.f32.mrb[0].mxu0
      %659 = vmatprep.mubr.f32.mxu0 0.0
      %660 = vmatmul.mubr.f32.gmra.mrb[0].mxu0 %v482
      %v661 = vpop.f32.mrb[0].mxu0
      %v662 = vadd.f32 %v451, %v661
      %v663 = vpop.f32.mrb[0].mxu0
      %664 = vmatprep.mubr.f32.mxu0 0.0
      %665 = vmatmul.mubr.f32.gmra.mrb[0].mxu0 %v485
      %v666 = vpop.f32.mrb[0].mxu0
      %v667 = vadd.f32 %v451, %v666
      %v668 = vpop.f32.mrb[0].mxu0
      %669 = vmatprep.mubr.f32.mxu0 0.0
      %670 = vmatmul.mubr.f32.gmra.mrb[0].mxu0 %v488
      %v671 = vpop.f32.mrb[0].mxu0
      %v672 = vadd.f32 %v451, %v671
      %v673 = vpop.f32.mrb[0].mxu0
      %674 = vmatprep.mubr.f32.mxu0 0.0
      %675 = vmatmul.mubr.f32.gmra.mrb[0].mxu0 %v491
      %v676 = vpop.f32.mrb[0].mxu0
      %v677 = vadd.f32 %v451, %v676
      %v678 = vpop.f32.mrb[0].mxu0
      %679 = vmatprep.mubr.f32.mxu0 0.0
      %680 = vmatmul.mubr.f32.gmra.mrb[0].mxu0 %v494
      %v681 = vpop.f32.mrb[0].mxu0
      %v682 = vadd.f32 %v451, %v681
      %v683 = vpop.f32.mrb[0].mxu0
      %684 = vmatprep.mubr.f32.mxu0 0.0
      %685 = vmatmul.mubr.f32.gmra.mrb[0].mxu0 %v497
      %v686 = vpop.f32.mrb[0].mxu0
      %v687 = vadd.f32 %v451, %v686
      %v688 = vpop.f32.mrb[0].mxu0
      %689 = vmatprep.mubr.f32.mxu0 0.0
      %690 = vmatmul.mubr.f32.gmra.mrb[0].mxu0 %v500
      %v691 = vpop.f32.mrb[0].mxu0
      %v692 = vadd.f32 %v451, %v691
      %v693 = vpop.f32.mrb[0].mxu0
      %694 = vmatprep.mubr.f32.mxu0 0.0
      %695 = vmatmul.mubr.f32.gmra.mrb[0].mxu0 %v503
      %v696 = vpop.f32.mrb[0].mxu0
      %v697 = vadd.f32 %v451, %v696
      %v698 = vpop.f32.mrb[0].mxu0
      %699 = vmatprep.mubr.f32.mxu0 0.0
      %700 = vmatmul.mubr.f32.gmra.mrb[0].mxu0 %v506
      %v701 = vpop.f32.mrb[0].mxu0
      %v702 = vadd.f32 %v451, %v701
      %v703 = vpop.f32.mrb[0].mxu0
      %704 = vmatprep.mubr.f32.mxu0 0.0
      %705 = vmatmul.mubr.f32.gmra.mrb[0].mxu0 %v509
      %v706 = vpop.f32.mrb[0].mxu0
      %v707 = vadd.f32 %v451, %v706
      %v708 = vpop.f32.mrb[0].mxu0
      %709 = vmatprep.mubr.f32.mxu0 0.0
      %710 = vmatmul.mubr.f32.gmra.mrb[0].mxu0 %v512
      %v711 = vpop.f32.mrb[0].mxu0
      %v712 = vadd.f32 %v451, %v711
      %v713 = vpop.f32.mrb[0].mxu0
      %714 = vmatprep.mubr.f32.mxu0 0.0
      %715 = vmatmul.mubr.f32.gmra.mrb[0].mxu0 %v515
      %v716 = vpop.f32.mrb[0].mxu0
      %v717 = vadd.f32 %v451, %v716
      %v718 = vpop.f32.mrb[0].mxu0
      %719 = vmatprep.mubr.f32.mxu0 0.0
      %720 = vmatmul.mubr.f32.gmra.mrb[0].mxu0 %v518
      %v721 = vpop.f32.mrb[0].mxu0
      %v722 = vadd.f32 %v451, %v721
      %v723 = vpop.f32.mrb[0].mxu0
      %724 = vmatprep.mubr.f32.mxu0 0.0
      %725 = vmatmul.mubr.f32.gmra.mrb[0].mxu0 %v521
      %v726 = vpop.f32.mrb[0].mxu0
      %v727 = vadd.f32 %v451, %v726
      %v728 = vpop.f32.mrb[0].mxu0
      %729 = vmatprep.mubr.f32.mxu0 0.0
      %730 = vmatmul.mubr.f32.gmra.mrb[0].mxu0 %v524
      %v731 = vpop.f32.mrb[0].mxu0
      %v732 = vadd.f32 %v451, %v731
      %v733 = vpop.f32.mrb[0].mxu0
      %734 = vmatprep.mubr.f32.mxu0 0.0
      %735 = vmatmul.mubr.f32.gmra.mrb[0].mxu0 %v527
      %v736 = vpop.f32.mrb[0].mxu0
      %v737 = vadd.f32 %v451, %v736
      %v738 = vpop.f32.mrb[0].mxu0
      %739 = vmatprep.mubr.f32.mxu0 0.0
      %740 = vmatmul.mubr.f32.gmra.mrb[0].mxu0 %v530
      %v741 = vpop.f32.mrb[0].mxu0
      %v742 = vadd.f32 %v451, %v741
      %v743 = vpop.f32.mrb[0].mxu0
      %744 = vmatprep.mubr.f32.mxu0 0.0
      %745 = vmatmul.mubr.f32.gmra.mrb[0].mxu0 %v533
      %v746 = vpop.f32.mrb[0].mxu0
      %v747 = vadd.f32 %v451, %v746
      %v748 = vpop.f32.mrb[0].mxu0
      %749 = vmatprep.mubr.f32.mxu0 0.0
      %750 = vmatmul.mubr.f32.gmra.mrb[0].mxu0 %v536
      %v751 = vpop.f32.mrb[0].mxu0
      %v752 = vadd.f32 %v451, %v751
      %v753 = vpop.f32.mrb[0].mxu0
      %754 = vmatprep.mubr.f32.mxu0 0.0
      %755 = vmatmul.mubr.f32.gmra.mrb[0].mxu0 %v539
      %v756 = vpop.f32.mrb[0].mxu0
      %v757 = vadd.f32 %v451, %v756
      %v758 = vpop.f32.mrb[0].mxu0
      %759 = vmatprep.mubr.f32.mxu0 0.0
      %760 = vmatmul.mubr.f32.gmra.mrb[0].mxu0 %v542
      %v761 = vpop.f32.mrb[0].mxu0
      %v762 = vadd.f32 %v451, %v761
      %v763 = vpop.f32.mrb[0].mxu0
      %764 = vmatprep.mubr.f32.mxu0 0.0
      %765 = vmatmul.mubr.f32.gmra.mrb[0].mxu0 %v545
      %v766 = vpop.f32.mrb[0].mxu0
      %v767 = vadd.f32 %v451, %v766
      %v768 = vpop.f32.mrb[0].mxu0
      %769 = vmatprep.mubr.f32.mxu0 0.0
      %770 = vmatmul.mubr.f32.gmra.mrb[0].mxu0 %v548
      %v771 = vpop.f32.mrb[0].mxu0
      %v772 = vadd.f32 %v451, %v771
      %v773 = vpop.f32.mrb[0].mxu0
      %774 = vdwg.mxu0
      %vm775 = vcmask 31744
      %776 = vst.msk [vmem:[%s293] sm:$0xff] %vm775, %v617
      %777 = vst.msk [vmem:[%s293 + $0x8] sm:$0xff] %vm775, %v622
      %778 = vst.msk [vmem:[%s293 + $0x10] sm:$0xff] %vm775, %v627
      %779 = vst.msk [vmem:[%s293 + $0x18] sm:$0xff] %vm775, %v632
      %780 = vst.msk [vmem:[%s293 + $0x20] sm:$0xff] %vm775, %v637
      %781 = vst.msk [vmem:[%s293 + $0x28] sm:$0xff] %vm775, %v642
      %782 = vst.msk [vmem:[%s293 + $0x30] sm:$0xff] %vm775, %v647
      %783 = vst.msk [vmem:[%s293 + $0x38] sm:$0xff] %vm775, %v652
      %784 = vst.msk [vmem:[%s293 + $0x40] sm:$0xff] %vm775, %v657
      %785 = vst.msk [vmem:[%s293 + $0x48] sm:$0xff] %vm775, %v662
      %786 = vst.msk [vmem:[%s293 + $0x50] sm:$0xff] %vm775, %v667
      %787 = vst.msk [vmem:[%s293 + $0x58] sm:$0xff] %vm775, %v672
      %788 = vst.msk [vmem:[%s293 + $0x60] sm:$0xff] %vm775, %v677
      %789 = vst.msk [vmem:[%s293 + $0x68] sm:$0xff] %vm775, %v682
      %790 = vst.msk [vmem:[%s293 + $0x70] sm:$0xff] %vm775, %v687
      %791 = vst.msk [vmem:[%s293 + $0x78] sm:$0xff] %vm775, %v692
      %792 = vst.msk [vmem:[%s293 + $0x80] sm:$0xff] %vm775, %v697
      %793 = vst.msk [vmem:[%s293 + $0x88] sm:$0xff] %vm775, %v702
      %794 = vst.msk [vmem:[%s293 + $0x90] sm:$0xff] %vm775, %v707
      %795 = vst.msk [vmem:[%s293 + $0x98] sm:$0xff] %vm775, %v712
      %796 = vst.msk [vmem:[%s293 + $0xa0] sm:$0xff] %vm775, %v717
      %797 = vst.msk [vmem:[%s293 + $0xa8] sm:$0xff] %vm775, %v722
      %798 = vst.msk [vmem:[%s293 + $0xb0] sm:$0xff] %vm775, %v727
      %799 = vst.msk [vmem:[%s293 + $0xb8] sm:$0xff] %vm775, %v732
      %800 = vst.msk [vmem:[%s293 + $0xc0] sm:$0xff] %vm775, %v737
      %801 = vst.msk [vmem:[%s293 + $0xc8] sm:$0xff] %vm775, %v742
      %802 = vst.msk [vmem:[%s293 + $0xd0] sm:$0xff] %vm775, %v747
      %803 = vst.msk [vmem:[%s293 + $0xd8] sm:$0xff] %vm775, %v752
      %804 = vst.msk [vmem:[%s293 + $0xe0] sm:$0xff] %vm775, %v757
      %805 = vst.msk [vmem:[%s293 + $0xe8] sm:$0xff] %vm775, %v762
      %806 = vst.msk [vmem:[%s293 + $0xf0] sm:$0xff] %vm775, %v767
      %807 = vst.msk [vmem:[%s293 + $0xf8] sm:$0xff] %vm775, %v772
      %v808 = vsel %vm775, %v617, 0.0
      %v809 = vsel %vm775, %v622, 0.0
      %v810 = vadd.f32 %v808, %v809
      %v811 = vsel %vm775, %v627, 0.0
      %v812 = vadd.f32 %v810, %v811
      %v813 = vsel %vm775, %v632, 0.0
      %v814 = vadd.f32 %v812, %v813
      %v815 = vsel %vm775, %v637, 0.0
      %v816 = vadd.f32 %v814, %v815
      %v817 = vsel %vm775, %v642, 0.0
      %v818 = vadd.f32 %v816, %v817
      %v819 = vsel %vm775, %v647, 0.0
      %v820 = vadd.f32 %v818, %v819
      %v821 = vsel %vm775, %v652, 0.0
      %v822 = vadd.f32 %v820, %v821
      %v823 = vsel %vm775, %v657, 0.0
      %v824 = vadd.f32 %v822, %v823
      %v825 = vsel %vm775, %v662, 0.0
      %v826 = vadd.f32 %v824, %v825
      %v827 = vsel %vm775, %v667, 0.0
      %v828 = vadd.f32 %v826, %v827
      %v829 = vsel %vm775, %v672, 0.0
      %v830 = vadd.f32 %v828, %v829
      %v831 = vsel %vm775, %v677, 0.0
      %v832 = vadd.f32 %v830, %v831
      %v833 = vsel %vm775, %v682, 0.0
      %v834 = vadd.f32 %v832, %v833
      %v835 = vsel %vm775, %v687, 0.0
      %v836 = vadd.f32 %v834, %v835
      %v837 = vsel %vm775, %v692, 0.0
      %v838 = vadd.f32 %v836, %v837
      %v839 = vsel %vm775, %v697, 0.0
      %v840 = vadd.f32 %v838, %v839
      %v841 = vsel %vm775, %v702, 0.0
      %v842 = vadd.f32 %v840, %v841
      %v843 = vsel %vm775, %v707, 0.0
      %v844 = vadd.f32 %v842, %v843
      %v845 = vsel %vm775, %v712, 0.0
      %v846 = vadd.f32 %v844, %v845
      %v847 = vsel %vm775, %v717, 0.0
      %v848 = vadd.f32 %v846, %v847
      %v849 = vsel %vm775, %v722, 0.0
      %v850 = vadd.f32 %v848, %v849
      %v851 = vsel %vm775, %v727, 0.0
      %v852 = vadd.f32 %v850, %v851
      %v853 = vsel %vm775, %v732, 0.0
      %v854 = vadd.f32 %v852, %v853
      %v855 = vsel %vm775, %v737, 0.0
      %v856 = vadd.f32 %v854, %v855
      %v857 = vsel %vm775, %v742, 0.0
      %v858 = vadd.f32 %v856, %v857
      %v859 = vsel %vm775, %v747, 0.0
      %v860 = vadd.f32 %v858, %v859
      %v861 = vsel %vm775, %v752, 0.0
      %v862 = vadd.f32 %v860, %v861
      %v863 = vsel %vm775, %v757, 0.0
      %v864 = vadd.f32 %v862, %v863
      %v865 = vsel %vm775, %v762, 0.0
      %v866 = vadd.f32 %v864, %v865
      %v867 = vsel %vm775, %v767, 0.0
      %v868 = vadd.f32 %v866, %v867
      %v869 = vsel %vm775, %v772, 0.0
      %v870 = vadd.f32 %v868, %v869
      %v871 = vrot.slane %v870, 4
      %v872 = vadd.f32 %v870, %v871
      %v873 = vrot.slane %v872, 2
      %v874 = vadd.f32 %v872, %v873
      %v875 = vrot.slane %v874, 1
      %v876 = vadd.f32 %v874, %v875
      %v877 = vmul.f32 %v617, %v617
      %v878 = vmul.f32 %v622, %v622
      %v879 = vmul.f32 %v627, %v627
      %v880 = vmul.f32 %v632, %v632
      %v881 = vmul.f32 %v637, %v637
      %v882 = vmul.f32 %v642, %v642
      %v883 = vmul.f32 %v647, %v647
      %v884 = vmul.f32 %v652, %v652
      %v885 = vmul.f32 %v657, %v657
      %v886 = vmul.f32 %v662, %v662
      %v887 = vmul.f32 %v667, %v667
      %v888 = vmul.f32 %v672, %v672
      %v889 = vmul.f32 %v677, %v677
      %v890 = vmul.f32 %v682, %v682
      %v891 = vmul.f32 %v687, %v687
      %v892 = vmul.f32 %v692, %v692
      %v893 = vmul.f32 %v697, %v697
      %v894 = vmul.f32 %v702, %v702
      %v895 = vmul.f32 %v707, %v707
      %v896 = vmul.f32 %v712, %v712
      %v897 = vmul.f32 %v717, %v717
      %v898 = vmul.f32 %v722, %v722
      %v899 = vmul.f32 %v727, %v727
      %v900 = vmul.f32 %v732, %v732
      %v901 = vmul.f32 %v737, %v737
      %v902 = vmul.f32 %v742, %v742
      %v903 = vmul.f32 %v747, %v747
      %v904 = vmul.f32 %v752, %v752
      %v905 = vmul.f32 %v757, %v757
      %v906 = vmul.f32 %v762, %v762
      %v907 = vmul.f32 %v767, %v767
      %v908 = vmul.f32 %v772, %v772
      %v909 = vsel %vm775, %v877, 0.0
      %v910 = vsel %vm775, %v878, 0.0
      %v911 = vadd.f32 %v909, %v910
      %v912 = vsel %vm775, %v879, 0.0
      %v913 = vadd.f32 %v911, %v912
      %v914 = vsel %vm775, %v880, 0.0
      %v915 = vadd.f32 %v913, %v914
      %v916 = vsel %vm775, %v881, 0.0
      %v917 = vadd.f32 %v915, %v916
      %v918 = vsel %vm775, %v882, 0.0
      %v919 = vadd.f32 %v917, %v918
      %v920 = vsel %vm775, %v883, 0.0
      %v921 = vadd.f32 %v919, %v920
      %v922 = vsel %vm775, %v884, 0.0
      %v923 = vadd.f32 %v921, %v922
      %v924 = vsel %vm775, %v885, 0.0
      %v925 = vadd.f32 %v923, %v924
      %v926 = vsel %vm775, %v886, 0.0
      %v927 = vadd.f32 %v925, %v926
      %v928 = vsel %vm775, %v887, 0.0
      %v929 = vadd.f32 %v927, %v928
      %v930 = vsel %vm775, %v888, 0.0
      %v931 = vadd.f32 %v929, %v930
      %v932 = vsel %vm775, %v889, 0.0
      %v933 = vadd.f32 %v931, %v932
      %v934 = vsel %vm775, %v890, 0.0
      %v935 = vadd.f32 %v933, %v934
      %v936 = vsel %vm775, %v891, 0.0
      %v937 = vadd.f32 %v935, %v936
      %v938 = vsel %vm775, %v892, 0.0
      %v939 = vadd.f32 %v937, %v938
      %v940 = vsel %vm775, %v893, 0.0
      %v941 = vadd.f32 %v939, %v940
      %v942 = vsel %vm775, %v894, 0.0
      %v943 = vadd.f32 %v941, %v942
      %v944 = vsel %vm775, %v895, 0.0
      %v945 = vadd.f32 %v943, %v944
      %v946 = vsel %vm775, %v896, 0.0
      %v947 = vadd.f32 %v945, %v946
      %v948 = vsel %vm775, %v897, 0.0
      %v949 = vadd.f32 %v947, %v948
      %v950 = vsel %vm775, %v898, 0.0
      %v951 = vadd.f32 %v949, %v950
      %v952 = vsel %vm775, %v899, 0.0
      %v953 = vadd.f32 %v951, %v952
      %v954 = vsel %vm775, %v900, 0.0
      %v955 = vadd.f32 %v953, %v954
      %v956 = vsel %vm775, %v901, 0.0
      %v957 = vadd.f32 %v955, %v956
      %v958 = vsel %vm775, %v902, 0.0
      %v959 = vadd.f32 %v957, %v958
      %v960 = vsel %vm775, %v903, 0.0
      %v961 = vadd.f32 %v959, %v960
      %v962 = vsel %vm775, %v904, 0.0
      %v963 = vadd.f32 %v961, %v962
      %v964 = vsel %vm775, %v905, 0.0
      %v965 = vadd.f32 %v963, %v964
      %v966 = vsel %vm775, %v906, 0.0
      %v967 = vadd.f32 %v965, %v966
      %v968 = vsel %vm775, %v907, 0.0
      %v969 = vadd.f32 %v967, %v968
      %v970 = vsel %vm775, %v908, 0.0
      %v971 = vadd.f32 %v969, %v970
      %v972 = vrot.slane %v971, 4
      %v973 = vadd.f32 %v971, %v972
      %v974 = vrot.slane %v973, 2
      %v975 = vadd.f32 %v973, %v974
      %v976 = vrot.slane %v975, 1
      %v977 = vadd.f32 %v975, %v976
      %978 = vst.msk [vmem:[%s298] sm:$0xff] %vm775, %v876
      %979 = vst.msk [vmem:[%s302] sm:$0xff] %vm775, %v977
      %s980 = smul.u32 32, %s19
      %p981 = scmp.lt.s32.totalorder %s980, 63
      %s982 = scalar_select %p981, %s980, 63
      %s983 = smul.addr %s982, 8
      %s984 = scalar_lea.vmem %s5, %s983
      %p985 = scmp.lt.s32.totalorder %s19, 1
      %s986 = scalar_select %p985, %s19, 1
      %s987 = smul.addr %s986, 8
      %s988 = scalar_lea.vmem %s6, %s987
      %p989 = scmp.lt.s32.totalorder %s19, 1
      %s990 = scalar_select %p989, %s19, 1
      %s991 = smul.addr %s990, 8
      %s992 = scalar_lea.vmem %s7, %s991
      // Predicated region
      $region41: #{bottleneck_forward.5} parent=39 // pred_check
        %p993 = pneg %p147
      $region42: #{bottleneck_forward.5} parent=39 // pred_check_branch
        %995 = sbr.rel (%p993) target = $region44
      $region43: #{bottleneck_forward.5} parent=39 // pred_region
        %s996 = smul.u32 32, %s19
      $region44: #{bottleneck_forward.5} parent=39 // pred_fallthru
        _
      // Predicated region
      $region45: #{bottleneck_forward.5} parent=39 // pred_check
        %p997 = pneg %p173
      $region46: #{bottleneck_forward.5} parent=39 // pred_check_branch
        %999 = sbr.rel (%p997) target = $region48
      $region47: #{bottleneck_forward.5} parent=39 // pred_region
        _
      $region48: #{bottleneck_forward.5} parent=39 // pred_fallthru
        _
      // Predicated region
      $region49: #{bottleneck_forward.5} parent=39 // pred_check
        %p1000 = pneg %p199
      $region50: #{bottleneck_forward.5} parent=39 // pred_check_branch
        %1002 = sbr.rel (%p1000) target = $region52
      $region51: #{bottleneck_forward.5} parent=39 // pred_region
        _
      $region52: #{bottleneck_forward.5} parent=39 // pred_fallthru
        _
    $region40: #{bottleneck_forward.5} parent=5 // pred_fallthru
      _
    %p1003 = scmp.le.s32.totalorder 2, %s14
    // Predicated region
    $region53: #{bottleneck_forward.5} parent=5 // pred_check
      %p1004 = pneg %p1003
    $region54: #{bottleneck_forward.5} parent=5 // pred_check_branch
      %1006 = sbr.rel (%p1004) target = $region56
    $region55: #{bottleneck_forward.5} parent=5 // pred_region
      %s1007 = ssub.s32 %s14, 2
      // Predicated region
      $region57: #{bottleneck_forward.5} parent=55 // pred_check
        %p1008 = pneg %p153
      $region58: #{bottleneck_forward.5} parent=55 // pred_check_branch
        %1010 = sbr.rel (%p1008) target = $region60
      $region59: #{bottleneck_forward.5} parent=55 // pred_region
        %s1011 = smul.u32 32, %s20
        %p1012 = scmp.lt.s32.totalorder %s1011, 63
        %s1013 = scalar_select %p1012, %s1011, 63
        %s1014 = smul.addr %s1013, 8
        %s1015 = scalar_lea.vmem %s5, %s1014
      $region60: #{bottleneck_forward.5} parent=55 // pred_fallthru
        _
      // Predicated region
      $region61: #{bottleneck_forward.5} parent=55 // pred_check
        %p1016 = pneg %p179
      $region62: #{bottleneck_forward.5} parent=55 // pred_check_branch
        %1018 = sbr.rel (%p1016) target = $region64
      $region63: #{bottleneck_forward.5} parent=55 // pred_region
        %p1019 = scmp.lt.s32.totalorder %s20, 1
        %s1020 = scalar_select %p1019, %s20, 1
        %s1021 = smul.addr %s1020, 8
        %s1022 = scalar_lea.vmem %s6, %s1021
      $region64: #{bottleneck_forward.5} parent=55 // pred_fallthru
        _
      // Predicated region
      $region65: #{bottleneck_forward.5} parent=55 // pred_check
        %p1023 = pneg %p205
      $region66: #{bottleneck_forward.5} parent=55 // pred_check_branch
        %1025 = sbr.rel (%p1023) target = $region68
      $region67: #{bottleneck_forward.5} parent=55 // pred_region
        %p1026 = scmp.lt.s32.totalorder %s20, 1
        %s1027 = scalar_select %p1026, %s20, 1
        %s1028 = smul.addr %s1027, 8
        %s1029 = scalar_lea.vmem %s7, %s1028
      $region68: #{bottleneck_forward.5} parent=55 // pred_fallthru
        _
    $region56: #{bottleneck_forward.5} parent=5 // pred_fallthru
      _
  $region6: #{bottleneck_forward.5} parent=0 // loop_footer
    %s18 = sadd.s32 1, %s14
  $region7: #{bottleneck_forward.5} parent=0 // loop_footer_branch
    %13 = sbr.rel target = $region3
  $region8: #{bottleneck_forward.5} parent=0 // loop_exit
    _

// kernel: bottleneck_forward.7
$region0: #{bottleneck_forward.7}
  #allocation0 [shape = 'u32[]', space=smem, size = 0x4, offset = 0x4, fixed_abs, tag = 'smem constant byte address 0x4 - core index']
  #allocation1 [shape = 'u32[144,128]{1,0:T(1,128)}', space=vmem, size = 0x12000, scoped, tag = 'internal scratch']
  %s0 = inlined_call_operand.vmem [shape: f32[512,4], index: 0, kind: input, shape index: {}]
  %s1 = inlined_call_operand.vmem [shape: f32[512,8], index: 1, kind: input, shape index: {}]
  %s2 = inlined_call_operand.vmem [shape: f32[1,4], index: 2, kind: input, shape index: {}]
  %s3 = inlined_call_operand.vmem [shape: f32[1,4], index: 3, kind: input, shape index: {}]
  %s4 = inlined_call_operand.vmem [shape: f32[4,8], index: 4, kind: input, shape index: {}]
  %s5 = inlined_call_operand.vmem [shape: f32[1,8], index: 5, kind: input, shape index: {}]
  %s6 = inlined_call_operand.vmem [shape: f32[512,8], index: 6, kind: output, shape index: {}]
  %s7 = sld [smem:[#allocation0]]
  $region57: #{bottleneck_forward.7} parent=0
    _
  %s9 = ssub.s32 1, %s7
  %s10 = scalar_select 0, %s9, %s7
  loop: start=0, step=1, limit=4
  $region2: #{bottleneck_forward.7} parent=0 // loop_pre_header
    _
  $region3: #{bottleneck_forward.7} parent=0 // loop_header
    %s12 = sphi 0, %s16
    %p13 = scmp.ge.s32.totalorder %s12, 4
    %s22 = sphi 0, %s24
    %s25 = sphi 0, %s22
    %s26 = sphi 0, %s25
    %s42 = sphi 0, %s26
    %s48 = sphi 0, %s50
    %s51 = sphi 0, %s48
    %s52 = sphi 0, %s51
    %s68 = sphi 0, %s52
    %s72 = sphi 0, %s72
    %s74 = sphi 0, %s72
    %s75 = sphi 0, %s74
    %s89 = sphi 0, %s75
    %s93 = sphi 0, %s93
    %s95 = sphi 0, %s93
    %s96 = sphi 0, %s95
    %s110 = sphi 0, %s96
    %s114 = sphi 0, %s114
    %s116 = sphi 0, %s114
    %s117 = sphi 0, %s116
    %s131 = sphi 0, %s117
    %s135 = sphi 0, %s135
    %s137 = sphi 0, %s135
    %s138 = sphi 0, %s137
    %s152 = sphi 0, %s138
    %s158 = sphi 0, %s160
    %s161 = sphi 0, %s158
    %s162 = sphi 0, %s161
    %s178 = sphi 0, %s162
  $region4: #{bottleneck_forward.7} parent=0 // loop_header_branch
    %15 = sbr.rel (%p13) target = $region8
  $region5: #{bottleneck_forward.7} parent=0 // loop_body
    %s17 = ssub.s32 %s12, 1
    %s18 = ssub.s32 %s12, 2
    %s19 = sadd.s32 %s12, 1
    %s20 = ssub.s32 %s12, %s19
    %p21 = scmp.eq.s32.totalorder %s20, 0
    %s23 = sadd.s32 %s22, 1
    %s24 = scalar_select %p21, %s22, %s23
    %p27 = pneg %p21
    %p28 = scmp.eq.s32.totalorder %s12, 1
    %p29 = por %p27, %p28
    %p30 = scmp.ne.s32.totalorder %s22, %s25
    %p31 = scmp.eq.s32.totalorder %s12, 0
    %p32 = por %p30, %p31
    %p33 = scmp.ne.s32.totalorder %s22, %s25
    %p34 = scmp.eq.s32.totalorder %s17, 1
    %p35 = por %p33, %p34
    %p36 = scmp.ne.s32.totalorder %s25, %s26
    %p37 = scmp.eq.s32.totalorder %s17, 0
    %p38 = por %p36, %p37
    %p39 = scmp.ne.s32.totalorder %s25, %s26
    %p40 = scmp.eq.s32.totalorder %s18, 1
    %p41 = por %p39, %p40
    %p43 = scmp.ne.s32.totalorder %s26, %s42
    %p44 = scmp.eq.s32.totalorder %s18, 0
    %p45 = por %p43, %p44
    %s46 = ssub.s32 %s12, %s19
    %p47 = scmp.eq.s32.totalorder %s46, 0
    %s49 = sadd.s32 %s48, 1
    %s50 = scalar_select %p47, %s48, %s49
    %p53 = pneg %p47
    %p54 = scmp.eq.s32.totalorder %s12, 1
    %p55 = por %p53, %p54
    %p56 = scmp.ne.s32.totalorder %s48, %s51
    %p57 = scmp.eq.s32.totalorder %s12, 0
    %p58 = por %p56, %p57
    %p59 = scmp.ne.s32.totalorder %s48, %s51
    %p60 = scmp.eq.s32.totalorder %s17, 1
    %p61 = por %p59, %p60
    %p62 = scmp.ne.s32.totalorder %s51, %s52
    %p63 = scmp.eq.s32.totalorder %s17, 0
    %p64 = por %p62, %p63
    %p65 = scmp.ne.s32.totalorder %s51, %s52
    %p66 = scmp.eq.s32.totalorder %s18, 1
    %p67 = por %p65, %p66
    %p69 = scmp.ne.s32.totalorder %s52, %s68
    %p70 = scmp.eq.s32.totalorder %s18, 0
    %p71 = por %p69, %p70
    %s73 = sadd.s32 %s72, 1
    %p76 = scmp.eq.s32.totalorder %s12, 1
    %p77 = scmp.ne.s32.totalorder %s72, %s74
    %p78 = scmp.eq.s32.totalorder %s12, 0
    %p79 = por %p77, %p78
    %p80 = scmp.ne.s32.totalorder %s72, %s74
    %p81 = scmp.eq.s32.totalorder %s17, 1
    %p82 = por %p80, %p81
    %p83 = scmp.ne.s32.totalorder %s74, %s75
    %p84 = scmp.eq.s32.totalorder %s17, 0
    %p85 = por %p83, %p84
    %p86 = scmp.ne.s32.totalorder %s74, %s75
    %p87 = scmp.eq.s32.totalorder %s18, 1
    %p88 = por %p86, %p87
    %p90 = scmp.ne.s32.totalorder %s75, %s89
    %p91 = scmp.eq.s32.totalorder %s18, 0
    %p92 = por %p90, %p91
    %s94 = sadd.s32 %s93, 1
    %p97 = scmp.eq.s32.totalorder %s12, 1
    %p98 = scmp.ne.s32.totalorder %s93, %s95
    %p99 = scmp.eq.s32.totalorder %s12, 0
    %p100 = por %p98, %p99
    %p101 = scmp.ne.s32.totalorder %s93, %s95
    %p102 = scmp.eq.s32.totalorder %s17, 1
    %p103 = por %p101, %p102
    %p104 = scmp.ne.s32.totalorder %s95, %s96
    %p105 = scmp.eq.s32.totalorder %s17, 0
    %p106 = por %p104, %p105
    %p107 = scmp.ne.s32.totalorder %s95, %s96
    %p108 = scmp.eq.s32.totalorder %s18, 1
    %p109 = por %p107, %p108
    %p111 = scmp.ne.s32.totalorder %s96, %s110
    %p112 = scmp.eq.s32.totalorder %s18, 0
    %p113 = por %p111, %p112
    %s115 = sadd.s32 %s114, 1
    %p118 = scmp.eq.s32.totalorder %s12, 1
    %p119 = scmp.ne.s32.totalorder %s114, %s116
    %p120 = scmp.eq.s32.totalorder %s12, 0
    %p121 = por %p119, %p120
    %p122 = scmp.ne.s32.totalorder %s114, %s116
    %p123 = scmp.eq.s32.totalorder %s17, 1
    %p124 = por %p122, %p123
    %p125 = scmp.ne.s32.totalorder %s116, %s117
    %p126 = scmp.eq.s32.totalorder %s17, 0
    %p127 = por %p125, %p126
    %p128 = scmp.ne.s32.totalorder %s116, %s117
    %p129 = scmp.eq.s32.totalorder %s18, 1
    %p130 = por %p128, %p129
    %p132 = scmp.ne.s32.totalorder %s117, %s131
    %p133 = scmp.eq.s32.totalorder %s18, 0
    %p134 = por %p132, %p133
    %s136 = sadd.s32 %s135, 1
    %p139 = scmp.eq.s32.totalorder %s12, 1
    %p140 = scmp.ne.s32.totalorder %s135, %s137
    %p141 = scmp.eq.s32.totalorder %s12, 0
    %p142 = por %p140, %p141
    %p143 = scmp.ne.s32.totalorder %s135, %s137
    %p144 = scmp.eq.s32.totalorder %s17, 1
    %p145 = por %p143, %p144
    %p146 = scmp.ne.s32.totalorder %s137, %s138
    %p147 = scmp.eq.s32.totalorder %s17, 0
    %p148 = por %p146, %p147
    %p149 = scmp.ne.s32.totalorder %s137, %s138
    %p150 = scmp.eq.s32.totalorder %s18, 1
    %p151 = por %p149, %p150
    %p153 = scmp.ne.s32.totalorder %s138, %s152
    %p154 = scmp.eq.s32.totalorder %s18, 0
    %p155 = por %p153, %p154
    %s156 = ssub.s32 %s12, %s19
    %p157 = scmp.eq.s32.totalorder %s156, 0
    %s159 = sadd.s32 %s158, 1
    %s160 = scalar_select %p157, %s158, %s159
    %p163 = pneg %p157
    %p164 = scmp.eq.s32.totalorder %s12, 1
    %p165 = por %p163, %p164
    %p166 = scmp.ne.s32.totalorder %s158, %s161
    %p167 = scmp.eq.s32.totalorder %s12, 0
    %p168 = por %p166, %p167
    %p169 = scmp.ne.s32.totalorder %s158, %s161
    %p170 = scmp.eq.s32.totalorder %s17, 1
    %p171 = por %p169, %p170
    %p172 = scmp.ne.s32.totalorder %s161, %s162
    %p173 = scmp.eq.s32.totalorder %s17, 0
    %p174 = por %p172, %p173
    %p175 = scmp.ne.s32.totalorder %s161, %s162
    %p176 = scmp.eq.s32.totalorder %s18, 1
    %p177 = por %p175, %p176
    %p179 = scmp.ne.s32.totalorder %s162, %s178
    %p180 = scmp.eq.s32.totalorder %s18, 0
    %p181 = por %p179, %p180
    %p182 = scmp.le.s32.totalorder 1, %s12
    %p183 = scmp.lt.s32.totalorder %s12, 3
    %p184 = pnand %p182, %p183
    %p185 = pneg %p184
    // Predicated region
    $region9: #{bottleneck_forward.7} parent=5 // pred_check
      _
    $region10: #{bottleneck_forward.7} parent=5 // pred_check_branch
      %187 = sbr.rel (%p184) target = $region12
    $region11: #{bottleneck_forward.7} parent=5 // pred_region
      %s188 = ssub.s32 %s12, 1
      // Predicated region
      $region13: #{bottleneck_forward.7} parent=11 // pred_check
        %p189 = pneg %p85
      $region14: #{bottleneck_forward.7} parent=11 // pred_check_branch
        %191 = sbr.rel (%p189) target = $region16
      $region15: #{bottleneck_forward.7} parent=11 // pred_region
        _
      $region16: #{bottleneck_forward.7} parent=11 // pred_fallthru
        _
      // Predicated region
      $region17: #{bottleneck_forward.7} parent=11 // pred_check
        %p192 = pneg %p106
      $region18: #{bottleneck_forward.7} parent=11 // pred_check_branch
        %194 = sbr.rel (%p192) target = $region20
      $region19: #{bottleneck_forward.7} parent=11 // pred_region
        _
      $region20: #{bottleneck_forward.7} parent=11 // pred_fallthru
        _
      // Predicated region
      $region21: #{bottleneck_forward.7} parent=11 // pred_check
        %p195 = pneg %p127
      $region22: #{bottleneck_forward.7} parent=11 // pred_check_branch
        %197 = sbr.rel (%p195) target = $region24
      $region23: #{bottleneck_forward.7} parent=11 // pred_region
        _
      $region24: #{bottleneck_forward.7} parent=11 // pred_fallthru
        _
      // Predicated region
      $region25: #{bottleneck_forward.7} parent=11 // pred_check
        %p198 = pneg %p148
      $region26: #{bottleneck_forward.7} parent=11 // pred_check_branch
        %200 = sbr.rel (%p198) target = $region28
      $region27: #{bottleneck_forward.7} parent=11 // pred_region
        _
      $region28: #{bottleneck_forward.7} parent=11 // pred_fallthru
        _
    $region12: #{bottleneck_forward.7} parent=5 // pred_fallthru
      _
    %p201 = scmp.lt.s32.totalorder %s12, 2
    // Predicated region
    $region29: #{bottleneck_forward.7} parent=5 // pred_check
      %p202 = pneg %p201
    $region30: #{bottleneck_forward.7} parent=5 // pred_check_branch
      %204 = sbr.rel (%p202) target = $region32
    $region31: #{bottleneck_forward.7} parent=5 // pred_region
      // Predicated region
      $region33: #{bottleneck_forward.7} parent=31 // pred_check
        %p205 = pneg %p32
      $region34: #{bottleneck_forward.7} parent=31 // pred_check_branch
        %207 = sbr.rel (%p205) target = $region36
      $region35: #{bottleneck_forward.7} parent=31 // pred_region
        %s208 = smul.u32 32, %s12
        %p209 = scmp.lt.s32.totalorder %s208, 63
        %s210 = scalar_select %p209, %s208, 63
        %s211 = smul.addr %s210, 8
        %s212 = scalar_lea.vmem %s0, %s211
        %s213 = smul.u32 32, %s12
      $region36: #{bottleneck_forward.7} parent=31 // pred_fallthru
        _
      // Predicated region
      $region37: #{bottleneck_forward.7} parent=31 // pred_check
        %p214 = pneg %p58
      $region38: #{bottleneck_forward.7} parent=31 // pred_check_branch
        %216 = sbr.rel (%p214) target = $region40
      $region39: #{bottleneck_forward.7} parent=31 // pred_region
        %s217 = smul.u32 32, %s12
        %p218 = scmp.lt.s32.totalorder %s217, 63
        %s219 = scalar_select %p218, %s217, 63
        %s220 = smul.addr %s219, 8
        %s221 = scalar_lea.vmem %s1, %s220
        %s222 = smul.u32 32, %s12
      $region40: #{bottleneck_forward.7} parent=31 // pred_fallthru
        _
    $region32: #{bottleneck_forward.7} parent=5 // pred_fallthru
      _
    %p223 = scmp.le.s32.totalorder 1, %s12
    %p224 = scmp.lt.s32.totalorder %s12, 3
    %p225 = pnand %p223, %p224
    %p226 = pneg %p225
    // Predicated region
    $region41: #{bottleneck_forward.7} parent=5 // pred_check
      _
    $region42: #{bottleneck_forward.7} parent=5 // pred_check_branch
      %228 = sbr.rel (%p225) target = $region44
    $region43: #{bottleneck_forward.7} parent=5 // pred_region
      %s229 = ssub.s32 %s12, 1
      %s230 = smul.u32 32, %s17
      %p231 = scmp.lt.s32.totalorder %s230, 63
      %s232 = scalar_select %p231, %s230, 63
      %s233 = smul.addr %s232, 8
      %s234 = scalar_lea.vmem %s0, %s233
      %p235 = pneg %p38
      %p236 = pneg %p35
      %s237 = smul.u32 32, %s17
      %p238 = scmp.lt.s32.totalorder %s237, 63
      %s239 = scalar_select %p238, %s237, 63
      %s240 = smul.addr %s239, 8
      %s241 = scalar_lea.vmem %s1, %s240
      %p242 = pneg %p64
      %p243 = pneg %p61
      %p244 = pneg %p85
      %p245 = pneg %p82
      %p246 = pneg %p106
      %p247 = pneg %p103
      %p248 = pneg %p127
      %p249 = pneg %p124
      %p250 = pneg %p148
      %p251 = pneg %p145
      %p252 = pneg %p174
      %p253 = pneg %p171
      %s254 = smul.u32 32, %s17
      %p255 = scmp.lt.s32.totalorder %s254, 63
      %s256 = scalar_select %p255, %s254, 63
      %s257 = smul.addr %s256, 8
      %s258 = scalar_lea.vmem %s6, %s257
      %s259 = smul.u32 32, %s17
      %p260 = scmp.lt.s32.totalorder %s259, 63
      %s261 = scalar_select %p260, %s259, 63
      %s262 = smul.addr %s261, 8
      %s263 = scalar_lea.vmem %s0, %s262
      %s264 = smul.u32 32, %s17
      %s265 = smul.u32 32, %s17
      %p266 = scmp.lt.s32.totalorder %s265, 63
      %s267 = scalar_select %p266, %s265, 63
      %s268 = smul.addr %s267, 8
      %s269 = scalar_lea.vmem %s1, %s268
      %s270 = smul.u32 32, %s17
      %s271 = smul.u32 32, %s17
      %p272 = scmp.lt.s32.totalorder %s271, 63
      %s273 = scalar_select %p272, %s271, 63
      %s274 = smul.addr %s273, 8
      %s275 = scalar_lea.vmem %s6, %s274
      %s276 = smul.u32 32, %s17
      %v277 = vld [vmem:[%s263] sm:$0xff]
      %v278 = vld [vmem:[%s263 + $0x8] sm:$0xff]
      %v279 = vld [vmem:[%s263 + $0x10] sm:$0xff]
      %v280 = vld [vmem:[%s263 + $0x18] sm:$0xff]
      %v281 = vld [vmem:[%s263 + $0x20] sm:$0xff]
      %v282 = vld [vmem:[%s263 + $0x28] sm:$0xff]
      %v283 = vld [vmem:[%s263 + $0x30] sm:$0xff]
      %v284 = vld [vmem:[%s263 + $0x38] sm:$0xff]
      %v285 = vld [vmem:[%s263 + $0x40] sm:$0xff]
      %v286 = vld [vmem:[%s263 + $0x48] sm:$0xff]
      %v287 = vld [vmem:[%s263 + $0x50] sm:$0xff]
      %v288 = vld [vmem:[%s263 + $0x58] sm:$0xff]
      %v289 = vld [vmem:[%s263 + $0x60] sm:$0xff]
      %v290 = vld [vmem:[%s263 + $0x68] sm:$0xff]
      %v291 = vld [vmem:[%s263 + $0x70] sm:$0xff]
      %v292 = vld [vmem:[%s263 + $0x78] sm:$0xff]
      %v293 = vld [vmem:[%s263 + $0x80] sm:$0xff]
      %v294 = vld [vmem:[%s263 + $0x88] sm:$0xff]
      %v295 = vld [vmem:[%s263 + $0x90] sm:$0xff]
      %v296 = vld [vmem:[%s263 + $0x98] sm:$0xff]
      %v297 = vld [vmem:[%s263 + $0xa0] sm:$0xff]
      %v298 = vld [vmem:[%s263 + $0xa8] sm:$0xff]
      %v299 = vld [vmem:[%s263 + $0xb0] sm:$0xff]
      %v300 = vld [vmem:[%s263 + $0xb8] sm:$0xff]
      %v301 = vld [vmem:[%s263 + $0xc0] sm:$0xff]
      %v302 = vld [vmem:[%s263 + $0xc8] sm:$0xff]
      %v303 = vld [vmem:[%s263 + $0xd0] sm:$0xff]
      %v304 = vld [vmem:[%s263 + $0xd8] sm:$0xff]
      %v305 = vld [vmem:[%s263 + $0xe0] sm:$0xff]
      %v306 = vld [vmem:[%s263 + $0xe8] sm:$0xff]
      %v307 = vld [vmem:[%s263 + $0xf0] sm:$0xff]
      %v308 = vld [vmem:[%s263 + $0xf8] sm:$0xff]
      %v309 = vld [vmem:[%s2] sm:$0x1]
      %v311 = vlaneseq
      %v312 = vshrl.u32 %v311, 7
      %v313 = vsub.s32 0, %v312
      %v314 = vrot.slane %v309, %v313
      %v316 = vmul.f32 %v277, %v314
      %v317 = vmul.f32 %v278, %v314
      %v318 = vmul.f32 %v279, %v314
      %v319 = vmul.f32 %v280, %v314
      %v320 = vmul.f32 %v281, %v314
      %v321 = vmul.f32 %v282, %v314
      %v322 = vmul.f32 %v283, %v314
      %v323 = vmul.f32 %v284, %v314
      %v324 = vmul.f32 %v285, %v314
      %v325 = vmul.f32 %v286, %v314
      %v326 = vmul.f32 %v287, %v314
      %v327 = vmul.f32 %v288, %v314
      %v328 = vmul.f32 %v289, %v314
      %v329 = vmul.f32 %v290, %v314
      %v330 = vmul.f32 %v291, %v314
      %v331 = vmul.f32 %v292, %v314
      %v332 = vmul.f32 %v293, %v314
      %v333 = vmul.f32 %v294, %v314
      %v334 = vmul.f32 %v295, %v314
      %v335 = vmul.f32 %v296, %v314
      %v336 = vmul.f32 %v297, %v314
      %v337 = vmul.f32 %v298, %v314
      %v338 = vmul.f32 %v299, %v314
      %v339 = vmul.f32 %v300, %v314
      %v340 = vmul.f32 %v301, %v314
      %v341 = vmul.f32 %v302, %v314
      %v342 = vmul.f32 %v303, %v314
      %v343 = vmul.f32 %v304, %v314
      %v344 = vmul.f32 %v305, %v314
      %v345 = vmul.f32 %v306, %v314
      %v346 = vmul.f32 %v307, %v314
      %v347 = vmul.f32 %v308, %v314
      %v348 = vld [vmem:[%s3] sm:$0x1]
      %v350 = vlaneseq
      %v351 = vshrl.u32 %v350, 7
      %v352 = vsub.s32 0, %v351
      %v353 = vrot.slane %v348, %v352
      %v355 = vadd.f32 %v316, %v353
      %v356 = vadd.f32 %v317, %v353
      %v357 = vadd.f32 %v318, %v353
      %v358 = vadd.f32 %v319, %v353
      %v359 = vadd.f32 %v320, %v353
      %v360 = vadd.f32 %v321, %v353
      %v361 = vadd.f32 %v322, %v353
      %v362 = vadd.f32 %v323, %v353
      %v363 = vadd.f32 %v324, %v353
      %v364 = vadd.f32 %v325, %v353
      %v365 = vadd.f32 %v326, %v353
      %v366 = vadd.f32 %v327, %v353
      %v367 = vadd.f32 %v328, %v353
      %v368 = vadd.f32 %v329, %v353
      %v369 = vadd.f32 %v330, %v353
      %v370 = vadd.f32 %v331, %v353
      %v371 = vadd.f32 %v332, %v353
      %v372 = vadd.f32 %v333, %v353
      %v373 = vadd.f32 %v334, %v353
      %v374 = vadd.f32 %v335, %v353
      %v375 = vadd.f32 %v336, %v353
      %v376 = vadd.f32 %v337, %v353
      %v377 = vadd.f32 %v338, %v353
      %v378 = vadd.f32 %v339, %v353
      %v379 = vadd.f32 %v340, %v353
      %v380 = vadd.f32 %v341, %v353
      %v381 = vadd.f32 %v342, %v353
      %v382 = vadd.f32 %v343, %v353
      %v383 = vadd.f32 %v344, %v353
      %v384 = vadd.f32 %v345, %v353
      %v385 = vadd.f32 %v346, %v353
      %v386 = vadd.f32 %v347, %v353
      %v387 = vmax.f32 %v355, 0.0
      %v388 = vmax.f32 %v356, 0.0
      %v389 = vmax.f32 %v357, 0.0
      %v390 = vmax.f32 %v358, 0.0
      %v391 = vmax.f32 %v359, 0.0
      %v392 = vmax.f32 %v360, 0.0
      %v393 = vmax.f32 %v361, 0.0
      %v394 = vmax.f32 %v362, 0.0
      %v395 = vmax.f32 %v363, 0.0
      %v396 = vmax.f32 %v364, 0.0
      %v397 = vmax.f32 %v365, 0.0
      %v398 = vmax.f32 %v366, 0.0
      %v399 = vmax.f32 %v367, 0.0
      %v400 = vmax.f32 %v368, 0.0
      %v401 = vmax.f32 %v369, 0.0
      %v402 = vmax.f32 %v370, 0.0
      %v403 = vmax.f32 %v371, 0.0
      %v404 = vmax.f32 %v372, 0.0
      %v405 = vmax.f32 %v373, 0.0
      %v406 = vmax.f32 %v374, 0.0
      %v407 = vmax.f32 %v375, 0.0
      %v408 = vmax.f32 %v376, 0.0
      %v409 = vmax.f32 %v377, 0.0
      %v410 = vmax.f32 %v378, 0.0
      %v411 = vmax.f32 %v379, 0.0
      %v412 = vmax.f32 %v380, 0.0
      %v413 = vmax.f32 %v381, 0.0
      %v414 = vmax.f32 %v382, 0.0
      %v415 = vmax.f32 %v383, 0.0
      %v416 = vmax.f32 %v384, 0.0
      %v417 = vmax.f32 %v385, 0.0
      %v418 = vmax.f32 %v386, 0.0
      %v419 = vld [vmem:[%s4] sm:$0xf]
      %v420 = vld [vmem:[%s5] sm:$0x1]
      %v422 = vlaneseq
      %v423 = vshrl.u32 %v422, 7
      %v424 = vsub.s32 0, %v423
      %v425 = vrot.slane %v420, %v424
      %vm427 = vcmask 31744
      %v429 = vsel %vm427, %v387, 0
      %v432 = vsel %vm427, %v388, 0
      %v435 = vsel %vm427, %v389, 0
      %v438 = vsel %vm427, %v390, 0
      %v441 = vsel %vm427, %v391, 0
      %v444 = vsel %vm427, %v392, 0
      %v447 = vsel %vm427, %v393, 0
      %v450 = vsel %vm427, %v394, 0
      %v453 = vsel %vm427, %v395, 0
      %v456 = vsel %vm427, %v396, 0
      %v459 = vsel %vm427, %v397, 0
      %v462 = vsel %vm427, %v398, 0
      %v465 = vsel %vm427, %v399, 0
      %v468 = vsel %vm427, %v400, 0
      %v471 = vsel %vm427, %v401, 0
      %v474 = vsel %vm427, %v402, 0
      %v477 = vsel %vm427, %v403, 0
      %v480 = vsel %vm427, %v404, 0
      %v483 = vsel %vm427, %v405, 0
      %v486 = vsel %vm427, %v406, 0
      %v489 = vsel %vm427, %v407, 0
      %v492 = vsel %vm427, %v408, 0
      %v495 = vsel %vm427, %v409, 0
      %v498 = vsel %vm427, %v410, 0
      %v501 = vsel %vm427, %v411, 0
      %v504 = vsel %vm427, %v412, 0
      %v507 = vsel %vm427, %v413, 0
      %v510 = vsel %vm427, %v414, 0
      %v513 = vsel %vm427, %v415, 0
      %v516 = vsel %vm427, %v416, 0
      %v519 = vsel %vm427, %v417, 0
      %v522 = vsel %vm427, %v418, 0
      %vm524 = vcmask 1043456
      %v526 = vsel %vm524, %v419, 0
      %528 = vmatprep.subr.mxu0 0.0
      %529 = vmatpush1.msra.mxu0 %v526
      %530 = vmatprep.subr.mxu0 0.0
      %531 = vmatpush1.msra.mxu0 0.0
      %532 = vmatprep.subr.mxu0 0.0
      %533 = vmatpush1.msra.mxu0 0.0
      %534 = vmatprep.subr.mxu0 0.0
      %535 = vmatpush1.msra.mxu0 0.0
      %536 = vmatprep.subr.mxu0 0.0
      %537 = vmatpush1.msra.mxu0 0.0
      %538 = vmatprep.subr.mxu0 0.0
      %539 = vmatpush1.msra.mxu0 0.0
      %540 = vmatprep.subr.mxu0 0.0
      %541 = vmatpush1.msra.mxu0 0.0
      %542 = vmatprep.subr.mxu0 0.0
      %543 = vmatpush1.msra.mxu0 0.0
      %544 = vmatprep.subr.mxu0 0.0
      %545 = vmatpush1.msra.mxu0 0.0
      %546 = vmatprep.subr.mxu0 0.0
      %547 = vmatpush1.msra.mxu0 0.0
      %548 = vmatprep.subr.mxu0 0.0
      %549 = vmatpush1.msra.mxu0 0.0
      %550 = vmatprep.subr.mxu0 0.0
      %551 = vmatpush1.msra.mxu0 0.0
      %552 = vmatprep.subr.mxu0 0.0
      %553 = vmatpush1.msra.mxu0 0.0
      %554 = vmatprep.subr.mxu0 0.0
      %555 = vmatpush1.msra.mxu0 0.0
      %556 = vmatprep.subr.mxu0 0.0
      %557 = vmatpush1.msra.mxu0 0.0
      %558 = vmatprep.subr.mxu0 0.0
      %559 = vmatpush1.msra.mxu0 0.0
      %560 = vmatprep.subr.mxu0 0.0
      %561 = vmatpush1.msra.mxu0 0.0
      %562 = vmatprep.subr.mxu0 0.0
      %563 = vmatpush1.msra.mxu0 0.0
      %564 = vmatprep.subr.mxu0 0.0
      %565 = vmatpush1.msra.mxu0 0.0
      %566 = vmatprep.subr.mxu0 0.0
      %567 = vmatpush1.msra.mxu0 0.0
      %568 = vmatprep.subr.mxu0 0.0
      %569 = vmatpush1.msra.mxu0 0.0
      %570 = vmatprep.subr.mxu0 0.0
      %571 = vmatpush1.msra.mxu0 0.0
      %572 = vmatprep.subr.mxu0 0.0
      %573 = vmatpush1.msra.mxu0 0.0
      %574 = vmatprep.subr.mxu0 0.0
      %575 = vmatpush1.msra.mxu0 0.0
      %576 = vmatprep.subr.mxu0 0.0
      %577 = vmatpush1.msra.mxu0 0.0
      %578 = vmatprep.subr.mxu0 0.0
      %579 = vmatpush1.msra.mxu0 0.0
      %580 = vmatprep.subr.mxu0 0.0
      %581 = vmatpush1.msra.mxu0 0.0
      %582 = vmatprep.subr.mxu0 0.0
      %583 = vmatpush1.msra.mxu0 0.0
      %584 = vmatprep.subr.mxu0 0.0
      %585 = vmatpush1.msra.mxu0 0.0
      %586 = vmatprep.subr.mxu0 0.0
      %587 = vmatpush1.msra.mxu0 0.0
      %588 = vmatprep.subr.mxu0 0.0
      %589 = vmatpush1.msra.mxu0 0.0
      %590 = vmatprep.subr.mxu0 0.0
      %591 = vmatpush1.msra.mxu0 0.0
      %592 = vmatprep.mubr.f32.mxu0 0.0
      %593 = vmatmul.mubr.f32.gmra.mrb[0].mxu0 %v429
      %v594 = vpop.f32.mrb[0].mxu0
      %v595 = vadd.f32 %v425, %v594
      %v596 = vpop.f32.mrb[0].mxu0
      %597 = vmatprep.mubr.f32.mxu0 0.0
      %598 = vmatmul.mubr.f32.gmra.mrb[0].mxu0 %v432
      %v599 = vpop.f32.mrb[0].mxu0
      %v600 = vadd.f32 %v425, %v599
      %v601 = vpop.f32.mrb[0].mxu0
      %602 = vmatprep.mubr.f32.mxu0 0.0
      %603 = vmatmul.mubr.f32.gmra.mrb[0].mxu0 %v435
      %v604 = vpop.f32.mrb[0].mxu0
      %v605 = vadd.f32 %v425, %v604
      %v606 = vpop.f32.mrb[0].mxu0
      %607 = vmatprep.mubr.f32.mxu0 0.0
      %608 = vmatmul.mubr.f32.gmra.mrb[0].mxu0 %v438
      %v609 = vpop.f32.mrb[0].mxu0
      %v610 = vadd.f32 %v425, %v609
      %v611 = vpop.f32.mrb[0].mxu0
      %612 = vmatprep.mubr.f32.mxu0 0.0
      %613 = vmatmul.mubr.f32.gmra.mrb[0].mxu0 %v441
      %v614 = vpop.f32.mrb[0].mxu0
      %v615 = vadd.f32 %v425, %v614
      %v616 = vpop.f32.mrb[0].mxu0
      %617 = vmatprep.mubr.f32.mxu0 0.0
      %618 = vmatmul.mubr.f32.gmra.mrb[0].mxu0 %v444
      %v619 = vpop.f32.mrb[0].mxu0
      %v620 = vadd.f32 %v425, %v619
      %v621 = vpop.f32.mrb[0].mxu0
      %622 = vmatprep.mubr.f32.mxu0 0.0
      %623 = vmatmul.mubr.f32.gmra.mrb[0].mxu0 %v447
      %v624 = vpop.f32.mrb[0].mxu0
      %v625 = vadd.f32 %v425, %v624
      %v626 = vpop.f32.mrb[0].mxu0
      %627 = vmatprep.mubr.f32.mxu0 0.0
      %628 = vmatmul.mubr.f32.gmra.mrb[0].mxu0 %v450
      %v629 = vpop.f32.mrb[0].mxu0
      %v630 = vadd.f32 %v425, %v629
      %v631 = vpop.f32.mrb[0].mxu0
      %632 = vmatprep.mubr.f32.mxu0 0.0
      %633 = vmatmul.mubr.f32.gmra.mrb[0].mxu0 %v453
      %v634 = vpop.f32.mrb[0].mxu0
      %v635 = vadd.f32 %v425, %v634
      %v636 = vpop.f32.mrb[0].mxu0
      %637 = vmatprep.mubr.f32.mxu0 0.0
      %638 = vmatmul.mubr.f32.gmra.mrb[0].mxu0 %v456
      %v639 = vpop.f32.mrb[0].mxu0
      %v640 = vadd.f32 %v425, %v639
      %v641 = vpop.f32.mrb[0].mxu0
      %642 = vmatprep.mubr.f32.mxu0 0.0
      %643 = vmatmul.mubr.f32.gmra.mrb[0].mxu0 %v459
      %v644 = vpop.f32.mrb[0].mxu0
      %v645 = vadd.f32 %v425, %v644
      %v646 = vpop.f32.mrb[0].mxu0
      %647 = vmatprep.mubr.f32.mxu0 0.0
      %648 = vmatmul.mubr.f32.gmra.mrb[0].mxu0 %v462
      %v649 = vpop.f32.mrb[0].mxu0
      %v650 = vadd.f32 %v425, %v649
      %v651 = vpop.f32.mrb[0].mxu0
      %652 = vmatprep.mubr.f32.mxu0 0.0
      %653 = vmatmul.mubr.f32.gmra.mrb[0].mxu0 %v465
      %v654 = vpop.f32.mrb[0].mxu0
      %v655 = vadd.f32 %v425, %v654
      %v656 = vpop.f32.mrb[0].mxu0
      %657 = vmatprep.mubr.f32.mxu0 0.0
      %658 = vmatmul.mubr.f32.gmra.mrb[0].mxu0 %v468
      %v659 = vpop.f32.mrb[0].mxu0
      %v660 = vadd.f32 %v425, %v659
      %v661 = vpop.f32.mrb[0].mxu0
      %662 = vmatprep.mubr.f32.mxu0 0.0
      %663 = vmatmul.mubr.f32.gmra.mrb[0].mxu0 %v471
      %v664 = vpop.f32.mrb[0].mxu0
      %v665 = vadd.f32 %v425, %v664
      %v666 = vpop.f32.mrb[0].mxu0
      %667 = vmatprep.mubr.f32.mxu0 0.0
      %668 = vmatmul.mubr.f32.gmra.mrb[0].mxu0 %v474
      %v669 = vpop.f32.mrb[0].mxu0
      %v670 = vadd.f32 %v425, %v669
      %v671 = vpop.f32.mrb[0].mxu0
      %672 = vmatprep.mubr.f32.mxu0 0.0
      %673 = vmatmul.mubr.f32.gmra.mrb[0].mxu0 %v477
      %v674 = vpop.f32.mrb[0].mxu0
      %v675 = vadd.f32 %v425, %v674
      %v676 = vpop.f32.mrb[0].mxu0
      %677 = vmatprep.mubr.f32.mxu0 0.0
      %678 = vmatmul.mubr.f32.gmra.mrb[0].mxu0 %v480
      %v679 = vpop.f32.mrb[0].mxu0
      %v680 = vadd.f32 %v425, %v679
      %v681 = vpop.f32.mrb[0].mxu0
      %682 = vmatprep.mubr.f32.mxu0 0.0
      %683 = vmatmul.mubr.f32.gmra.mrb[0].mxu0 %v483
      %v684 = vpop.f32.mrb[0].mxu0
      %v685 = vadd.f32 %v425, %v684
      %v686 = vpop.f32.mrb[0].mxu0
      %687 = vmatprep.mubr.f32.mxu0 0.0
      %688 = vmatmul.mubr.f32.gmra.mrb[0].mxu0 %v486
      %v689 = vpop.f32.mrb[0].mxu0
      %v690 = vadd.f32 %v425, %v689
      %v691 = vpop.f32.mrb[0].mxu0
      %692 = vmatprep.mubr.f32.mxu0 0.0
      %693 = vmatmul.mubr.f32.gmra.mrb[0].mxu0 %v489
      %v694 = vpop.f32.mrb[0].mxu0
      %v695 = vadd.f32 %v425, %v694
      %v696 = vpop.f32.mrb[0].mxu0
      %697 = vmatprep.mubr.f32.mxu0 0.0
      %698 = vmatmul.mubr.f32.gmra.mrb[0].mxu0 %v492
      %v699 = vpop.f32.mrb[0].mxu0
      %v700 = vadd.f32 %v425, %v699
      %v701 = vpop.f32.mrb[0].mxu0
      %702 = vmatprep.mubr.f32.mxu0 0.0
      %703 = vmatmul.mubr.f32.gmra.mrb[0].mxu0 %v495
      %v704 = vpop.f32.mrb[0].mxu0
      %v705 = vadd.f32 %v425, %v704
      %v706 = vpop.f32.mrb[0].mxu0
      %707 = vmatprep.mubr.f32.mxu0 0.0
      %708 = vmatmul.mubr.f32.gmra.mrb[0].mxu0 %v498
      %v709 = vpop.f32.mrb[0].mxu0
      %v710 = vadd.f32 %v425, %v709
      %v711 = vpop.f32.mrb[0].mxu0
      %712 = vmatprep.mubr.f32.mxu0 0.0
      %713 = vmatmul.mubr.f32.gmra.mrb[0].mxu0 %v501
      %v714 = vpop.f32.mrb[0].mxu0
      %v715 = vadd.f32 %v425, %v714
      %v716 = vpop.f32.mrb[0].mxu0
      %717 = vmatprep.mubr.f32.mxu0 0.0
      %718 = vmatmul.mubr.f32.gmra.mrb[0].mxu0 %v504
      %v719 = vpop.f32.mrb[0].mxu0
      %v720 = vadd.f32 %v425, %v719
      %v721 = vpop.f32.mrb[0].mxu0
      %722 = vmatprep.mubr.f32.mxu0 0.0
      %723 = vmatmul.mubr.f32.gmra.mrb[0].mxu0 %v507
      %v724 = vpop.f32.mrb[0].mxu0
      %v725 = vadd.f32 %v425, %v724
      %v726 = vpop.f32.mrb[0].mxu0
      %727 = vmatprep.mubr.f32.mxu0 0.0
      %728 = vmatmul.mubr.f32.gmra.mrb[0].mxu0 %v510
      %v729 = vpop.f32.mrb[0].mxu0
      %v730 = vadd.f32 %v425, %v729
      %v731 = vpop.f32.mrb[0].mxu0
      %732 = vmatprep.mubr.f32.mxu0 0.0
      %733 = vmatmul.mubr.f32.gmra.mrb[0].mxu0 %v513
      %v734 = vpop.f32.mrb[0].mxu0
      %v735 = vadd.f32 %v425, %v734
      %v736 = vpop.f32.mrb[0].mxu0
      %737 = vmatprep.mubr.f32.mxu0 0.0
      %738 = vmatmul.mubr.f32.gmra.mrb[0].mxu0 %v516
      %v739 = vpop.f32.mrb[0].mxu0
      %v740 = vadd.f32 %v425, %v739
      %v741 = vpop.f32.mrb[0].mxu0
      %742 = vmatprep.mubr.f32.mxu0 0.0
      %743 = vmatmul.mubr.f32.gmra.mrb[0].mxu0 %v519
      %v744 = vpop.f32.mrb[0].mxu0
      %v745 = vadd.f32 %v425, %v744
      %v746 = vpop.f32.mrb[0].mxu0
      %747 = vmatprep.mubr.f32.mxu0 0.0
      %748 = vmatmul.mubr.f32.gmra.mrb[0].mxu0 %v522
      %v749 = vpop.f32.mrb[0].mxu0
      %v750 = vadd.f32 %v425, %v749
      %v751 = vpop.f32.mrb[0].mxu0
      %752 = vdwg.mxu0
      %v753 = vld [vmem:[%s269] sm:$0xff]
      %v754 = vld [vmem:[%s269 + $0x8] sm:$0xff]
      %v755 = vld [vmem:[%s269 + $0x10] sm:$0xff]
      %v756 = vld [vmem:[%s269 + $0x18] sm:$0xff]
      %v757 = vld [vmem:[%s269 + $0x20] sm:$0xff]
      %v758 = vld [vmem:[%s269 + $0x28] sm:$0xff]
      %v759 = vld [vmem:[%s269 + $0x30] sm:$0xff]
      %v760 = vld [vmem:[%s269 + $0x38] sm:$0xff]
      %v761 = vld [vmem:[%s269 + $0x40] sm:$0xff]
      %v762 = vld [vmem:[%s269 + $0x48] sm:$0xff]
      %v763 = vld [vmem:[%s269 + $0x50] sm:$0xff]
      %v764 = vld [vmem:[%s269 + $0x58] sm:$0xff]
      %v765 = vld [vmem:[%s269 + $0x60] sm:$0xff]
      %v766 = vld [vmem:[%s269 + $0x68] sm:$0xff]
      %v767 = vld [vmem:[%s269 + $0x70] sm:$0xff]
      %v768 = vld [vmem:[%s269 + $0x78] sm:$0xff]
      %v769 = vld [vmem:[%s269 + $0x80] sm:$0xff]
      %v770 = vld [vmem:[%s269 + $0x88] sm:$0xff]
      %v771 = vld [vmem:[%s269 + $0x90] sm:$0xff]
      %v772 = vld [vmem:[%s269 + $0x98] sm:$0xff]
      %v773 = vld [vmem:[%s269 + $0xa0] sm:$0xff]
      %v774 = vld [vmem:[%s269 + $0xa8] sm:$0xff]
      %v775 = vld [vmem:[%s269 + $0xb0] sm:$0xff]
      %v776 = vld [vmem:[%s269 + $0xb8] sm:$0xff]
      %v777 = vld [vmem:[%s269 + $0xc0] sm:$0xff]
      %v778 = vld [vmem:[%s269 + $0xc8] sm:$0xff]
      %v779 = vld [vmem:[%s269 + $0xd0] sm:$0xff]
      %v780 = vld [vmem:[%s269 + $0xd8] sm:$0xff]
      %v781 = vld [vmem:[%s269 + $0xe0] sm:$0xff]
      %v782 = vld [vmem:[%s269 + $0xe8] sm:$0xff]
      %v783 = vld [vmem:[%s269 + $0xf0] sm:$0xff]
      %v784 = vld [vmem:[%s269 + $0xf8] sm:$0xff]
      %v785 = vadd.f32 %v595, %v753
      %v786 = vadd.f32 %v600, %v754
      %v787 = vadd.f32 %v605, %v755
      %v788 = vadd.f32 %v610, %v756
      %v789 = vadd.f32 %v615, %v757
      %v790 = vadd.f32 %v620, %v758
      %v791 = vadd.f32 %v625, %v759
      %v792 = vadd.f32 %v630, %v760
      %v793 = vadd.f32 %v635, %v761
      %v794 = vadd.f32 %v640, %v762
      %v795 = vadd.f32 %v645, %v763
      %v796 = vadd.f32 %v650, %v764
      %v797 = vadd.f32 %v655, %v765
      %v798 = vadd.f32 %v660, %v766
      %v799 = vadd.f32 %v665, %v767
      %v800 = vadd.f32 %v670, %v768
      %v801 = vadd.f32 %v675, %v769
      %v802 = vadd.f32 %v680, %v770
      %v803 = vadd.f32 %v685, %v771
      %v804 = vadd.f32 %v690, %v772
      %v805 = vadd.f32 %v695, %v773
      %v806 = vadd.f32 %v700, %v774
      %v807 = vadd.f32 %v705, %v775
      %v808 = vadd.f32 %v710, %v776
      %v809 = vadd.f32 %v715, %v777
      %v810 = vadd.f32 %v720, %v778
      %v811 = vadd.f32 %v725, %v779
      %v812 = vadd.f32 %v730, %v780
      %v813 = vadd.f32 %v735, %v781
      %v814 = vadd.f32 %v740, %v782
      %v815 = vadd.f32 %v745, %v783
      %v816 = vadd.f32 %v750, %v784
      %vm817 = vcmask 64512
      %818 = vst.msk [vmem:[%s275] sm:$0xff] %vm817, %v785
      %819 = vst.msk [vmem:[%s275 + $0x8] sm:$0xff] %vm817, %v786
      %820 = vst.msk [vmem:[%s275 + $0x10] sm:$0xff] %vm817, %v787
      %821 = vst.msk [vmem:[%s275 + $0x18] sm:$0xff] %vm817, %v788
      %822 = vst.msk [vmem:[%s275 + $0x20] sm:$0xff] %vm817, %v789
      %823 = vst.msk [vmem:[%s275 + $0x28] sm:$0xff] %vm817, %v790
      %824 = vst.msk [vmem:[%s275 + $0x30] sm:$0xff] %vm817, %v791
      %825 = vst.msk [vmem:[%s275 + $0x38] sm:$0xff] %vm817, %v792
      %826 = vst.msk [vmem:[%s275 + $0x40] sm:$0xff] %vm817, %v793
      %827 = vst.msk [vmem:[%s275 + $0x48] sm:$0xff] %vm817, %v794
      %828 = vst.msk [vmem:[%s275 + $0x50] sm:$0xff] %vm817, %v795
      %829 = vst.msk [vmem:[%s275 + $0x58] sm:$0xff] %vm817, %v796
      %830 = vst.msk [vmem:[%s275 + $0x60] sm:$0xff] %vm817, %v797
      %831 = vst.msk [vmem:[%s275 + $0x68] sm:$0xff] %vm817, %v798
      %832 = vst.msk [vmem:[%s275 + $0x70] sm:$0xff] %vm817, %v799
      %833 = vst.msk [vmem:[%s275 + $0x78] sm:$0xff] %vm817, %v800
      %834 = vst.msk [vmem:[%s275 + $0x80] sm:$0xff] %vm817, %v801
      %835 = vst.msk [vmem:[%s275 + $0x88] sm:$0xff] %vm817, %v802
      %836 = vst.msk [vmem:[%s275 + $0x90] sm:$0xff] %vm817, %v803
      %837 = vst.msk [vmem:[%s275 + $0x98] sm:$0xff] %vm817, %v804
      %838 = vst.msk [vmem:[%s275 + $0xa0] sm:$0xff] %vm817, %v805
      %839 = vst.msk [vmem:[%s275 + $0xa8] sm:$0xff] %vm817, %v806
      %840 = vst.msk [vmem:[%s275 + $0xb0] sm:$0xff] %vm817, %v807
      %841 = vst.msk [vmem:[%s275 + $0xb8] sm:$0xff] %vm817, %v808
      %842 = vst.msk [vmem:[%s275 + $0xc0] sm:$0xff] %vm817, %v809
      %843 = vst.msk [vmem:[%s275 + $0xc8] sm:$0xff] %vm817, %v810
      %844 = vst.msk [vmem:[%s275 + $0xd0] sm:$0xff] %vm817, %v811
      %845 = vst.msk [vmem:[%s275 + $0xd8] sm:$0xff] %vm817, %v812
      %846 = vst.msk [vmem:[%s275 + $0xe0] sm:$0xff] %vm817, %v813
      %847 = vst.msk [vmem:[%s275 + $0xe8] sm:$0xff] %vm817, %v814
      %848 = vst.msk [vmem:[%s275 + $0xf0] sm:$0xff] %vm817, %v815
      %849 = vst.msk [vmem:[%s275 + $0xf8] sm:$0xff] %vm817, %v816
      %s850 = smul.u32 32, %s17
      %p851 = scmp.lt.s32.totalorder %s850, 63
      %s852 = scalar_select %p851, %s850, 63
      %s853 = smul.addr %s852, 8
      %s854 = scalar_lea.vmem %s6, %s853
      // Predicated region
      $region45: #{bottleneck_forward.7} parent=43 // pred_check
        %p855 = pneg %p171
      $region46: #{bottleneck_forward.7} parent=43 // pred_check_branch
        %857 = sbr.rel (%p855) target = $region48
      $region47: #{bottleneck_forward.7} parent=43 // pred_region
        %s858 = smul.u32 32, %s17
      $region48: #{bottleneck_forward.7} parent=43 // pred_fallthru
        _
    $region44: #{bottleneck_forward.7} parent=5 // pred_fallthru
      _
    %p859 = scmp.le.s32.totalorder 2, %s12
    // Predicated region
    $region49: #{bottleneck_forward.7} parent=5 // pred_check
      %p860 = pneg %p859
    $region50: #{bottleneck_forward.7} parent=5 // pred_check_branch
      %862 = sbr.rel (%p860) target = $region52
    $region51: #{bottleneck_forward.7} parent=5 // pred_region
      %s863 = ssub.s32 %s12, 2
      // Predicated region
      $region53: #{bottleneck_forward.7} parent=51 // pred_check
        %p864 = pneg %p177
      $region54: #{bottleneck_forward.7} parent=51 // pred_check_branch
        %866 = sbr.rel (%p864) target = $region56
      $region55: #{bottleneck_forward.7} parent=51 // pred_region
        %s867 = smul.u32 32, %s18
        %p868 = scmp.lt.s32.totalorder %s867, 63
        %s869 = scalar_select %p868, %s867, 63
        %s870 = smul.addr %s869, 8
        %s871 = scalar_lea.vmem %s6, %s870
      $region56: #{bottleneck_forward.7} parent=51 // pred_fallthru
        _
    $region52: #{bottleneck_forward.7} parent=5 // pred_fallthru
      _
  $region6: #{bottleneck_forward.7} parent=0 // loop_footer
    %s16 = sadd.s32 1, %s12
  $region7: #{bottleneck_forward.7} parent=0 // loop_footer_branch
    %11 = sbr.rel target = $region3
  $region8: #{bottleneck_forward.7} parent=0 // loop_exit
    _

// kernel: bottleneck_forward.6
$region0: #{bottleneck_forward.6}
  #allocation0 [shape = 'u32[]', space=smem, size = 0x4, offset = 0x4, fixed_abs, tag = 'smem constant byte address 0x4 - core index']
  #allocation1 [shape = 'u32[144,128]{1,0:T(1,128)}', space=vmem, size = 0x12000, scoped, tag = 'internal scratch']
  #allocation2 [shape = 'f32[10,18,4]{2,1,0:T(8,128)}', space=vmem, size = 0x1e000, scoped, tag = 'scratch operand']
  %s0 = inlined_call_operand.vmem [shape: f32[2,16,16,4], index: 0, kind: input, shape index: {}, may-alias: {0,1,2}]
  %s1 = inlined_call_operand.vmem [shape: f32[2,16,16,4], index: 1, kind: input, shape index: {}, may-alias: {0,1,2}]
  %s2 = inlined_call_operand.vmem [shape: f32[2,16,16,4], index: 2, kind: input, shape index: {}, may-alias: {0,1,2}]
  %s3 = inlined_call_operand.vmem [shape: f32[1,4], index: 3, kind: input, shape index: {}]
  %s4 = inlined_call_operand.vmem [shape: f32[1,4], index: 4, kind: input, shape index: {}]
  %s5 = inlined_call_operand.vmem [shape: f32[3,3,4,4], index: 5, kind: input, shape index: {}]
  %s6 = inlined_call_operand.vmem [shape: f32[1,4], index: 6, kind: input, shape index: {}]
  %s7 = inlined_call_operand.vmem [shape: f32[2,16,16,4], index: 7, kind: output, shape index: {0}]
  %s8 = inlined_call_operand.vmem [shape: f32[4,8,4], index: 8, kind: output, shape index: {1}]
  %s9 = inlined_call_operand.vmem [shape: f32[4,8,4], index: 9, kind: output, shape index: {2}]
  %10 = xla_tuple %s7, %s8, %s9
  %s11 = sld [smem:[#allocation0]]
  $region85: #{bottleneck_forward.6} parent=0
    _
  %s13 = ssub.s32 1, %s11
  %s14 = scalar_select 0, %s13, %s11
  loop: start=0, step=1, limit=6
  $region2: #{bottleneck_forward.6} parent=0 // loop_pre_header
    _
  $region3: #{bottleneck_forward.6} parent=0 // loop_header
    %s16 = sphi 0, %s20
    %p17 = scmp.ge.s32.totalorder %s16, 6
    %s23 = sphi 0, %s35
    %s24 = sphi 0, %s31
    %s25 = sphi 0, %s23
    %s26 = sphi 0, %s24
    %s27 = sphi 0, %s25
    %s28 = sphi 0, %s26
    %s40 = sphi 0, %s42
    %s43 = sphi 0, %s40
    %s44 = sphi 0, %s43
    %s60 = sphi 0, %s44
    %s76 = sphi 0, %s78
    %s79 = sphi 0, %s76
    %s80 = sphi 0, %s79
    %s96 = sphi 0, %s80
    %s112 = sphi 0, %s114
    %s115 = sphi 0, %s112
    %s116 = sphi 0, %s115
    %s132 = sphi 0, %s116
    %s136 = sphi 0, %s136
    %s138 = sphi 0, %s136
    %s139 = sphi 0, %s138
    %s153 = sphi 0, %s139
    %s157 = sphi 0, %s157
    %s159 = sphi 0, %s157
    %s160 = sphi 0, %s159
    %s174 = sphi 0, %s160
    %s178 = sphi 0, %s178
    %s180 = sphi 0, %s178
    %s181 = sphi 0, %s180
    %s195 = sphi 0, %s181
    %s199 = sphi 0, %s199
    %s201 = sphi 0, %s199
    %s202 = sphi 0, %s201
    %s216 = sphi 0, %s202
    %s224 = sphi 0, %s226
    %s227 = sphi 0, %s224
    %s228 = sphi 0, %s227
    %s244 = sphi 0, %s228
    %s254 = sphi 0, %s256
    %s257 = sphi 0, %s254
    %s258 = sphi 0, %s257
    %s274 = sphi 0, %s258
    %s284 = sphi 0, %s286
    %s287 = sphi 0, %s284
    %s288 = sphi 0, %s287
    %s304 = sphi 0, %s288
  $region4: #{bottleneck_forward.6} parent=0 // loop_header_branch
    %19 = sbr.rel (%p17) target = $region8
  $region5: #{bottleneck_forward.6} parent=0 // loop_body
    %s21 = ssub.s32 %s16, 1
    %s22 = ssub.s32 %s16, 2
    %s29 = sadd.s32 1, %s24
    %p30 = scmp.ge.s32.totalorder %s29, 2
    %s31 = scalar_select %p30, 0, %s29
    %s32 = sadd.s32 1, %s23
    %s33 = scalar_select %p30, %s32, %s23
    %p34 = scmp.ge.s32.totalorder %s33, 2
    %s35 = scalar_select %p34, 0, %s33
    %s36 = ssub.s32 %s23, %s35
    %s37 = ssub.s32 %s24, %s31
    %s38 = sor.u32 %s36, %s37
    %p39 = scmp.eq.s32.totalorder %s38, 0
    %s41 = sadd.s32 %s40, 1
    %s42 = scalar_select %p39, %s40, %s41
    %p45 = pneg %p39
    %p46 = scmp.eq.s32.totalorder %s16, 3
    %p47 = por %p45, %p46
    %p48 = scmp.ne.s32.totalorder %s40, %s43
    %p49 = scmp.eq.s32.totalorder %s16, 0
    %p50 = por %p48, %p49
    %p51 = scmp.ne.s32.totalorder %s40, %s43
    %p52 = scmp.eq.s32.totalorder %s21, 3
    %p53 = por %p51, %p52
    %p54 = scmp.ne.s32.totalorder %s43, %s44
    %p55 = scmp.eq.s32.totalorder %s21, 0
    %p56 = por %p54, %p55
    %p57 = scmp.ne.s32.totalorder %s43, %s44
    %p58 = scmp.eq.s32.totalorder %s22, 3
    %p59 = por %p57, %p58
    %p61 = scmp.ne.s32.totalorder %s44, %s60
    %p62 = scmp.eq.s32.totalorder %s22, 0
    %p63 = por %p61, %p62
    %s64 = smul.u32 %s24, 8
    %s65 = ssub.s32 %s64, 1
    %p66 = scmp.gt.s32.totalorder %s65, 0
    %s67 = scalar_select %p66, %s65, 0
    %s68 = smul.u32 %s31, 8
    %s69 = ssub.s32 %s68, 1
    %p70 = scmp.gt.s32.totalorder %s69, 0
    %s71 = scalar_select %p70, %s69, 0
    %s72 = ssub.s32 %s23, %s35
    %s73 = ssub.s32 %s67, %s71
    %s74 = sor.u32 %s72, %s73
    %p75 = scmp.eq.s32.totalorder %s74, 0
    %s77 = sadd.s32 %s76, 1
    %s78 = scalar_select %p75, %s76, %s77
    %p81 = pneg %p75
    %p82 = scmp.eq.s32.totalorder %s16, 3
    %p83 = por %p81, %p82
    %p84 = scmp.ne.s32.totalorder %s76, %s79
    %p85 = scmp.eq.s32.totalorder %s16, 0
    %p86 = por %p84, %p85
    %p87 = scmp.ne.s32.totalorder %s76, %s79
    %p88 = scmp.eq.s32.totalorder %s21, 3
    %p89 = por %p87, %p88
    %p90 = scmp.ne.s32.totalorder %s79, %s80
    %p91 = scmp.eq.s32.totalorder %s21, 0
    %p92 = por %p90, %p91
    %p93 = scmp.ne.s32.totalorder %s79, %s80
    %p94 = scmp.eq.s32.totalorder %s22, 3
    %p95 = por %p93, %p94
    %p97 = scmp.ne.s32.totalorder %s80, %s96
    %p98 = scmp.eq.s32.totalorder %s22, 0
    %p99 = por %p97, %p98
    %s100 = sadd.s32 %s24, 1
    %s101 = smul.u32 %s100, 8
    %p102 = scmp.lt.s32.totalorder %s101, 15
    %s103 = scalar_select %p102, %s101, 15
    %s104 = sadd.s32 %s31, 1
    %s105 = smul.u32 %s104, 8
    %p106 = scmp.lt.s32.totalorder %s105, 15
    %s107 = scalar_select %p106, %s105, 15
    %s108 = ssub.s32 %s23, %s35
    %s109 = ssub.s32 %s103, %s107
    %s110 = sor.u32 %s108, %s109
    %p111 = scmp.eq.s32.totalorder %s110, 0
    %s113 = sadd.s32 %s112, 1
    %s114 = scalar_select %p111, %s112, %s113
    %p117 = pneg %p111
    %p118 = scmp.eq.s32.totalorder %s16, 3
    %p119 = por %p117, %p118
    %p120 = scmp.ne.s32.totalorder %s112, %s115
    %p121 = scmp.eq.s32.totalorder %s16, 0
    %p122 = por %p120, %p121
    %p123 = scmp.ne.s32.totalorder %s112, %s115
    %p124 = scmp.eq.s32.totalorder %s21, 3
    %p125 = por %p123, %p124
    %p126 = scmp.ne.s32.totalorder %s115, %s116
    %p127 = scmp.eq.s32.totalorder %s21, 0
    %p128 = por %p126, %p127
    %p129 = scmp.ne.s32.totalorder %s115, %s116
    %p130 = scmp.eq.s32.totalorder %s22, 3
    %p131 = por %p129, %p130
    %p133 = scmp.ne.s32.totalorder %s116, %s132
    %p134 = scmp.eq.s32.totalorder %s22, 0
    %p135 = por %p133, %p134
    %s137 = sadd.s32 %s136, 1
    %p140 = scmp.eq.s32.totalorder %s16, 3
    %p141 = scmp.ne.s32.totalorder %s136, %s138
    %p142 = scmp.eq.s32.totalorder %s16, 0
    %p143 = por %p141, %p142
    %p144 = scmp.ne.s32.totalorder %s136, %s138
    %p145 = scmp.eq.s32.totalorder %s21, 3
    %p146 = por %p144, %p145
    %p147 = scmp.ne.s32.totalorder %s138, %s139
    %p148 = scmp.eq.s32.totalorder %s21, 0
    %p149 = por %p147, %p148
    %p150 = scmp.ne.s32.totalorder %s138, %s139
    %p151 = scmp.eq.s32.totalorder %s22, 3
    %p152 = por %p150, %p151
    %p154 = scmp.ne.s32.totalorder %s139, %s153
    %p155 = scmp.eq.s32.totalorder %s22, 0
    %p156 = por %p154, %p155
    %s158 = sadd.s32 %s157, 1
    %p161 = scmp.eq.s32.totalorder %s16, 3
    %p162 = scmp.ne.s32.totalorder %s157, %s159
    %p163 = scmp.eq.s32.totalorder %s16, 0
    %p164 = por %p162, %p163
    %p165 = scmp.ne.s32.totalorder %s157, %s159
    %p166 = scmp.eq.s32.totalorder %s21, 3
    %p167 = por %p165, %p166
    %p168 = scmp.ne.s32.totalorder %s159, %s160
    %p169 = scmp.eq.s32.totalorder %s21, 0
    %p170 = por %p168, %p169
    %p171 = scmp.ne.s32.totalorder %s159, %s160
    %p172 = scmp.eq.s32.totalorder %s22, 3
    %p173 = por %p171, %p172
    %p175 = scmp.ne.s32.totalorder %s160, %s174
    %p176 = scmp.eq.s32.totalorder %s22, 0
    %p177 = por %p175, %p176
    %s179 = sadd.s32 %s178, 1
    %p182 = scmp.eq.s32.totalorder %s16, 3
    %p183 = scmp.ne.s32.totalorder %s178, %s180
    %p184 = scmp.eq.s32.totalorder %s16, 0
    %p185 = por %p183, %p184
    %p186 = scmp.ne.s32.totalorder %s178, %s180
    %p187 = scmp.eq.s32.totalorder %s21, 3
    %p188 = por %p186, %p187
    %p189 = scmp.ne.s32.totalorder %s180, %s181
    %p190 = scmp.eq.s32.totalorder %s21, 0
    %p191 = por %p189, %p190
    %p192 = scmp.ne.s32.totalorder %s180, %s181
    %p193 = scmp.eq.s32.totalorder %s22, 3
    %p194 = por %p192, %p193
    %p196 = scmp.ne.s32.totalorder %s181, %s195
    %p197 = scmp.eq.s32.totalorder %s22, 0
    %p198 = por %p196, %p197
    %s200 = sadd.s32 %s199, 1
    %p203 = scmp.eq.s32.totalorder %s16, 3
    %p204 = scmp.ne.s32.totalorder %s199, %s201
    %p205 = scmp.eq.s32.totalorder %s16, 0
    %p206 = por %p204, %p205
    %p207 = scmp.ne.s32.totalorder %s199, %s201
    %p208 = scmp.eq.s32.totalorder %s21, 3
    %p209 = por %p207, %p208
    %p210 = scmp.ne.s32.totalorder %s201, %s202
    %p211 = scmp.eq.s32.totalorder %s21, 0
    %p212 = por %p210, %p211
    %p213 = scmp.ne.s32.totalorder %s201, %s202
    %p214 = scmp.eq.s32.totalorder %s22, 3
    %p215 = por %p213, %p214
    %p217 = scmp.ne.s32.totalorder %s202, %s216
    %p218 = scmp.eq.s32.totalorder %s22, 0
    %p219 = por %p217, %p218
    %s220 = ssub.s32 %s23, %s35
    %s221 = ssub.s32 %s24, %s31
    %s222 = sor.u32 %s220, %s221
    %p223 = scmp.eq.s32.totalorder %s222, 0
    %s225 = sadd.s32 %s224, 1
    %s226 = scalar_select %p223, %s224, %s225
    %p229 = pneg %p223
    %p230 = scmp.eq.s32.totalorder %s16, 3
    %p231 = por %p229, %p230
    %p232 = scmp.ne.s32.totalorder %s224, %s227
    %p233 = scmp.eq.s32.totalorder %s16, 0
    %p234 = por %p232, %p233
    %p235 = scmp.ne.s32.totalorder %s224, %s227
    %p236 = scmp.eq.s32.totalorder %s21, 3
    %p237 = por %p235, %p236
    %p238 = scmp.ne.s32.totalorder %s227, %s228
    %p239 = scmp.eq.s32.totalorder %s21, 0
    %p240 = por %p238, %p239
    %p241 = scmp.ne.s32.totalorder %s227, %s228
    %p242 = scmp.eq.s32.totalorder %s22, 3
    %p243 = por %p241, %p242
    %p245 = scmp.ne.s32.totalorder %s228, %s244
    %p246 = scmp.eq.s32.totalorder %s22, 0
    %p247 = por %p245, %p246
    %s248 = smul.u32 %s23, 2
    %s249 = sadd.s32 %s248, %s24
    %s250 = smul.u32 %s35, 2
    %s251 = sadd.s32 %s250, %s31
    %s252 = ssub.s32 %s249, %s251
    %p253 = scmp.eq.s32.totalorder %s252, 0
    %s255 = sadd.s32 %s254, 1
    %s256 = scalar_select %p253, %s254, %s255
    %p259 = pneg %p253
    %p260 = scmp.eq.s32.totalorder %s16, 3
    %p261 = por %p259, %p260
    %p262 = scmp.ne.s32.totalorder %s254, %s257
    %p263 = scmp.eq.s32.totalorder %s16, 0
    %p264 = por %p262, %p263
    %p265 = scmp.ne.s32.totalorder %s254, %s257
    %p266 = scmp.eq.s32.totalorder %s21, 3
    %p267 = por %p265, %p266
    %p268 = scmp.ne.s32.totalorder %s257, %s258
    %p269 = scmp.eq.s32.totalorder %s21, 0
    %p270 = por %p268, %p269
    %p271 = scmp.ne.s32.totalorder %s257, %s258
    %p272 = scmp.eq.s32.totalorder %s22, 3
    %p273 = por %p271, %p272
    %p275 = scmp.ne.s32.totalorder %s258, %s274
    %p276 = scmp.eq.s32.totalorder %s22, 0
    %p277 = por %p275, %p276
    %s278 = smul.u32 %s23, 2
    %s279 = sadd.s32 %s278, %s24
    %s280 = smul.u32 %s35, 2
    %s281 = sadd.s32 %s280, %s31
    %s282 = ssub.s32 %s279, %s281
    %p283 = scmp.eq.s32.totalorder %s282, 0
    %s285 = sadd.s32 %s284, 1
    %s286 = scalar_select %p283, %s284, %s285
    %p289 = pneg %p283
    %p290 = scmp.eq.s32.totalorder %s16, 3
    %p291 = por %p289, %p290
    %p292 = scmp.ne.s32.totalorder %s284, %s287
    %p293 = scmp.eq.s32.totalorder %s16, 0
    %p294 = por %p292, %p293
    %p295 = scmp.ne.s32.totalorder %s284, %s287
    %p296 = scmp.eq.s32.totalorder %s21, 3
    %p297 = por %p295, %p296
    %p298 = scmp.ne.s32.totalorder %s287, %s288
    %p299 = scmp.eq.s32.totalorder %s21, 0
    %p300 = por %p298, %p299
    %p301 = scmp.ne.s32.totalorder %s287, %s288
    %p302 = scmp.eq.s32.totalorder %s22, 3
    %p303 = por %p301, %p302
    %p305 = scmp.ne.s32.totalorder %s288, %s304
    %p306 = scmp.eq.s32.totalorder %s22, 0
    %p307 = por %p305, %p306
    %p308 = scmp.le.s32.totalorder 1, %s16
    %p309 = scmp.lt.s32.totalorder %s16, 5
    %p310 = pnand %p308, %p309
    %p311 = pneg %p310
    // Predicated region
    $region9: #{bottleneck_forward.6} parent=5 // pred_check
      _
    $region10: #{bottleneck_forward.6} parent=5 // pred_check_branch
      %313 = sbr.rel (%p310) target = $region12
    $region11: #{bottleneck_forward.6} parent=5 // pred_region
      %s314 = ssub.s32 %s16, 1
      // Predicated region
      $region13: #{bottleneck_forward.6} parent=11 // pred_check
        %p315 = pneg %p149
      $region14: #{bottleneck_forward.6} parent=11 // pred_check_branch
        %317 = sbr.rel (%p315) target = $region16
      $region15: #{bottleneck_forward.6} parent=11 // pred_region
        _
      $region16: #{bottleneck_forward.6} parent=11 // pred_fallthru
        _
      // Predicated region
      $region17: #{bottleneck_forward.6} parent=11 // pred_check
        %p318 = pneg %p170
      $region18: #{bottleneck_forward.6} parent=11 // pred_check_branch
        %320 = sbr.rel (%p318) target = $region20
      $region19: #{bottleneck_forward.6} parent=11 // pred_region
        _
      $region20: #{bottleneck_forward.6} parent=11 // pred_fallthru
        _
      // Predicated region
      $region21: #{bottleneck_forward.6} parent=11 // pred_check
        %p321 = pneg %p191
      $region22: #{bottleneck_forward.6} parent=11 // pred_check_branch
        %323 = sbr.rel (%p321) target = $region24
      $region23: #{bottleneck_forward.6} parent=11 // pred_region
        _
      $region24: #{bottleneck_forward.6} parent=11 // pred_fallthru
        _
      // Predicated region
      $region25: #{bottleneck_forward.6} parent=11 // pred_check
        %p324 = pneg %p212
      $region26: #{bottleneck_forward.6} parent=11 // pred_check_branch
        %326 = sbr.rel (%p324) target = $region28
      $region27: #{bottleneck_forward.6} parent=11 // pred_region
        _
      $region28: #{bottleneck_forward.6} parent=11 // pred_fallthru
        _
    $region12: #{bottleneck_forward.6} parent=5 // pred_fallthru
      _
    %p327 = scmp.lt.s32.totalorder %s16, 4
    // Predicated region
    $region29: #{bottleneck_forward.6} parent=5 // pred_check
      %p328 = pneg %p327
    $region30: #{bottleneck_forward.6} parent=5 // pred_check_branch
      %330 = sbr.rel (%p328) target = $region32
    $region31: #{bottleneck_forward.6} parent=5 // pred_region
      // Predicated region
      $region33: #{bottleneck_forward.6} parent=31 // pred_check
        %p331 = pneg %p50
      $region34: #{bottleneck_forward.6} parent=31 // pred_check_branch
        %333 = sbr.rel (%p331) target = $region36
      $region35: #{bottleneck_forward.6} parent=31 // pred_region
        %s334 = smul.u32 8, %s24
        %p335 = scmp.lt.s32.totalorder %s23, 1
        %s336 = scalar_select %p335, %s23, 1
        %p337 = scmp.lt.s32.totalorder %s334, 15
        %s338 = scalar_select %p337, %s334, 15
        %s339 = smul.addr %s338, 2
        %s340 = smul.addr %s336, 32
        %s341 = sadd.s32 %s339, %s340
        %s342 = smul.addr %s341, 8
        %s343 = scalar_lea.vmem %s0, %s342
        %s344 = smul.u32 8, %s24
      $region36: #{bottleneck_forward.6} parent=31 // pred_fallthru
        _
      // Predicated region
      $region37: #{bottleneck_forward.6} parent=31 // pred_check
        %p345 = pneg %p86
      $region38: #{bottleneck_forward.6} parent=31 // pred_check_branch
        %347 = sbr.rel (%p345) target = $region40
      $region39: #{bottleneck_forward.6} parent=31 // pred_region
        %s348 = smul.u32 %s24, 8
        %s349 = ssub.s32 %s348, 1
        %p350 = scmp.gt.s32.totalorder %s349, 0
        %s351 = scalar_select %p350, %s349, 0
        %p352 = scmp.lt.s32.totalorder %s23, 1
        %s353 = scalar_select %p352, %s23, 1
        %p354 = scmp.lt.s32.totalorder %s351, 15
        %s355 = scalar_select %p354, %s351, 15
        %s356 = smul.addr %s355, 2
        %s357 = smul.addr %s353, 32
        %s358 = sadd.s32 %s356, %s357
        %s359 = smul.addr %s358, 8
        %s360 = scalar_lea.vmem %s1, %s359
        %s361 = smul.u32 %s24, 8
        %s362 = ssub.s32 %s361, 1
        %p363 = scmp.gt.s32.totalorder %s362, 0
        %s364 = scalar_select %p363, %s362, 0
      $region40: #{bottleneck_forward.6} parent=31 // pred_fallthru
        _
      // Predicated region
      $region41: #{bottleneck_forward.6} parent=31 // pred_check
        %p365 = pneg %p122
      $region42: #{bottleneck_forward.6} parent=31 // pred_check_branch
        %367 = sbr.rel (%p365) target = $region44
      $region43: #{bottleneck_forward.6} parent=31 // pred_region
        %s368 = sadd.s32 %s24, 1
        %s369 = smul.u32 %s368, 8
        %p370 = scmp.lt.s32.totalorder %s369, 15
        %s371 = scalar_select %p370, %s369, 15
        %p372 = scmp.lt.s32.totalorder %s23, 1
        %s373 = scalar_select %p372, %s23, 1
        %p374 = scmp.lt.s32.totalorder %s371, 15
        %s375 = scalar_select %p374, %s371, 15
        %s376 = smul.addr %s375, 2
        %s377 = smul.addr %s373, 32
        %s378 = sadd.s32 %s376, %s377
        %s379 = smul.addr %s378, 8
        %s380 = scalar_lea.vmem %s2, %s379
        %s381 = sadd.s32 %s24, 1
        %s382 = smul.u32 %s381, 8
        %p383 = scmp.lt.s32.totalorder %s382, 15
        %s384 = scalar_select %p383, %s382, 15
      $region44: #{bottleneck_forward.6} parent=31 // pred_fallthru
        _
    $region32: #{bottleneck_forward.6} parent=5 // pred_fallthru
      _
    %p385 = scmp.le.s32.totalorder 1, %s16
    %p386 = scmp.lt.s32.totalorder %s16, 5
    %p387 = pnand %p385, %p386
    %p388 = pneg %p387
    // Predicated region
    $region45: #{bottleneck_forward.6} parent=5 // pred_check
      _
    $region46: #{bottleneck_forward.6} parent=5 // pred_check_branch
      %390 = sbr.rel (%p387) target = $region48
    $region47: #{bottleneck_forward.6} parent=5 // pred_region
      %s391 = ssub.s32 %s16, 1
      %s392 = smul.u32 8, %s26
      %p393 = scmp.lt.s32.totalorder %s25, 1
      %s394 = scalar_select %p393, %s25, 1
      %p395 = scmp.lt.s32.totalorder %s392, 15
      %s396 = scalar_select %p395, %s392, 15
      %s397 = smul.addr %s396, 2
      %s398 = smul.addr %s394, 32
      %s399 = sadd.s32 %s397, %s398
      %s400 = smul.addr %s399, 8
      %s401 = scalar_lea.vmem %s0, %s400
      %p402 = pneg %p56
      %p403 = pneg %p53
      %s404 = smul.u32 %s26, 8
      %s405 = ssub.s32 %s404, 1
      %p406 = scmp.gt.s32.totalorder %s405, 0
      %s407 = scalar_select %p406, %s405, 0
      %p408 = scmp.lt.s32.totalorder %s25, 1
      %s409 = scalar_select %p408, %s25, 1
      %p410 = scmp.lt.s32.totalorder %s407, 15
      %s411 = scalar_select %p410, %s407, 15
      %s412 = smul.addr %s411, 2
      %s413 = smul.addr %s409, 32
      %s414 = sadd.s32 %s412, %s413
      %s415 = smul.addr %s414, 8
      %s416 = scalar_lea.vmem %s1, %s415
      %p417 = pneg %p92
      %p418 = pneg %p89
      %s419 = sadd.s32 %s26, 1
      %s420 = smul.u32 %s419, 8
      %p421 = scmp.lt.s32.totalorder %s420, 15
      %s422 = scalar_select %p421, %s420, 15
      %p423 = scmp.lt.s32.totalorder %s25, 1
      %s424 = scalar_select %p423, %s25, 1
      %p425 = scmp.lt.s32.totalorder %s422, 15
      %s426 = scalar_select %p425, %s422, 15
      %s427 = smul.addr %s426, 2
      %s428 = smul.addr %s424, 32
      %s429 = sadd.s32 %s427, %s428
      %s430 = smul.addr %s429, 8
      %s431 = scalar_lea.vmem %s2, %s430
      %p432 = pneg %p128
      %p433 = pneg %p125
      %p434 = pneg %p149
      %p435 = pneg %p146
      %p436 = pneg %p170
      %p437 = pneg %p167
      %p438 = pneg %p191
      %p439 = pneg %p188
      %p440 = pneg %p212
      %p441 = pneg %p209
      %p442 = pneg %p240
      %p443 = pneg %p237
      %s444 = smul.u32 8, %s26
      %p445 = scmp.lt.s32.totalorder %s25, 1
      %s446 = scalar_select %p445, %s25, 1
      %p447 = scmp.lt.s32.totalorder %s444, 15
      %s448 = scalar_select %p447, %s444, 15
      %s449 = smul.addr %s448, 2
      %s450 = smul.addr %s446, 32
      %s451 = sadd.s32 %s449, %s450
      %s452 = smul.addr %s451, 8
      %s453 = scalar_lea.vmem %s7, %s452
      %p454 = pneg %p270
      %p455 = pneg %p267
      %s456 = smul.u32 %s25, 2
      %s457 = sadd.s32 %s456, %s26
      %p458 = scmp.lt.s32.totalorder %s457, 3
      %s459 = scalar_select %p458, %s457, 3
      %s460 = smul.addr %s459, 8
      %s461 = scalar_lea.vmem %s8, %s460
      %p462 = pneg %p300
      %p463 = pneg %p297
      %s464 = smul.u32 %s25, 2
      %s465 = sadd.s32 %s464, %s26
      %p466 = scmp.lt.s32.totalorder %s465, 3
      %s467 = scalar_select %p466, %s465, 3
      %s468 = smul.addr %s467, 8
      %s469 = scalar_lea.vmem %s9, %s468
      %s470 = smul.u32 8, %s26
      %p471 = scmp.lt.s32.totalorder %s25, 1
      %s472 = scalar_select %p471, %s25, 1
      %p473 = scmp.lt.s32.totalorder %s470, 15
      %s474 = scalar_select %p473, %s470, 15
      %s475 = smul.addr %s474, 2
      %s476 = smul.addr %s472, 32
      %s477 = sadd.s32 %s475, %s476
      %s478 = smul.addr %s477, 8
      %s479 = scalar_lea.vmem %s0, %s478
      %s480 = smul.u32 8, %s26
      %s481 = smul.u32 %s26, 8
      %s482 = ssub.s32 %s481, 1
      %p483 = scmp.gt.s32.totalorder %s482, 0
      %s484 = scalar_select %p483, %s482, 0
      %p485 = scmp.lt.s32.totalorder %s25, 1
      %s486 = scalar_select %p485, %s25, 1
      %p487 = scmp.lt.s32.totalorder %s484, 15
      %s488 = scalar_select %p487, %s484, 15
      %s489 = smul.addr %s488, 2
      %s490 = smul.addr %s486, 32
      %s491 = sadd.s32 %s489, %s490
      %s492 = smul.addr %s491, 8
      %s493 = scalar_lea.vmem %s1, %s492
      %s494 = smul.u32 %s26, 8
      %s495 = ssub.s32 %s494, 1
      %p496 = scmp.gt.s32.totalorder %s495, 0
      %s497 = scalar_select %p496, %s495, 0
      %s498 = sadd.s32 %s26, 1
      %s499 = smul.u32 %s498, 8
      %p500 = scmp.lt.s32.totalorder %s499, 15
      %s501 = scalar_select %p500, %s499, 15
      %p502 = scmp.lt.s32.totalorder %s25, 1
      %s503 = scalar_select %p502, %s25, 1
      %p504 = scmp.lt.s32.totalorder %s501, 15
      %s505 = scalar_select %p504, %s501, 15
      %s506 = smul.addr %s505, 2
      %s507 = smul.addr %s503, 32
      %s508 = sadd.s32 %s506, %s507
      %s509 = smul.addr %s508, 8
      %s510 = scalar_lea.vmem %s2, %s509
      %s511 = sadd.s32 %s26, 1
      %s512 = smul.u32 %s511, 8
      %p513 = scmp.lt.s32.totalorder %s512, 15
      %s514 = scalar_select %p513, %s512, 15
      %s515 = smul.u32 8, %s26
      %p516 = scmp.lt.s32.totalorder %s25, 1
      %s517 = scalar_select %p516, %s25, 1
      %p518 = scmp.lt.s32.totalorder %s515, 15
      %s519 = scalar_select %p518, %s515, 15
      %s520 = smul.addr %s519, 2
      %s521 = smul.addr %s517, 32
      %s522 = sadd.s32 %s520, %s521
      %s523 = smul.addr %s522, 8
      %s524 = scalar_lea.vmem %s7, %s523
      %s525 = smul.u32 8, %s26
      %s526 = smul.u32 %s25, 2
      %s527 = sadd.s32 %s526, %s26
      %p528 = scmp.lt.s32.totalorder %s527, 3
      %s529 = scalar_select %p528, %s527, 3
      %s530 = smul.addr %s529, 8
      %s531 = scalar_lea.vmem %s8, %s530
      %s532 = smul.u32 %s25, 2
      %s533 = sadd.s32 %s532, %s26
      %s534 = smul.u32 %s25, 2
      %s535 = sadd.s32 %s534, %s26
      %p536 = scmp.lt.s32.totalorder %s535, 3
      %s537 = scalar_select %p536, %s535, 3
      %s538 = smul.addr %s537, 8
      %s539 = scalar_lea.vmem %s9, %s538
      %s540 = smul.u32 %s25, 2
      %s541 = sadd.s32 %s540, %s26
      %v542 = vld [vmem:[%s3] sm:$0x1]
      %v543 = vld [vmem:[%s4] sm:$0x1]
      %vm544 = vcmask 31744
      %545 = vst.msk [vmem:[#allocation2] sm:$0xff] %vm544, 0.0
      %546 = vst.msk [vmem:[#allocation2 + $0x8] sm:$0xff] %vm544, 0.0
      %vm547 = vcmask 25600
      %548 = vst.msk [vmem:[#allocation2 + $0x10] sm:$0x3] %vm547, 0.0
      %s549 = scalar_lea.vmem [#allocation2], 216
      %550 = vst.msk [vmem:[%s549] sm:$0xff] %vm544, 0.0
      %551 = vst.msk [vmem:[%s549 + $0x8] sm:$0xff] %vm544, 0.0
      %552 = vst.msk [vmem:[%s549 + $0x10] sm:$0x3] %vm547, 0.0
      %v553 = vld [vmem:[%s479] sm:$0xff]
      %v554 = vld [vmem:[%s479 + $0x8] sm:$0xff]
      %v555 = vld [vmem:[%s479 + $0x10] sm:$0xff]
      %v556 = vld [vmem:[%s479 + $0x18] sm:$0xff]
      %v557 = vld [vmem:[%s479 + $0x20] sm:$0xff]
      %v558 = vld [vmem:[%s479 + $0x28] sm:$0xff]
      %v559 = vld [vmem:[%s479 + $0x30] sm:$0xff]
      %v560 = vld [vmem:[%s479 + $0x38] sm:$0xff]
      %v561 = vld [vmem:[%s479 + $0x40] sm:$0xff]
      %v562 = vld [vmem:[%s479 + $0x48] sm:$0xff]
      %v563 = vld [vmem:[%s479 + $0x50] sm:$0xff]
      %v564 = vld [vmem:[%s479 + $0x58] sm:$0xff]
      %v565 = vld [vmem:[%s479 + $0x60] sm:$0xff]
      %v566 = vld [vmem:[%s479 + $0x68] sm:$0xff]
      %v567 = vld [vmem:[%s479 + $0x70] sm:$0xff]
      %v568 = vld [vmem:[%s479 + $0x78] sm:$0xff]
      %v570 = vlaneseq
      %v571 = vshrl.u32 %v570, 7
      %v572 = vsub.s32 0, %v571
      %v573 = vrot.slane %v542, %v572
      %v575 = vmul.f32 %v553, %v573
      %v576 = vmul.f32 %v554, %v573
      %v577 = vmul.f32 %v555, %v573
      %v578 = vmul.f32 %v556, %v573
      %v579 = vmul.f32 %v557, %v573
      %v580 = vmul.f32 %v558, %v573
      %v581 = vmul.f32 %v559, %v573
      %v582 = vmul.f32 %v560, %v573
      %v583 = vmul.f32 %v561, %v573
      %v584 = vmul.f32 %v562, %v573
      %v585 = vmul.f32 %v563, %v573
      %v586 = vmul.f32 %v564, %v573
      %v587 = vmul.f32 %v565, %v573
      %v588 = vmul.f32 %v566, %v573
      %v589 = vmul.f32 %v567, %v573
      %v590 = vmul.f32 %v568, %v573
      %v592 = vlaneseq
      %v593 = vshrl.u32 %v592, 7
      %v594 = vsub.s32 0, %v593
      %v595 = vrot.slane %v543, %v594
      %v597 = vadd.f32 %v575, %v595
      %v598 = vadd.f32 %v576, %v595
      %v599 = vadd.f32 %v577, %v595
      %v600 = vadd.f32 %v578, %v595
      %v601 = vadd.f32 %v579, %v595
      %v602 = vadd.f32 %v580, %v595
      %v603 = vadd.f32 %v581, %v595
      %v604 = vadd.f32 %v582, %v595
      %v605 = vadd.f32 %v583, %v595
      %v606 = vadd.f32 %v584, %v595
      %v607 = vadd.f32 %v585, %v595
      %v608 = vadd.f32 %v586, %v595
      %v609 = vadd.f32 %v587, %v595
      %v610 = vadd.f32 %v588, %v595
      %v611 = vadd.f32 %v589, %v595
      %v612 = vadd.f32 %v590, %v595
      %v613 = vmax.f32 %v597, 0.0
      %v614 = vmax.f32 %v598, 0.0
      %v615 = vmax.f32 %v599, 0.0
      %v616 = vmax.f32 %v600, 0.0
      %v617 = vmax.f32 %v601, 0.0
      %v618 = vmax.f32 %v602, 0.0
      %v619 = vmax.f32 %v603, 0.0
      %v620 = vmax.f32 %v604, 0.0
      %v621 = vmax.f32 %v605, 0.0
      %v622 = vmax.f32 %v606, 0.0
      %v623 = vmax.f32 %v607, 0.0
      %v624 = vmax.f32 %v608, 0.0
      %v625 = vmax.f32 %v609, 0.0
      %v626 = vmax.f32 %v610, 0.0
      %v627 = vmax.f32 %v611, 0.0
      %v628 = vmax.f32 %v612, 0.0
      %vm645 = vcmask 1040384
      %v646 = vrot.slane %v613, 7
      %v647 = vrot.slane %v614, 7
      %v648 = vsel %vm645, %v646, %v647
      %v649 = vrot.slane %v615, 7
      %v650 = vrot.slane %v616, 7
      %v651 = vsel %vm645, %v649, %v650
      %v652 = vrot.slane %v617, 7
      %v653 = vrot.slane %v618, 7
      %v654 = vsel %vm645, %v652, %v653
      %v655 = vrot.slane %v619, 7
      %v656 = vrot.slane %v620, 7
      %v657 = vsel %vm645, %v655, %v656
      %v658 = vrot.slane %v621, 7
      %v659 = vrot.slane %v622, 7
      %v660 = vsel %vm645, %v658, %v659
      %v661 = vrot.slane %v623, 7
      %v662 = vrot.slane %v624, 7
      %v663 = vsel %vm645, %v661, %v662
      %v664 = vrot.slane %v625, 7
      %v665 = vrot.slane %v626, 7
      %v666 = vsel %vm645, %v664, %v665
      %v667 = vrot.slane %v627, 7
      %v668 = vrot.slane %v628, 7
      %v669 = vsel %vm645, %v667, %v668
      %v694 = vsel %vm645, 0.0, %v646
      %v695 = vsel %vm645, 0.0, %v649
      %v696 = vsel %vm645, 0.0, %v652
      %v697 = vsel %vm645, 0.0, %v655
      %v698 = vsel %vm645, 0.0, %v658
      %v699 = vsel %vm645, 0.0, %v661
      %v700 = vsel %vm645, 0.0, %v664
      %v701 = vsel %vm645, 0.0, %v667
      %v702 = vsel %vm645, %v647, 0.0
      %v703 = vsel %vm645, %v650, 0.0
      %v704 = vsel %vm645, %v653, 0.0
      %v705 = vsel %vm645, %v656, 0.0
      %v706 = vsel %vm645, %v659, 0.0
      %v707 = vsel %vm645, %v662, 0.0
      %v708 = vsel %vm645, %v665, 0.0
      %v709 = vsel %vm645, %v668, 0.0
      %s710 = scalar_lea.vmem [#allocation2], 24
      %711 = vst.msk [vmem:[%s710] sm:$0xff] %vm544, %v694
      %712 = vst.msk [vmem:[%s710 + $0x8] sm:$0xff] %vm544, %v648
      %713 = vst.msk [vmem:[%s710 + $0x10] sm:$0x3] %vm547, %v702
      %714 = vst.msk [vmem:[%s710 + $0x18] sm:$0xff] %vm544, %v695
      %715 = vst.msk [vmem:[%s710 + $0x20] sm:$0xff] %vm544, %v651
      %716 = vst.msk [vmem:[%s710 + $0x28] sm:$0x3] %vm547, %v703
      %717 = vst.msk [vmem:[%s710 + $0x30] sm:$0xff] %vm544, %v696
      %718 = vst.msk [vmem:[%s710 + $0x38] sm:$0xff] %vm544, %v654
      %719 = vst.msk [vmem:[%s710 + $0x40] sm:$0x3] %vm547, %v704
      %720 = vst.msk [vmem:[%s710 + $0x48] sm:$0xff] %vm544, %v697
      %721 = vst.msk [vmem:[%s710 + $0x50] sm:$0xff] %vm544, %v657
      %722 = vst.msk [vmem:[%s710 + $0x58] sm:$0x3] %vm547, %v705
      %723 = vst.msk [vmem:[%s710 + $0x60] sm:$0xff] %vm544, %v698
      %724 = vst.msk [vmem:[%s710 + $0x68] sm:$0xff] %vm544, %v660
      %725 = vst.msk [vmem:[%s710 + $0x70] sm:$0x3] %vm547, %v706
      %726 = vst.msk [vmem:[%s710 + $0x78] sm:$0xff] %vm544, %v699
      %727 = vst.msk [vmem:[%s710 + $0x80] sm:$0xff] %vm544, %v663
      %728 = vst.msk [vmem:[%s710 + $0x88] sm:$0x3] %vm547, %v707
      %729 = vst.msk [vmem:[%s710 + $0x90] sm:$0xff] %vm544, %v700
      %730 = vst.msk [vmem:[%s710 + $0x98] sm:$0xff] %vm544, %v666
      %731 = vst.msk [vmem:[%s710 + $0xa0] sm:$0x3] %vm547, %v708
      %732 = vst.msk [vmem:[%s710 + $0xa8] sm:$0xff] %vm544, %v701
      %733 = vst.msk [vmem:[%s710 + $0xb0] sm:$0xff] %vm544, %v669
      %734 = vst.msk [vmem:[%s710 + $0xb8] sm:$0x3] %vm547, %v709
      %p735 = scmp.gt.s32.totalorder %s26, 0
      // Predicated region
      $region49: #{bottleneck_forward.6} parent=47 // pred_check
        %p736 = pneg %p735
      $region50: #{bottleneck_forward.6} parent=47 // pred_check_branch
        %738 = sbr.rel (%p736) target = $region52
      $region51: #{bottleneck_forward.6} parent=47 // pred_region
        %v739 = vld [vmem:[%s493] sm:$0xff]
        %v740 = vld [vmem:[%s493 + $0x8] sm:$0xff]
        %v741 = vmul.f32 %v739, %v573
        %v742 = vmul.f32 %v740, %v573
        %v743 = vadd.f32 %v741, %v595
        %v744 = vadd.f32 %v742, %v595
        %v745 = vmax.f32 %v743, 0.0
        %v746 = vmax.f32 %v744, 0.0
        %v749 = vrot.slane %v745, 7
        %v750 = vrot.slane %v746, 7
        %v751 = vsel %vm645, %v749, %v750
        %v755 = vsel %vm645, 0.0, %v749
        %v756 = vsel %vm645, %v750, 0.0
        %757 = vst.msk [vmem:[#allocation2] sm:$0xff] %vm544, %v755
        %758 = vst.msk [vmem:[#allocation2 + $0x8] sm:$0xff] %vm544, %v751
        %759 = vst.msk [vmem:[#allocation2 + $0x10] sm:$0x3] %vm547, %v756
      $region52: #{bottleneck_forward.6} parent=47 // pred_fallthru
        _
      %p760 = scmp.lt.s32.totalorder %s26, 1
      // Predicated region
      $region53: #{bottleneck_forward.6} parent=47 // pred_check
        %p761 = pneg %p760
      $region54: #{bottleneck_forward.6} parent=47 // pred_check_branch
        %763 = sbr.rel (%p761) target = $region56
      $region55: #{bottleneck_forward.6} parent=47 // pred_region
        %v764 = vld [vmem:[%s510] sm:$0xff]
        %v765 = vld [vmem:[%s510 + $0x8] sm:$0xff]
        %v766 = vmul.f32 %v764, %v573
        %v767 = vmul.f32 %v765, %v573
        %v768 = vadd.f32 %v766, %v595
        %v769 = vadd.f32 %v767, %v595
        %v770 = vmax.f32 %v768, 0.0
        %v771 = vmax.f32 %v769, 0.0
        %v774 = vrot.slane %v770, 7
        %v775 = vrot.slane %v771, 7
        %v776 = vsel %vm645, %v774, %v775
        %v780 = vsel %vm645, 0.0, %v774
        %v781 = vsel %vm645, %v775, 0.0
        %782 = vst.msk [vmem:[%s549] sm:$0xff] %vm544, %v780
        %783 = vst.msk [vmem:[%s549 + $0x8] sm:$0xff] %vm544, %v776
        %784 = vst.msk [vmem:[%s549 + $0x10] sm:$0x3] %vm547, %v781
      $region56: #{bottleneck_forward.6} parent=47 // pred_fallthru
        _
      %v785 = vld [vmem:[%s5] sm:$0xf]
      %v786 = vld [vmem:[%s5 + $0x4] sm:$0xf]
      %v787 = vld [vmem:[%s5 + $0x8] sm:$0xf]
      %v788 = vld [vmem:[%s5 + $0xc] sm:$0xf]
      %v789 = vld [vmem:[%s5 + $0x10] sm:$0xf]
      %v790 = vld [vmem:[%s5 + $0x14] sm:$0xf]
      %v791 = vld [vmem:[%s5 + $0x18] sm:$0xf]
      %v792 = vld [vmem:[%s5 + $0x1c] sm:$0xf]
      %v793 = vld [vmem:[%s5 + $0x20] sm:$0xf]
      %v794 = vld [vmem:[%s6] sm:$0x1]
      %v795 = vld [vmem:[#allocation2] sm:$0xff]
      %v796 = vld [vmem:[#allocation2 + $0x8] sm:$0xff]
      %v797 = vld [vmem:[#allocation2 + $0x10] sm:$0x3]
      %v798 = vld [vmem:[#allocation2 + $0x18] sm:$0xff]
      %v799 = vld [vmem:[#allocation2 + $0x20] sm:$0xff]
      %v800 = vld [vmem:[#allocation2 + $0x28] sm:$0x3]
      %v801 = vld [vmem:[#allocation2 + $0x30] sm:$0xff]
      %v802 = vld [vmem:[#allocation2 + $0x38] sm:$0xff]
      %v803 = vld [vmem:[#allocation2 + $0x40] sm:$0x3]
      %vm807 = vcmask 1046528
      %v808 = vrot.slane %v795, 1
      %v809 = vrot.slane %v796, 1
      %v810 = vsel %vm807, %v808, %v809
      %v811 = vrot.slane %v797, 1
      %v812 = vsel %vm807, %v809, %v811
      %v813 = vsel %vm544, %v810, 0
      %v815 = vsel %vm544, %v812, 0
      %vm817 = vcmask 1043456
      %v819 = vsel %vm817, %v786, 0
      %821 = vmatprep.subr.mxu0 0.0
      %822 = vmatpush1.msra.mxu0 %v819
      %823 = vmatprep.subr.mxu0 0.0
      %824 = vmatpush1.msra.mxu0 0.0
      %825 = vmatprep.subr.mxu0 0.0
      %826 = vmatpush1.msra.mxu0 0.0
      %827 = vmatprep.subr.mxu0 0.0
      %828 = vmatpush1.msra.mxu0 0.0
      %829 = vmatprep.subr.mxu0 0.0
      %830 = vmatpush1.msra.mxu0 0.0
      %831 = vmatprep.subr.mxu0 0.0
      %832 = vmatpush1.msra.mxu0 0.0
      %833 = vmatprep.subr.mxu0 0.0
      %834 = vmatpush1.msra.mxu0 0.0
      %835 = vmatprep.subr.mxu0 0.0
      %836 = vmatpush1.msra.mxu0 0.0
      %837 = vmatprep.subr.mxu0 0.0
      %838 = vmatpush1.msra.mxu0 0.0
      %839 = vmatprep.subr.mxu0 0.0
      %840 = vmatpush1.msra.mxu0 0.0
      %841 = vmatprep.subr.mxu0 0.0
      %842 = vmatpush1.msra.mxu0 0.0
      %843 = vmatprep.subr.mxu0 0.0
      %844 = vmatpush1.msra.mxu0 0.0
      %845 = vmatprep.subr.mxu0 0.0
      %846 = vmatpush1.msra.mxu0 0.0
      %847 = vmatprep.subr.mxu0 0.0
      %848 = vmatpush1.msra.mxu0 0.0
      %849 = vmatprep.subr.mxu0 0.0
      %850 = vmatpush1.msra.mxu0 0.0
      %851 = vmatprep.subr.mxu0 0.0
      %852 = vmatpush1.msra.mxu0 0.0
      %853 = vmatprep.subr.mxu0 0.0
      %854 = vmatpush1.msra.mxu0 0.0
      %855 = vmatprep.subr.mxu0 0.0
      %856 = vmatpush1.msra.mxu0 0.0
      %857 = vmatprep.subr.mxu0 0.0
      %858 = vmatpush1.msra.mxu0 0.0
      %859 = vmatprep.subr.mxu0 0.0
      %860 = vmatpush1.msra.mxu0 0.0
      %861 = vmatprep.subr.mxu0 0.0
      %862 = vmatpush1.msra.mxu0 0.0
      %863 = vmatprep.subr.mxu0 0.0
      %864 = vmatpush1.msra.mxu0 0.0
      %865 = vmatprep.subr.mxu0 0.0
      %866 = vmatpush1.msra.mxu0 0.0
      %867 = vmatprep.subr.mxu0 0.0
      %868 = vmatpush1.msra.mxu0 0.0
      %869 = vmatprep.subr.mxu0 0.0
      %870 = vmatpush1.msra.mxu0 0.0
      %871 = vmatprep.subr.mxu0 0.0
      %872 = vmatpush1.msra.mxu0 0.0
      %873 = vmatprep.subr.mxu0 0.0
      %874 = vmatpush1.msra.mxu0 0.0
      %875 = vmatprep.subr.mxu0 0.0
      %876 = vmatpush1.msra.mxu0 0.0
      %877 = vmatprep.subr.mxu0 0.0
      %878 = vmatpush1.msra.mxu0 0.0
      %879 = vmatprep.subr.mxu0 0.0
      %880 = vmatpush1.msra.mxu0 0.0
      %881 = vmatprep.subr.mxu0 0.0
      %882 = vmatpush1.msra.mxu0 0.0
      %883 = vmatprep.subr.mxu0 0.0
      %884 = vmatpush1.msra.mxu0 0.0
      %885 = vmatprep.mubr.f32.mxu0 0.0
      %886 = vmatmul.mubr.f32.gmra.mrb[0].mxu0 %v813
      %v887 = vpop.f32.mrb[0].mxu0
      %v888 = vadd.f32 0.0, %v887
      %v889 = vpop.f32.mrb[0].mxu0
      %890 = vmatprep.mubr.f32.mxu0 0.0
      %891 = vmatmul.mubr.f32.gmra.mrb[0].mxu0 %v815
      %v892 = vpop.f32.mrb[0].mxu0
      %v893 = vadd.f32 0.0, %v892
      %v894 = vpop.f32.mrb[0].mxu0
      %895 = vdwg.mxu0
      %v896 = vsel %vm544, %v795, 0
      %v898 = vsel %vm544, %v796, 0
      %v901 = vsel %vm817, %v785, 0
      %903 = vmatprep.subr.mxu0 0.0
      %904 = vmatpush1.msra.mxu0 %v901
      %905 = vmatprep.subr.mxu0 0.0
      %906 = vmatpush1.msra.mxu0 0.0
      %907 = vmatprep.subr.mxu0 0.0
      %908 = vmatpush1.msra.mxu0 0.0
      %909 = vmatprep.subr.mxu0 0.0
      %910 = vmatpush1.msra.mxu0 0.0
      %911 = vmatprep.subr.mxu0 0.0
      %912 = vmatpush1.msra.mxu0 0.0
      %913 = vmatprep.subr.mxu0 0.0
      %914 = vmatpush1.msra.mxu0 0.0
      %915 = vmatprep.subr.mxu0 0.0
      %916 = vmatpush1.msra.mxu0 0.0
      %917 = vmatprep.subr.mxu0 0.0
      %918 = vmatpush1.msra.mxu0 0.0
      %919 = vmatprep.subr.mxu0 0.0
      %920 = vmatpush1.msra.mxu0 0.0
      %921 = vmatprep.subr.mxu0 0.0
      %922 = vmatpush1.msra.mxu0 0.0
      %923 = vmatprep.subr.mxu0 0.0
      %924 = vmatpush1.msra.mxu0 0.0
      %925 = vmatprep.subr.mxu0 0.0
      %926 = vmatpush1.msra.mxu0 0.0
      %927 = vmatprep.subr.mxu0 0.0
      %928 = vmatpush1.msra.mxu0 0.0
      %929 = vmatprep.subr.mxu0 0.0
      %930 = vmatpush1.msra.mxu0 0.0
      %931 = vmatprep.subr.mxu0 0.0
      %932 = vmatpush1.msra.mxu0 0.0
      %933 = vmatprep.subr.mxu0 0.0
      %934 = vmatpush1.msra.mxu0 0.0
      %935 = vmatprep.subr.mxu0 0.0
      %936 = vmatpush1.msra.mxu0 0.0
      %937 = vmatprep.subr.mxu0 0.0
      %938 = vmatpush1.msra.mxu0 0.0
      %939 = vmatprep.subr.mxu0 0.0
      %940 = vmatpush1.msra.mxu0 0.0
      %941 = vmatprep.subr.mxu0 0.0
      %942 = vmatpush1.msra.mxu0 0.0
      %943 = vmatprep.subr.mxu0 0.0
      %944 = vmatpush1.msra.mxu0 0.0
      %945 = vmatprep.subr.mxu0 0.0
      %946 = vmatpush1.msra.mxu0 0.0
      %947 = vmatprep.subr.mxu0 0.0
      %948 = vmatpush1.msra.mxu0 0.0
      %949 = vmatprep.subr.mxu0 0.0
      %950 = vmatpush1.msra.mxu0 0.0
      %951 = vmatprep.subr.mxu0 0.0
      %952 = vmatpush1.msra.mxu0 0.0
      %953 = vmatprep.subr.mxu0 0.0
      %954 = vmatpush1.msra.mxu0 0.0
      %955 = vmatprep.subr.mxu0 0.0
      %956 = vmatpush1.msra.mxu0 0.0
      %957 = vmatprep.subr.mxu0 0.0
      %958 = vmatpush1.msra.mxu0 0.0
      %959 = vmatprep.subr.mxu0 0.0
      %960 = vmatpush1.msra.mxu0 0.0
      %961 = vmatprep.subr.mxu0 0.0
      %962 = vmatpush1.msra.mxu0 0.0
      %963 = vmatprep.subr.mxu0 0.0
      %964 = vmatpush1.msra.mxu0 0.0
      %965 = vmatprep.subr.mxu0 0.0
      %966 = vmatpush1.msra.mxu0 0.0
      %967 = vmatprep.mubr.f32.mxu0 0.0
      %968 = vmatmul.mubr.f32.gmra.mrb[0].mxu0 %v896
      %v969 = vpop.f32.mrb[0].mxu0
      %v970 = vadd.f32 %v888, %v969
      %v971 = vpop.f32.mrb[0].mxu0
      %972 = vmatprep.mubr.f32.mxu0 0.0
      %973 = vmatmul.mubr.f32.gmra.mrb[0].mxu0 %v898
      %v974 = vpop.f32.mrb[0].mxu0
      %v975 = vadd.f32 %v893, %v974
      %v976 = vpop.f32.mrb[0].mxu0
      %977 = vdwg.mxu0
      %vm978 = vcmask 1045504
      %v979 = vrot.slane %v795, 2
      %v980 = vrot.slane %v796, 2
      %v981 = vsel %vm978, %v979, %v980
      %v982 = vrot.slane %v797, 2
      %v983 = vsel %vm978, %v980, %v982
      %v984 = vsel %vm544, %v981, 0
      %v986 = vsel %vm544, %v983, 0
      %v989 = vsel %vm817, %v787, 0
      %991 = vmatprep.subr.mxu0 0.0
      %992 = vmatpush1.msra.mxu0 %v989
      %993 = vmatprep.subr.mxu0 0.0
      %994 = vmatpush1.msra.mxu0 0.0
      %995 = vmatprep.subr.mxu0 0.0
      %996 = vmatpush1.msra.mxu0 0.0
      %997 = vmatprep.subr.mxu0 0.0
      %998 = vmatpush1.msra.mxu0 0.0
      %999 = vmatprep.subr.mxu0 0.0
      %1000 = vmatpush1.msra.mxu0 0.0
      %1001 = vmatprep.subr.mxu0 0.0
      %1002 = vmatpush1.msra.mxu0 0.0
      %1003 = vmatprep.subr.mxu0 0.0
      %1004 = vmatpush1.msra.mxu0 0.0
      %1005 = vmatprep.subr.mxu0 0.0
      %1006 = vmatpush1.msra.mxu0 0.0
      %1007 = vmatprep.subr.mxu0 0.0
      %1008 = vmatpush1.msra.mxu0 0.0
      %1009 = vmatprep.subr.mxu0 0.0
      %1010 = vmatpush1.msra.mxu0 0.0
      %1011 = vmatprep.subr.mxu0 0.0
      %1012 = vmatpush1.msra.mxu0 0.0
      %1013 = vmatprep.subr.mxu0 0.0
      %1014 = vmatpush1.msra.mxu0 0.0
      %1015 = vmatprep.subr.mxu0 0.0
      %1016 = vmatpush1.msra.mxu0 0.0
      %1017 = vmatprep.subr.mxu0 0.0
      %1018 = vmatpush1.msra.mxu0 0.0
      %1019 = vmatprep.subr.mxu0 0.0
      %1020 = vmatpush1.msra.mxu0 0.0
      %1021 = vmatprep.subr.mxu0 0.0
      %1022 = vmatpush1.msra.mxu0 0.0
      %1023 = vmatprep.subr.mxu0 0.0
      %1024 = vmatpush1.msra.mxu0 0.0
      %1025 = vmatprep.subr.mxu0 0.0
      %1026 = vmatpush1.msra.mxu0 0.0
      %1027 = vmatprep.subr.mxu0 0.0
      %1028 = vmatpush1.msra.mxu0 0.0
      %1029 = vmatprep.subr.mxu0 0.0
      %1030 = vmatpush1.msra.mxu0 0.0
      %1031 = vmatprep.subr.mxu0 0.0
      %1032 = vmatpush1.msra.mxu0 0.0
      %1033 = vmatprep.subr.mxu0 0.0
      %1034 = vmatpush1.msra.mxu0 0.0
      %1035 = vmatprep.subr.mxu0 0.0
      %1036 = vmatpush1.msra.mxu0 0.0
      %1037 = vmatprep.subr.mxu0 0.0
      %1038 = vmatpush1.msra.mxu0 0.0
      %1039 = vmatprep.subr.mxu0 0.0
      %1040 = vmatpush1.msra.mxu0 0.0
      %1041 = vmatprep.subr.mxu0 0.0
      %1042 = vmatpush1.msra.mxu0 0.0
      %1043 = vmatprep.subr.mxu0 0.0
      %1044 = vmatpush1.msra.mxu0 0.0
      %1045 = vmatprep.subr.mxu0 0.0
      %1046 = vmatpush1.msra.mxu0 0.0
      %1047 = vmatprep.subr.mxu0 0.0
      %1048 = vmatpush1.msra.mxu0 0.0
      %1049 = vmatprep.subr.mxu0 0.0
      %1050 = vmatpush1.msra.mxu0 0.0
      %1051 = vmatprep.subr.mxu0 0.0
      %1052 = vmatpush1.msra.mxu0 0.0
      %1053 = vmatprep.subr.mxu0 0.0
      %1054 = vmatpush1.msra.mxu0 0.0
      %1055 = vmatprep.mubr.f32.mxu0 0.0
      %1056 = vmatmul.mubr.f32.gmra.mrb[0].mxu0 %v984
      %v1057 = vpop.f32.mrb[0].mxu0
      %v1058 = vadd.f32 0.0, %v1057
      %v1059 = vpop.f32.mrb[0].mxu0
      %1060 = vmatprep.mubr.f32.mxu0 0.0
      %1061 = vmatmul.mubr.f32.gmra.mrb[0].mxu0 %v986
      %v1062 = vpop.f32.mrb[0].mxu0
      %v1063 = vadd.f32 0.0, %v1062
      %v1064 = vpop.f32.mrb[0].mxu0
      %1065 = vdwg.mxu0
      %v1066 = vadd.f32 %v970, %v1058
      %v1067 = vadd.f32 %v975, %v1063
      %v1069 = vsel %vm544, %v798, 0
      %v1072 = vsel %vm544, %v799, 0
      %v1075 = vsel %vm817, %v788, 0
      %1077 = vmatprep.subr.mxu0 0.0
      %1078 = vmatpush1.msra.mxu0 %v1075
      %1079 = vmatprep.subr.mxu0 0.0
      %1080 = vmatpush1.msra.mxu0 0.0
      %1081 = vmatprep.subr.mxu0 0.0
      %1082 = vmatpush1.msra.mxu0 0.0
      %1083 = vmatprep.subr.mxu0 0.0
      %1084 = vmatpush1.msra.mxu0 0.0
      %1085 = vmatprep.subr.mxu0 0.0
      %1086 = vmatpush1.msra.mxu0 0.0
      %1087 = vmatprep.subr.mxu0 0.0
      %1088 = vmatpush1.msra.mxu0 0.0
      %1089 = vmatprep.subr.mxu0 0.0
      %1090 = vmatpush1.msra.mxu0 0.0
      %1091 = vmatprep.subr.mxu0 0.0
      %1092 = vmatpush1.msra.mxu0 0.0
      %1093 = vmatprep.subr.mxu0 0.0
      %1094 = vmatpush1.msra.mxu0 0.0
      %1095 = vmatprep.subr.mxu0 0.0
      %1096 = vmatpush1.msra.mxu0 0.0
      %1097 = vmatprep.subr.mxu0 0.0
      %1098 = vmatpush1.msra.mxu0 0.0
      %1099 = vmatprep.subr.mxu0 0.0
      %1100 = vmatpush1.msra.mxu0 0.0
      %1101 = vmatprep.subr.mxu0 0.0
      %1102 = vmatpush1.msra.mxu0 0.0
      %1103 = vmatprep.subr.mxu0 0.0
      %1104 = vmatpush1.msra.mxu0 0.0
      %1105 = vmatprep.subr.mxu0 0.0
      %1106 = vmatpush1.msra.mxu0 0.0
      %1107 = vmatprep.subr.mxu0 0.0
      %1108 = vmatpush1.msra.mxu0 0.0
      %1109 = vmatprep.subr.mxu0 0.0
      %1110 = vmatpush1.msra.mxu0 0.0
      %1111 = vmatprep.subr.mxu0 0.0
      %1112 = vmatpush1.msra.mxu0 0.0
      %1113 = vmatprep.subr.mxu0 0.0
      %1114 = vmatpush1.msra.mxu0 0.0
      %1115 = vmatprep.subr.mxu0 0.0
      %1116 = vmatpush1.msra.mxu0 0.0
      %1117 = vmatprep.subr.mxu0 0.0
      %1118 = vmatpush1.msra.mxu0 0.0
      %1119 = vmatprep.subr.mxu0 0.0
      %1120 = vmatpush1.msra.mxu0 0.0
      %1121 = vmatprep.subr.mxu0 0.0
      %1122 = vmatpush1.msra.mxu0 0.0
      %1123 = vmatprep.subr.mxu0 0.0
      %1124 = vmatpush1.msra.mxu0 0.0
      %1125 = vmatprep.subr.mxu0 0.0
      %1126 = vmatpush1.msra.mxu0 0.0
      %1127 = vmatprep.subr.mxu0 0.0
      %1128 = vmatpush1.msra.mxu0 0.0
      %1129 = vmatprep.subr.mxu0 0.0
      %1130 = vmatpush1.msra.mxu0 0.0
      %1131 = vmatprep.subr.mxu0 0.0
      %1132 = vmatpush1.msra.mxu0 0.0
      %1133 = vmatprep.subr.mxu0 0.0
      %1134 = vmatpush1.msra.mxu0 0.0
      %1135 = vmatprep.subr.mxu0 0.0
      %1136 = vmatpush1.msra.mxu0 0.0
      %1137 = vmatprep.subr.mxu0 0.0
      %1138 = vmatpush1.msra.mxu0 0.0
      %1139 = vmatprep.subr.mxu0 0.0
      %1140 = vmatpush1.msra.mxu0 0.0
      %1141 = vmatprep.mubr.f32.mxu0 0.0
      %1142 = vmatmul.mubr.f32.gmra.mrb[0].mxu0 %v1069
      %v1143 = vpop.f32.mrb[0].mxu0
      %v1144 = vadd.f32 0.0, %v1143
      %v1145 = vpop.f32.mrb[0].mxu0
      %1146 = vmatprep.mubr.f32.mxu0 0.0
      %1147 = vmatmul.mubr.f32.gmra.mrb[0].mxu0 %v1072
      %v1148 = vpop.f32.mrb[0].mxu0
      %v1149 = vadd.f32 0.0, %v1148
      %v1150 = vpop.f32.mrb[0].mxu0
      %1151 = vdwg.mxu0
      %v1152 = vadd.f32 %v1066, %v1144
      %v1153 = vadd.f32 %v1067, %v1149
      %v1155 = vrot.slane %v798, 1
      %v1156 = vrot.slane %v799, 1
      %v1157 = vsel %vm807, %v1155, %v1156
      %v1158 = vrot.slane %v800, 1
      %v1159 = vsel %vm807, %v1156, %v1158
      %v1160 = vsel %vm544, %v1157, 0
      %v1162 = vsel %vm544, %v1159, 0
      %v1165 = vsel %vm817, %v789, 0
      %1167 = vmatprep.subr.mxu0 0.0
      %1168 = vmatpush1.msra.mxu0 %v1165
      %1169 = vmatprep.subr.mxu0 0.0
      %1170 = vmatpush1.msra.mxu0 0.0
      %1171 = vmatprep.subr.mxu0 0.0
      %1172 = vmatpush1.msra.mxu0 0.0
      %1173 = vmatprep.subr.mxu0 0.0
      %1174 = vmatpush1.msra.mxu0 0.0
      %1175 = vmatprep.subr.mxu0 0.0
      %1176 = vmatpush1.msra.mxu0 0.0
      %1177 = vmatprep.subr.mxu0 0.0
      %1178 = vmatpush1.msra.mxu0 0.0
      %1179 = vmatprep.subr.mxu0 0.0
      %1180 = vmatpush1.msra.mxu0 0.0
      %1181 = vmatprep.subr.mxu0 0.0
      %1182 = vmatpush1.msra.mxu0 0.0
      %1183 = vmatprep.subr.mxu0 0.0
      %1184 = vmatpush1.msra.mxu0 0.0
      %1185 = vmatprep.subr.mxu0 0.0
      %1186 = vmatpush1.msra.mxu0 0.0
      %1187 = vmatprep.subr.mxu0 0.0
      %1188 = vmatpush1.msra.mxu0 0.0
      %1189 = vmatprep.subr.mxu0 0.0
      %1190 = vmatpush1.msra.mxu0 0.0
      %1191 = vmatprep.subr.mxu0 0.0
      %1192 = vmatpush1.msra.mxu0 0.0
      %1193 = vmatprep.subr.mxu0 0.0
      %1194 = vmatpush1.msra.mxu0 0.0
      %1195 = vmatprep.subr.mxu0 0.0
      %1196 = vmatpush1.msra.mxu0 0.0
      %1197 = vmatprep.subr.mxu0 0.0
      %1198 = vmatpush1.msra.mxu0 0.0
      %1199 = vmatprep.subr.mxu0 0.0
      %1200 = vmatpush1.msra.mxu0 0.0
      %1201 = vmatprep.subr.mxu0 0.0
      %1202 = vmatpush1.msra.mxu0 0.0
      %1203 = vmatprep.subr.mxu0 0.0
      %1204 = vmatpush1.msra.mxu0 0.0
      %1205 = vmatprep.subr.mxu0 0.0
      %1206 = vmatpush1.msra.mxu0 0.0
      %1207 = vmatprep.subr.mxu0 0.0
      %1208 = vmatpush1.msra.mxu0 0.0
      %1209 = vmatprep.subr.mxu0 0.0
      %1210 = vmatpush1.msra.mxu0 0.0
      %1211 = vmatprep.subr.mxu0 0.0
      %1212 = vmatpush1.msra.mxu0 0.0
      %1213 = vmatprep.subr.mxu0 0.0
      %1214 = vmatpush1.msra.mxu0 0.0
      %1215 = vmatprep.subr.mxu0 0.0
      %1216 = vmatpush1.msra.mxu0 0.0
      %1217 = vmatprep.subr.mxu0 0.0
      %1218 = vmatpush1.msra.mxu0 0.0
      %1219 = vmatprep.subr.mxu0 0.0
      %1220 = vmatpush1.msra.mxu0 0.0
      %1221 = vmatprep.subr.mxu0 0.0
      %1222 = vmatpush1.msra.mxu0 0.0
      %1223 = vmatprep.subr.mxu0 0.0
      %1224 = vmatpush1.msra.mxu0 0.0
      %1225 = vmatprep.subr.mxu0 0.0
      %1226 = vmatpush1.msra.mxu0 0.0
      %1227 = vmatprep.subr.mxu0 0.0
      %1228 = vmatpush1.msra.mxu0 0.0
      %1229 = vmatprep.subr.mxu0 0.0
      %1230 = vmatpush1.msra.mxu0 0.0
      %1231 = vmatprep.mubr.f32.mxu0 0.0
      %1232 = vmatmul.mubr.f32.gmra.mrb[0].mxu0 %v1160
      %v1233 = vpop.f32.mrb[0].mxu0
      %v1234 = vadd.f32 0.0, %v1233
      %v1235 = vpop.f32.mrb[0].mxu0
      %1236 = vmatprep.mubr.f32.mxu0 0.0
      %1237 = vmatmul.mubr.f32.gmra.mrb[0].mxu0 %v1162
      %v1238 = vpop.f32.mrb[0].mxu0
      %v1239 = vadd.f32 0.0, %v1238
      %v1240 = vpop.f32.mrb[0].mxu0
      %1241 = vdwg.mxu0
      %v1242 = vadd.f32 %v1152, %v1234
      %v1243 = vadd.f32 %v1153, %v1239
      %v1244 = vrot.slane %v798, 2
      %v1245 = vrot.slane %v799, 2
      %v1246 = vsel %vm978, %v1244, %v1245
      %v1247 = vrot.slane %v800, 2
      %v1248 = vsel %vm978, %v1245, %v1247
      %v1249 = vsel %vm544, %v1246, 0
      %v1251 = vsel %vm544, %v1248, 0
      %v1254 = vsel %vm817, %v790, 0
      %1256 = vmatprep.subr.mxu0 0.0
      %1257 = vmatpush1.msra.mxu0 %v1254
      %1258 = vmatprep.subr.mxu0 0.0
      %1259 = vmatpush1.msra.mxu0 0.0
      %1260 = vmatprep.subr.mxu0 0.0
      %1261 = vmatpush1.msra.mxu0 0.0
      %1262 = vmatprep.subr.mxu0 0.0
      %1263 = vmatpush1.msra.mxu0 0.0
      %1264 = vmatprep.subr.mxu0 0.0
      %1265 = vmatpush1.msra.mxu0 0.0
      %1266 = vmatprep.subr.mxu0 0.0
      %1267 = vmatpush1.msra.mxu0 0.0
      %1268 = vmatprep.subr.mxu0 0.0
      %1269 = vmatpush1.msra.mxu0 0.0
      %1270 = vmatprep.subr.mxu0 0.0
      %1271 = vmatpush1.msra.mxu0 0.0
      %1272 = vmatprep.subr.mxu0 0.0
      %1273 = vmatpush1.msra.mxu0 0.0
      %1274 = vmatprep.subr.mxu0 0.0
      %1275 = vmatpush1.msra.mxu0 0.0
      %1276 = vmatprep.subr.mxu0 0.0
      %1277 = vmatpush1.msra.mxu0 0.0
      %1278 = vmatprep.subr.mxu0 0.0
      %1279 = vmatpush1.msra.mxu0 0.0
      %1280 = vmatprep.subr.mxu0 0.0
      %1281 = vmatpush1.msra.mxu0 0.0
      %1282 = vmatprep.subr.mxu0 0.0
      %1283 = vmatpush1.msra.mxu0 0.0
      %1284 = vmatprep.subr.mxu0 0.0
      %1285 = vmatpush1.msra.mxu0 0.0
      %1286 = vmatprep.subr.mxu0 0.0
      %1287 = vmatpush1.msra.mxu0 0.0
      %1288 = vmatprep.subr.mxu0 0.0
      %1289 = vmatpush1.msra.mxu0 0.0
      %1290 = vmatprep.subr.mxu0 0.0
      %1291 = vmatpush1.msra.mxu0 0.0
      %1292 = vmatprep.subr.mxu0 0.0
      %1293 = vmatpush1.msra.mxu0 0.0
      %1294 = vmatprep.subr.mxu0 0.0
      %1295 = vmatpush1.msra.mxu0 0.0
      %1296 = vmatprep.subr.mxu0 0.0
      %1297 = vmatpush1.msra.mxu0 0.0
      %1298 = vmatprep.subr.mxu0 0.0
      %1299 = vmatpush1.msra.mxu0 0.0
      %1300 = vmatprep.subr.mxu0 0.0
      %1301 = vmatpush1.msra.mxu0 0.0
      %1302 = vmatprep.subr.mxu0 0.0
      %1303 = vmatpush1.msra.mxu0 0.0
      %1304 = vmatprep.subr.mxu0 0.0
      %1305 = vmatpush1.msra.mxu0 0.0
      %1306 = vmatprep.subr.mxu0 0.0
      %1307 = vmatpush1.msra.mxu0 0.0
      %1308 = vmatprep.subr.mxu0 0.0
      %1309 = vmatpush1.msra.mxu0 0.0
      %1310 = vmatprep.subr.mxu0 0.0
      %1311 = vmatpush1.msra.mxu0 0.0
      %1312 = vmatprep.subr.mxu0 0.0
      %1313 = vmatpush1.msra.mxu0 0.0
      %1314 = vmatprep.subr.mxu0 0.0
      %1315 = vmatpush1.msra.mxu0 0.0
      %1316 = vmatprep.subr.mxu0 0.0
      %1317 = vmatpush1.msra.mxu0 0.0
      %1318 = vmatprep.subr.mxu0 0.0
      %1319 = vmatpush1.msra.mxu0 0.0
      %1320 = vmatprep.mubr.f32.mxu0 0.0
      %1321 = vmatmul.mubr.f32.gmra.mrb[0].mxu0 %v1249
      %v1322 = vpop.f32.mrb[0].mxu0
      %v1323 = vadd.f32 0.0, %v1322
      %v1324 = vpop.f32.mrb[0].mxu0
      %1325 = vmatprep.mubr.f32.mxu0 0.0
      %1326 = vmatmul.mubr.f32.gmra.mrb[0].mxu0 %v1251
      %v1327 = vpop.f32.mrb[0].mxu0
      %v1328 = vadd.f32 0.0, %v1327
      %v1329 = vpop.f32.mrb[0].mxu0
      %1330 = vdwg.mxu0
      %v1331 = vadd.f32 %v1242, %v1323
      %v1332 = vadd.f32 %v1243, %v1328
      %v1334 = vsel %vm544, %v801, 0
      %v1337 = vsel %vm544, %v802, 0
      %v1340 = vsel %vm817, %v791, 0
      %1342 = vmatprep.subr.mxu0 0.0
      %1343 = vmatpush1.msra.mxu0 %v1340
      %1344 = vmatprep.subr.mxu0 0.0
      %1345 = vmatpush1.msra.mxu0 0.0
      %1346 = vmatprep.subr.mxu0 0.0
      %1347 = vmatpush1.msra.mxu0 0.0
      %1348 = vmatprep.subr.mxu0 0.0
      %1349 = vmatpush1.msra.mxu0 0.0
      %1350 = vmatprep.subr.mxu0 0.0
      %1351 = vmatpush1.msra.mxu0 0.0
      %1352 = vmatprep.subr.mxu0 0.0
      %1353 = vmatpush1.msra.mxu0 0.0
      %1354 = vmatprep.subr.mxu0 0.0
      %1355 = vmatpush1.msra.mxu0 0.0
      %1356 = vmatprep.subr.mxu0 0.0
      %1357 = vmatpush1.msra.mxu0 0.0
      %1358 = vmatprep.subr.mxu0 0.0
      %1359 = vmatpush1.msra.mxu0 0.0
      %1360 = vmatprep.subr.mxu0 0.0
      %1361 = vmatpush1.msra.mxu0 0.0
      %1362 = vmatprep.subr.mxu0 0.0
      %1363 = vmatpush1.msra.mxu0 0.0
      %1364 = vmatprep.subr.mxu0 0.0
      %1365 = vmatpush1.msra.mxu0 0.0
      %1366 = vmatprep.subr.mxu0 0.0
      %1367 = vmatpush1.msra.mxu0 0.0
      %1368 = vmatprep.subr.mxu0 0.0
      %1369 = vmatpush1.msra.mxu0 0.0
      %1370 = vmatprep.subr.mxu0 0.0
      %1371 = vmatpush1.msra.mxu0 0.0
      %1372 = vmatprep.subr.mxu0 0.0
      %1373 = vmatpush1.msra.mxu0 0.0
      %1374 = vmatprep.subr.mxu0 0.0
      %1375 = vmatpush1.msra.mxu0 0.0
      %1376 = vmatprep.subr.mxu0 0.0
      %1377 = vmatpush1.msra.mxu0 0.0
      %1378 = vmatprep.subr.mxu0 0.0
      %1379 = vmatpush1.msra.mxu0 0.0
      %1380 = vmatprep.subr.mxu0 0.0
      %1381 = vmatpush1.msra.mxu0 0.0
      %1382 = vmatprep.subr.mxu0 0.0
      %1383 = vmatpush1.msra.mxu0 0.0
      %1384 = vmatprep.subr.mxu0 0.0
      %1385 = vmatpush1.msra.mxu0 0.0
      %1386 = vmatprep.subr.mxu0 0.0
      %1387 = vmatpush1.msra.mxu0 0.0
      %1388 = vmatprep.subr.mxu0 0.0
      %1389 = vmatpush1.msra.mxu0 0.0
      %1390 = vmatprep.subr.mxu0 0.0
      %1391 = vmatpush1.msra.mxu0 0.0
      %1392 = vmatprep.subr.mxu0 0.0
      %1393 = vmatpush1.msra.mxu0 0.0
      %1394 = vmatprep.subr.mxu0 0.0
      %1395 = vmatpush1.msra.mxu0 0.0
      %1396 = vmatprep.subr.mxu0 0.0
      %1397 = vmatpush1.msra.mxu0 0.0
      %1398 = vmatprep.subr.mxu0 0.0
      %1399 = vmatpush1.msra.mxu0 0.0
      %1400 = vmatprep.subr.mxu0 0.0
      %1401 = vmatpush1.msra.mxu0 0.0
      %1402 = vmatprep.subr.mxu0 0.0
      %1403 = vmatpush1.msra.mxu0 0.0
      %1404 = vmatprep.subr.mxu0 0.0
      %1405 = vmatpush1.msra.mxu0 0.0
      %1406 = vmatprep.mubr.f32.mxu0 0.0
      %1407 = vmatmul.mubr.f32.gmra.mrb[0].mxu0 %v1334
      %v1408 = vpop.f32.mrb[0].mxu0
      %v1409 = vadd.f32 0.0, %v1408
      %v1410 = vpop.f32.mrb[0].mxu0
      %1411 = vmatprep.mubr.f32.mxu0 0.0
      %1412 = vmatmul.mubr.f32.gmra.mrb[0].mxu0 %v1337
      %v1413 = vpop.f32.mrb[0].mxu0
      %v1414 = vadd.f32 0.0, %v1413
      %v1415 = vpop.f32.mrb[0].mxu0
      %1416 = vdwg.mxu0
      %v1417 = vadd.f32 %v1331, %v1409
      %v1418 = vadd.f32 %v1332, %v1414
      %v1420 = vrot.slane %v801, 1
      %v1421 = vrot.slane %v802, 1
      %v1422 = vsel %vm807, %v1420, %v1421
      %v1423 = vrot.slane %v803, 1
      %v1424 = vsel %vm807, %v1421, %v1423
      %v1425 = vsel %vm544, %v1422, 0
      %v1427 = vsel %vm544, %v1424, 0
      %v1430 = vsel %vm817, %v792, 0
      %1432 = vmatprep.subr.mxu0 0.0
      %1433 = vmatpush1.msra.mxu0 %v1430
      %1434 = vmatprep.subr.mxu0 0.0
      %1435 = vmatpush1.msra.mxu0 0.0
      %1436 = vmatprep.subr.mxu0 0.0
      %1437 = vmatpush1.msra.mxu0 0.0
      %1438 = vmatprep.subr.mxu0 0.0
      %1439 = vmatpush1.msra.mxu0 0.0
      %1440 = vmatprep.subr.mxu0 0.0
      %1441 = vmatpush1.msra.mxu0 0.0
      %1442 = vmatprep.subr.mxu0 0.0
      %1443 = vmatpush1.msra.mxu0 0.0
      %1444 = vmatprep.subr.mxu0 0.0
      %1445 = vmatpush1.msra.mxu0 0.0
      %1446 = vmatprep.subr.mxu0 0.0
      %1447 = vmatpush1.msra.mxu0 0.0
      %1448 = vmatprep.subr.mxu0 0.0
      %1449 = vmatpush1.msra.mxu0 0.0
      %1450 = vmatprep.subr.mxu0 0.0
      %1451 = vmatpush1.msra.mxu0 0.0
      %1452 = vmatprep.subr.mxu0 0.0
      %1453 = vmatpush1.msra.mxu0 0.0
      %1454 = vmatprep.subr.mxu0 0.0
      %1455 = vmatpush1.msra.mxu0 0.0
      %1456 = vmatprep.subr.mxu0 0.0
      %1457 = vmatpush1.msra.mxu0 0.0
      %1458 = vmatprep.subr.mxu0 0.0
      %1459 = vmatpush1.msra.mxu0 0.0
      %1460 = vmatprep.subr.mxu0 0.0
      %1461 = vmatpush1.msra.mxu0 0.0
      %1462 = vmatprep.subr.mxu0 0.0
      %1463 = vmatpush1.msra.mxu0 0.0
      %1464 = vmatprep.subr.mxu0 0.0
      %1465 = vmatpush1.msra.mxu0 0.0
      %1466 = vmatprep.subr.mxu0 0.0
      %1467 = vmatpush1.msra.mxu0 0.0
      %1468 = vmatprep.subr.mxu0 0.0
      %1469 = vmatpush1.msra.mxu0 0.0
      %1470 = vmatprep.subr.mxu0 0.0
      %1471 = vmatpush1.msra.mxu0 0.0
      %1472 = vmatprep.subr.mxu0 0.0
      %1473 = vmatpush1.msra.mxu0 0.0
      %1474 = vmatprep.subr.mxu0 0.0
      %1475 = vmatpush1.msra.mxu0 0.0
      %1476 = vmatprep.subr.mxu0 0.0
      %1477 = vmatpush1.msra.mxu0 0.0
      %1478 = vmatprep.subr.mxu0 0.0
      %1479 = vmatpush1.msra.mxu0 0.0
      %1480 = vmatprep.subr.mxu0 0.0
      %1481 = vmatpush1.msra.mxu0 0.0
      %1482 = vmatprep.subr.mxu0 0.0
      %1483 = vmatpush1.msra.mxu0 0.0
      %1484 = vmatprep.subr.mxu0 0.0
      %1485 = vmatpush1.msra.mxu0 0.0
      %1486 = vmatprep.subr.mxu0 0.0
      %1487 = vmatpush1.msra.mxu0 0.0
      %1488 = vmatprep.subr.mxu0 0.0
      %1489 = vmatpush1.msra.mxu0 0.0
      %1490 = vmatprep.subr.mxu0 0.0
      %1491 = vmatpush1.msra.mxu0 0.0
      %1492 = vmatprep.subr.mxu0 0.0
      %1493 = vmatpush1.msra.mxu0 0.0
      %1494 = vmatprep.subr.mxu0 0.0
      %1495 = vmatpush1.msra.mxu0 0.0
      %1496 = vmatprep.mubr.f32.mxu0 0.0
      %1497 = vmatmul.mubr.f32.gmra.mrb[0].mxu0 %v1425
      %v1498 = vpop.f32.mrb[0].mxu0
      %v1499 = vadd.f32 0.0, %v1498
      %v1500 = vpop.f32.mrb[0].mxu0
      %1501 = vmatprep.mubr.f32.mxu0 0.0
      %1502 = vmatmul.mubr.f32.gmra.mrb[0].mxu0 %v1427
      %v1503 = vpop.f32.mrb[0].mxu0
      %v1504 = vadd.f32 0.0, %v1503
      %v1505 = vpop.f32.mrb[0].mxu0
      %1506 = vdwg.mxu0
      %v1507 = vadd.f32 %v1417, %v1499
      %v1508 = vadd.f32 %v1418, %v1504
      %v1509 = vrot.slane %v801, 2
      %v1510 = vrot.slane %v802, 2
      %v1511 = vsel %vm978, %v1509, %v1510
      %v1512 = vrot.slane %v803, 2
      %v1513 = vsel %vm978, %v1510, %v1512
      %v1514 = vsel %vm544, %v1511, 0
      %v1516 = vsel %vm544, %v1513, 0
      %v1519 = vsel %vm817, %v793, 0
      %1521 = vmatprep.subr.mxu0 0.0
      %1522 = vmatpush1.msra.mxu0 %v1519
      %1523 = vmatprep.subr.mxu0 0.0
      %1524 = vmatpush1.msra.mxu0 0.0
      %1525 = vmatprep.subr.mxu0 0.0
      %1526 = vmatpush1.msra.mxu0 0.0
      %1527 = vmatprep.subr.mxu0 0.0
      %1528 = vmatpush1.msra.mxu0 0.0
      %1529 = vmatprep.subr.mxu0 0.0
      %1530 = vmatpush1.msra.mxu0 0.0
      %1531 = vmatprep.subr.mxu0 0.0
      %1532 = vmatpush1.msra.mxu0 0.0
      %1533 = vmatprep.subr.mxu0 0.0
      %1534 = vmatpush1.msra.mxu0 0.0
      %1535 = vmatprep.subr.mxu0 0.0
      %1536 = vmatpush1.msra.mxu0 0.0
      %1537 = vmatprep.subr.mxu0 0.0
      %1538 = vmatpush1.msra.mxu0 0.0
      %1539 = vmatprep.subr.mxu0 0.0
      %1540 = vmatpush1.msra.mxu0 0.0
      %1541 = vmatprep.subr.mxu0 0.0
      %1542 = vmatpush1.msra.mxu0 0.0
      %1543 = vmatprep.subr.mxu0 0.0
      %1544 = vmatpush1.msra.mxu0 0.0
      %1545 = vmatprep.subr.mxu0 0.0
      %1546 = vmatpush1.msra.mxu0 0.0
      %1547 = vmatprep.subr.mxu0 0.0
      %1548 = vmatpush1.msra.mxu0 0.0
      %1549 = vmatprep.subr.mxu0 0.0
      %1550 = vmatpush1.msra.mxu0 0.0
      %1551 = vmatprep.subr.mxu0 0.0
      %1552 = vmatpush1.msra.mxu0 0.0
      %1553 = vmatprep.subr.mxu0 0.0
      %1554 = vmatpush1.msra.mxu0 0.0
      %1555 = vmatprep.subr.mxu0 0.0
      %1556 = vmatpush1.msra.mxu0 0.0
      %1557 = vmatprep.subr.mxu0 0.0
      %1558 = vmatpush1.msra.mxu0 0.0
      %1559 = vmatprep.subr.mxu0 0.0
      %1560 = vmatpush1.msra.mxu0 0.0
      %1561 = vmatprep.subr.mxu0 0.0
      %1562 = vmatpush1.msra.mxu0 0.0
      %1563 = vmatprep.subr.mxu0 0.0
      %1564 = vmatpush1.msra.mxu0 0.0
      %1565 = vmatprep.subr.mxu0 0.0
      %1566 = vmatpush1.msra.mxu0 0.0
      %1567 = vmatprep.subr.mxu0 0.0
      %1568 = vmatpush1.msra.mxu0 0.0
      %1569 = vmatprep.subr.mxu0 0.0
      %1570 = vmatpush1.msra.mxu0 0.0
      %1571 = vmatprep.subr.mxu0 0.0
      %1572 = vmatpush1.msra.mxu0 0.0
      %1573 = vmatprep.subr.mxu0 0.0
      %1574 = vmatpush1.msra.mxu0 0.0
      %1575 = vmatprep.subr.mxu0 0.0
      %1576 = vmatpush1.msra.mxu0 0.0
      %1577 = vmatprep.subr.mxu0 0.0
      %1578 = vmatpush1.msra.mxu0 0.0
      %1579 = vmatprep.subr.mxu0 0.0
      %1580 = vmatpush1.msra.mxu0 0.0
      %1581 = vmatprep.subr.mxu0 0.0
      %1582 = vmatpush1.msra.mxu0 0.0
      %1583 = vmatprep.subr.mxu0 0.0
      %1584 = vmatpush1.msra.mxu0 0.0
      %1585 = vmatprep.mubr.f32.mxu0 0.0
      %1586 = vmatmul.mubr.f32.gmra.mrb[0].mxu0 %v1514
      %v1587 = vpop.f32.mrb[0].mxu0
      %v1588 = vadd.f32 0.0, %v1587
      %v1589 = vpop.f32.mrb[0].mxu0
      %1590 = vmatprep.mubr.f32.mxu0 0.0
      %1591 = vmatmul.mubr.f32.gmra.mrb[0].mxu0 %v1516
      %v1592 = vpop.f32.mrb[0].mxu0
      %v1593 = vadd.f32 0.0, %v1592
      %v1594 = vpop.f32.mrb[0].mxu0
      %1595 = vdwg.mxu0
      %v1596 = vadd.f32 %v1507, %v1588
      %v1597 = vadd.f32 %v1508, %v1593
      %v1599 = vlaneseq
      %v1600 = vshrl.u32 %v1599, 7
      %v1601 = vsub.s32 0, %v1600
      %v1602 = vrot.slane %v794, %v1601
      %v1604 = vadd.f32 %v1596, %v1602
      %v1605 = vadd.f32 %v1597, %v1602
      %1606 = vst.msk [vmem:[%s524] sm:$0xff] %vm544, %v1604
      %1607 = vst.msk [vmem:[%s524 + $0x8] sm:$0xff] %vm544, %v1605
      %v1608 = vld [vmem:[%s710] sm:$0xff]
      %v1609 = vld [vmem:[%s710 + $0x8] sm:$0xff]
      %v1610 = vld [vmem:[%s710 + $0x10] sm:$0x3]
      %v1611 = vld [vmem:[%s710 + $0x18] sm:$0xff]
      %v1612 = vld [vmem:[%s710 + $0x20] sm:$0xff]
      %v1613 = vld [vmem:[%s710 + $0x28] sm:$0x3]
      %v1614 = vld [vmem:[%s710 + $0x30] sm:$0xff]
      %v1615 = vld [vmem:[%s710 + $0x38] sm:$0xff]
      %v1616 = vld [vmem:[%s710 + $0x40] sm:$0x3]
      %v1620 = vrot.slane %v1608, 1
      %v1621 = vrot.slane %v1609, 1
      %v1622 = vsel %vm807, %v1620, %v1621
      %v1623 = vrot.slane %v1610, 1
      %v1624 = vsel %vm807, %v1621, %v1623
      %v1625 = vsel %vm544, %v1622, 0
      %v1627 = vsel %vm544, %v1624, 0
      %1629 = vmatprep.subr.mxu0 0.0
      %1630 = vmatpush1.msra.mxu0 %v819
      %1631 = vmatprep.subr.mxu0 0.0
      %1632 = vmatpush1.msra.mxu0 0.0
      %1633 = vmatprep.subr.mxu0 0.0
      %1634 = vmatpush1.msra.mxu0 0.0
      %1635 = vmatprep.subr.mxu0 0.0
      %1636 = vmatpush1.msra.mxu0 0.0
      %1637 = vmatprep.subr.mxu0 0.0
      %1638 = vmatpush1.msra.mxu0 0.0
      %1639 = vmatprep.subr.mxu0 0.0
      %1640 = vmatpush1.msra.mxu0 0.0
      %1641 = vmatprep.subr.mxu0 0.0
      %1642 = vmatpush1.msra.mxu0 0.0
      %1643 = vmatprep.subr.mxu0 0.0
      %1644 = vmatpush1.msra.mxu0 0.0
      %1645 = vmatprep.subr.mxu0 0.0
      %1646 = vmatpush1.msra.mxu0 0.0
      %1647 = vmatprep.subr.mxu0 0.0
      %1648 = vmatpush1.msra.mxu0 0.0
      %1649 = vmatprep.subr.mxu0 0.0
      %1650 = vmatpush1.msra.mxu0 0.0
      %1651 = vmatprep.subr.mxu0 0.0
      %1652 = vmatpush1.msra.mxu0 0.0
      %1653 = vmatprep.subr.mxu0 0.0
      %1654 = vmatpush1.msra.mxu0 0.0
      %1655 = vmatprep.subr.mxu0 0.0
      %1656 = vmatpush1.msra.mxu0 0.0
      %1657 = vmatprep.subr.mxu0 0.0
      %1658 = vmatpush1.msra.mxu0 0.0
      %1659 = vmatprep.subr.mxu0 0.0
      %1660 = vmatpush1.msra.mxu0 0.0
      %1661 = vmatprep.subr.mxu0 0.0
      %1662 = vmatpush1.msra.mxu0 0.0
      %1663 = vmatprep.subr.mxu0 0.0
      %1664 = vmatpush1.msra.mxu0 0.0
      %1665 = vmatprep.subr.mxu0 0.0
      %1666 = vmatpush1.msra.mxu0 0.0
      %1667 = vmatprep.subr.mxu0 0.0
      %1668 = vmatpush1.msra.mxu0 0.0
      %1669 = vmatprep.subr.mxu0 0.0
      %1670 = vmatpush1.msra.mxu0 0.0
      %1671 = vmatprep.subr.mxu0 0.0
      %1672 = vmatpush1.msra.mxu0 0.0
      %1673 = vmatprep.subr.mxu0 0.0
      %1674 = vmatpush1.msra.mxu0 0.0
      %1675 = vmatprep.subr.mxu0 0.0
      %1676 = vmatpush1.msra.mxu0 0.0
      %1677 = vmatprep.subr.mxu0 0.0
      %1678 = vmatpush1.msra.mxu0 0.0
      %1679 = vmatprep.subr.mxu0 0.0
      %1680 = vmatpush1.msra.mxu0 0.0
      %1681 = vmatprep.subr.mxu0 0.0
      %1682 = vmatpush1.msra.mxu0 0.0
      %1683 = vmatprep.subr.mxu0 0.0
      %1684 = vmatpush1.msra.mxu0 0.0
      %1685 = vmatprep.subr.mxu0 0.0
      %1686 = vmatpush1.msra.mxu0 0.0
      %1687 = vmatprep.subr.mxu0 0.0
      %1688 = vmatpush1.msra.mxu0 0.0
      %1689 = vmatprep.subr.mxu0 0.0
      %1690 = vmatpush1.msra.mxu0 0.0
      %1691 = vmatprep.subr.mxu0 0.0
      %1692 = vmatpush1.msra.mxu0 0.0
      %1693 = vmatprep.mubr.f32.mxu0 0.0
      %1694 = vmatmul.mubr.f32.gmra.mrb[0].mxu0 %v1625
      %v1695 = vpop.f32.mrb[0].mxu0
      %v1696 = vadd.f32 0.0, %v1695
      %v1697 = vpop.f32.mrb[0].mxu0
      %1698 = vmatprep.mubr.f32.mxu0 0.0
      %1699 = vmatmul.mubr.f32.gmra.mrb[0].mxu0 %v1627
      %v1700 = vpop.f32.mrb[0].mxu0
      %v1701 = vadd.f32 0.0, %v1700
      %v1702 = vpop.f32.mrb[0].mxu0
      %1703 = vdwg.mxu0
      %v1704 = vsel %vm544, %v1608, 0
      %v1706 = vsel %vm544, %v1609, 0
      %1708 = vmatprep.subr.mxu0 0.0
      %1709 = vmatpush1.msra.mxu0 %v901
      %1710 = vmatprep.subr.mxu0 0.0
      %1711 = vmatpush1.msra.mxu0 0.0
      %1712 = vmatprep.subr.mxu0 0.0
      %1713 = vmatpush1.msra.mxu0 0.0
      %1714 = vmatprep.subr.mxu0 0.0
      %1715 = vmatpush1.msra.mxu0 0.0
      %1716 = vmatprep.subr.mxu0 0.0
      %1717 = vmatpush1.msra.mxu0 0.0
      %1718 = vmatprep.subr.mxu0 0.0
      %1719 = vmatpush1.msra.mxu0 0.0
      %1720 = vmatprep.subr.mxu0 0.0
      %1721 = vmatpush1.msra.mxu0 0.0
      %1722 = vmatprep.subr.mxu0 0.0
      %1723 = vmatpush1.msra.mxu0 0.0
      %1724 = vmatprep.subr.mxu0 0.0
      %1725 = vmatpush1.msra.mxu0 0.0
      %1726 = vmatprep.subr.mxu0 0.0
      %1727 = vmatpush1.msra.mxu0 0.0
      %1728 = vmatprep.subr.mxu0 0.0
      %1729 = vmatpush1.msra.mxu0 0.0
      %1730 = vmatprep.subr.mxu0 0.0
      %1731 = vmatpush1.msra.mxu0 0.0
      %1732 = vmatprep.subr.mxu0 0.0
      %1733 = vmatpush1.msra.mxu0 0.0
      %1734 = vmatprep.subr.mxu0 0.0
      %1735 = vmatpush1.msra.mxu0 0.0
      %1736 = vmatprep.subr.mxu0 0.0
      %1737 = vmatpush1.msra.mxu0 0.0
      %1738 = vmatprep.subr.mxu0 0.0
      %1739 = vmatpush1.msra.mxu0 0.0
      %1740 = vmatprep.subr.mxu0 0.0
      %1741 = vmatpush1.msra.mxu0 0.0
      %1742 = vmatprep.subr.mxu0 0.0
      %1743 = vmatpush1.msra.mxu0 0.0
      %1744 = vmatprep.subr.mxu0 0.0
      %1745 = vmatpush1.msra.mxu0 0.0
      %1746 = vmatprep.subr.mxu0 0.0
      %1747 = vmatpush1.msra.mxu0 0.0
      %1748 = vmatprep.subr.mxu0 0.0
      %1749 = vmatpush1.msra.mxu0 0.0
      %1750 = vmatprep.subr.mxu0 0.0
      %1751 = vmatpush1.msra.mxu0 0.0
      %1752 = vmatprep.subr.mxu0 0.0
      %1753 = vmatpush1.msra.mxu0 0.0
      %1754 = vmatprep.subr.mxu0 0.0
      %1755 = vmatpush1.msra.mxu0 0.0
      %1756 = vmatprep.subr.mxu0 0.0
      %1757 = vmatpush1.msra.mxu0 0.0
      %1758 = vmatprep.subr.mxu0 0.0
      %1759 = vmatpush1.msra.mxu0 0.0
      %1760 = vmatprep.subr.mxu0 0.0
      %1761 = vmatpush1.msra.mxu0 0.0
      %1762 = vmatprep.subr.mxu0 0.0
      %1763 = vmatpush1.msra.mxu0 0.0
      %1764 = vmatprep.subr.mxu0 0.0
      %1765 = vmatpush1.msra.mxu0 0.0
      %1766 = vmatprep.subr.mxu0 0.0
      %1767 = vmatpush1.msra.mxu0 0.0
      %1768 = vmatprep.subr.mxu0 0.0
      %1769 = vmatpush1.msra.mxu0 0.0
      %1770 = vmatprep.subr.mxu0 0.0
      %1771 = vmatpush1.msra.mxu0 0.0
      %1772 = vmatprep.mubr.f32.mxu0 0.0
      %1773 = vmatmul.mubr.f32.gmra.mrb[0].mxu0 %v1704
      %v1774 = vpop.f32.mrb[0].mxu0
      %v1775 = vadd.f32 %v1696, %v1774
      %v1776 = vpop.f32.mrb[0].mxu0
      %1777 = vmatprep.mubr.f32.mxu0 0.0
      %1778 = vmatmul.mubr.f32.gmra.mrb[0].mxu0 %v1706
      %v1779 = vpop.f32.mrb[0].mxu0
      %v1780 = vadd.f32 %v1701, %v1779
      %v1781 = vpop.f32.mrb[0].mxu0
      %1782 = vdwg.mxu0
      %v1783 = vrot.slane %v1608, 2
      %v1784 = vrot.slane %v1609, 2
      %v1785 = vsel %vm978, %v1783, %v1784
      %v1786 = vrot.slane %v1610, 2
      %v1787 = vsel %vm978, %v1784, %v1786
      %v1788 = vsel %vm544, %v1785, 0
      %v1790 = vsel %vm544, %v1787, 0
      %1792 = vmatprep.subr.mxu0 0.0
      %1793 = vmatpush1.msra.mxu0 %v989
      %1794 = vmatprep.subr.mxu0 0.0
      %1795 = vmatpush1.msra.mxu0 0.0
      %1796 = vmatprep.subr.mxu0 0.0
      %1797 = vmatpush1.msra.mxu0 0.0
      %1798 = vmatprep.subr.mxu0 0.0
      %1799 = vmatpush1.msra.mxu0 0.0
      %1800 = vmatprep.subr.mxu0 0.0
      %1801 = vmatpush1.msra.mxu0 0.0
      %1802 = vmatprep.subr.mxu0 0.0
      %1803 = vmatpush1.msra.mxu0 0.0
      %1804 = vmatprep.subr.mxu0 0.0
      %1805 = vmatpush1.msra.mxu0 0.0
      %1806 = vmatprep.subr.mxu0 0.0
      %1807 = vmatpush1.msra.mxu0 0.0
      %1808 = vmatprep.subr.mxu0 0.0
      %1809 = vmatpush1.msra.mxu0 0.0
      %1810 = vmatprep.subr.mxu0 0.0
      %1811 = vmatpush1.msra.mxu0 0.0
      %1812 = vmatprep.subr.mxu0 0.0
      %1813 = vmatpush1.msra.mxu0 0.0
      %1814 = vmatprep.subr.mxu0 0.0
      %1815 = vmatpush1.msra.mxu0 0.0
      %1816 = vmatprep.subr.mxu0 0.0
      %1817 = vmatpush1.msra.mxu0 0.0
      %1818 = vmatprep.subr.mxu0 0.0
      %1819 = vmatpush1.msra.mxu0 0.0
      %1820 = vmatprep.subr.mxu0 0.0
      %1821 = vmatpush1.msra.mxu0 0.0
      %1822 = vmatprep.subr.mxu0 0.0
      %1823 = vmatpush1.msra.mxu0 0.0
      %1824 = vmatprep.subr.mxu0 0.0
      %1825 = vmatpush1.msra.mxu0 0.0
      %1826 = vmatprep.subr.mxu0 0.0
      %1827 = vmatpush1.msra.mxu0 0.0
      %1828 = vmatprep.subr.mxu0 0.0
      %1829 = vmatpush1.msra.mxu0 0.0
      %1830 = vmatprep.subr.mxu0 0.0
      %1831 = vmatpush1.msra.mxu0 0.0
      %1832 = vmatprep.subr.mxu0 0.0
      %1833 = vmatpush1.msra.mxu0 0.0
      %1834 = vmatprep.subr.mxu0 0.0
      %1835 = vmatpush1.msra.mxu0 0.0
      %1836 = vmatprep.subr.mxu0 0.0
      %1837 = vmatpush1.msra.mxu0 0.0
      %1838 = vmatprep.subr.mxu0 0.0
      %1839 = vmatpush1.msra.mxu0 0.0
      %1840 = vmatprep.subr.mxu0 0.0
      %1841 = vmatpush1.msra.mxu0 0.0
      %1842 = vmatprep.subr.mxu0 0.0
      %1843 = vmatpush1.msra.mxu0 0.0
      %1844 = vmatprep.subr.mxu0 0.0
      %1845 = vmatpush1.msra.mxu0 0.0
      %1846 = vmatprep.subr.mxu0 0.0
      %1847 = vmatpush1.msra.mxu0 0.0
      %1848 = vmatprep.subr.mxu0 0.0
      %1849 = vmatpush1.msra.mxu0 0.0
      %1850 = vmatprep.subr.mxu0 0.0
      %1851 = vmatpush1.msra.mxu0 0.0
      %1852 = vmatprep.subr.mxu0 0.0
      %1853 = vmatpush1.msra.mxu0 0.0
      %1854 = vmatprep.subr.mxu0 0.0
      %1855 = vmatpush1.msra.mxu0 0.0
      %1856 = vmatprep.mubr.f32.mxu0 0.0
      %1857 = vmatmul.mubr.f32.gmra.mrb[0].mxu0 %v1788
      %v1858 = vpop.f32.mrb[0].mxu0
      %v1859 = vadd.f32 0.0, %v1858
      %v1860 = vpop.f32.mrb[0].mxu0
      %1861 = vmatprep.mubr.f32.mxu0 0.0
      %1862 = vmatmul.mubr.f32.gmra.mrb[0].mxu0 %v1790
      %v1863 = vpop.f32.mrb[0].mxu0
      %v1864 = vadd.f32 0.0, %v1863
      %v1865 = vpop.f32.mrb[0].mxu0
      %1866 = vdwg.mxu0
      %v1867 = vadd.f32 %v1775, %v1859
      %v1868 = vadd.f32 %v1780, %v1864
      %v1870 = vsel %vm544, %v1611, 0
      %v1873 = vsel %vm544, %v1612, 0
      %1875 = vmatprep.subr.mxu0 0.0
      %1876 = vmatpush1.msra.mxu0 %v1075
      %1877 = vmatprep.subr.mxu0 0.0
      %1878 = vmatpush1.msra.mxu0 0.0
      %1879 = vmatprep.subr.mxu0 0.0
      %1880 = vmatpush1.msra.mxu0 0.0
      %1881 = vmatprep.subr.mxu0 0.0
      %1882 = vmatpush1.msra.mxu0 0.0
      %1883 = vmatprep.subr.mxu0 0.0
      %1884 = vmatpush1.msra.mxu0 0.0
      %1885 = vmatprep.subr.mxu0 0.0
      %1886 = vmatpush1.msra.mxu0 0.0
      %1887 = vmatprep.subr.mxu0 0.0
      %1888 = vmatpush1.msra.mxu0 0.0
      %1889 = vmatprep.subr.mxu0 0.0
      %1890 = vmatpush1.msra.mxu0 0.0
      %1891 = vmatprep.subr.mxu0 0.0
      %1892 = vmatpush1.msra.mxu0 0.0
      %1893 = vmatprep.subr.mxu0 0.0
      %1894 = vmatpush1.msra.mxu0 0.0
      %1895 = vmatprep.subr.mxu0 0.0
      %1896 = vmatpush1.msra.mxu0 0.0
      %1897 = vmatprep.subr.mxu0 0.0
      %1898 = vmatpush1.msra.mxu0 0.0
      %1899 = vmatprep.subr.mxu0 0.0
      %1900 = vmatpush1.msra.mxu0 0.0
      %1901 = vmatprep.subr.mxu0 0.0
      %1902 = vmatpush1.msra.mxu0 0.0
      %1903 = vmatprep.subr.mxu0 0.0
      %1904 = vmatpush1.msra.mxu0 0.0
      %1905 = vmatprep.subr.mxu0 0.0
      %1906 = vmatpush1.msra.mxu0 0.0
      %1907 = vmatprep.subr.mxu0 0.0
      %1908 = vmatpush1.msra.mxu0 0.0
      %1909 = vmatprep.subr.mxu0 0.0
      %1910 = vmatpush1.msra.mxu0 0.0
      %1911 = vmatprep.subr.mxu0 0.0
      %1912 = vmatpush1.msra.mxu0 0.0
      %1913 = vmatprep.subr.mxu0 0.0
      %1914 = vmatpush1.msra.mxu0 0.0
      %1915 = vmatprep.subr.mxu0 0.0
      %1916 = vmatpush1.msra.mxu0 0.0
      %1917 = vmatprep.subr.mxu0 0.0
      %1918 = vmatpush1.msra.mxu0 0.0
      %1919 = vmatprep.subr.mxu0 0.0
      %1920 = vmatpush1.msra.mxu0 0.0
      %1921 = vmatprep.subr.mxu0 0.0
      %1922 = vmatpush1.msra.mxu0 0.0
      %1923 = vmatprep.subr.mxu0 0.0
      %1924 = vmatpush1.msra.mxu0 0.0
      %1925 = vmatprep.subr.mxu0 0.0
      %1926 = vmatpush1.msra.mxu0 0.0
      %1927 = vmatprep.subr.mxu0 0.0
      %1928 = vmatpush1.msra.mxu0 0.0
      %1929 = vmatprep.subr.mxu0 0.0
      %1930 = vmatpush1.msra.mxu0 0.0
      %1931 = vmatprep.subr.mxu0 0.0
      %1932 = vmatpush1.msra.mxu0 0.0
      %1933 = vmatprep.subr.mxu0 0.0
      %1934 = vmatpush1.msra.mxu0 0.0
      %1935 = vmatprep.subr.mxu0 0.0
      %1936 = vmatpush1.msra.mxu0 0.0
      %1937 = vmatprep.subr.mxu0 0.0
      %1938 = vmatpush1.msra.mxu0 0.0
      %1939 = vmatprep.mubr.f32.mxu0 0.0
      %1940 = vmatmul.mubr.f32.gmra.mrb[0].mxu0 %v1870
      %v1941 = vpop.f32.mrb[0].mxu0
      %v1942 = vadd.f32 0.0, %v1941
      %v1943 = vpop.f32.mrb[0].mxu0
      %1944 = vmatprep.mubr.f32.mxu0 0.0
      %1945 = vmatmul.mubr.f32.gmra.mrb[0].mxu0 %v1873
      %v1946 = vpop.f32.mrb[0].mxu0
      %v1947 = vadd.f32 0.0, %v1946
      %v1948 = vpop.f32.mrb[0].mxu0
      %1949 = vdwg.mxu0
      %v1950 = vadd.f32 %v1867, %v1942
      %v1951 = vadd.f32 %v1868, %v1947
      %v1953 = vrot.slane %v1611, 1
      %v1954 = vrot.slane %v1612, 1
      %v1955 = vsel %vm807, %v1953, %v1954
      %v1956 = vrot.slane %v1613, 1
      %v1957 = vsel %vm807, %v1954, %v1956
      %v1958 = vsel %vm544, %v1955, 0
      %v1960 = vsel %vm544, %v1957, 0
      %1962 = vmatprep.subr.mxu0 0.0
      %1963 = vmatpush1.msra.mxu0 %v1165
      %1964 = vmatprep.subr.mxu0 0.0
      %1965 = vmatpush1.msra.mxu0 0.0
      %1966 = vmatprep.subr.mxu0 0.0
      %1967 = vmatpush1.msra.mxu0 0.0
      %1968 = vmatprep.subr.mxu0 0.0
      %1969 = vmatpush1.msra.mxu0 0.0
      %1970 = vmatprep.subr.mxu0 0.0
      %1971 = vmatpush1.msra.mxu0 0.0
      %1972 = vmatprep.subr.mxu0 0.0
      %1973 = vmatpush1.msra.mxu0 0.0
      %1974 = vmatprep.subr.mxu0 0.0
      %1975 = vmatpush1.msra.mxu0 0.0
      %1976 = vmatprep.subr.mxu0 0.0
      %1977 = vmatpush1.msra.mxu0 0.0
      %1978 = vmatprep.subr.mxu0 0.0
      %1979 = vmatpush1.msra.mxu0 0.0
      %1980 = vmatprep.subr.mxu0 0.0
      %1981 = vmatpush1.msra.mxu0 0.0
      %1982 = vmatprep.subr.mxu0 0.0
      %1983 = vmatpush1.msra.mxu0 0.0
      %1984 = vmatprep.subr.mxu0 0.0
      %1985 = vmatpush1.msra.mxu0 0.0
      %1986 = vmatprep.subr.mxu0 0.0
      %1987 = vmatpush1.msra.mxu0 0.0
      %1988 = vmatprep.subr.mxu0 0.0
      %1989 = vmatpush1.msra.mxu0 0.0
      %1990 = vmatprep.subr.mxu0 0.0
      %1991 = vmatpush1.msra.mxu0 0.0
      %1992 = vmatprep.subr.mxu0 0.0
      %1993 = vmatpush1.msra.mxu0 0.0
      %1994 = vmatprep.subr.mxu0 0.0
      %1995 = vmatpush1.msra.mxu0 0.0
      %1996 = vmatprep.subr.mxu0 0.0
      %1997 = vmatpush1.msra.mxu0 0.0
      %1998 = vmatprep.subr.mxu0 0.0
      %1999 = vmatpush1.msra.mxu0 0.0
      %2000 = vmatprep.subr.mxu0 0.0
      %2001 = vmatpush1.msra.mxu0 0.0
      %2002 = vmatprep.subr.mxu0 0.0
      %2003 = vmatpush1.msra.mxu0 0.0
      %2004 = vmatprep.subr.mxu0 0.0
      %2005 = vmatpush1.msra.mxu0 0.0
      %2006 = vmatprep.subr.mxu0 0.0
      %2007 = vmatpush1.msra.mxu0 0.0
      %2008 = vmatprep.subr.mxu0 0.0
      %2009 = vmatpush1.msra.mxu0 0.0
      %2010 = vmatprep.subr.mxu0 0.0
      %2011 = vmatpush1.msra.mxu0 0.0
      %2012 = vmatprep.subr.mxu0 0.0
      %2013 = vmatpush1.msra.mxu0 0.0
      %2014 = vmatprep.subr.mxu0 0.0
      %2015 = vmatpush1.msra.mxu0 0.0
      %2016 = vmatprep.subr.mxu0 0.0
      %2017 = vmatpush1.msra.mxu0 0.0
      %2018 = vmatprep.subr.mxu0 0.0
      %2019 = vmatpush1.msra.mxu0 0.0
      %2020 = vmatprep.subr.mxu0 0.0
      %2021 = vmatpush1.msra.mxu0 0.0
      %2022 = vmatprep.subr.mxu0 0.0
      %2023 = vmatpush1.msra.mxu0 0.0
      %2024 = vmatprep.subr.mxu0 0.0
      %2025 = vmatpush1.msra.mxu0 0.0
      %2026 = vmatprep.mubr.f32.mxu0 0.0
      %2027 = vmatmul.mubr.f32.gmra.mrb[0].mxu0 %v1958
      %v2028 = vpop.f32.mrb[0].mxu0
      %v2029 = vadd.f32 0.0, %v2028
      %v2030 = vpop.f32.mrb[0].mxu0
      %2031 = vmatprep.mubr.f32.mxu0 0.0
      %2032 = vmatmul.mubr.f32.gmra.mrb[0].mxu0 %v1960
      %v2033 = vpop.f32.mrb[0].mxu0
      %v2034 = vadd.f32 0.0, %v2033
      %v2035 = vpop.f32.mrb[0].mxu0
      %2036 = vdwg.mxu0
      %v2037 = vadd.f32 %v1950, %v2029
      %v2038 = vadd.f32 %v1951, %v2034
      %v2039 = vrot.slane %v1611, 2
      %v2040 = vrot.slane %v1612, 2
      %v2041 = vsel %vm978, %v2039, %v2040
      %v2042 = vrot.slane %v1613, 2
      %v2043 = vsel %vm978, %v2040, %v2042
      %v2044 = vsel %vm544, %v2041, 0
      %v2046 = vsel %vm544, %v2043, 0
      %2048 = vmatprep.subr.mxu0 0.0
      %2049 = vmatpush1.msra.mxu0 %v1254
      %2050 = vmatprep.subr.mxu0 0.0
      %2051 = vmatpush1.msra.mxu0 0.0
      %2052 = vmatprep.subr.mxu0 0.0
      %2053 = vmatpush1.msra.mxu0 0.0
      %2054 = vmatprep.subr.mxu0 0.0
      %2055 = vmatpush1.msra.mxu0 0.0
      %2056 = vmatprep.subr.mxu0 0.0
      %2057 = vmatpush1.msra.mxu0 0.0
      %2058 = vmatprep.subr.mxu0 0.0
      %2059 = vmatpush1.msra.mxu0 0.0
      %2060 = vmatprep.subr.mxu0 0.0
      %2061 = vmatpush1.msra.mxu0 0.0
      %2062 = vmatprep.subr.mxu0 0.0
      %2063 = vmatpush1.msra.mxu0 0.0
      %2064 = vmatprep.subr.mxu0 0.0
      %2065 = vmatpush1.msra.mxu0 0.0
      %2066 = vmatprep.subr.mxu0 0.0
      %2067 = vmatpush1.msra.mxu0 0.0
      %2068 = vmatprep.subr.mxu0 0.0
      %2069 = vmatpush1.msra.mxu0 0.0
      %2070 = vmatprep.subr.mxu0 0.0
      %2071 = vmatpush1.msra.mxu0 0.0
      %2072 = vmatprep.subr.mxu0 0.0
      %2073 = vmatpush1.msra.mxu0 0.0
      %2074 = vmatprep.subr.mxu0 0.0
      %2075 = vmatpush1.msra.mxu0 0.0
      %2076 = vmatprep.subr.mxu0 0.0
      %2077 = vmatpush1.msra.mxu0 0.0
      %2078 = vmatprep.subr.mxu0 0.0
      %2079 = vmatpush1.msra.mxu0 0.0
      %2080 = vmatprep.subr.mxu0 0.0
      %2081 = vmatpush1.msra.mxu0 0.0
      %2082 = vmatprep.subr.mxu0 0.0
      %2083 = vmatpush1.msra.mxu0 0.0
      %2084 = vmatprep.subr.mxu0 0.0
      %2085 = vmatpush1.msra.mxu0 0.0
      %2086 = vmatprep.subr.mxu0 0.0
      %2087 = vmatpush1.msra.mxu0 0.0
      %2088 = vmatprep.subr.mxu0 0.0
      %2089 = vmatpush1.msra.mxu0 0.0
      %2090 = vmatprep.subr.mxu0 0.0
      %2091 = vmatpush1.msra.mxu0 0.0
      %2092 = vmatprep.subr.mxu0 0.0
      %2093 = vmatpush1.msra.mxu0 0.0
      %2094 = vmatprep.subr.mxu0 0.0
      %2095 = vmatpush1.msra.mxu0 0.0
      %2096 = vmatprep.subr.mxu0 0.0
      %2097 = vmatpush1.msra.mxu0 0.0
      %2098 = vmatprep.subr.mxu0 0.0
      %2099 = vmatpush1.msra.mxu0 0.0
      %2100 = vmatprep.subr.mxu0 0.0
      %2101 = vmatpush1.msra.mxu0 0.0
      %2102 = vmatprep.subr.mxu0 0.0
      %2103 = vmatpush1.msra.mxu0 0.0
      %2104 = vmatprep.subr.mxu0 0.0
      %2105 = vmatpush1.msra.mxu0 0.0
      %2106 = vmatprep.subr.mxu0 0.0
      %2107 = vmatpush1.msra.mxu0 0.0
      %2108 = vmatprep.subr.mxu0 0.0
      %2109 = vmatpush1.msra.mxu0 0.0
      %2110 = vmatprep.subr.mxu0 0.0
      %2111 = vmatpush1.msra.mxu0 0.0
      %2112 = vmatprep.mubr.f32.mxu0 0.0
      %2113 = vmatmul.mubr.f32.gmra.mrb[0].mxu0 %v2044
      %v2114 = vpop.f32.mrb[0].mxu0
      %v2115 = vadd.f32 0.0, %v2114
      %v2116 = vpop.f32.mrb[0].mxu0
      %2117 = vmatprep.mubr.f32.mxu0 0.0
      %2118 = vmatmul.mubr.f32.gmra.mrb[0].mxu0 %v2046
      %v2119 = vpop.f32.mrb[0].mxu0
      %v2120 = vadd.f32 0.0, %v2119
      %v2121 = vpop.f32.mrb[0].mxu0
      %2122 = vdwg.mxu0
      %v2123 = vadd.f32 %v2037, %v2115
      %v2124 = vadd.f32 %v2038, %v2120
      %v2126 = vsel %vm544, %v1614, 0
      %v2129 = vsel %vm544, %v1615, 0
      %2131 = vmatprep.subr.mxu0 0.0
      %2132 = vmatpush1.msra.mxu0 %v1340
      %2133 = vmatprep.subr.mxu0 0.0
      %2134 = vmatpush1.msra.mxu0 0.0
      %2135 = vmatprep.subr.mxu0 0.0
      %2136 = vmatpush1.msra.mxu0 0.0
      %2137 = vmatprep.subr.mxu0 0.0
      %2138 = vmatpush1.msra.mxu0 0.0
      %2139 = vmatprep.subr.mxu0 0.0
      %2140 = vmatpush1.msra.mxu0 0.0
      %2141 = vmatprep.subr.mxu0 0.0
      %2142 = vmatpush1.msra.mxu0 0.0
      %2143 = vmatprep.subr.mxu0 0.0
      %2144 = vmatpush1.msra.mxu0 0.0
      %2145 = vmatprep.subr.mxu0 0.0
      %2146 = vmatpush1.msra.mxu0 0.0
      %2147 = vmatprep.subr.mxu0 0.0
      %2148 = vmatpush1.msra.mxu0 0.0
      %2149 = vmatprep.subr.mxu0 0.0
      %2150 = vmatpush1.msra.mxu0 0.0
      %2151 = vmatprep.subr.mxu0 0.0
      %2152 = vmatpush1.msra.mxu0 0.0
      %2153 = vmatprep.subr.mxu0 0.0
      %2154 = vmatpush1.msra.mxu0 0.0
      %2155 = vmatprep.subr.mxu0 0.0
      %2156 = vmatpush1.msra.mxu0 0.0
      %2157 = vmatprep.subr.mxu0 0.0
      %2158 = vmatpush1.msra.mxu0 0.0
      %2159 = vmatprep.subr.mxu0 0.0
      %2160 = vmatpush1.msra.mxu0 0.0
      %2161 = vmatprep.subr.mxu0 0.0
      %2162 = vmatpush1.msra.mxu0 0.0
      %2163 = vmatprep.subr.mxu0 0.0
      %2164 = vmatpush1.msra.mxu0 0.0
      %2165 = vmatprep.subr.mxu0 0.0
      %2166 = vmatpush1.msra.mxu0 0.0
      %2167 = vmatprep.subr.mxu0 0.0
      %2168 = vmatpush1.msra.mxu0 0.0
      %2169 = vmatprep.subr.mxu0 0.0
      %2170 = vmatpush1.msra.mxu0 0.0
      %2171 = vmatprep.subr.mxu0 0.0
      %2172 = vmatpush1.msra.mxu0 0.0
      %2173 = vmatprep.subr.mxu0 0.0
      %2174 = vmatpush1.msra.mxu0 0.0
      %2175 = vmatprep.subr.mxu0 0.0
      %2176 = vmatpush1.msra.mxu0 0.0
      %2177 = vmatprep.subr.mxu0 0.0
      %2178 = vmatpush1.msra.mxu0 0.0
      %2179 = vmatprep.subr.mxu0 0.0
      %2180 = vmatpush1.msra.mxu0 0.0
      %2181 = vmatprep.subr.mxu0 0.0
      %2182 = vmatpush1.msra.mxu0 0.0
      %2183 = vmatprep.subr.mxu0 0.0
      %2184 = vmatpush1.msra.mxu0 0.0
      %2185 = vmatprep.subr.mxu0 0.0
      %2186 = vmatpush1.msra.mxu0 0.0
      %2187 = vmatprep.subr.mxu0 0.0
      %2188 = vmatpush1.msra.mxu0 0.0
      %2189 = vmatprep.subr.mxu0 0.0
      %2190 = vmatpush1.msra.mxu0 0.0
      %2191 = vmatprep.subr.mxu0 0.0
      %2192 = vmatpush1.msra.mxu0 0.0
      %2193 = vmatprep.subr.mxu0 0.0
      %2194 = vmatpush1.msra.mxu0 0.0
      %2195 = vmatprep.mubr.f32.mxu0 0.0
      %2196 = vmatmul.mubr.f32.gmra.mrb[0].mxu0 %v2126
      %v2197 = vpop.f32.mrb[0].mxu0
      %v2198 = vadd.f32 0.0, %v2197
      %v2199 = vpop.f32.mrb[0].mxu0
      %2200 = vmatprep.mubr.f32.mxu0 0.0
      %2201 = vmatmul.mubr.f32.gmra.mrb[0].mxu0 %v2129
      %v2202 = vpop.f32.mrb[0].mxu0
      %v2203 = vadd.f32 0.0, %v2202
      %v2204 = vpop.f32.mrb[0].mxu0
      %2205 = vdwg.mxu0
      %v2206 = vadd.f32 %v2123, %v2198
      %v2207 = vadd.f32 %v2124, %v2203
      %v2209 = vrot.slane %v1614, 1
      %v2210 = vrot.slane %v1615, 1
      %v2211 = vsel %vm807, %v2209, %v2210
      %v2212 = vrot.slane %v1616, 1
      %v2213 = vsel %vm807, %v2210, %v2212
      %v2214 = vsel %vm544, %v2211, 0
      %v2216 = vsel %vm544, %v2213, 0
      %2218 = vmatprep.subr.mxu0 0.0
      %2219 = vmatpush1.msra.mxu0 %v1430
      %2220 = vmatprep.subr.mxu0 0.0
      %2221 = vmatpush1.msra.mxu0 0.0
      %2222 = vmatprep.subr.mxu0 0.0
      %2223 = vmatpush1.msra.mxu0 0.0
      %2224 = vmatprep.subr.mxu0 0.0
      %2225 = vmatpush1.msra.mxu0 0.0
      %2226 = vmatprep.subr.mxu0 0.0
      %2227 = vmatpush1.msra.mxu0 0.0
      %2228 = vmatprep.subr.mxu0 0.0
      %2229 = vmatpush1.msra.mxu0 0.0
      %2230 = vmatprep.subr.mxu0 0.0
      %2231 = vmatpush1.msra.mxu0 0.0
      %2232 = vmatprep.subr.mxu0 0.0
      %2233 = vmatpush1.msra.mxu0 0.0
      %2234 = vmatprep.subr.mxu0 0.0
      %2235 = vmatpush1.msra.mxu0 0.0
      %2236 = vmatprep.subr.mxu0 0.0
      %2237 = vmatpush1.msra.mxu0 0.0
      %2238 = vmatprep.subr.mxu0 0.0
      %2239 = vmatpush1.msra.mxu0 0.0
      %2240 = vmatprep.subr.mxu0 0.0
      %2241 = vmatpush1.msra.mxu0 0.0
      %2242 = vmatprep.subr.mxu0 0.0
      %2243 = vmatpush1.msra.mxu0 0.0
      %2244 = vmatprep.subr.mxu0 0.0
      %2245 = vmatpush1.msra.mxu0 0.0
      %2246 = vmatprep.subr.mxu0 0.0
      %2247 = vmatpush1.msra.mxu0 0.0
      %2248 = vmatprep.subr.mxu0 0.0
      %2249 = vmatpush1.msra.mxu0 0.0
      %2250 = vmatprep.subr.mxu0 0.0
      %2251 = vmatpush1.msra.mxu0 0.0
      %2252 = vmatprep.subr.mxu0 0.0
      %2253 = vmatpush1.msra.mxu0 0.0
      %2254 = vmatprep.subr.mxu0 0.0
      %2255 = vmatpush1.msra.mxu0 0.0
      %2256 = vmatprep.subr.mxu0 0.0
      %2257 = vmatpush1.msra.mxu0 0.0
      %2258 = vmatprep.subr.mxu0 0.0
      %2259 = vmatpush1.msra.mxu0 0.0
      %2260 = vmatprep.subr.mxu0 0.0
      %2261 = vmatpush1.msra.mxu0 0.0
      %2262 = vmatprep.subr.mxu0 0.0
      %2263 = vmatpush1.msra.mxu0 0.0
      %2264 = vmatprep.subr.mxu0 0.0
      %2265 = vmatpush1.msra.mxu0 0.0
      %2266 = vmatprep.subr.mxu0 0.0
      %2267 = vmatpush1.msra.mxu0 0.0
      %2268 = vmatprep.subr.mxu0 0.0
      %2269 = vmatpush1.msra.mxu0 0.0
      %2270 = vmatprep.subr.mxu0 0.0
      %2271 = vmatpush1.msra.mxu0 0.0
      %2272 = vmatprep.subr.mxu0 0.0
      %2273 = vmatpush1.msra.mxu0 0.0
      %2274 = vmatprep.subr.mxu0 0.0
      %2275 = vmatpush1.msra.mxu0 0.0
      %2276 = vmatprep.subr.mxu0 0.0
      %2277 = vmatpush1.msra.mxu0 0.0
      %2278 = vmatprep.subr.mxu0 0.0
      %2279 = vmatpush1.msra.mxu0 0.0
      %2280 = vmatprep.subr.mxu0 0.0
      %2281 = vmatpush1.msra.mxu0 0.0
      %2282 = vmatprep.mubr.f32.mxu0 0.0
      %2283 = vmatmul.mubr.f32.gmra.mrb[0].mxu0 %v2214
      %v2284 = vpop.f32.mrb[0].mxu0
      %v2285 = vadd.f32 0.0, %v2284
      %v2286 = vpop.f32.mrb[0].mxu0
      %2287 = vmatprep.mubr.f32.mxu0 0.0
      %2288 = vmatmul.mubr.f32.gmra.mrb[0].mxu0 %v2216
      %v2289 = vpop.f32.mrb[0].mxu0
      %v2290 = vadd.f32 0.0, %v2289
      %v2291 = vpop.f32.mrb[0].mxu0
      %2292 = vdwg.mxu0
      %v2293 = vadd.f32 %v2206, %v2285
      %v2294 = vadd.f32 %v2207, %v2290
      %v2295 = vrot.slane %v1614, 2
      %v2296 = vrot.slane %v1615, 2
      %v2297 = vsel %vm978, %v2295, %v2296
      %v2298 = vrot.slane %v1616, 2
      %v2299 = vsel %vm978, %v2296, %v2298
      %v2300 = vsel %vm544, %v2297, 0
      %v2302 = vsel %vm544, %v2299, 0
      %2304 = vmatprep.subr.mxu0 0.0
      %2305 = vmatpush1.msra.mxu0 %v1519
      %2306 = vmatprep.subr.mxu0 0.0
      %2307 = vmatpush1.msra.mxu0 0.0
      %2308 = vmatprep.subr.mxu0 0.0
      %2309 = vmatpush1.msra.mxu0 0.0
      %2310 = vmatprep.subr.mxu0 0.0
      %2311 = vmatpush1.msra.mxu0 0.0
      %2312 = vmatprep.subr.mxu0 0.0
      %2313 = vmatpush1.msra.mxu0 0.0
      %2314 = vmatprep.subr.mxu0 0.0
      %2315 = vmatpush1.msra.mxu0 0.0
      %2316 = vmatprep.subr.mxu0 0.0
      %2317 = vmatpush1.msra.mxu0 0.0
      %2318 = vmatprep.subr.mxu0 0.0
      %2319 = vmatpush1.msra.mxu0 0.0
      %2320 = vmatprep.subr.mxu0 0.0
      %2321 = vmatpush1.msra.mxu0 0.0
      %2322 = vmatprep.subr.mxu0 0.0
      %2323 = vmatpush1.msra.mxu0 0.0
      %2324 = vmatprep.subr.mxu0 0.0
      %2325 = vmatpush1.msra.mxu0 0.0
      %2326 = vmatprep.subr.mxu0 0.0
      %2327 = vmatpush1.msra.mxu0 0.0
      %2328 = vmatprep.subr.mxu0 0.0
      %2329 = vmatpush1.msra.mxu0 0.0
      %2330 = vmatprep.subr.mxu0 0.0
      %2331 = vmatpush1.msra.mxu0 0.0
      %2332 = vmatprep.subr.mxu0 0.0
      %2333 = vmatpush1.msra.mxu0 0.0
      %2334 = vmatprep.subr.mxu0 0.0
      %2335 = vmatpush1.msra.mxu0 0.0
      %2336 = vmatprep.subr.mxu0 0.0
      %2337 = vmatpush1.msra.mxu0 0.0
      %2338 = vmatprep.subr.mxu0 0.0
      %2339 = vmatpush1.msra.mxu0 0.0
      %2340 = vmatprep.subr.mxu0 0.0
      %2341 = vmatpush1.msra.mxu0 0.0
      %2342 = vmatprep.subr.mxu0 0.0
      %2343 = vmatpush1.msra.mxu0 0.0
      %2344 = vmatprep.subr.mxu0 0.0
      %2345 = vmatpush1.msra.mxu0 0.0
      %2346 = vmatprep.subr.mxu0 0.0
      %2347 = vmatpush1.msra.mxu0 0.0
      %2348 = vmatprep.subr.mxu0 0.0
      %2349 = vmatpush1.msra.mxu0 0.0
      %2350 = vmatprep.subr.mxu0 0.0
      %2351 = vmatpush1.msra.mxu0 0.0
      %2352 = vmatprep.subr.mxu0 0.0
      %2353 = vmatpush1.msra.mxu0 0.0
      %2354 = vmatprep.subr.mxu0 0.0
      %2355 = vmatpush1.msra.mxu0 0.0
      %2356 = vmatprep.subr.mxu0 0.0
      %2357 = vmatpush1.msra.mxu0 0.0
      %2358 = vmatprep.subr.mxu0 0.0
      %2359 = vmatpush1.msra.mxu0 0.0
      %2360 = vmatprep.subr.mxu0 0.0
      %2361 = vmatpush1.msra.mxu0 0.0
      %2362 = vmatprep.subr.mxu0 0.0
      %2363 = vmatpush1.msra.mxu0 0.0
      %2364 = vmatprep.subr.mxu0 0.0
      %2365 = vmatpush1.msra.mxu0 0.0
      %2366 = vmatprep.subr.mxu0 0.0
      %2367 = vmatpush1.msra.mxu0 0.0
      %2368 = vmatprep.mubr.f32.mxu0 0.0
      %2369 = vmatmul.mubr.f32.gmra.mrb[0].mxu0 %v2300
      %v2370 = vpop.f32.mrb[0].mxu0
      %v2371 = vadd.f32 0.0, %v2370
      %v2372 = vpop.f32.mrb[0].mxu0
      %2373 = vmatprep.mubr.f32.mxu0 0.0
      %2374 = vmatmul.mubr.f32.gmra.mrb[0].mxu0 %v2302
      %v2375 = vpop.f32.mrb[0].mxu0
      %v2376 = vadd.f32 0.0, %v2375
      %v2377 = vpop.f32.mrb[0].mxu0
      %2378 = vdwg.mxu0
      %v2379 = vadd.f32 %v2293, %v2371
      %v2380 = vadd.f32 %v2294, %v2376
      %v2381 = vadd.f32 %v2379, %v1602
      %v2382 = vadd.f32 %v2380, %v1602
      %s2383 = scalar_lea.vmem %s524, 16
      %2384 = vst.msk [vmem:[%s2383] sm:$0xff] %vm544, %v2381
      %2385 = vst.msk [vmem:[%s2383 + $0x8] sm:$0xff] %vm544, %v2382
      %s2386 = scalar_lea.vmem [#allocation2], 48
      %v2387 = vld [vmem:[%s2386] sm:$0xff]
      %v2388 = vld [vmem:[%s2386 + $0x8] sm:$0xff]
      %v2389 = vld [vmem:[%s2386 + $0x10] sm:$0x3]
      %v2390 = vld [vmem:[%s2386 + $0x18] sm:$0xff]
      %v2391 = vld [vmem:[%s2386 + $0x20] sm:$0xff]
      %v2392 = vld [vmem:[%s2386 + $0x28] sm:$0x3]
      %v2393 = vld [vmem:[%s2386 + $0x30] sm:$0xff]
      %v2394 = vld [vmem:[%s2386 + $0x38] sm:$0xff]
      %v2395 = vld [vmem:[%s2386 + $0x40] sm:$0x3]
      %v2399 = vrot.slane %v2387, 1
      %v2400 = vrot.slane %v2388, 1
      %v2401 = vsel %vm807, %v2399, %v2400
      %v2402 = vrot.slane %v2389, 1
      %v2403 = vsel %vm807, %v2400, %v2402
      %v2404 = vsel %vm544, %v2401, 0
      %v2406 = vsel %vm544, %v2403, 0
      %2408 = vmatprep.subr.mxu0 0.0
      %2409 = vmatpush1.msra.mxu0 %v819
      %2410 = vmatprep.subr.mxu0 0.0
      %2411 = vmatpush1.msra.mxu0 0.0
      %2412 = vmatprep.subr.mxu0 0.0
      %2413 = vmatpush1.msra.mxu0 0.0
      %2414 = vmatprep.subr.mxu0 0.0
      %2415 = vmatpush1.msra.mxu0 0.0
      %2416 = vmatprep.subr.mxu0 0.0
      %2417 = vmatpush1.msra.mxu0 0.0
      %2418 = vmatprep.subr.mxu0 0.0
      %2419 = vmatpush1.msra.mxu0 0.0
      %2420 = vmatprep.subr.mxu0 0.0
      %2421 = vmatpush1.msra.mxu0 0.0
      %2422 = vmatprep.subr.mxu0 0.0
      %2423 = vmatpush1.msra.mxu0 0.0
      %2424 = vmatprep.subr.mxu0 0.0
      %2425 = vmatpush1.msra.mxu0 0.0
      %2426 = vmatprep.subr.mxu0 0.0
      %2427 = vmatpush1.msra.mxu0 0.0
      %2428 = vmatprep.subr.mxu0 0.0
      %2429 = vmatpush1.msra.mxu0 0.0
      %2430 = vmatprep.subr.mxu0 0.0
      %2431 = vmatpush1.msra.mxu0 0.0
      %2432 = vmatprep.subr.mxu0 0.0
      %2433 = vmatpush1.msra.mxu0 0.0
      %2434 = vmatprep.subr.mxu0 0.0
      %2435 = vmatpush1.msra.mxu0 0.0
      %2436 = vmatprep.subr.mxu0 0.0
      %2437 = vmatpush1.msra.mxu0 0.0
      %2438 = vmatprep.subr.mxu0 0.0
      %2439 = vmatpush1.msra.mxu0 0.0
      %2440 = vmatprep.subr.mxu0 0.0
      %2441 = vmatpush1.msra.mxu0 0.0
      %2442 = vmatprep.subr.mxu0 0.0
      %2443 = vmatpush1.msra.mxu0 0.0
      %2444 = vmatprep.subr.mxu0 0.0
      %2445 = vmatpush1.msra.mxu0 0.0
      %2446 = vmatprep.subr.mxu0 0.0
      %2447 = vmatpush1.msra.mxu0 0.0
      %2448 = vmatprep.subr.mxu0 0.0
      %2449 = vmatpush1.msra.mxu0 0.0
      %2450 = vmatprep.subr.mxu0 0.0
      %2451 = vmatpush1.msra.mxu0 0.0
      %2452 = vmatprep.subr.mxu0 0.0
      %2453 = vmatpush1.msra.mxu0 0.0
      %2454 = vmatprep.subr.mxu0 0.0
      %2455 = vmatpush1.msra.mxu0 0.0
      %2456 = vmatprep.subr.mxu0 0.0
      %2457 = vmatpush1.msra.mxu0 0.0
      %2458 = vmatprep.subr.mxu0 0.0
      %2459 = vmatpush1.msra.mxu0 0.0
      %2460 = vmatprep.subr.mxu0 0.0
      %2461 = vmatpush1.msra.mxu0 0.0
      %2462 = vmatprep.subr.mxu0 0.0
      %2463 = vmatpush1.msra.mxu0 0.0
      %2464 = vmatprep.subr.mxu0 0.0
      %2465 = vmatpush1.msra.mxu0 0.0
      %2466 = vmatprep.subr.mxu0 0.0
      %2467 = vmatpush1.msra.mxu0 0.0
      %2468 = vmatprep.subr.mxu0 0.0
      %2469 = vmatpush1.msra.mxu0 0.0
      %2470 = vmatprep.subr.mxu0 0.0
      %2471 = vmatpush1.msra.mxu0 0.0
      %2472 = vmatprep.mubr.f32.mxu0 0.0
      %2473 = vmatmul.mubr.f32.gmra.mrb[0].mxu0 %v2404
      %v2474 = vpop.f32.mrb[0].mxu0
      %v2475 = vadd.f32 0.0, %v2474
      %v2476 = vpop.f32.mrb[0].mxu0
      %2477 = vmatprep.mubr.f32.mxu0 0.0
      %2478 = vmatmul.mubr.f32.gmra.mrb[0].mxu0 %v2406
      %v2479 = vpop.f32.mrb[0].mxu0
      %v2480 = vadd.f32 0.0, %v2479
      %v2481 = vpop.f32.mrb[0].mxu0
      %2482 = vdwg.mxu0
      %v2483 = vsel %vm544, %v2387, 0
      %v2485 = vsel %vm544, %v2388, 0
      %2487 = vmatprep.subr.mxu0 0.0
      %2488 = vmatpush1.msra.mxu0 %v901
      %2489 = vmatprep.subr.mxu0 0.0
      %2490 = vmatpush1.msra.mxu0 0.0
      %2491 = vmatprep.subr.mxu0 0.0
      %2492 = vmatpush1.msra.mxu0 0.0
      %2493 = vmatprep.subr.mxu0 0.0
      %2494 = vmatpush1.msra.mxu0 0.0
      %2495 = vmatprep.subr.mxu0 0.0
      %2496 = vmatpush1.msra.mxu0 0.0
      %2497 = vmatprep.subr.mxu0 0.0
      %2498 = vmatpush1.msra.mxu0 0.0
      %2499 = vmatprep.subr.mxu0 0.0
      %2500 = vmatpush1.msra.mxu0 0.0
      %2501 = vmatprep.subr.mxu0 0.0
      %2502 = vmatpush1.msra.mxu0 0.0
      %2503 = vmatprep.subr.mxu0 0.0
      %2504 = vmatpush1.msra.mxu0 0.0
      %2505 = vmatprep.subr.mxu0 0.0
      %2506 = vmatpush1.msra.mxu0 0.0
      %2507 = vmatprep.subr.mxu0 0.0
      %2508 = vmatpush1.msra.mxu0 0.0
      %2509 = vmatprep.subr.mxu0 0.0
      %2510 = vmatpush1.msra.mxu0 0.0
      %2511 = vmatprep.subr.mxu0 0.0
      %2512 = vmatpush1.msra.mxu0 0.0
      %2513 = vmatprep.subr.mxu0 0.0
      %2514 = vmatpush1.msra.mxu0 0.0
      %2515 = vmatprep.subr.mxu0 0.0
      %2516 = vmatpush1.msra.mxu0 0.0
      %2517 = vmatprep.subr.mxu0 0.0
      %2518 = vmatpush1.msra.mxu0 0.0
      %2519 = vmatprep.subr.mxu0 0.0
      %2520 = vmatpush1.msra.mxu0 0.0
      %2521 = vmatprep.subr.mxu0 0.0
      %2522 = vmatpush1.msra.mxu0 0.0
      %2523 = vmatprep.subr.mxu0 0.0
      %2524 = vmatpush1.msra.mxu0 0.0
      %2525 = vmatprep.subr.mxu0 0.0
      %2526 = vmatpush1.msra.mxu0 0.0
      %2527 = vmatprep.subr.mxu0 0.0
      %2528 = vmatpush1.msra.mxu0 0.0
      %2529 = vmatprep.subr.mxu0 0.0
      %2530 = vmatpush1.msra.mxu0 0.0
      %2531 = vmatprep.subr.mxu0 0.0
      %2532 = vmatpush1.msra.mxu0 0.0
      %2533 = vmatprep.subr.mxu0 0.0
      %2534 = vmatpush1.msra.mxu0 0.0
      %2535 = vmatprep.subr.mxu0 0.0
      %2536 = vmatpush1.msra.mxu0 0.0
      %2537 = vmatprep.subr.mxu0 0.0
      %2538 = vmatpush1.msra.mxu0 0.0
      %2539 = vmatprep.subr.mxu0 0.0
      %2540 = vmatpush1.msra.mxu0 0.0
      %2541 = vmatprep.subr.mxu0 0.0
      %2542 = vmatpush1.msra.mxu0 0.0
      %2543 = vmatprep.subr.mxu0 0.0
      %2544 = vmatpush1.msra.mxu0 0.0
      %2545 = vmatprep.subr.mxu0 0.0
      %2546 = vmatpush1.msra.mxu0 0.0
      %2547 = vmatprep.subr.mxu0 0.0
      %2548 = vmatpush1.msra.mxu0 0.0
      %2549 = vmatprep.subr.mxu0 0.0
      %2550 = vmatpush1.msra.mxu0 0.0
      %2551 = vmatprep.mubr.f32.mxu0 0.0
      %2552 = vmatmul.mubr.f32.gmra.mrb[0].mxu0 %v2483
      %v2553 = vpop.f32.mrb[0].mxu0
      %v2554 = vadd.f32 %v2475, %v2553
      %v2555 = vpop.f32.mrb[0].mxu0
      %2556 = vmatprep.mubr.f32.mxu0 0.0
      %2557 = vmatmul.mubr.f32.gmra.mrb[0].mxu0 %v2485
      %v2558 = vpop.f32.mrb[0].mxu0
      %v2559 = vadd.f32 %v2480, %v2558
      %v2560 = vpop.f32.mrb[0].mxu0
      %2561 = vdwg.mxu0
      %v2562 = vrot.slane %v2387, 2
      %v2563 = vrot.slane %v2388, 2
      %v2564 = vsel %vm978, %v2562, %v2563
      %v2565 = vrot.slane %v2389, 2
      %v2566 = vsel %vm978, %v2563, %v2565
      %v2567 = vsel %vm544, %v2564, 0
      %v2569 = vsel %vm544, %v2566, 0
      %2571 = vmatprep.subr.mxu0 0.0
      %2572 = vmatpush1.msra.mxu0 %v989
      %2573 = vmatprep.subr.mxu0 0.0
      %2574 = vmatpush1.msra.mxu0 0.0
      %2575 = vmatprep.subr.mxu0 0.0
      %2576 = vmatpush1.msra.mxu0 0.0
      %2577 = vmatprep.subr.mxu0 0.0
      %2578 = vmatpush1.msra.mxu0 0.0
      %2579 = vmatprep.subr.mxu0 0.0
      %2580 = vmatpush1.msra.mxu0 0.0
      %2581 = vmatprep.subr.mxu0 0.0
      %2582 = vmatpush1.msra.mxu0 0.0
      %2583 = vmatprep.subr.mxu0 0.0
      %2584 = vmatpush1.msra.mxu0 0.0
      %2585 = vmatprep.subr.mxu0 0.0
      %2586 = vmatpush1.msra.mxu0 0.0
      %2587 = vmatprep.subr.mxu0 0.0
      %2588 = vmatpush1.msra.mxu0 0.0
      %2589 = vmatprep.subr.mxu0 0.0
      %2590 = vmatpush1.msra.mxu0 0.0
      %2591 = vmatprep.subr.mxu0 0.0
      %2592 = vmatpush1.msra.mxu0 0.0
      %2593 = vmatprep.subr.mxu0 0.0
      %2594 = vmatpush1.msra.mxu0 0.0
      %2595 = vmatprep.subr.mxu0 0.0
      %2596 = vmatpush1.msra.mxu0 0.0
      %2597 = vmatprep.subr.mxu0 0.0
      %2598 = vmatpush1.msra.mxu0 0.0
      %2599 = vmatprep.subr.mxu0 0.0
      %2600 = vmatpush1.msra.mxu0 0.0
      %2601 = vmatprep.subr.mxu0 0.0
      %2602 = vmatpush1.msra.mxu0 0.0
      %2603 = vmatprep.subr.mxu0 0.0
      %2604 = vmatpush1.msra.mxu0 0.0
      %2605 = vmatprep.subr.mxu0 0.0
      %2606 = vmatpush1.msra.mxu0 0.0
      %2607 = vmatprep.subr.mxu0 0.0
      %2608 = vmatpush1.msra.mxu0 0.0
      %2609 = vmatprep.subr.mxu0 0.0
      %2610 = vmatpush1.msra.mxu0 0.0
      %2611 = vmatprep.subr.mxu0 0.0
      %2612 = vmatpush1.msra.mxu0 0.0
      %2613 = vmatprep.subr.mxu0 0.0
      %2614 = vmatpush1.msra.mxu0 0.0
      %2615 = vmatprep.subr.mxu0 0.0
      %2616 = vmatpush1.msra.mxu0 0.0
      %2617 = vmatprep.subr.mxu0 0.0
      %2618 = vmatpush1.msra.mxu0 0.0
      %2619 = vmatprep.subr.mxu0 0.0
      %2620 = vmatpush1.msra.mxu0 0.0
      %2621 = vmatprep.subr.mxu0 0.0
      %2622 = vmatpush1.msra.mxu0 0.0
      %2623 = vmatprep.subr.mxu0 0.0
      %2624 = vmatpush1.msra.mxu0 0.0
      %2625 = vmatprep.subr.mxu0 0.0
      %2626 = vmatpush1.msra.mxu0 0.0
      %2627 = vmatprep.subr.mxu0 0.0
      %2628 = vmatpush1.msra.mxu0 0.0
      %2629 = vmatprep.subr.mxu0 0.0
      %2630 = vmatpush1.msra.mxu0 0.0
      %2631 = vmatprep.subr.mxu0 0.0
      %2632 = vmatpush1.msra.mxu0 0.0
      %2633 = vmatprep.subr.mxu0 0.0
      %2634 = vmatpush1.msra.mxu0 0.0
      %2635 = vmatprep.mubr.f32.mxu0 0.0
      %2636 = vmatmul.mubr.f32.gmra.mrb[0].mxu0 %v2567
      %v2637 = vpop.f32.mrb[0].mxu0
      %v2638 = vadd.f32 0.0, %v2637
      %v2639 = vpop.f32.mrb[0].mxu0
      %2640 = vmatprep.mubr.f32.mxu0 0.0
      %2641 = vmatmul.mubr.f32.gmra.mrb[0].mxu0 %v2569
      %v2642 = vpop.f32.mrb[0].mxu0
      %v2643 = vadd.f32 0.0, %v2642
      %v2644 = vpop.f32.mrb[0].mxu0
      %2645 = vdwg.mxu0
      %v2646 = vadd.f32 %v2554, %v2638
      %v2647 = vadd.f32 %v2559, %v2643
      %v2649 = vsel %vm544, %v2390, 0
      %v2652 = vsel %vm544, %v2391, 0
      %2654 = vmatprep.subr.mxu0 0.0
      %2655 = vmatpush1.msra.mxu0 %v1075
      %2656 = vmatprep.subr.mxu0 0.0
      %2657 = vmatpush1.msra.mxu0 0.0
      %2658 = vmatprep.subr.mxu0 0.0
      %2659 = vmatpush1.msra.mxu0 0.0
      %2660 = vmatprep.subr.mxu0 0.0
      %2661 = vmatpush1.msra.mxu0 0.0
      %2662 = vmatprep.subr.mxu0 0.0
      %2663 = vmatpush1.msra.mxu0 0.0
      %2664 = vmatprep.subr.mxu0 0.0
      %2665 = vmatpush1.msra.mxu0 0.0
      %2666 = vmatprep.subr.mxu0 0.0
      %2667 = vmatpush1.msra.mxu0 0.0
      %2668 = vmatprep.subr.mxu0 0.0
      %2669 = vmatpush1.msra.mxu0 0.0
      %2670 = vmatprep.subr.mxu0 0.0
      %2671 = vmatpush1.msra.mxu0 0.0
      %2672 = vmatprep.subr.mxu0 0.0
      %2673 = vmatpush1.msra.mxu0 0.0
      %2674 = vmatprep.subr.mxu0 0.0
      %2675 = vmatpush1.msra.mxu0 0.0
      %2676 = vmatprep.subr.mxu0 0.0
      %2677 = vmatpush1.msra.mxu0 0.0
      %2678 = vmatprep.subr.mxu0 0.0
      %2679 = vmatpush1.msra.mxu0 0.0
      %2680 = vmatprep.subr.mxu0 0.0
      %2681 = vmatpush1.msra.mxu0 0.0
      %2682 = vmatprep.subr.mxu0 0.0
      %2683 = vmatpush1.msra.mxu0 0.0
      %2684 = vmatprep.subr.mxu0 0.0
      %2685 = vmatpush1.msra.mxu0 0.0
      %2686 = vmatprep.subr.mxu0 0.0
      %2687 = vmatpush1.msra.mxu0 0.0
      %2688 = vmatprep.subr.mxu0 0.0
      %2689 = vmatpush1.msra.mxu0 0.0
      %2690 = vmatprep.subr.mxu0 0.0
      %2691 = vmatpush1.msra.mxu0 0.0
      %2692 = vmatprep.subr.mxu0 0.0
      %2693 = vmatpush1.msra.mxu0 0.0
      %2694 = vmatprep.subr.mxu0 0.0
      %2695 = vmatpush1.msra.mxu0 0.0
      %2696 = vmatprep.subr.mxu0 0.0
      %2697 = vmatpush1.msra.mxu0 0.0
      %2698 = vmatprep.subr.mxu0 0.0
      %2699 = vmatpush1.msra.mxu0 0.0
      %2700 = vmatprep.subr.mxu0 0.0
      %2701 = vmatpush1.msra.mxu0 0.0
      %2702 = vmatprep.subr.mxu0 0.0
      %2703 = vmatpush1.msra.mxu0 0.0
      %2704 = vmatprep.subr.mxu0 0.0
      %2705 = vmatpush1.msra.mxu0 0.0
      %2706 = vmatprep.subr.mxu0 0.0
      %2707 = vmatpush1.msra.mxu0 0.0
      %2708 = vmatprep.subr.mxu0 0.0
      %2709 = vmatpush1.msra.mxu0 0.0
      %2710 = vmatprep.subr.mxu0 0.0
      %2711 = vmatpush1.msra.mxu0 0.0
      %2712 = vmatprep.subr.mxu0 0.0
      %2713 = vmatpush1.msra.mxu0 0.0
      %2714 = vmatprep.subr.mxu0 0.0
      %2715 = vmatpush1.msra.mxu0 0.0
      %2716 = vmatprep.subr.mxu0 0.0
      %2717 = vmatpush1.msra.mxu0 0.0
      %2718 = vmatprep.mubr.f32.mxu0 0.0
      %2719 = vmatmul.mubr.f32.gmra.mrb[0].mxu0 %v2649
      %v2720 = vpop.f32.mrb[0].mxu0
      %v2721 = vadd.f32 0.0, %v2720
      %v2722 = vpop.f32.mrb[0].mxu0
      %2723 = vmatprep.mubr.f32.mxu0 0.0
      %2724 = vmatmul.mubr.f32.gmra.mrb[0].mxu0 %v2652
      %v2725 = vpop.f32.mrb[0].mxu0
      %v2726 = vadd.f32 0.0, %v2725
      %v2727 = vpop.f32.mrb[0].mxu0
      %2728 = vdwg.mxu0
      %v2729 = vadd.f32 %v2646, %v2721
      %v2730 = vadd.f32 %v2647, %v2726
      %v2732 = vrot.slane %v2390, 1
      %v2733 = vrot.slane %v2391, 1
      %v2734 = vsel %vm807, %v2732, %v2733
      %v2735 = vrot.slane %v2392, 1
      %v2736 = vsel %vm807, %v2733, %v2735
      %v2737 = vsel %vm544, %v2734, 0
      %v2739 = vsel %vm544, %v2736, 0
      %2741 = vmatprep.subr.mxu0 0.0
      %2742 = vmatpush1.msra.mxu0 %v1165
      %2743 = vmatprep.subr.mxu0 0.0
      %2744 = vmatpush1.msra.mxu0 0.0
      %2745 = vmatprep.subr.mxu0 0.0
      %2746 = vmatpush1.msra.mxu0 0.0
      %2747 = vmatprep.subr.mxu0 0.0
      %2748 = vmatpush1.msra.mxu0 0.0
      %2749 = vmatprep.subr.mxu0 0.0
      %2750 = vmatpush1.msra.mxu0 0.0
      %2751 = vmatprep.subr.mxu0 0.0
      %2752 = vmatpush1.msra.mxu0 0.0
      %2753 = vmatprep.subr.mxu0 0.0
      %2754 = vmatpush1.msra.mxu0 0.0
      %2755 = vmatprep.subr.mxu0 0.0
      %2756 = vmatpush1.msra.mxu0 0.0
      %2757 = vmatprep.subr.mxu0 0.0
      %2758 = vmatpush1.msra.mxu0 0.0
      %2759 = vmatprep.subr.mxu0 0.0
      %2760 = vmatpush1.msra.mxu0 0.0
      %2761 = vmatprep.subr.mxu0 0.0
      %2762 = vmatpush1.msra.mxu0 0.0
      %2763 = vmatprep.subr.mxu0 0.0
      %2764 = vmatpush1.msra.mxu0 0.0
      %2765 = vmatprep.subr.mxu0 0.0
      %2766 = vmatpush1.msra.mxu0 0.0
      %2767 = vmatprep.subr.mxu0 0.0
      %2768 = vmatpush1.msra.mxu0 0.0
      %2769 = vmatprep.subr.mxu0 0.0
      %2770 = vmatpush1.msra.mxu0 0.0
      %2771 = vmatprep.subr.mxu0 0.0
      %2772 = vmatpush1.msra.mxu0 0.0
      %2773 = vmatprep.subr.mxu0 0.0
      %2774 = vmatpush1.msra.mxu0 0.0
      %2775 = vmatprep.subr.mxu0 0.0
      %2776 = vmatpush1.msra.mxu0 0.0
      %2777 = vmatprep.subr.mxu0 0.0
      %2778 = vmatpush1.msra.mxu0 0.0
      %2779 = vmatprep.subr.mxu0 0.0
      %2780 = vmatpush1.msra.mxu0 0.0
      %2781 = vmatprep.subr.mxu0 0.0
      %2782 = vmatpush1.msra.mxu0 0.0
      %2783 = vmatprep.subr.mxu0 0.0
      %2784 = vmatpush1.msra.mxu0 0.0
      %2785 = vmatprep.subr.mxu0 0.0
      %2786 = vmatpush1.msra.mxu0 0.0
      %2787 = vmatprep.subr.mxu0 0.0
      %2788 = vmatpush1.msra.mxu0 0.0
      %2789 = vmatprep.subr.mxu0 0.0
      %2790 = vmatpush1.msra.mxu0 0.0
      %2791 = vmatprep.subr.mxu0 0.0
      %2792 = vmatpush1.msra.mxu0 0.0
      %2793 = vmatprep.subr.mxu0 0.0
      %2794 = vmatpush1.msra.mxu0 0.0
      %2795 = vmatprep.subr.mxu0 0.0
      %2796 = vmatpush1.msra.mxu0 0.0
      %2797 = vmatprep.subr.mxu0 0.0
      %2798 = vmatpush1.msra.mxu0 0.0
      %2799 = vmatprep.subr.mxu0 0.0
      %2800 = vmatpush1.msra.mxu0 0.0
      %2801 = vmatprep.subr.mxu0 0.0
      %2802 = vmatpush1.msra.mxu0 0.0
      %2803 = vmatprep.subr.mxu0 0.0
      %2804 = vmatpush1.msra.mxu0 0.0
      %2805 = vmatprep.mubr.f32.mxu0 0.0
      %2806 = vmatmul.mubr.f32.gmra.mrb[0].mxu0 %v2737
      %v2807 = vpop.f32.mrb[0].mxu0
      %v2808 = vadd.f32 0.0, %v2807
      %v2809 = vpop.f32.mrb[0].mxu0
      %2810 = vmatprep.mubr.f32.mxu0 0.0
      %2811 = vmatmul.mubr.f32.gmra.mrb[0].mxu0 %v2739
      %v2812 = vpop.f32.mrb[0].mxu0
      %v2813 = vadd.f32 0.0, %v2812
      %v2814 = vpop.f32.mrb[0].mxu0
      %2815 = vdwg.mxu0
      %v2816 = vadd.f32 %v2729, %v2808
      %v2817 = vadd.f32 %v2730, %v2813
      %v2818 = vrot.slane %v2390, 2
      %v2819 = vrot.slane %v2391, 2
      %v2820 = vsel %vm978, %v2818, %v2819
      %v2821 = vrot.slane %v2392, 2
      %v2822 = vsel %vm978, %v2819, %v2821
      %v2823 = vsel %vm544, %v2820, 0
      %v2825 = vsel %vm544, %v2822, 0
      %2827 = vmatprep.subr.mxu0 0.0
      %2828 = vmatpush1.msra.mxu0 %v1254
      %2829 = vmatprep.subr.mxu0 0.0
      %2830 = vmatpush1.msra.mxu0 0.0
      %2831 = vmatprep.subr.mxu0 0.0
      %2832 = vmatpush1.msra.mxu0 0.0
      %2833 = vmatprep.subr.mxu0 0.0
      %2834 = vmatpush1.msra.mxu0 0.0
      %2835 = vmatprep.subr.mxu0 0.0
      %2836 = vmatpush1.msra.mxu0 0.0
      %2837 = vmatprep.subr.mxu0 0.0
      %2838 = vmatpush1.msra.mxu0 0.0
      %2839 = vmatprep.subr.mxu0 0.0
      %2840 = vmatpush1.msra.mxu0 0.0
      %2841 = vmatprep.subr.mxu0 0.0
      %2842 = vmatpush1.msra.mxu0 0.0
      %2843 = vmatprep.subr.mxu0 0.0
      %2844 = vmatpush1.msra.mxu0 0.0
      %2845 = vmatprep.subr.mxu0 0.0
      %2846 = vmatpush1.msra.mxu0 0.0
      %2847 = vmatprep.subr.mxu0 0.0
      %2848 = vmatpush1.msra.mxu0 0.0
      %2849 = vmatprep.subr.mxu0 0.0
      %2850 = vmatpush1.msra.mxu0 0.0
      %2851 = vmatprep.subr.mxu0 0.0
      %2852 = vmatpush1.msra.mxu0 0.0
      %2853 = vmatprep.subr.mxu0 0.0
      %2854 = vmatpush1.msra.mxu0 0.0
      %2855 = vmatprep.subr.mxu0 0.0
      %2856 = vmatpush1.msra.mxu0 0.0
      %2857 = vmatprep.subr.mxu0 0.0
      %2858 = vmatpush1.msra.mxu0 0.0
      %2859 = vmatprep.subr.mxu0 0.0
      %2860 = vmatpush1.msra.mxu0 0.0
      %2861 = vmatprep.subr.mxu0 0.0
      %2862 = vmatpush1.msra.mxu0 0.0
      %2863 = vmatprep.subr.mxu0 0.0
      %2864 = vmatpush1.msra.mxu0 0.0
      %2865 = vmatprep.subr.mxu0 0.0
      %2866 = vmatpush1.msra.mxu0 0.0
      %2867 = vmatprep.subr.mxu0 0.0
      %2868 = vmatpush1.msra.mxu0 0.0
      %2869 = vmatprep.subr.mxu0 0.0
      %2870 = vmatpush1.msra.mxu0 0.0
      %2871 = vmatprep.subr.mxu0 0.0
      %2872 = vmatpush1.msra.mxu0 0.0
      %2873 = vmatprep.subr.mxu0 0.0
      %2874 = vmatpush1.msra.mxu0 0.0
      %2875 = vmatprep.subr.mxu0 0.0
      %2876 = vmatpush1.msra.mxu0 0.0
      %2877 = vmatprep.subr.mxu0 0.0
      %2878 = vmatpush1.msra.mxu0 0.0
      %2879 = vmatprep.subr.mxu0 0.0
      %2880 = vmatpush1.msra.mxu0 0.0
      %2881 = vmatprep.subr.mxu0 0.0
      %2882 = vmatpush1.msra.mxu0 0.0
      %2883 = vmatprep.subr.mxu0 0.0
      %2884 = vmatpush1.msra.mxu0 0.0
      %2885 = vmatprep.subr.mxu0 0.0
      %2886 = vmatpush1.msra.mxu0 0.0
      %2887 = vmatprep.subr.mxu0 0.0
      %2888 = vmatpush1.msra.mxu0 0.0
      %2889 = vmatprep.subr.mxu0 0.0
      %2890 = vmatpush1.msra.mxu0 0.0
      %2891 = vmatprep.mubr.f32.mxu0 0.0
      %2892 = vmatmul.mubr.f32.gmra.mrb[0].mxu0 %v2823
      %v2893 = vpop.f32.mrb[0].mxu0
      %v2894 = vadd.f32 0.0, %v2893
      %v2895 = vpop.f32.mrb[0].mxu0
      %2896 = vmatprep.mubr.f32.mxu0 0.0
      %2897 = vmatmul.mubr.f32.gmra.mrb[0].mxu0 %v2825
      %v2898 = vpop.f32.mrb[0].mxu0
      %v2899 = vadd.f32 0.0, %v2898
      %v2900 = vpop.f32.mrb[0].mxu0
      %2901 = vdwg.mxu0
      %v2902 = vadd.f32 %v2816, %v2894
      %v2903 = vadd.f32 %v2817, %v2899
      %v2905 = vsel %vm544, %v2393, 0
      %v2908 = vsel %vm544, %v2394, 0
      %2910 = vmatprep.subr.mxu0 0.0
      %2911 = vmatpush1.msra.mxu0 %v1340
      %2912 = vmatprep.subr.mxu0 0.0
      %2913 = vmatpush1.msra.mxu0 0.0
      %2914 = vmatprep.subr.mxu0 0.0
      %2915 = vmatpush1.msra.mxu0 0.0
      %2916 = vmatprep.subr.mxu0 0.0
      %2917 = vmatpush1.msra.mxu0 0.0
      %2918 = vmatprep.subr.mxu0 0.0
      %2919 = vmatpush1.msra.mxu0 0.0
      %2920 = vmatprep.subr.mxu0 0.0
      %2921 = vmatpush1.msra.mxu0 0.0
      %2922 = vmatprep.subr.mxu0 0.0
      %2923 = vmatpush1.msra.mxu0 0.0
      %2924 = vmatprep.subr.mxu0 0.0
      %2925 = vmatpush1.msra.mxu0 0.0
      %2926 = vmatprep.subr.mxu0 0.0
      %2927 = vmatpush1.msra.mxu0 0.0
      %2928 = vmatprep.subr.mxu0 0.0
      %2929 = vmatpush1.msra.mxu0 0.0
      %2930 = vmatprep.subr.mxu0 0.0
      %2931 = vmatpush1.msra.mxu0 0.0
      %2932 = vmatprep.subr.mxu0 0.0
      %2933 = vmatpush1.msra.mxu0 0.0
      %2934 = vmatprep.subr.mxu0 0.0
      %2935 = vmatpush1.msra.mxu0 0.0
      %2936 = vmatprep.subr.mxu0 0.0
      %2937 = vmatpush1.msra.mxu0 0.0
      %2938 = vmatprep.subr.mxu0 0.0
      %2939 = vmatpush1.msra.mxu0 0.0
      %2940 = vmatprep.subr.mxu0 0.0
      %2941 = vmatpush1.msra.mxu0 0.0
      %2942 = vmatprep.subr.mxu0 0.0
      %2943 = vmatpush1.msra.mxu0 0.0
      %2944 = vmatprep.subr.mxu0 0.0
      %2945 = vmatpush1.msra.mxu0 0.0
      %2946 = vmatprep.subr.mxu0 0.0
      %2947 = vmatpush1.msra.mxu0 0.0
      %2948 = vmatprep.subr.mxu0 0.0
      %2949 = vmatpush1.msra.mxu0 0.0
      %2950 = vmatprep.subr.mxu0 0.0
      %2951 = vmatpush1.msra.mxu0 0.0
      %2952 = vmatprep.subr.mxu0 0.0
      %2953 = vmatpush1.msra.mxu0 0.0
      %2954 = vmatprep.subr.mxu0 0.0
      %2955 = vmatpush1.msra.mxu0 0.0
      %2956 = vmatprep.subr.mxu0 0.0
      %2957 = vmatpush1.msra.mxu0 0.0
      %2958 = vmatprep.subr.mxu0 0.0
      %2959 = vmatpush1.msra.mxu0 0.0
      %2960 = vmatprep.subr.mxu0 0.0
      %2961 = vmatpush1.msra.mxu0 0.0
      %2962 = vmatprep.subr.mxu0 0.0
      %2963 = vmatpush1.msra.mxu0 0.0
      %2964 = vmatprep.subr.mxu0 0.0
      %2965 = vmatpush1.msra.mxu0 0.0
      %2966 = vmatprep.subr.mxu0 0.0
      %2967 = vmatpush1.msra.mxu0 0.0
      %2968 = vmatprep.subr.mxu0 0.0
      %2969 = vmatpush1.msra.mxu0 0.0
      %2970 = vmatprep.subr.mxu0 0.0
      %2971 = vmatpush1.msra.mxu0 0.0
      %2972 = vmatprep.subr.mxu0 0.0
      %2973 = vmatpush1.msra.mxu0 0.0
      %2974 = vmatprep.mubr.f32.mxu0 0.0
      %2975 = vmatmul.mubr.f32.gmra.mrb[0].mxu0 %v2905
      %v2976 = vpop.f32.mrb[0].mxu0
      %v2977 = vadd.f32 0.0, %v2976
      %v2978 = vpop.f32.mrb[0].mxu0
      %2979 = vmatprep.mubr.f32.mxu0 0.0
      %2980 = vmatmul.mubr.f32.gmra.mrb[0].mxu0 %v2908
      %v2981 = vpop.f32.mrb[0].mxu0
      %v2982 = vadd.f32 0.0, %v2981
      %v2983 = vpop.f32.mrb[0].mxu0
      %2984 = vdwg.mxu0
      %v2985 = vadd.f32 %v2902, %v2977
      %v2986 = vadd.f32 %v2903, %v2982
      %v2988 = vrot.slane %v2393, 1
      %v2989 = vrot.slane %v2394, 1
      %v2990 = vsel %vm807, %v2988, %v2989
      %v2991 = vrot.slane %v2395, 1
      %v2992 = vsel %vm807, %v2989, %v2991
      %v2993 = vsel %vm544, %v2990, 0
      %v2995 = vsel %vm544, %v2992, 0
      %2997 = vmatprep.subr.mxu0 0.0
      %2998 = vmatpush1.msra.mxu0 %v1430
      %2999 = vmatprep.subr.mxu0 0.0
      %3000 = vmatpush1.msra.mxu0 0.0
      %3001 = vmatprep.subr.mxu0 0.0
      %3002 = vmatpush1.msra.mxu0 0.0
      %3003 = vmatprep.subr.mxu0 0.0
      %3004 = vmatpush1.msra.mxu0 0.0
      %3005 = vmatprep.subr.mxu0 0.0
      %3006 = vmatpush1.msra.mxu0 0.0
      %3007 = vmatprep.subr.mxu0 0.0
      %3008 = vmatpush1.msra.mxu0 0.0
      %3009 = vmatprep.subr.mxu0 0.0
      %3010 = vmatpush1.msra.mxu0 0.0
      %3011 = vmatprep.subr.mxu0 0.0
      %3012 = vmatpush1.msra.mxu0 0.0
      %3013 = vmatprep.subr.mxu0 0.0
      %3014 = vmatpush1.msra.mxu0 0.0
      %3015 = vmatprep.subr.mxu0 0.0
      %3016 = vmatpush1.msra.mxu0 0.0
      %3017 = vmatprep.subr.mxu0 0.0
      %3018 = vmatpush1.msra.mxu0 0.0
      %3019 = vmatprep.subr.mxu0 0.0
      %3020 = vmatpush1.msra.mxu0 0.0
      %3021 = vmatprep.subr.mxu0 0.0
      %3022 = vmatpush1.msra.mxu0 0.0
      %3023 = vmatprep.subr.mxu0 0.0
      %3024 = vmatpush1.msra.mxu0 0.0
      %3025 = vmatprep.subr.mxu0 0.0
      %3026 = vmatpush1.msra.mxu0 0.0
      %3027 = vmatprep.subr.mxu0 0.0
      %3028 = vmatpush1.msra.mxu0 0.0
      %3029 = vmatprep.subr.mxu0 0.0
      %3030 = vmatpush1.msra.mxu0 0.0
      %3031 = vmatprep.subr.mxu0 0.0
      %3032 = vmatpush1.msra.mxu0 0.0
      %3033 = vmatprep.subr.mxu0 0.0
      %3034 = vmatpush1.msra.mxu0 0.0
      %3035 = vmatprep.subr.mxu0 0.0
      %3036 = vmatpush1.msra.mxu0 0.0
      %3037 = vmatprep.subr.mxu0 0.0
      %3038 = vmatpush1.msra.mxu0 0.0
      %3039 = vmatprep.subr.mxu0 0.0
      %3040 = vmatpush1.msra.mxu0 0.0
      %3041 = vmatprep.subr.mxu0 0.0
      %3042 = vmatpush1.msra.mxu0 0.0
      %3043 = vmatprep.subr.mxu0 0.0
      %3044 = vmatpush1.msra.mxu0 0.0
      %3045 = vmatprep.subr.mxu0 0.0
      %3046 = vmatpush1.msra.mxu0 0.0
      %3047 = vmatprep.subr.mxu0 0.0
      %3048 = vmatpush1.msra.mxu0 0.0
      %3049 = vmatprep.subr.mxu0 0.0
      %3050 = vmatpush1.msra.mxu0 0.0
      %3051 = vmatprep.subr.mxu0 0.0
      %3052 = vmatpush1.msra.mxu0 0.0
      %3053 = vmatprep.subr.mxu0 0.0
      %3054 = vmatpush1.msra.mxu0 0.0
      %3055 = vmatprep.subr.mxu0 0.0
      %3056 = vmatpush1.msra.mxu0 0.0
      %3057 = vmatprep.subr.mxu0 0.0
      %3058 = vmatpush1.msra.mxu0 0.0
      %3059 = vmatprep.subr.mxu0 0.0
      %3060 = vmatpush1.msra.mxu0 0.0
      %3061 = vmatprep.mubr.f32.mxu0 0.0
      %3062 = vmatmul.mubr.f32.gmra.mrb[0].mxu0 %v2993
      %v3063 = vpop.f32.mrb[0].mxu0
      %v3064 = vadd.f32 0.0, %v3063
      %v3065 = vpop.f32.mrb[0].mxu0
      %3066 = vmatprep.mubr.f32.mxu0 0.0
      %3067 = vmatmul.mubr.f32.gmra.mrb[0].mxu0 %v2995
      %v3068 = vpop.f32.mrb[0].mxu0
      %v3069 = vadd.f32 0.0, %v3068
      %v3070 = vpop.f32.mrb[0].mxu0
      %3071 = vdwg.mxu0
      %v3072 = vadd.f32 %v2985, %v3064
      %v3073 = vadd.f32 %v2986, %v3069
      %v3074 = vrot.slane %v2393, 2
      %v3075 = vrot.slane %v2394, 2
      %v3076 = vsel %vm978, %v3074, %v3075
      %v3077 = vrot.slane %v2395, 2
      %v3078 = vsel %vm978, %v3075, %v3077
      %v3079 = vsel %vm544, %v3076, 0
      %v3081 = vsel %vm544, %v3078, 0
      %3083 = vmatprep.subr.mxu0 0.0
      %3084 = vmatpush1.msra.mxu0 %v1519
      %3085 = vmatprep.subr.mxu0 0.0
      %3086 = vmatpush1.msra.mxu0 0.0
      %3087 = vmatprep.subr.mxu0 0.0
      %3088 = vmatpush1.msra.mxu0 0.0
      %3089 = vmatprep.subr.mxu0 0.0
      %3090 = vmatpush1.msra.mxu0 0.0
      %3091 = vmatprep.subr.mxu0 0.0
      %3092 = vmatpush1.msra.mxu0 0.0
      %3093 = vmatprep.subr.mxu0 0.0
      %3094 = vmatpush1.msra.mxu0 0.0
      %3095 = vmatprep.subr.mxu0 0.0
      %3096 = vmatpush1.msra.mxu0 0.0
      %3097 = vmatprep.subr.mxu0 0.0
      %3098 = vmatpush1.msra.mxu0 0.0
      %3099 = vmatprep.subr.mxu0 0.0
      %3100 = vmatpush1.msra.mxu0 0.0
      %3101 = vmatprep.subr.mxu0 0.0
      %3102 = vmatpush1.msra.mxu0 0.0
      %3103 = vmatprep.subr.mxu0 0.0
      %3104 = vmatpush1.msra.mxu0 0.0
      %3105 = vmatprep.subr.mxu0 0.0
      %3106 = vmatpush1.msra.mxu0 0.0
      %3107 = vmatprep.subr.mxu0 0.0
      %3108 = vmatpush1.msra.mxu0 0.0
      %3109 = vmatprep.subr.mxu0 0.0
      %3110 = vmatpush1.msra.mxu0 0.0
      %3111 = vmatprep.subr.mxu0 0.0
      %3112 = vmatpush1.msra.mxu0 0.0
      %3113 = vmatprep.subr.mxu0 0.0
      %3114 = vmatpush1.msra.mxu0 0.0
      %3115 = vmatprep.subr.mxu0 0.0
      %3116 = vmatpush1.msra.mxu0 0.0
      %3117 = vmatprep.subr.mxu0 0.0
      %3118 = vmatpush1.msra.mxu0 0.0
      %3119 = vmatprep.subr.mxu0 0.0
      %3120 = vmatpush1.msra.mxu0 0.0
      %3121 = vmatprep.subr.mxu0 0.0
      %3122 = vmatpush1.msra.mxu0 0.0
      %3123 = vmatprep.subr.mxu0 0.0
      %3124 = vmatpush1.msra.mxu0 0.0
      %3125 = vmatprep.subr.mxu0 0.0
      %3126 = vmatpush1.msra.mxu0 0.0
      %3127 = vmatprep.subr.mxu0 0.0
      %3128 = vmatpush1.msra.mxu0 0.0
      %3129 = vmatprep.subr.mxu0 0.0
      %3130 = vmatpush1.msra.mxu0 0.0
      %3131 = vmatprep.subr.mxu0 0.0
      %3132 = vmatpush1.msra.mxu0 0.0
      %3133 = vmatprep.subr.mxu0 0.0
      %3134 = vmatpush1.msra.mxu0 0.0
      %3135 = vmatprep.subr.mxu0 0.0
      %3136 = vmatpush1.msra.mxu0 0.0
      %3137 = vmatprep.subr.mxu0 0.0
      %3138 = vmatpush1.msra.mxu0 0.0
      %3139 = vmatprep.subr.mxu0 0.0
      %3140 = vmatpush1.msra.mxu0 0.0
      %3141 = vmatprep.subr.mxu0 0.0
      %3142 = vmatpush1.msra.mxu0 0.0
      %3143 = vmatprep.subr.mxu0 0.0
      %3144 = vmatpush1.msra.mxu0 0.0
      %3145 = vmatprep.subr.mxu0 0.0
      %3146 = vmatpush1.msra.mxu0 0.0
      %3147 = vmatprep.mubr.f32.mxu0 0.0
      %3148 = vmatmul.mubr.f32.gmra.mrb[0].mxu0 %v3079
      %v3149 = vpop.f32.mrb[0].mxu0
      %v3150 = vadd.f32 0.0, %v3149
      %v3151 = vpop.f32.mrb[0].mxu0
      %3152 = vmatprep.mubr.f32.mxu0 0.0
      %3153 = vmatmul.mubr.f32.gmra.mrb[0].mxu0 %v3081
      %v3154 = vpop.f32.mrb[0].mxu0
      %v3155 = vadd.f32 0.0, %v3154
      %v3156 = vpop.f32.mrb[0].mxu0
      %3157 = vdwg.mxu0
      %v3158 = vadd.f32 %v3072, %v3150
      %v3159 = vadd.f32 %v3073, %v3155
      %v3160 = vadd.f32 %v3158, %v1602
      %v3161 = vadd.f32 %v3159, %v1602
      %s3162 = scalar_lea.vmem %s524, 32
      %3163 = vst.msk [vmem:[%s3162] sm:$0xff] %vm544, %v3160
      %3164 = vst.msk [vmem:[%s3162 + $0x8] sm:$0xff] %vm544, %v3161
      %s3165 = scalar_lea.vmem [#allocation2], 72
      %v3166 = vld [vmem:[%s3165] sm:$0xff]
      %v3167 = vld [vmem:[%s3165 + $0x8] sm:$0xff]
      %v3168 = vld [vmem:[%s3165 + $0x10] sm:$0x3]
      %v3169 = vld [vmem:[%s3165 + $0x18] sm:$0xff]
      %v3170 = vld [vmem:[%s3165 + $0x20] sm:$0xff]
      %v3171 = vld [vmem:[%s3165 + $0x28] sm:$0x3]
      %v3172 = vld [vmem:[%s3165 + $0x30] sm:$0xff]
      %v3173 = vld [vmem:[%s3165 + $0x38] sm:$0xff]
      %v3174 = vld [vmem:[%s3165 + $0x40] sm:$0x3]
      %v3178 = vrot.slane %v3166, 1
      %v3179 = vrot.slane %v3167, 1
      %v3180 = vsel %vm807, %v3178, %v3179
      %v3181 = vrot.slane %v3168, 1
      %v3182 = vsel %vm807, %v3179, %v3181
      %v3183 = vsel %vm544, %v3180, 0
      %v3185 = vsel %vm544, %v3182, 0
      %3187 = vmatprep.subr.mxu0 0.0
      %3188 = vmatpush1.msra.mxu0 %v819
      %3189 = vmatprep.subr.mxu0 0.0
      %3190 = vmatpush1.msra.mxu0 0.0
      %3191 = vmatprep.subr.mxu0 0.0
      %3192 = vmatpush1.msra.mxu0 0.0
      %3193 = vmatprep.subr.mxu0 0.0
      %3194 = vmatpush1.msra.mxu0 0.0
      %3195 = vmatprep.subr.mxu0 0.0
      %3196 = vmatpush1.msra.mxu0 0.0
      %3197 = vmatprep.subr.mxu0 0.0
      %3198 = vmatpush1.msra.mxu0 0.0
      %3199 = vmatprep.subr.mxu0 0.0
      %3200 = vmatpush1.msra.mxu0 0.0
      %3201 = vmatprep.subr.mxu0 0.0
      %3202 = vmatpush1.msra.mxu0 0.0
      %3203 = vmatprep.subr.mxu0 0.0
      %3204 = vmatpush1.msra.mxu0 0.0
      %3205 = vmatprep.subr.mxu0 0.0
      %3206 = vmatpush1.msra.mxu0 0.0
      %3207 = vmatprep.subr.mxu0 0.0
      %3208 = vmatpush1.msra.mxu0 0.0
      %3209 = vmatprep.subr.mxu0 0.0
      %3210 = vmatpush1.msra.mxu0 0.0
      %3211 = vmatprep.subr.mxu0 0.0
      %3212 = vmatpush1.msra.mxu0 0.0
      %3213 = vmatprep.subr.mxu0 0.0
      %3214 = vmatpush1.msra.mxu0 0.0
      %3215 = vmatprep.subr.mxu0 0.0
      %3216 = vmatpush1.msra.mxu0 0.0
      %3217 = vmatprep.subr.mxu0 0.0
      %3218 = vmatpush1.msra.mxu0 0.0
      %3219 = vmatprep.subr.mxu0 0.0
      %3220 = vmatpush1.msra.mxu0 0.0
      %3221 = vmatprep.subr.mxu0 0.0
      %3222 = vmatpush1.msra.mxu0 0.0
      %3223 = vmatprep.subr.mxu0 0.0
      %3224 = vmatpush1.msra.mxu0 0.0
      %3225 = vmatprep.subr.mxu0 0.0
      %3226 = vmatpush1.msra.mxu0 0.0
      %3227 = vmatprep.subr.mxu0 0.0
      %3228 = vmatpush1.msra.mxu0 0.0
      %3229 = vmatprep.subr.mxu0 0.0
      %3230 = vmatpush1.msra.mxu0 0.0
      %3231 = vmatprep.subr.mxu0 0.0
      %3232 = vmatpush1.msra.mxu0 0.0
      %3233 = vmatprep.subr.mxu0 0.0
      %3234 = vmatpush1.msra.mxu0 0.0
      %3235 = vmatprep.subr.mxu0 0.0
      %3236 = vmatpush1.msra.mxu0 0.0
      %3237 = vmatprep.subr.mxu0 0.0
      %3238 = vmatpush1.msra.mxu0 0.0
      %3239 = vmatprep.subr.mxu0 0.0
      %3240 = vmatpush1.msra.mxu0 0.0
      %3241 = vmatprep.subr.mxu0 0.0
      %3242 = vmatpush1.msra.mxu0 0.0
      %3243 = vmatprep.subr.mxu0 0.0
      %3244 = vmatpush1.msra.mxu0 0.0
      %3245 = vmatprep.subr.mxu0 0.0
      %3246 = vmatpush1.msra.mxu0 0.0
      %3247 = vmatprep.subr.mxu0 0.0
      %3248 = vmatpush1.msra.mxu0 0.0
      %3249 = vmatprep.subr.mxu0 0.0
      %3250 = vmatpush1.msra.mxu0 0.0
      %3251 = vmatprep.mubr.f32.mxu0 0.0
      %3252 = vmatmul.mubr.f32.gmra.mrb[0].mxu0 %v3183
      %v3253 = vpop.f32.mrb[0].mxu0
      %v3254 = vadd.f32 0.0, %v3253
      %v3255 = vpop.f32.mrb[0].mxu0
      %3256 = vmatprep.mubr.f32.mxu0 0.0
      %3257 = vmatmul.mubr.f32.gmra.mrb[0].mxu0 %v3185
      %v3258 = vpop.f32.mrb[0].mxu0
      %v3259 = vadd.f32 0.0, %v3258
      %v3260 = vpop.f32.mrb[0].mxu0
      %3261 = vdwg.mxu0
      %v3262 = vsel %vm544, %v3166, 0
      %v3264 = vsel %vm544, %v3167, 0
      %3266 = vmatprep.subr.mxu0 0.0
      %3267 = vmatpush1.msra.mxu0 %v901
      %3268 = vmatprep.subr.mxu0 0.0
      %3269 = vmatpush1.msra.mxu0 0.0
      %3270 = vmatprep.subr.mxu0 0.0
      %3271 = vmatpush1.msra.mxu0 0.0
      %3272 = vmatprep.subr.mxu0 0.0
      %3273 = vmatpush1.msra.mxu0 0.0
      %3274 = vmatprep.subr.mxu0 0.0
      %3275 = vmatpush1.msra.mxu0 0.0
      %3276 = vmatprep.subr.mxu0 0.0
      %3277 = vmatpush1.msra.mxu0 0.0
      %3278 = vmatprep.subr.mxu0 0.0
      %3279 = vmatpush1.msra.mxu0 0.0
      %3280 = vmatprep.subr.mxu0 0.0
      %3281 = vmatpush1.msra.mxu0 0.0
      %3282 = vmatprep.subr.mxu0 0.0
      %3283 = vmatpush1.msra.mxu0 0.0
      %3284 = vmatprep.subr.mxu0 0.0
      %3285 = vmatpush1.msra.mxu0 0.0
      %3286 = vmatprep.subr.mxu0 0.0
      %3287 = vmatpush1.msra.mxu0 0.0
      %3288 = vmatprep.subr.mxu0 0.0
      %3289 = vmatpush1.msra.mxu0 0.0
      %3290 = vmatprep.subr.mxu0 0.0
      %3291 = vmatpush1.msra.mxu0 0.0
      %3292 = vmatprep.subr.mxu0 0.0
      %3293 = vmatpush1.msra.mxu0 0.0
      %3294 = vmatprep.subr.mxu0 0.0
      %3295 = vmatpush1.msra.mxu0 0.0
      %3296 = vmatprep.subr.mxu0 0.0
      %3297 = vmatpush1.msra.mxu0 0.0
      %3298 = vmatprep.subr.mxu0 0.0
      %3299 = vmatpush1.msra.mxu0 0.0
      %3300 = vmatprep.subr.mxu0 0.0
      %3301 = vmatpush1.msra.mxu0 0.0
      %3302 = vmatprep.subr.mxu0 0.0
      %3303 = vmatpush1.msra.mxu0 0.0
      %3304 = vmatprep.subr.mxu0 0.0
      %3305 = vmatpush1.msra.mxu0 0.0
      %3306 = vmatprep.subr.mxu0 0.0
      %3307 = vmatpush1.msra.mxu0 0.0
      %3308 = vmatprep.subr.mxu0 0.0
      %3309 = vmatpush1.msra.mxu0 0.0
      %3310 = vmatprep.subr.mxu0 0.0
      %3311 = vmatpush1.msra.mxu0 0.0
      %3312 = vmatprep.subr.mxu0 0.0
      %3313 = vmatpush1.msra.mxu0 0.0
      %3314 = vmatprep.subr.mxu0 0.0
      %3315 = vmatpush1.msra.mxu0 0.0
      %3316 = vmatprep.subr.mxu0 0.0
      %3317 = vmatpush1.msra.mxu0 0.0
      %3318 = vmatprep.subr.mxu0 0.0
      %3319 = vmatpush1.msra.mxu0 0.0
      %3320 = vmatprep.subr.mxu0 0.0
      %3321 = vmatpush1.msra.mxu0 0.0
      %3322 = vmatprep.subr.mxu0 0.0
      %3323 = vmatpush1.msra.mxu0 0.0
      %3324 = vmatprep.subr.mxu0 0.0
      %3325 = vmatpush1.msra.mxu0 0.0
      %3326 = vmatprep.subr.mxu0 0.0
      %3327 = vmatpush1.msra.mxu0 0.0
      %3328 = vmatprep.subr.mxu0 0.0
      %3329 = vmatpush1.msra.mxu0 0.0
      %3330 = vmatprep.mubr.f32.mxu0 0.0
      %3331 = vmatmul.mubr.f32.gmra.mrb[0].mxu0 %v3262
      %v3332 = vpop.f32.mrb[0].mxu0
      %v3333 = vadd.f32 %v3254, %v3332
      %v3334 = vpop.f32.mrb[0].mxu0
      %3335 = vmatprep.mubr.f32.mxu0 0.0
      %3336 = vmatmul.mubr.f32.gmra.mrb[0].mxu0 %v3264
      %v3337 = vpop.f32.mrb[0].mxu0
      %v3338 = vadd.f32 %v3259, %v3337
      %v3339 = vpop.f32.mrb[0].mxu0
      %3340 = vdwg.mxu0
      %v3341 = vrot.slane %v3166, 2
      %v3342 = vrot.slane %v3167, 2
      %v3343 = vsel %vm978, %v3341, %v3342
      %v3344 = vrot.slane %v3168, 2
      %v3345 = vsel %vm978, %v3342, %v3344
      %v3346 = vsel %vm544, %v3343, 0
      %v3348 = vsel %vm544, %v3345, 0
      %3350 = vmatprep.subr.mxu0 0.0
      %3351 = vmatpush1.msra.mxu0 %v989
      %3352 = vmatprep.subr.mxu0 0.0
      %3353 = vmatpush1.msra.mxu0 0.0
      %3354 = vmatprep.subr.mxu0 0.0
      %3355 = vmatpush1.msra.mxu0 0.0
      %3356 = vmatprep.subr.mxu0 0.0
      %3357 = vmatpush1.msra.mxu0 0.0
      %3358 = vmatprep.subr.mxu0 0.0
      %3359 = vmatpush1.msra.mxu0 0.0
      %3360 = vmatprep.subr.mxu0 0.0
      %3361 = vmatpush1.msra.mxu0 0.0
      %3362 = vmatprep.subr.mxu0 0.0
      %3363 = vmatpush1.msra.mxu0 0.0
      %3364 = vmatprep.subr.mxu0 0.0
      %3365 = vmatpush1.msra.mxu0 0.0
      %3366 = vmatprep.subr.mxu0 0.0
      %3367 = vmatpush1.msra.mxu0 0.0
      %3368 = vmatprep.subr.mxu0 0.0
      %3369 = vmatpush1.msra.mxu0 0.0
      %3370 = vmatprep.subr.mxu0 0.0
      %3371 = vmatpush1.msra.mxu0 0.0
      %3372 = vmatprep.subr.mxu0 0.0
      %3373 = vmatpush1.msra.mxu0 0.0
      %3374 = vmatprep.subr.mxu0 0.0
      %3375 = vmatpush1.msra.mxu0 0.0
      %3376 = vmatprep.subr.mxu0 0.0
      %3377 = vmatpush1.msra.mxu0 0.0
      %3378 = vmatprep.subr.mxu0 0.0
      %3379 = vmatpush1.msra.mxu0 0.0
      %3380 = vmatprep.subr.mxu0 0.0
      %3381 = vmatpush1.msra.mxu0 0.0
      %3382 = vmatprep.subr.mxu0 0.0
      %3383 = vmatpush1.msra.mxu0 0.0
      %3384 = vmatprep.subr.mxu0 0.0
      %3385 = vmatpush1.msra.mxu0 0.0
      %3386 = vmatprep.subr.mxu0 0.0
      %3387 = vmatpush1.msra.mxu0 0.0
      %3388 = vmatprep.subr.mxu0 0.0
      %3389 = vmatpush1.msra.mxu0 0.0
      %3390 = vmatprep.subr.mxu0 0.0
      %3391 = vmatpush1.msra.mxu0 0.0
      %3392 = vmatprep.subr.mxu0 0.0
      %3393 = vmatpush1.msra.mxu0 0.0
      %3394 = vmatprep.subr.mxu0 0.0
      %3395 = vmatpush1.msra.mxu0 0.0
      %3396 = vmatprep.subr.mxu0 0.0
      %3397 = vmatpush1.msra.mxu0 0.0
      %3398 = vmatprep.subr.mxu0 0.0
      %3399 = vmatpush1.msra.mxu0 0.0
      %3400 = vmatprep.subr.mxu0 0.0
      %3401 = vmatpush1.msra.mxu0 0.0
      %3402 = vmatprep.subr.mxu0 0.0
      %3403 = vmatpush1.msra.mxu0 0.0
      %3404 = vmatprep.subr.mxu0 0.0
      %3405 = vmatpush1.msra.mxu0 0.0
      %3406 = vmatprep.subr.mxu0 0.0
      %3407 = vmatpush1.msra.mxu0 0.0
      %3408 = vmatprep.subr.mxu0 0.0
      %3409 = vmatpush1.msra.mxu0 0.0
      %3410 = vmatprep.subr.mxu0 0.0
      %3411 = vmatpush1.msra.mxu0 0.0
      %3412 = vmatprep.subr.mxu0 0.0
      %3413 = vmatpush1.msra.mxu0 0.0
      %3414 = vmatprep.mubr.f32.mxu0 0.0
      %3415 = vmatmul.mubr.f32.gmra.mrb[0].mxu0 %v3346
      %v3416 = vpop.f32.mrb[0].mxu0
      %v3417 = vadd.f32 0.0, %v3416
      %v3418 = vpop.f32.mrb[0].mxu0
      %3419 = vmatprep.mubr.f32.mxu0 0.0
      %3420 = vmatmul.mubr.f32.gmra.mrb[0].mxu0 %v3348
      %v3421 = vpop.f32.mrb[0].mxu0
      %v3422 = vadd.f32 0.0, %v3421
      %v3423 = vpop.f32.mrb[0].mxu0
      %3424 = vdwg.mxu0
      %v3425 = vadd.f32 %v3333, %v3417
      %v3426 = vadd.f32 %v3338, %v3422
      %v3428 = vsel %vm544, %v3169, 0
      %v3431 = vsel %vm544, %v3170, 0
      %3433 = vmatprep.subr.mxu0 0.0
      %3434 = vmatpush1.msra.mxu0 %v1075
      %3435 = vmatprep.subr.mxu0 0.0
      %3436 = vmatpush1.msra.mxu0 0.0
      %3437 = vmatprep.subr.mxu0 0.0
      %3438 = vmatpush1.msra.mxu0 0.0
      %3439 = vmatprep.subr.mxu0 0.0
      %3440 = vmatpush1.msra.mxu0 0.0
      %3441 = vmatprep.subr.mxu0 0.0
      %3442 = vmatpush1.msra.mxu0 0.0
      %3443 = vmatprep.subr.mxu0 0.0
      %3444 = vmatpush1.msra.mxu0 0.0
      %3445 = vmatprep.subr.mxu0 0.0
      %3446 = vmatpush1.msra.mxu0 0.0
      %3447 = vmatprep.subr.mxu0 0.0
      %3448 = vmatpush1.msra.mxu0 0.0
      %3449 = vmatprep.subr.mxu0 0.0
      %3450 = vmatpush1.msra.mxu0 0.0
      %3451 = vmatprep.subr.mxu0 0.0
      %3452 = vmatpush1.msra.mxu0 0.0
      %3453 = vmatprep.subr.mxu0 0.0
      %3454 = vmatpush1.msra.mxu0 0.0
      %3455 = vmatprep.subr.mxu0 0.0
      %3456 = vmatpush1.msra.mxu0 0.0
      %3457 = vmatprep.subr.mxu0 0.0
      %3458 = vmatpush1.msra.mxu0 0.0
      %3459 = vmatprep.subr.mxu0 0.0
      %3460 = vmatpush1.msra.mxu0 0.0
      %3461 = vmatprep.subr.mxu0 0.0
      %3462 = vmatpush1.msra.mxu0 0.0
      %3463 = vmatprep.subr.mxu0 0.0
      %3464 = vmatpush1.msra.mxu0 0.0
      %3465 = vmatprep.subr.mxu0 0.0
      %3466 = vmatpush1.msra.mxu0 0.0
      %3467 = vmatprep.subr.mxu0 0.0
      %3468 = vmatpush1.msra.mxu0 0.0
      %3469 = vmatprep.subr.mxu0 0.0
      %3470 = vmatpush1.msra.mxu0 0.0
      %3471 = vmatprep.subr.mxu0 0.0
      %3472 = vmatpush1.msra.mxu0 0.0
      %3473 = vmatprep.subr.mxu0 0.0
      %3474 = vmatpush1.msra.mxu0 0.0
      %3475 = vmatprep.subr.mxu0 0.0
      %3476 = vmatpush1.msra.mxu0 0.0
      %3477 = vmatprep.subr.mxu0 0.0
      %3478 = vmatpush1.msra.mxu0 0.0
      %3479 = vmatprep.subr.mxu0 0.0
      %3480 = vmatpush1.msra.mxu0 0.0
      %3481 = vmatprep.subr.mxu0 0.0
      %3482 = vmatpush1.msra.mxu0 0.0
      %3483 = vmatprep.subr.mxu0 0.0
      %3484 = vmatpush1.msra.mxu0 0.0
      %3485 = vmatprep.subr.mxu0 0.0
      %3486 = vmatpush1.msra.mxu0 0.0
      %3487 = vmatprep.subr.mxu0 0.0
      %3488 = vmatpush1.msra.mxu0 0.0
      %3489 = vmatprep.subr.mxu0 0.0
      %3490 = vmatpush1.msra.mxu0 0.0
      %3491 = vmatprep.subr.mxu0 0.0
      %3492 = vmatpush1.msra.mxu0 0.0
      %3493 = vmatprep.subr.mxu0 0.0
      %3494 = vmatpush1.msra.mxu0 0.0
      %3495 = vmatprep.subr.mxu0 0.0
      %3496 = vmatpush1.msra.mxu0 0.0
      %3497 = vmatprep.mubr.f32.mxu0 0.0
      %3498 = vmatmul.mubr.f32.gmra.mrb[0].mxu0 %v3428
      %v3499 = vpop.f32.mrb[0].mxu0
      %v3500 = vadd.f32 0.0, %v3499
      %v3501 = vpop.f32.mrb[0].mxu0
      %3502 = vmatprep.mubr.f32.mxu0 0.0
      %3503 = vmatmul.mubr.f32.gmra.mrb[0].mxu0 %v3431
      %v3504 = vpop.f32.mrb[0].mxu0
      %v3505 = vadd.f32 0.0, %v3504
      %v3506 = vpop.f32.mrb[0].mxu0
      %3507 = vdwg.mxu0
      %v3508 = vadd.f32 %v3425, %v3500
      %v3509 = vadd.f32 %v3426, %v3505
      %v3511 = vrot.slane %v3169, 1
      %v3512 = vrot.slane %v3170, 1
      %v3513 = vsel %vm807, %v3511, %v3512
      %v3514 = vrot.slane %v3171, 1
      %v3515 = vsel %vm807, %v3512, %v3514
      %v3516 = vsel %vm544, %v3513, 0
      %v3518 = vsel %vm544, %v3515, 0
      %3520 = vmatprep.subr.mxu0 0.0
      %3521 = vmatpush1.msra.mxu0 %v1165
      %3522 = vmatprep.subr.mxu0 0.0
      %3523 = vmatpush1.msra.mxu0 0.0
      %3524 = vmatprep.subr.mxu0 0.0
      %3525 = vmatpush1.msra.mxu0 0.0
      %3526 = vmatprep.subr.mxu0 0.0
      %3527 = vmatpush1.msra.mxu0 0.0
      %3528 = vmatprep.subr.mxu0 0.0
      %3529 = vmatpush1.msra.mxu0 0.0
      %3530 = vmatprep.subr.mxu0 0.0
      %3531 = vmatpush1.msra.mxu0 0.0
      %3532 = vmatprep.subr.mxu0 0.0
      %3533 = vmatpush1.msra.mxu0 0.0
      %3534 = vmatprep.subr.mxu0 0.0
      %3535 = vmatpush1.msra.mxu0 0.0
      %3536 = vmatprep.subr.mxu0 0.0
      %3537 = vmatpush1.msra.mxu0 0.0
      %3538 = vmatprep.subr.mxu0 0.0
      %3539 = vmatpush1.msra.mxu0 0.0
      %3540 = vmatprep.subr.mxu0 0.0
      %3541 = vmatpush1.msra.mxu0 0.0
      %3542 = vmatprep.subr.mxu0 0.0
      %3543 = vmatpush1.msra.mxu0 0.0
      %3544 = vmatprep.subr.mxu0 0.0
      %3545 = vmatpush1.msra.mxu0 0.0
      %3546 = vmatprep.subr.mxu0 0.0
      %3547 = vmatpush1.msra.mxu0 0.0
      %3548 = vmatprep.subr.mxu0 0.0
      %3549 = vmatpush1.msra.mxu0 0.0
      %3550 = vmatprep.subr.mxu0 0.0
      %3551 = vmatpush1.msra.mxu0 0.0
      %3552 = vmatprep.subr.mxu0 0.0
      %3553 = vmatpush1.msra.mxu0 0.0
      %3554 = vmatprep.subr.mxu0 0.0
      %3555 = vmatpush1.msra.mxu0 0.0
      %3556 = vmatprep.subr.mxu0 0.0
      %3557 = vmatpush1.msra.mxu0 0.0
      %3558 = vmatprep.subr.mxu0 0.0
      %3559 = vmatpush1.msra.mxu0 0.0
      %3560 = vmatprep.subr.mxu0 0.0
      %3561 = vmatpush1.msra.mxu0 0.0
      %3562 = vmatprep.subr.mxu0 0.0
      %3563 = vmatpush1.msra.mxu0 0.0
      %3564 = vmatprep.subr.mxu0 0.0
      %3565 = vmatpush1.msra.mxu0 0.0
      %3566 = vmatprep.subr.mxu0 0.0
      %3567 = vmatpush1.msra.mxu0 0.0
      %3568 = vmatprep.subr.mxu0 0.0
      %3569 = vmatpush1.msra.mxu0 0.0
      %3570 = vmatprep.subr.mxu0 0.0
      %3571 = vmatpush1.msra.mxu0 0.0
      %3572 = vmatprep.subr.mxu0 0.0
      %3573 = vmatpush1.msra.mxu0 0.0
      %3574 = vmatprep.subr.mxu0 0.0
      %3575 = vmatpush1.msra.mxu0 0.0
      %3576 = vmatprep.subr.mxu0 0.0
      %3577 = vmatpush1.msra.mxu0 0.0
      %3578 = vmatprep.subr.mxu0 0.0
      %3579 = vmatpush1.msra.mxu0 0.0
      %3580 = vmatprep.subr.mxu0 0.0
      %3581 = vmatpush1.msra.mxu0 0.0
      %3582 = vmatprep.subr.mxu0 0.0
      %3583 = vmatpush1.msra.mxu0 0.0
      %3584 = vmatprep.mubr.f32.mxu0 0.0
      %3585 = vmatmul.mubr.f32.gmra.mrb[0].mxu0 %v3516
      %v3586 = vpop.f32.mrb[0].mxu0
      %v3587 = vadd.f32 0.0, %v3586
      %v3588 = vpop.f32.mrb[0].mxu0
      %3589 = vmatprep.mubr.f32.mxu0 0.0
      %3590 = vmatmul.mubr.f32.gmra.mrb[0].mxu0 %v3518
      %v3591 = vpop.f32.mrb[0].mxu0
      %v3592 = vadd.f32 0.0, %v3591
      %v3593 = vpop.f32.mrb[0].mxu0
      %3594 = vdwg.mxu0
      %v3595 = vadd.f32 %v3508, %v3587
      %v3596 = vadd.f32 %v3509, %v3592
      %v3597 = vrot.slane %v3169, 2
      %v3598 = vrot.slane %v3170, 2
      %v3599 = vsel %vm978, %v3597, %v3598
      %v3600 = vrot.slane %v3171, 2
      %v3601 = vsel %vm978, %v3598, %v3600
      %v3602 = vsel %vm544, %v3599, 0
      %v3604 = vsel %vm544, %v3601, 0
      %3606 = vmatprep.subr.mxu0 0.0
      %3607 = vmatpush1.msra.mxu0 %v1254
      %3608 = vmatprep.subr.mxu0 0.0
      %3609 = vmatpush1.msra.mxu0 0.0
      %3610 = vmatprep.subr.mxu0 0.0
      %3611 = vmatpush1.msra.mxu0 0.0
      %3612 = vmatprep.subr.mxu0 0.0
      %3613 = vmatpush1.msra.mxu0 0.0
      %3614 = vmatprep.subr.mxu0 0.0
      %3615 = vmatpush1.msra.mxu0 0.0
      %3616 = vmatprep.subr.mxu0 0.0
      %3617 = vmatpush1.msra.mxu0 0.0
      %3618 = vmatprep.subr.mxu0 0.0
      %3619 = vmatpush1.msra.mxu0 0.0
      %3620 = vmatprep.subr.mxu0 0.0
      %3621 = vmatpush1.msra.mxu0 0.0
      %3622 = vmatprep.subr.mxu0 0.0
      %3623 = vmatpush1.msra.mxu0 0.0
      %3624 = vmatprep.subr.mxu0 0.0
      %3625 = vmatpush1.msra.mxu0 0.0
      %3626 = vmatprep.subr.mxu0 0.0
      %3627 = vmatpush1.msra.mxu0 0.0
      %3628 = vmatprep.subr.mxu0 0.0
      %3629 = vmatpush1.msra.mxu0 0.0
      %3630 = vmatprep.subr.mxu0 0.0
      %3631 = vmatpush1.msra.mxu0 0.0
      %3632 = vmatprep.subr.mxu0 0.0
      %3633 = vmatpush1.msra.mxu0 0.0
      %3634 = vmatprep.subr.mxu0 0.0
      %3635 = vmatpush1.msra.mxu0 0.0
      %3636 = vmatprep.subr.mxu0 0.0
      %3637 = vmatpush1.msra.mxu0 0.0
      %3638 = vmatprep.subr.mxu0 0.0
      %3639 = vmatpush1.msra.mxu0 0.0
      %3640 = vmatprep.subr.mxu0 0.0
      %3641 = vmatpush1.msra.mxu0 0.0
      %3642 = vmatprep.subr.mxu0 0.0
      %3643 = vmatpush1.msra.mxu0 0.0
      %3644 = vmatprep.subr.mxu0 0.0
      %3645 = vmatpush1.msra.mxu0 0.0
      %3646 = vmatprep.subr.mxu0 0.0
      %3647 = vmatpush1.msra.mxu0 0.0
      %3648 = vmatprep.subr.mxu0 0.0
      %3649 = vmatpush1.msra.mxu0 0.0
      %3650 = vmatprep.subr.mxu0 0.0
      %3651 = vmatpush1.msra.mxu0 0.0
      %3652 = vmatprep.subr.mxu0 0.0
      %3653 = vmatpush1.msra.mxu0 0.0
      %3654 = vmatprep.subr.mxu0 0.0
      %3655 = vmatpush1.msra.mxu0 0.0
      %3656 = vmatprep.subr.mxu0 0.0
      %3657 = vmatpush1.msra.mxu0 0.0
      %3658 = vmatprep.subr.mxu0 0.0
      %3659 = vmatpush1.msra.mxu0 0.0
      %3660 = vmatprep.subr.mxu0 0.0
      %3661 = vmatpush1.msra.mxu0 0.0
      %3662 = vmatprep.subr.mxu0 0.0
      %3663 = vmatpush1.msra.mxu0 0.0
      %3664 = vmatprep.subr.mxu0 0.0
      %3665 = vmatpush1.msra.mxu0 0.0
      %3666 = vmatprep.subr.mxu0 0.0
      %3667 = vmatpush1.msra.mxu0 0.0
      %3668 = vmatprep.subr.mxu0 0.0
      %3669 = vmatpush1.msra.mxu0 0.0
      %3670 = vmatprep.mubr.f32.mxu0 0.0
      %3671 = vmatmul.mubr.f32.gmra.mrb[0].mxu0 %v3602
      %v3672 = vpop.f32.mrb[0].mxu0
      %v3673 = vadd.f32 0.0, %v3672
      %v3674 = vpop.f32.mrb[0].mxu0
      %3675 = vmatprep.mubr.f32.mxu0 0.0
      %3676 = vmatmul.mubr.f32.gmra.mrb[0].mxu0 %v3604
      %v3677 = vpop.f32.mrb[0].mxu0
      %v3678 = vadd.f32 0.0, %v3677
      %v3679 = vpop.f32.mrb[0].mxu0
      %3680 = vdwg.mxu0
      %v3681 = vadd.f32 %v3595, %v3673
      %v3682 = vadd.f32 %v3596, %v3678
      %v3684 = vsel %vm544, %v3172, 0
      %v3687 = vsel %vm544, %v3173, 0
      %3689 = vmatprep.subr.mxu0 0.0
      %3690 = vmatpush1.msra.mxu0 %v1340
      %3691 = vmatprep.subr.mxu0 0.0
      %3692 = vmatpush1.msra.mxu0 0.0
      %3693 = vmatprep.subr.mxu0 0.0
      %3694 = vmatpush1.msra.mxu0 0.0
      %3695 = vmatprep.subr.mxu0 0.0
      %3696 = vmatpush1.msra.mxu0 0.0
      %3697 = vmatprep.subr.mxu0 0.0
      %3698 = vmatpush1.msra.mxu0 0.0
      %3699 = vmatprep.subr.mxu0 0.0
      %3700 = vmatpush1.msra.mxu0 0.0
      %3701 = vmatprep.subr.mxu0 0.0
      %3702 = vmatpush1.msra.mxu0 0.0
      %3703 = vmatprep.subr.mxu0 0.0
      %3704 = vmatpush1.msra.mxu0 0.0
      %3705 = vmatprep.subr.mxu0 0.0
      %3706 = vmatpush1.msra.mxu0 0.0
      %3707 = vmatprep.subr.mxu0 0.0
      %3708 = vmatpush1.msra.mxu0 0.0
      %3709 = vmatprep.subr.mxu0 0.0
      %3710 = vmatpush1.msra.mxu0 0.0
      %3711 = vmatprep.subr.mxu0 0.0
      %3712 = vmatpush1.msra.mxu0 0.0
      %3713 = vmatprep.subr.mxu0 0.0
      %3714 = vmatpush1.msra.mxu0 0.0
      %3715 = vmatprep.subr.mxu0 0.0
      %3716 = vmatpush1.msra.mxu0 0.0
      %3717 = vmatprep.subr.mxu0 0.0
      %3718 = vmatpush1.msra.mxu0 0.0
      %3719 = vmatprep.subr.mxu0 0.0
      %3720 = vmatpush1.msra.mxu0 0.0
      %3721 = vmatprep.subr.mxu0 0.0
      %3722 = vmatpush1.msra.mxu0 0.0
      %3723 = vmatprep.subr.mxu0 0.0
      %3724 = vmatpush1.msra.mxu0 0.0
      %3725 = vmatprep.subr.mxu0 0.0
      %3726 = vmatpush1.msra.mxu0 0.0
      %3727 = vmatprep.subr.mxu0 0.0
      %3728 = vmatpush1.msra.mxu0 0.0
      %3729 = vmatprep.subr.mxu0 0.0
      %3730 = vmatpush1.msra.mxu0 0.0
      %3731 = vmatprep.subr.mxu0 0.0
      %3732 = vmatpush1.msra.mxu0 0.0
      %3733 = vmatprep.subr.mxu0 0.0
      %3734 = vmatpush1.msra.mxu0 0.0
      %3735 = vmatprep.subr.mxu0 0.0
      %3736 = vmatpush1.msra.mxu0 0.0
      %3737 = vmatprep.subr.mxu0 0.0
      %3738 = vmatpush1.msra.mxu0 0.0
      %3739 = vmatprep.subr.mxu0 0.0
      %3740 = vmatpush1.msra.mxu0 0.0
      %3741 = vmatprep.subr.mxu0 0.0
      %3742 = vmatpush1.msra.mxu0 0.0
      %3743 = vmatprep.subr.mxu0 0.0
      %3744 = vmatpush1.msra.mxu0 0.0
      %3745 = vmatprep.subr.mxu0 0.0
      %3746 = vmatpush1.msra.mxu0 0.0
      %3747 = vmatprep.subr.mxu0 0.0
      %3748 = vmatpush1.msra.mxu0 0.0
      %3749 = vmatprep.subr.mxu0 0.0
      %3750 = vmatpush1.msra.mxu0 0.0
      %3751 = vmatprep.subr.mxu0 0.0
      %3752 = vmatpush1.msra.mxu0 0.0
      %3753 = vmatprep.mubr.f32.mxu0 0.0
      %3754 = vmatmul.mubr.f32.gmra.mrb[0].mxu0 %v3684
      %v3755 = vpop.f32.mrb[0].mxu0
      %v3756 = vadd.f32 0.0, %v3755
      %v3757 = vpop.f32.mrb[0].mxu0
      %3758 = vmatprep.mubr.f32.mxu0 0.0
      %3759 = vmatmul.mubr.f32.gmra.mrb[0].mxu0 %v3687
      %v3760 = vpop.f32.mrb[0].mxu0
      %v3761 = vadd.f32 0.0, %v3760
      %v3762 = vpop.f32.mrb[0].mxu0
      %3763 = vdwg.mxu0
      %v3764 = vadd.f32 %v3681, %v3756
      %v3765 = vadd.f32 %v3682, %v3761
      %v3767 = vrot.slane %v3172, 1
      %v3768 = vrot.slane %v3173, 1
      %v3769 = vsel %vm807, %v3767, %v3768
      %v3770 = vrot.slane %v3174, 1
      %v3771 = vsel %vm807, %v3768, %v3770
      %v3772 = vsel %vm544, %v3769, 0
      %v3774 = vsel %vm544, %v3771, 0
      %3776 = vmatprep.subr.mxu0 0.0
      %3777 = vmatpush1.msra.mxu0 %v1430
      %3778 = vmatprep.subr.mxu0 0.0
      %3779 = vmatpush1.msra.mxu0 0.0
      %3780 = vmatprep.subr.mxu0 0.0
      %3781 = vmatpush1.msra.mxu0 0.0
      %3782 = vmatprep.subr.mxu0 0.0
      %3783 = vmatpush1.msra.mxu0 0.0
      %3784 = vmatprep.subr.mxu0 0.0
      %3785 = vmatpush1.msra.mxu0 0.0
      %3786 = vmatprep.subr.mxu0 0.0
      %3787 = vmatpush1.msra.mxu0 0.0
      %3788 = vmatprep.subr.mxu0 0.0
      %3789 = vmatpush1.msra.mxu0 0.0
      %3790 = vmatprep.subr.mxu0 0.0
      %3791 = vmatpush1.msra.mxu0 0.0
      %3792 = vmatprep.subr.mxu0 0.0
      %3793 = vmatpush1.msra.mxu0 0.0
      %3794 = vmatprep.subr.mxu0 0.0
      %3795 = vmatpush1.msra.mxu0 0.0
      %3796 = vmatprep.subr.mxu0 0.0
      %3797 = vmatpush1.msra.mxu0 0.0
      %3798 = vmatprep.subr.mxu0 0.0
      %3799 = vmatpush1.msra.mxu0 0.0
      %3800 = vmatprep.subr.mxu0 0.0
      %3801 = vmatpush1.msra.mxu0 0.0
      %3802 = vmatprep.subr.mxu0 0.0
      %3803 = vmatpush1.msra.mxu0 0.0
      %3804 = vmatprep.subr.mxu0 0.0
      %3805 = vmatpush1.msra.mxu0 0.0
      %3806 = vmatprep.subr.mxu0 0.0
      %3807 = vmatpush1.msra.mxu0 0.0
      %3808 = vmatprep.subr.mxu0 0.0
      %3809 = vmatpush1.msra.mxu0 0.0
      %3810 = vmatprep.subr.mxu0 0.0
      %3811 = vmatpush1.msra.mxu0 0.0
      %3812 = vmatprep.subr.mxu0 0.0
      %3813 = vmatpush1.msra.mxu0 0.0
      %3814 = vmatprep.subr.mxu0 0.0
      %3815 = vmatpush1.msra.mxu0 0.0
      %3816 = vmatprep.subr.mxu0 0.0
      %3817 = vmatpush1.msra.mxu0 0.0
      %3818 = vmatprep.subr.mxu0 0.0
      %3819 = vmatpush1.msra.mxu0 0.0
      %3820 = vmatprep.subr.mxu0 0.0
      %3821 = vmatpush1.msra.mxu0 0.0
      %3822 = vmatprep.subr.mxu0 0.0
      %3823 = vmatpush1.msra.mxu0 0.0
      %3824 = vmatprep.subr.mxu0 0.0
      %3825 = vmatpush1.msra.mxu0 0.0
      %3826 = vmatprep.subr.mxu0 0.0
      %3827 = vmatpush1.msra.mxu0 0.0
      %3828 = vmatprep.subr.mxu0 0.0
      %3829 = vmatpush1.msra.mxu0 0.0
      %3830 = vmatprep.subr.mxu0 0.0
      %3831 = vmatpush1.msra.mxu0 0.0
      %3832 = vmatprep.subr.mxu0 0.0
      %3833 = vmatpush1.msra.mxu0 0.0
      %3834 = vmatprep.subr.mxu0 0.0
      %3835 = vmatpush1.msra.mxu0 0.0
      %3836 = vmatprep.subr.mxu0 0.0
      %3837 = vmatpush1.msra.mxu0 0.0
      %3838 = vmatprep.subr.mxu0 0.0
      %3839 = vmatpush1.msra.mxu0 0.0
      %3840 = vmatprep.mubr.f32.mxu0 0.0
      %3841 = vmatmul.mubr.f32.gmra.mrb[0].mxu0 %v3772
      %v3842 = vpop.f32.mrb[0].mxu0
      %v3843 = vadd.f32 0.0, %v3842
      %v3844 = vpop.f32.mrb[0].mxu0
      %3845 = vmatprep.mubr.f32.mxu0 0.0
      %3846 = vmatmul.mubr.f32.gmra.mrb[0].mxu0 %v3774
      %v3847 = vpop.f32.mrb[0].mxu0
      %v3848 = vadd.f32 0.0, %v3847
      %v3849 = vpop.f32.mrb[0].mxu0
      %3850 = vdwg.mxu0
      %v3851 = vadd.f32 %v3764, %v3843
      %v3852 = vadd.f32 %v3765, %v3848
      %v3853 = vrot.slane %v3172, 2
      %v3854 = vrot.slane %v3173, 2
      %v3855 = vsel %vm978, %v3853, %v3854
      %v3856 = vrot.slane %v3174, 2
      %v3857 = vsel %vm978, %v3854, %v3856
      %v3858 = vsel %vm544, %v3855, 0
      %v3860 = vsel %vm544, %v3857, 0
      %3862 = vmatprep.subr.mxu0 0.0
      %3863 = vmatpush1.msra.mxu0 %v1519
      %3864 = vmatprep.subr.mxu0 0.0
      %3865 = vmatpush1.msra.mxu0 0.0
      %3866 = vmatprep.subr.mxu0 0.0
      %3867 = vmatpush1.msra.mxu0 0.0
      %3868 = vmatprep.subr.mxu0 0.0
      %3869 = vmatpush1.msra.mxu0 0.0
      %3870 = vmatprep.subr.mxu0 0.0
      %3871 = vmatpush1.msra.mxu0 0.0
      %3872 = vmatprep.subr.mxu0 0.0
      %3873 = vmatpush1.msra.mxu0 0.0
      %3874 = vmatprep.subr.mxu0 0.0
      %3875 = vmatpush1.msra.mxu0 0.0
      %3876 = vmatprep.subr.mxu0 0.0
      %3877 = vmatpush1.msra.mxu0 0.0
      %3878 = vmatprep.subr.mxu0 0.0
      %3879 = vmatpush1.msra.mxu0 0.0
      %3880 = vmatprep.subr.mxu0 0.0
      %3881 = vmatpush1.msra.mxu0 0.0
      %3882 = vmatprep.subr.mxu0 0.0
      %3883 = vmatpush1.msra.mxu0 0.0
      %3884 = vmatprep.subr.mxu0 0.0
      %3885 = vmatpush1.msra.mxu0 0.0
      %3886 = vmatprep.subr.mxu0 0.0
      %3887 = vmatpush1.msra.mxu0 0.0
      %3888 = vmatprep.subr.mxu0 0.0
      %3889 = vmatpush1.msra.mxu0 0.0
      %3890 = vmatprep.subr.mxu0 0.0
      %3891 = vmatpush1.msra.mxu0 0.0
      %3892 = vmatprep.subr.mxu0 0.0
      %3893 = vmatpush1.msra.mxu0 0.0
      %3894 = vmatprep.subr.mxu0 0.0
      %3895 = vmatpush1.msra.mxu0 0.0
      %3896 = vmatprep.subr.mxu0 0.0
      %3897 = vmatpush1.msra.mxu0 0.0
      %3898 = vmatprep.subr.mxu0 0.0
      %3899 = vmatpush1.msra.mxu0 0.0
      %3900 = vmatprep.subr.mxu0 0.0
      %3901 = vmatpush1.msra.mxu0 0.0
      %3902 = vmatprep.subr.mxu0 0.0
      %3903 = vmatpush1.msra.mxu0 0.0
      %3904 = vmatprep.subr.mxu0 0.0
      %3905 = vmatpush1.msra.mxu0 0.0
      %3906 = vmatprep.subr.mxu0 0.0
      %3907 = vmatpush1.msra.mxu0 0.0
      %3908 = vmatprep.subr.mxu0 0.0
      %3909 = vmatpush1.msra.mxu0 0.0
      %3910 = vmatprep.subr.mxu0 0.0
      %3911 = vmatpush1.msra.mxu0 0.0
      %3912 = vmatprep.subr.mxu0 0.0
      %3913 = vmatpush1.msra.mxu0 0.0
      %3914 = vmatprep.subr.mxu0 0.0
      %3915 = vmatpush1.msra.mxu0 0.0
      %3916 = vmatprep.subr.mxu0 0.0
      %3917 = vmatpush1.msra.mxu0 0.0
      %3918 = vmatprep.subr.mxu0 0.0
      %3919 = vmatpush1.msra.mxu0 0.0
      %3920 = vmatprep.subr.mxu0 0.0
      %3921 = vmatpush1.msra.mxu0 0.0
      %3922 = vmatprep.subr.mxu0 0.0
      %3923 = vmatpush1.msra.mxu0 0.0
      %3924 = vmatprep.subr.mxu0 0.0
      %3925 = vmatpush1.msra.mxu0 0.0
      %3926 = vmatprep.mubr.f32.mxu0 0.0
      %3927 = vmatmul.mubr.f32.gmra.mrb[0].mxu0 %v3858
      %v3928 = vpop.f32.mrb[0].mxu0
      %v3929 = vadd.f32 0.0, %v3928
      %v3930 = vpop.f32.mrb[0].mxu0
      %3931 = vmatprep.mubr.f32.mxu0 0.0
      %3932 = vmatmul.mubr.f32.gmra.mrb[0].mxu0 %v3860
      %v3933 = vpop.f32.mrb[0].mxu0
      %v3934 = vadd.f32 0.0, %v3933
      %v3935 = vpop.f32.mrb[0].mxu0
      %3936 = vdwg.mxu0
      %v3937 = vadd.f32 %v3851, %v3929
      %v3938 = vadd.f32 %v3852, %v3934
      %v3939 = vadd.f32 %v3937, %v1602
      %v3940 = vadd.f32 %v3938, %v1602
      %s3941 = scalar_lea.vmem %s524, 48
      %3942 = vst.msk [vmem:[%s3941] sm:$0xff] %vm544, %v3939
      %3943 = vst.msk [vmem:[%s3941 + $0x8] sm:$0xff] %vm544, %v3940
      %s3944 = scalar_lea.vmem [#allocation2], 96
      %v3945 = vld [vmem:[%s3944] sm:$0xff]
      %v3946 = vld [vmem:[%s3944 + $0x8] sm:$0xff]
      %v3947 = vld [vmem:[%s3944 + $0x10] sm:$0x3]
      %v3948 = vld [vmem:[%s3944 + $0x18] sm:$0xff]
      %v3949 = vld [vmem:[%s3944 + $0x20] sm:$0xff]
      %v3950 = vld [vmem:[%s3944 + $0x28] sm:$0x3]
      %v3951 = vld [vmem:[%s3944 + $0x30] sm:$0xff]
      %v3952 = vld [vmem:[%s3944 + $0x38] sm:$0xff]
      %v3953 = vld [vmem:[%s3944 + $0x40] sm:$0x3]
      %v3957 = vrot.slane %v3945, 1
      %v3958 = vrot.slane %v3946, 1
      %v3959 = vsel %vm807, %v3957, %v3958
      %v3960 = vrot.slane %v3947, 1
      %v3961 = vsel %vm807, %v3958, %v3960
      %v3962 = vsel %vm544, %v3959, 0
      %v3964 = vsel %vm544, %v3961, 0
      %3966 = vmatprep.subr.mxu0 0.0
      %3967 = vmatpush1.msra.mxu0 %v819
      %3968 = vmatprep.subr.mxu0 0.0
      %3969 = vmatpush1.msra.mxu0 0.0
      %3970 = vmatprep.subr.mxu0 0.0
      %3971 = vmatpush1.msra.mxu0 0.0
      %3972 = vmatprep.subr.mxu0 0.0
      %3973 = vmatpush1.msra.mxu0 0.0
      %3974 = vmatprep.subr.mxu0 0.0
      %3975 = vmatpush1.msra.mxu0 0.0
      %3976 = vmatprep.subr.mxu0 0.0
      %3977 = vmatpush1.msra.mxu0 0.0
      %3978 = vmatprep.subr.mxu0 0.0
      %3979 = vmatpush1.msra.mxu0 0.0
      %3980 = vmatprep.subr.mxu0 0.0
      %3981 = vmatpush1.msra.mxu0 0.0
      %3982 = vmatprep.subr.mxu0 0.0
      %3983 = vmatpush1.msra.mxu0 0.0
      %3984 = vmatprep.subr.mxu0 0.0
      %3985 = vmatpush1.msra.mxu0 0.0
      %3986 = vmatprep.subr.mxu0 0.0
      %3987 = vmatpush1.msra.mxu0 0.0
      %3988 = vmatprep.subr.mxu0 0.0
      %3989 = vmatpush1.msra.mxu0 0.0
      %3990 = vmatprep.subr.mxu0 0.0
      %3991 = vmatpush1.msra.mxu0 0.0
      %3992 = vmatprep.subr.mxu0 0.0
      %3993 = vmatpush1.msra.mxu0 0.0
      %3994 = vmatprep.subr.mxu0 0.0
      %3995 = vmatpush1.msra.mxu0 0.0
      %3996 = vmatprep.subr.mxu0 0.0
      %3997 = vmatpush1.msra.mxu0 0.0
      %3998 = vmatprep.subr.mxu0 0.0
      %3999 = vmatpush1.msra.mxu0 0.0
      %4000 = vmatprep.subr.mxu0 0.0
      %4001 = vmatpush1.msra.mxu0 0.0
      %4002 = vmatprep.subr.mxu0 0.0
      %4003 = vmatpush1.msra.mxu0 0.0
      %4004 = vmatprep.subr.mxu0 0.0
      %4005 = vmatpush1.msra.mxu0 0.0
      %4006 = vmatprep.subr.mxu0 0.0
      %4007 = vmatpush1.msra.mxu0 0.0
      %4008 = vmatprep.subr.mxu0 0.0
      %4009 = vmatpush1.msra.mxu0 0.0
      %4010 = vmatprep.subr.mxu0 0.0
      %4011 = vmatpush1.msra.mxu0 0.0
      %4012 = vmatprep.subr.mxu0 0.0
      %4013 = vmatpush1.msra.mxu0 0.0
      %4014 = vmatprep.subr.mxu0 0.0
      %4015 = vmatpush1.msra.mxu0 0.0
      %4016 = vmatprep.subr.mxu0 0.0
      %4017 = vmatpush1.msra.mxu0 0.0
      %4018 = vmatprep.subr.mxu0 0.0
      %4019 = vmatpush1.msra.mxu0 0.0
      %4020 = vmatprep.subr.mxu0 0.0
      %4021 = vmatpush1.msra.mxu0 0.0
      %4022 = vmatprep.subr.mxu0 0.0
      %4023 = vmatpush1.msra.mxu0 0.0
      %4024 = vmatprep.subr.mxu0 0.0
      %4025 = vmatpush1.msra.mxu0 0.0
      %4026 = vmatprep.subr.mxu0 0.0
      %4027 = vmatpush1.msra.mxu0 0.0
      %4028 = vmatprep.subr.mxu0 0.0
      %4029 = vmatpush1.msra.mxu0 0.0
      %4030 = vmatprep.mubr.f32.mxu0 0.0
      %4031 = vmatmul.mubr.f32.gmra.mrb[0].mxu0 %v3962
      %v4032 = vpop.f32.mrb[0].mxu0
      %v4033 = vadd.f32 0.0, %v4032
      %v4034 = vpop.f32.mrb[0].mxu0
      %4035 = vmatprep.mubr.f32.mxu0 0.0
      %4036 = vmatmul.mubr.f32.gmra.mrb[0].mxu0 %v3964
      %v4037 = vpop.f32.mrb[0].mxu0
      %v4038 = vadd.f32 0.0, %v4037
      %v4039 = vpop.f32.mrb[0].mxu0
      %4040 = vdwg.mxu0
      %v4041 = vsel %vm544, %v3945, 0
      %v4043 = vsel %vm544, %v3946, 0
      %4045 = vmatprep.subr.mxu0 0.0
      %4046 = vmatpush1.msra.mxu0 %v901
      %4047 = vmatprep.subr.mxu0 0.0
      %4048 = vmatpush1.msra.mxu0 0.0
      %4049 = vmatprep.subr.mxu0 0.0
      %4050 = vmatpush1.msra.mxu0 0.0
      %4051 = vmatprep.subr.mxu0 0.0
      %4052 = vmatpush1.msra.mxu0 0.0
      %4053 = vmatprep.subr.mxu0 0.0
      %4054 = vmatpush1.msra.mxu0 0.0
      %4055 = vmatprep.subr.mxu0 0.0
      %4056 = vmatpush1.msra.mxu0 0.0
      %4057 = vmatprep.subr.mxu0 0.0
      %4058 = vmatpush1.msra.mxu0 0.0
      %4059 = vmatprep.subr.mxu0 0.0
      %4060 = vmatpush1.msra.mxu0 0.0
      %4061 = vmatprep.subr.mxu0 0.0
      %4062 = vmatpush1.msra.mxu0 0.0
      %4063 = vmatprep.subr.mxu0 0.0
      %4064 = vmatpush1.msra.mxu0 0.0
      %4065 = vmatprep.subr.mxu0 0.0
      %4066 = vmatpush1.msra.mxu0 0.0
      %4067 = vmatprep.subr.mxu0 0.0
      %4068 = vmatpush1.msra.mxu0 0.0
      %4069 = vmatprep.subr.mxu0 0.0
      %4070 = vmatpush1.msra.mxu0 0.0
      %4071 = vmatprep.subr.mxu0 0.0
      %4072 = vmatpush1.msra.mxu0 0.0
      %4073 = vmatprep.subr.mxu0 0.0
      %4074 = vmatpush1.msra.mxu0 0.0
      %4075 = vmatprep.subr.mxu0 0.0
      %4076 = vmatpush1.msra.mxu0 0.0
      %4077 = vmatprep.subr.mxu0 0.0
      %4078 = vmatpush1.msra.mxu0 0.0
      %4079 = vmatprep.subr.mxu0 0.0
      %4080 = vmatpush1.msra.mxu0 0.0
      %4081 = vmatprep.subr.mxu0 0.0
      %4082 = vmatpush1.msra.mxu0 0.0
      %4083 = vmatprep.subr.mxu0 0.0
      %4084 = vmatpush1.msra.mxu0 0.0
      %4085 = vmatprep.subr.mxu0 0.0
      %4086 = vmatpush1.msra.mxu0 0.0
      %4087 = vmatprep.subr.mxu0 0.0
      %4088 = vmatpush1.msra.mxu0 0.0
      %4089 = vmatprep.subr.mxu0 0.0
      %4090 = vmatpush1.msra.mxu0 0.0
      %4091 = vmatprep.subr.mxu0 0.0
      %4092 = vmatpush1.msra.mxu0 0.0
      %4093 = vmatprep.subr.mxu0 0.0
      %4094 = vmatpush1.msra.mxu0 0.0
      %4095 = vmatprep.subr.mxu0 0.0
      %4096 = vmatpush1.msra.mxu0 0.0
      %4097 = vmatprep.subr.mxu0 0.0
      %4098 = vmatpush1.msra.mxu0 0.0
      %4099 = vmatprep.subr.mxu0 0.0
      %4100 = vmatpush1.msra.mxu0 0.0
      %4101 = vmatprep.subr.mxu0 0.0
      %4102 = vmatpush1.msra.mxu0 0.0
      %4103 = vmatprep.subr.mxu0 0.0
      %4104 = vmatpush1.msra.mxu0 0.0
      %4105 = vmatprep.subr.mxu0 0.0
      %4106 = vmatpush1.msra.mxu0 0.0
      %4107 = vmatprep.subr.mxu0 0.0
      %4108 = vmatpush1.msra.mxu0 0.0
      %4109 = vmatprep.mubr.f32.mxu0 0.0
      %4110 = vmatmul.mubr.f32.gmra.mrb[0].mxu0 %v4041
      %v4111 = vpop.f32.mrb[0].mxu0
      %v4112 = vadd.f32 %v4033, %v4111
      %v4113 = vpop.f32.mrb[0].mxu0
      %4114 = vmatprep.mubr.f32.mxu0 0.0
      %4115 = vmatmul.mubr.f32.gmra.mrb[0].mxu0 %v4043
      %v4116 = vpop.f32.mrb[0].mxu0
      %v4117 = vadd.f32 %v4038, %v4116
      %v4118 = vpop.f32.mrb[0].mxu0
      %4119 = vdwg.mxu0
      %v4120 = vrot.slane %v3945, 2
      %v4121 = vrot.slane %v3946, 2
      %v4122 = vsel %vm978, %v4120, %v4121
      %v4123 = vrot.slane %v3947, 2
      %v4124 = vsel %vm978, %v4121, %v4123
      %v4125 = vsel %vm544, %v4122, 0
      %v4127 = vsel %vm544, %v4124, 0
      %4129 = vmatprep.subr.mxu0 0.0
      %4130 = vmatpush1.msra.mxu0 %v989
      %4131 = vmatprep.subr.mxu0 0.0
      %4132 = vmatpush1.msra.mxu0 0.0
      %4133 = vmatprep.subr.mxu0 0.0
      %4134 = vmatpush1.msra.mxu0 0.0
      %4135 = vmatprep.subr.mxu0 0.0
      %4136 = vmatpush1.msra.mxu0 0.0
      %4137 = vmatprep.subr.mxu0 0.0
      %4138 = vmatpush1.msra.mxu0 0.0
      %4139 = vmatprep.subr.mxu0 0.0
      %4140 = vmatpush1.msra.mxu0 0.0
      %4141 = vmatprep.subr.mxu0 0.0
      %4142 = vmatpush1.msra.mxu0 0.0
      %4143 = vmatprep.subr.mxu0 0.0
      %4144 = vmatpush1.msra.mxu0 0.0
      %4145 = vmatprep.subr.mxu0 0.0
      %4146 = vmatpush1.msra.mxu0 0.0
      %4147 = vmatprep.subr.mxu0 0.0
      %4148 = vmatpush1.msra.mxu0 0.0
      %4149 = vmatprep.subr.mxu0 0.0
      %4150 = vmatpush1.msra.mxu0 0.0
      %4151 = vmatprep.subr.mxu0 0.0
      %4152 = vmatpush1.msra.mxu0 0.0
      %4153 = vmatprep.subr.mxu0 0.0
      %4154 = vmatpush1.msra.mxu0 0.0
      %4155 = vmatprep.subr.mxu0 0.0
      %4156 = vmatpush1.msra.mxu0 0.0
      %4157 = vmatprep.subr.mxu0 0.0
      %4158 = vmatpush1.msra.mxu0 0.0
      %4159 = vmatprep.subr.mxu0 0.0
      %4160 = vmatpush1.msra.mxu0 0.0
      %4161 = vmatprep.subr.mxu0 0.0
      %4162 = vmatpush1.msra.mxu0 0.0
      %4163 = vmatprep.subr.mxu0 0.0
      %4164 = vmatpush1.msra.mxu0 0.0
      %4165 = vmatprep.subr.mxu0 0.0
      %4166 = vmatpush1.msra.mxu0 0.0
      %4167 = vmatprep.subr.mxu0 0.0
      %4168 = vmatpush1.msra.mxu0 0.0
      %4169 = vmatprep.subr.mxu0 0.0
      %4170 = vmatpush1.msra.mxu0 0.0
      %4171 = vmatprep.subr.mxu0 0.0
      %4172 = vmatpush1.msra.mxu0 0.0
      %4173 = vmatprep.subr.mxu0 0.0
      %4174 = vmatpush1.msra.mxu0 0.0
      %4175 = vmatprep.subr.mxu0 0.0
      %4176 = vmatpush1.msra.mxu0 0.0
      %4177 = vmatprep.subr.mxu0 0.0
      %4178 = vmatpush1.msra.mxu0 0.0
      %4179 = vmatprep.subr.mxu0 0.0
      %4180 = vmatpush1.msra.mxu0 0.0
      %4181 = vmatprep.subr.mxu0 0.0
      %4182 = vmatpush1.msra.mxu0 0.0
      %4183 = vmatprep.subr.mxu0 0.0
      %4184 = vmatpush1.msra.mxu0 0.0
      %4185 = vmatprep.subr.mxu0 0.0
      %4186 = vmatpush1.msra.mxu0 0.0
      %4187 = vmatprep.subr.mxu0 0.0
      %4188 = vmatpush1.msra.mxu0 0.0
      %4189 = vmatprep.subr.mxu0 0.0
      %4190 = vmatpush1.msra.mxu0 0.0
      %4191 = vmatprep.subr.mxu0 0.0
      %4192 = vmatpush1.msra.mxu0 0.0
      %4193 = vmatprep.mubr.f32.mxu0 0.0
      %4194 = vmatmul.mubr.f32.gmra.mrb[0].mxu0 %v4125
      %v4195 = vpop.f32.mrb[0].mxu0
      %v4196 = vadd.f32 0.0, %v4195
      %v4197 = vpop.f32.mrb[0].mxu0
      %4198 = vmatprep.mubr.f32.mxu0 0.0
      %4199 = vmatmul.mubr.f32.gmra.mrb[0].mxu0 %v4127
      %v4200 = vpop.f32.mrb[0].mxu0
      %v4201 = vadd.f32 0.0, %v4200
      %v4202 = vpop.f32.mrb[0].mxu0
      %4203 = vdwg.mxu0
      %v4204 = vadd.f32 %v4112, %v4196
      %v4205 = vadd.f32 %v4117, %v4201
      %v4207 = vsel %vm544, %v3948, 0
      %v4210 = vsel %vm544, %v3949, 0
      %4212 = vmatprep.subr.mxu0 0.0
      %4213 = vmatpush1.msra.mxu0 %v1075
      %4214 = vmatprep.subr.mxu0 0.0
      %4215 = vmatpush1.msra.mxu0 0.0
      %4216 = vmatprep.subr.mxu0 0.0
      %4217 = vmatpush1.msra.mxu0 0.0
      %4218 = vmatprep.subr.mxu0 0.0
      %4219 = vmatpush1.msra.mxu0 0.0
      %4220 = vmatprep.subr.mxu0 0.0
      %4221 = vmatpush1.msra.mxu0 0.0
      %4222 = vmatprep.subr.mxu0 0.0
      %4223 = vmatpush1.msra.mxu0 0.0
      %4224 = vmatprep.subr.mxu0 0.0
      %4225 = vmatpush1.msra.mxu0 0.0
      %4226 = vmatprep.subr.mxu0 0.0
      %4227 = vmatpush1.msra.mxu0 0.0
      %4228 = vmatprep.subr.mxu0 0.0
      %4229 = vmatpush1.msra.mxu0 0.0
      %4230 = vmatprep.subr.mxu0 0.0
      %4231 = vmatpush1.msra.mxu0 0.0
      %4232 = vmatprep.subr.mxu0 0.0
      %4233 = vmatpush1.msra.mxu0 0.0
      %4234 = vmatprep.subr.mxu0 0.0
      %4235 = vmatpush1.msra.mxu0 0.0
      %4236 = vmatprep.subr.mxu0 0.0
      %4237 = vmatpush1.msra.mxu0 0.0
      %4238 = vmatprep.subr.mxu0 0.0
      %4239 = vmatpush1.msra.mxu0 0.0
      %4240 = vmatprep.subr.mxu0 0.0
      %4241 = vmatpush1.msra.mxu0 0.0
      %4242 = vmatprep.subr.mxu0 0.0
      %4243 = vmatpush1.msra.mxu0 0.0
      %4244 = vmatprep.subr.mxu0 0.0
      %4245 = vmatpush1.msra.mxu0 0.0
      %4246 = vmatprep.subr.mxu0 0.0
      %4247 = vmatpush1.msra.mxu0 0.0
      %4248 = vmatprep.subr.mxu0 0.0
      %4249 = vmatpush1.msra.mxu0 0.0
      %4250 = vmatprep.subr.mxu0 0.0
      %4251 = vmatpush1.msra.mxu0 0.0
      %4252 = vmatprep.subr.mxu0 0.0
      %4253 = vmatpush1.msra.mxu0 0.0
      %4254 = vmatprep.subr.mxu0 0.0
      %4255 = vmatpush1.msra.mxu0 0.0
      %4256 = vmatprep.subr.mxu0 0.0
      %4257 = vmatpush1.msra.mxu0 0.0
      %4258 = vmatprep.subr.mxu0 0.0
      %4259 = vmatpush1.msra.mxu0 0.0
      %4260 = vmatprep.subr.mxu0 0.0
      %4261 = vmatpush1.msra.mxu0 0.0
      %4262 = vmatprep.subr.mxu0 0.0
      %4263 = vmatpush1.msra.mxu0 0.0
      %4264 = vmatprep.subr.mxu0 0.0
      %4265 = vmatpush1.msra.mxu0 0.0
      %4266 = vmatprep.subr.mxu0 0.0
      %4267 = vmatpush1.msra.mxu0 0.0
      %4268 = vmatprep.subr.mxu0 0.0
      %4269 = vmatpush1.msra.mxu0 0.0
      %4270 = vmatprep.subr.mxu0 0.0
      %4271 = vmatpush1.msra.mxu0 0.0
      %4272 = vmatprep.subr.mxu0 0.0
      %4273 = vmatpush1.msra.mxu0 0.0
      %4274 = vmatprep.subr.mxu0 0.0
      %4275 = vmatpush1.msra.mxu0 0.0
      %4276 = vmatprep.mubr.f32.mxu0 0.0
      %4277 = vmatmul.mubr.f32.gmra.mrb[0].mxu0 %v4207
      %v4278 = vpop.f32.mrb[0].mxu0
      %v4279 = vadd.f32 0.0, %v4278
      %v4280 = vpop.f32.mrb[0].mxu0
      %4281 = vmatprep.mubr.f32.mxu0 0.0
      %4282 = vmatmul.mubr.f32.gmra.mrb[0].mxu0 %v4210
      %v4283 = vpop.f32.mrb[0].mxu0
      %v4284 = vadd.f32 0.0, %v4283
      %v4285 = vpop.f32.mrb[0].mxu0
      %4286 = vdwg.mxu0
      %v4287 = vadd.f32 %v4204, %v4279
      %v4288 = vadd.f32 %v4205, %v4284
      %v4290 = vrot.slane %v3948, 1
      %v4291 = vrot.slane %v3949, 1
      %v4292 = vsel %vm807, %v4290, %v4291
      %v4293 = vrot.slane %v3950, 1
      %v4294 = vsel %vm807, %v4291, %v4293
      %v4295 = vsel %vm544, %v4292, 0
      %v4297 = vsel %vm544, %v4294, 0
      %4299 = vmatprep.subr.mxu0 0.0
      %4300 = vmatpush1.msra.mxu0 %v1165
      %4301 = vmatprep.subr.mxu0 0.0
      %4302 = vmatpush1.msra.mxu0 0.0
      %4303 = vmatprep.subr.mxu0 0.0
      %4304 = vmatpush1.msra.mxu0 0.0
      %4305 = vmatprep.subr.mxu0 0.0
      %4306 = vmatpush1.msra.mxu0 0.0
      %4307 = vmatprep.subr.mxu0 0.0
      %4308 = vmatpush1.msra.mxu0 0.0
      %4309 = vmatprep.subr.mxu0 0.0
      %4310 = vmatpush1.msra.mxu0 0.0
      %4311 = vmatprep.subr.mxu0 0.0
      %4312 = vmatpush1.msra.mxu0 0.0
      %4313 = vmatprep.subr.mxu0 0.0
      %4314 = vmatpush1.msra.mxu0 0.0
      %4315 = vmatprep.subr.mxu0 0.0
      %4316 = vmatpush1.msra.mxu0 0.0
      %4317 = vmatprep.subr.mxu0 0.0
      %4318 = vmatpush1.msra.mxu0 0.0
      %4319 = vmatprep.subr.mxu0 0.0
      %4320 = vmatpush1.msra.mxu0 0.0
      %4321 = vmatprep.subr.mxu0 0.0
      %4322 = vmatpush1.msra.mxu0 0.0
      %4323 = vmatprep.subr.mxu0 0.0
      %4324 = vmatpush1.msra.mxu0 0.0
      %4325 = vmatprep.subr.mxu0 0.0
      %4326 = vmatpush1.msra.mxu0 0.0
      %4327 = vmatprep.subr.mxu0 0.0
      %4328 = vmatpush1.msra.mxu0 0.0
      %4329 = vmatprep.subr.mxu0 0.0
      %4330 = vmatpush1.msra.mxu0 0.0
      %4331 = vmatprep.subr.mxu0 0.0
      %4332 = vmatpush1.msra.mxu0 0.0
      %4333 = vmatprep.subr.mxu0 0.0
      %4334 = vmatpush1.msra.mxu0 0.0
      %4335 = vmatprep.subr.mxu0 0.0
      %4336 = vmatpush1.msra.mxu0 0.0
      %4337 = vmatprep.subr.mxu0 0.0
      %4338 = vmatpush1.msra.mxu0 0.0
      %4339 = vmatprep.subr.mxu0 0.0
      %4340 = vmatpush1.msra.mxu0 0.0
      %4341 = vmatprep.subr.mxu0 0.0
      %4342 = vmatpush1.msra.mxu0 0.0
      %4343 = vmatprep.subr.mxu0 0.0
      %4344 = vmatpush1.msra.mxu0 0.0
      %4345 = vmatprep.subr.mxu0 0.0
      %4346 = vmatpush1.msra.mxu0 0.0
      %4347 = vmatprep.subr.mxu0 0.0
      %4348 = vmatpush1.msra.mxu0 0.0
      %4349 = vmatprep.subr.mxu0 0.0
      %4350 = vmatpush1.msra.mxu0 0.0
      %4351 = vmatprep.subr.mxu0 0.0
      %4352 = vmatpush1.msra.mxu0 0.0
      %4353 = vmatprep.subr.mxu0 0.0
      %4354 = vmatpush1.msra.mxu0 0.0
      %4355 = vmatprep.subr.mxu0 0.0
      %4356 = vmatpush1.msra.mxu0 0.0
      %4357 = vmatprep.subr.mxu0 0.0
      %4358 = vmatpush1.msra.mxu0 0.0
      %4359 = vmatprep.subr.mxu0 0.0
      %4360 = vmatpush1.msra.mxu0 0.0
      %4361 = vmatprep.subr.mxu0 0.0
      %4362 = vmatpush1.msra.mxu0 0.0
      %4363 = vmatprep.mubr.f32.mxu0 0.0
      %4364 = vmatmul.mubr.f32.gmra.mrb[0].mxu0 %v4295
      %v4365 = vpop.f32.mrb[0].mxu0
      %v4366 = vadd.f32 0.0, %v4365
      %v4367 = vpop.f32.mrb[0].mxu0
      %4368 = vmatprep.mubr.f32.mxu0 0.0
      %4369 = vmatmul.mubr.f32.gmra.mrb[0].mxu0 %v4297
      %v4370 = vpop.f32.mrb[0].mxu0
      %v4371 = vadd.f32 0.0, %v4370
      %v4372 = vpop.f32.mrb[0].mxu0
      %4373 = vdwg.mxu0
      %v4374 = vadd.f32 %v4287, %v4366
      %v4375 = vadd.f32 %v4288, %v4371
      %v4376 = vrot.slane %v3948, 2
      %v4377 = vrot.slane %v3949, 2
      %v4378 = vsel %vm978, %v4376, %v4377
      %v4379 = vrot.slane %v3950, 2
      %v4380 = vsel %vm978, %v4377, %v4379
      %v4381 = vsel %vm544, %v4378, 0
      %v4383 = vsel %vm544, %v4380, 0
      %4385 = vmatprep.subr.mxu0 0.0
      %4386 = vmatpush1.msra.mxu0 %v1254
      %4387 = vmatprep.subr.mxu0 0.0
      %4388 = vmatpush1.msra.mxu0 0.0
      %4389 = vmatprep.subr.mxu0 0.0
      %4390 = vmatpush1.msra.mxu0 0.0
      %4391 = vmatprep.subr.mxu0 0.0
      %4392 = vmatpush1.msra.mxu0 0.0
      %4393 = vmatprep.subr.mxu0 0.0
      %4394 = vmatpush1.msra.mxu0 0.0
      %4395 = vmatprep.subr.mxu0 0.0
      %4396 = vmatpush1.msra.mxu0 0.0
      %4397 = vmatprep.subr.mxu0 0.0
      %4398 = vmatpush1.msra.mxu0 0.0
      %4399 = vmatprep.subr.mxu0 0.0
      %4400 = vmatpush1.msra.mxu0 0.0
      %4401 = vmatprep.subr.mxu0 0.0
      %4402 = vmatpush1.msra.mxu0 0.0
      %4403 = vmatprep.subr.mxu0 0.0
      %4404 = vmatpush1.msra.mxu0 0.0
      %4405 = vmatprep.subr.mxu0 0.0
      %4406 = vmatpush1.msra.mxu0 0.0
      %4407 = vmatprep.subr.mxu0 0.0
      %4408 = vmatpush1.msra.mxu0 0.0
      %4409 = vmatprep.subr.mxu0 0.0
      %4410 = vmatpush1.msra.mxu0 0.0
      %4411 = vmatprep.subr.mxu0 0.0
      %4412 = vmatpush1.msra.mxu0 0.0
      %4413 = vmatprep.subr.mxu0 0.0
      %4414 = vmatpush1.msra.mxu0 0.0
      %4415 = vmatprep.subr.mxu0 0.0
      %4416 = vmatpush1.msra.mxu0 0.0
      %4417 = vmatprep.subr.mxu0 0.0
      %4418 = vmatpush1.msra.mxu0 0.0
      %4419 = vmatprep.subr.mxu0 0.0
      %4420 = vmatpush1.msra.mxu0 0.0
      %4421 = vmatprep.subr.mxu0 0.0
      %4422 = vmatpush1.msra.mxu0 0.0
      %4423 = vmatprep.subr.mxu0 0.0
      %4424 = vmatpush1.msra.mxu0 0.0
      %4425 = vmatprep.subr.mxu0 0.0
      %4426 = vmatpush1.msra.mxu0 0.0
      %4427 = vmatprep.subr.mxu0 0.0
      %4428 = vmatpush1.msra.mxu0 0.0
      %4429 = vmatprep.subr.mxu0 0.0
      %4430 = vmatpush1.msra.mxu0 0.0
      %4431 = vmatprep.subr.mxu0 0.0
      %4432 = vmatpush1.msra.mxu0 0.0
      %4433 = vmatprep.subr.mxu0 0.0
      %4434 = vmatpush1.msra.mxu0 0.0
      %4435 = vmatprep.subr.mxu0 0.0
      %4436 = vmatpush1.msra.mxu0 0.0
      %4437 = vmatprep.subr.mxu0 0.0
      %4438 = vmatpush1.msra.mxu0 0.0
      %4439 = vmatprep.subr.mxu0 0.0
      %4440 = vmatpush1.msra.mxu0 0.0
      %4441 = vmatprep.subr.mxu0 0.0
      %4442 = vmatpush1.msra.mxu0 0.0
      %4443 = vmatprep.subr.mxu0 0.0
      %4444 = vmatpush1.msra.mxu0 0.0
      %4445 = vmatprep.subr.mxu0 0.0
      %4446 = vmatpush1.msra.mxu0 0.0
      %4447 = vmatprep.subr.mxu0 0.0
      %4448 = vmatpush1.msra.mxu0 0.0
      %4449 = vmatprep.mubr.f32.mxu0 0.0
      %4450 = vmatmul.mubr.f32.gmra.mrb[0].mxu0 %v4381
      %v4451 = vpop.f32.mrb[0].mxu0
      %v4452 = vadd.f32 0.0, %v4451
      %v4453 = vpop.f32.mrb[0].mxu0
      %4454 = vmatprep.mubr.f32.mxu0 0.0
      %4455 = vmatmul.mubr.f32.gmra.mrb[0].mxu0 %v4383
      %v4456 = vpop.f32.mrb[0].mxu0
      %v4457 = vadd.f32 0.0, %v4456
      %v4458 = vpop.f32.mrb[0].mxu0
      %4459 = vdwg.mxu0
      %v4460 = vadd.f32 %v4374, %v4452
      %v4461 = vadd.f32 %v4375, %v4457
      %v4463 = vsel %vm544, %v3951, 0
      %v4466 = vsel %vm544, %v3952, 0
      %4468 = vmatprep.subr.mxu0 0.0
      %4469 = vmatpush1.msra.mxu0 %v1340
      %4470 = vmatprep.subr.mxu0 0.0
      %4471 = vmatpush1.msra.mxu0 0.0
      %4472 = vmatprep.subr.mxu0 0.0
      %4473 = vmatpush1.msra.mxu0 0.0
      %4474 = vmatprep.subr.mxu0 0.0
      %4475 = vmatpush1.msra.mxu0 0.0
      %4476 = vmatprep.subr.mxu0 0.0
      %4477 = vmatpush1.msra.mxu0 0.0
      %4478 = vmatprep.subr.mxu0 0.0
      %4479 = vmatpush1.msra.mxu0 0.0
      %4480 = vmatprep.subr.mxu0 0.0
      %4481 = vmatpush1.msra.mxu0 0.0
      %4482 = vmatprep.subr.mxu0 0.0
      %4483 = vmatpush1.msra.mxu0 0.0
      %4484 = vmatprep.subr.mxu0 0.0
      %4485 = vmatpush1.msra.mxu0 0.0
      %4486 = vmatprep.subr.mxu0 0.0
      %4487 = vmatpush1.msra.mxu0 0.0
      %4488 = vmatprep.subr.mxu0 0.0
      %4489 = vmatpush1.msra.mxu0 0.0
      %4490 = vmatprep.subr.mxu0 0.0
      %4491 = vmatpush1.msra.mxu0 0.0
      %4492 = vmatprep.subr.mxu0 0.0
      %4493 = vmatpush1.msra.mxu0 0.0
      %4494 = vmatprep.subr.mxu0 0.0
      %4495 = vmatpush1.msra.mxu0 0.0
      %4496 = vmatprep.subr.mxu0 0.0
      %4497 = vmatpush1.msra.mxu0 0.0
      %4498 = vmatprep.subr.mxu0 0.0
      %4499 = vmatpush1.msra.mxu0 0.0
      %4500 = vmatprep.subr.mxu0 0.0
      %4501 = vmatpush1.msra.mxu0 0.0
      %4502 = vmatprep.subr.mxu0 0.0
      %4503 = vmatpush1.msra.mxu0 0.0
      %4504 = vmatprep.subr.mxu0 0.0
      %4505 = vmatpush1.msra.mxu0 0.0
      %4506 = vmatprep.subr.mxu0 0.0
      %4507 = vmatpush1.msra.mxu0 0.0
      %4508 = vmatprep.subr.mxu0 0.0
      %4509 = vmatpush1.msra.mxu0 0.0
      %4510 = vmatprep.subr.mxu0 0.0
      %4511 = vmatpush1.msra.mxu0 0.0
      %4512 = vmatprep.subr.mxu0 0.0
      %4513 = vmatpush1.msra.mxu0 0.0
      %4514 = vmatprep.subr.mxu0 0.0
      %4515 = vmatpush1.msra.mxu0 0.0
      %4516 = vmatprep.subr.mxu0 0.0
      %4517 = vmatpush1.msra.mxu0 0.0
      %4518 = vmatprep.subr.mxu0 0.0
      %4519 = vmatpush1.msra.mxu0 0.0
      %4520 = vmatprep.subr.mxu0 0.0
      %4521 = vmatpush1.msra.mxu0 0.0
      %4522 = vmatprep.subr.mxu0 0.0
      %4523 = vmatpush1.msra.mxu0 0.0
      %4524 = vmatprep.subr.mxu0 0.0
      %4525 = vmatpush1.msra.mxu0 0.0
      %4526 = vmatprep.subr.mxu0 0.0
      %4527 = vmatpush1.msra.mxu0 0.0
      %4528 = vmatprep.subr.mxu0 0.0
      %4529 = vmatpush1.msra.mxu0 0.0
      %4530 = vmatprep.subr.mxu0 0.0
      %4531 = vmatpush1.msra.mxu0 0.0
      %4532 = vmatprep.mubr.f32.mxu0 0.0
      %4533 = vmatmul.mubr.f32.gmra.mrb[0].mxu0 %v4463
      %v4534 = vpop.f32.mrb[0].mxu0
      %v4535 = vadd.f32 0.0, %v4534
      %v4536 = vpop.f32.mrb[0].mxu0
      %4537 = vmatprep.mubr.f32.mxu0 0.0
      %4538 = vmatmul.mubr.f32.gmra.mrb[0].mxu0 %v4466
      %v4539 = vpop.f32.mrb[0].mxu0
      %v4540 = vadd.f32 0.0, %v4539
      %v4541 = vpop.f32.mrb[0].mxu0
      %4542 = vdwg.mxu0
      %v4543 = vadd.f32 %v4460, %v4535
      %v4544 = vadd.f32 %v4461, %v4540
      %v4546 = vrot.slane %v3951, 1
      %v4547 = vrot.slane %v3952, 1
      %v4548 = vsel %vm807, %v4546, %v4547
      %v4549 = vrot.slane %v3953, 1
      %v4550 = vsel %vm807, %v4547, %v4549
      %v4551 = vsel %vm544, %v4548, 0
      %v4553 = vsel %vm544, %v4550, 0
      %4555 = vmatprep.subr.mxu0 0.0
      %4556 = vmatpush1.msra.mxu0 %v1430
      %4557 = vmatprep.subr.mxu0 0.0
      %4558 = vmatpush1.msra.mxu0 0.0
      %4559 = vmatprep.subr.mxu0 0.0
      %4560 = vmatpush1.msra.mxu0 0.0
      %4561 = vmatprep.subr.mxu0 0.0
      %4562 = vmatpush1.msra.mxu0 0.0
      %4563 = vmatprep.subr.mxu0 0.0
      %4564 = vmatpush1.msra.mxu0 0.0
      %4565 = vmatprep.subr.mxu0 0.0
      %4566 = vmatpush1.msra.mxu0 0.0
      %4567 = vmatprep.subr.mxu0 0.0
      %4568 = vmatpush1.msra.mxu0 0.0
      %4569 = vmatprep.subr.mxu0 0.0
      %4570 = vmatpush1.msra.mxu0 0.0
      %4571 = vmatprep.subr.mxu0 0.0
      %4572 = vmatpush1.msra.mxu0 0.0
      %4573 = vmatprep.subr.mxu0 0.0
      %4574 = vmatpush1.msra.mxu0 0.0
      %4575 = vmatprep.subr.mxu0 0.0
      %4576 = vmatpush1.msra.mxu0 0.0
      %4577 = vmatprep.subr.mxu0 0.0
      %4578 = vmatpush1.msra.mxu0 0.0
      %4579 = vmatprep.subr.mxu0 0.0
      %4580 = vmatpush1.msra.mxu0 0.0
      %4581 = vmatprep.subr.mxu0 0.0
      %4582 = vmatpush1.msra.mxu0 0.0
      %4583 = vmatprep.subr.mxu0 0.0
      %4584 = vmatpush1.msra.mxu0 0.0
      %4585 = vmatprep.subr.mxu0 0.0
      %4586 = vmatpush1.msra.mxu0 0.0
      %4587 = vmatprep.subr.mxu0 0.0
      %4588 = vmatpush1.msra.mxu0 0.0
      %4589 = vmatprep.subr.mxu0 0.0
      %4590 = vmatpush1.msra.mxu0 0.0
      %4591 = vmatprep.subr.mxu0 0.0
      %4592 = vmatpush1.msra.mxu0 0.0
      %4593 = vmatprep.subr.mxu0 0.0
      %4594 = vmatpush1.msra.mxu0 0.0
      %4595 = vmatprep.subr.mxu0 0.0
      %4596 = vmatpush1.msra.mxu0 0.0
      %4597 = vmatprep.subr.mxu0 0.0
      %4598 = vmatpush1.msra.mxu0 0.0
      %4599 = vmatprep.subr.mxu0 0.0
      %4600 = vmatpush1.msra.mxu0 0.0
      %4601 = vmatprep.subr.mxu0 0.0
      %4602 = vmatpush1.msra.mxu0 0.0
      %4603 = vmatprep.subr.mxu0 0.0
      %4604 = vmatpush1.msra.mxu0 0.0
      %4605 = vmatprep.subr.mxu0 0.0
      %4606 = vmatpush1.msra.mxu0 0.0
      %4607 = vmatprep.subr.mxu0 0.0
      %4608 = vmatpush1.msra.mxu0 0.0
      %4609 = vmatprep.subr.mxu0 0.0
      %4610 = vmatpush1.msra.mxu0 0.0
      %4611 = vmatprep.subr.mxu0 0.0
      %4612 = vmatpush1.msra.mxu0 0.0
      %4613 = vmatprep.subr.mxu0 0.0
      %4614 = vmatpush1.msra.mxu0 0.0
      %4615 = vmatprep.subr.mxu0 0.0
      %4616 = vmatpush1.msra.mxu0 0.0
      %4617 = vmatprep.subr.mxu0 0.0
      %4618 = vmatpush1.msra.mxu0 0.0
      %4619 = vmatprep.mubr.f32.mxu0 0.0
      %4620 = vmatmul.mubr.f32.gmra.mrb[0].mxu0 %v4551
      %v4621 = vpop.f32.mrb[0].mxu0
      %v4622 = vadd.f32 0.0, %v4621
      %v4623 = vpop.f32.mrb[0].mxu0
      %4624 = vmatprep.mubr.f32.mxu0 0.0
      %4625 = vmatmul.mubr.f32.gmra.mrb[0].mxu0 %v4553
      %v4626 = vpop.f32.mrb[0].mxu0
      %v4627 = vadd.f32 0.0, %v4626
      %v4628 = vpop.f32.mrb[0].mxu0
      %4629 = vdwg.mxu0
      %v4630 = vadd.f32 %v4543, %v4622
      %v4631 = vadd.f32 %v4544, %v4627
      %v4632 = vrot.slane %v3951, 2
      %v4633 = vrot.slane %v3952, 2
      %v4634 = vsel %vm978, %v4632, %v4633
      %v4635 = vrot.slane %v3953, 2
      %v4636 = vsel %vm978, %v4633, %v4635
      %v4637 = vsel %vm544, %v4634, 0
      %v4639 = vsel %vm544, %v4636, 0
      %4641 = vmatprep.subr.mxu0 0.0
      %4642 = vmatpush1.msra.mxu0 %v1519
      %4643 = vmatprep.subr.mxu0 0.0
      %4644 = vmatpush1.msra.mxu0 0.0
      %4645 = vmatprep.subr.mxu0 0.0
      %4646 = vmatpush1.msra.mxu0 0.0
      %4647 = vmatprep.subr.mxu0 0.0
      %4648 = vmatpush1.msra.mxu0 0.0
      %4649 = vmatprep.subr.mxu0 0.0
      %4650 = vmatpush1.msra.mxu0 0.0
      %4651 = vmatprep.subr.mxu0 0.0
      %4652 = vmatpush1.msra.mxu0 0.0
      %4653 = vmatprep.subr.mxu0 0.0
      %4654 = vmatpush1.msra.mxu0 0.0
      %4655 = vmatprep.subr.mxu0 0.0
      %4656 = vmatpush1.msra.mxu0 0.0
      %4657 = vmatprep.subr.mxu0 0.0
      %4658 = vmatpush1.msra.mxu0 0.0
      %4659 = vmatprep.subr.mxu0 0.0
      %4660 = vmatpush1.msra.mxu0 0.0
      %4661 = vmatprep.subr.mxu0 0.0
      %4662 = vmatpush1.msra.mxu0 0.0
      %4663 = vmatprep.subr.mxu0 0.0
      %4664 = vmatpush1.msra.mxu0 0.0
      %4665 = vmatprep.subr.mxu0 0.0
      %4666 = vmatpush1.msra.mxu0 0.0
      %4667 = vmatprep.subr.mxu0 0.0
      %4668 = vmatpush1.msra.mxu0 0.0
      %4669 = vmatprep.subr.mxu0 0.0
      %4670 = vmatpush1.msra.mxu0 0.0
      %4671 = vmatprep.subr.mxu0 0.0
      %4672 = vmatpush1.msra.mxu0 0.0
      %4673 = vmatprep.subr.mxu0 0.0
      %4674 = vmatpush1.msra.mxu0 0.0
      %4675 = vmatprep.subr.mxu0 0.0
      %4676 = vmatpush1.msra.mxu0 0.0
      %4677 = vmatprep.subr.mxu0 0.0
      %4678 = vmatpush1.msra.mxu0 0.0
      %4679 = vmatprep.subr.mxu0 0.0
      %4680 = vmatpush1.msra.mxu0 0.0
      %4681 = vmatprep.subr.mxu0 0.0
      %4682 = vmatpush1.msra.mxu0 0.0
      %4683 = vmatprep.subr.mxu0 0.0
      %4684 = vmatpush1.msra.mxu0 0.0
      %4685 = vmatprep.subr.mxu0 0.0
      %4686 = vmatpush1.msra.mxu0 0.0
      %4687 = vmatprep.subr.mxu0 0.0
      %4688 = vmatpush1.msra.mxu0 0.0
      %4689 = vmatprep.subr.mxu0 0.0
      %4690 = vmatpush1.msra.mxu0 0.0
      %4691 = vmatprep.subr.mxu0 0.0
      %4692 = vmatpush1.msra.mxu0 0.0
      %4693 = vmatprep.subr.mxu0 0.0
      %4694 = vmatpush1.msra.mxu0 0.0
      %4695 = vmatprep.subr.mxu0 0.0
      %4696 = vmatpush1.msra.mxu0 0.0
      %4697 = vmatprep.subr.mxu0 0.0
      %4698 = vmatpush1.msra.mxu0 0.0
      %4699 = vmatprep.subr.mxu0 0.0
      %4700 = vmatpush1.msra.mxu0 0.0
      %4701 = vmatprep.subr.mxu0 0.0
      %4702 = vmatpush1.msra.mxu0 0.0
      %4703 = vmatprep.subr.mxu0 0.0
      %4704 = vmatpush1.msra.mxu0 0.0
      %4705 = vmatprep.mubr.f32.mxu0 0.0
      %4706 = vmatmul.mubr.f32.gmra.mrb[0].mxu0 %v4637
      %v4707 = vpop.f32.mrb[0].mxu0
      %v4708 = vadd.f32 0.0, %v4707
      %v4709 = vpop.f32.mrb[0].mxu0
      %4710 = vmatprep.mubr.f32.mxu0 0.0
      %4711 = vmatmul.mubr.f32.gmra.mrb[0].mxu0 %v4639
      %v4712 = vpop.f32.mrb[0].mxu0
      %v4713 = vadd.f32 0.0, %v4712
      %v4714 = vpop.f32.mrb[0].mxu0
      %4715 = vdwg.mxu0
      %v4716 = vadd.f32 %v4630, %v4708
      %v4717 = vadd.f32 %v4631, %v4713
      %v4718 = vadd.f32 %v4716, %v1602
      %v4719 = vadd.f32 %v4717, %v1602
      %s4720 = scalar_lea.vmem %s524, 64
      %4721 = vst.msk [vmem:[%s4720] sm:$0xff] %vm544, %v4718
      %4722 = vst.msk [vmem:[%s4720 + $0x8] sm:$0xff] %vm544, %v4719
      %s4723 = scalar_lea.vmem [#allocation2], 120
      %v4724 = vld [vmem:[%s4723] sm:$0xff]
      %v4725 = vld [vmem:[%s4723 + $0x8] sm:$0xff]
      %v4726 = vld [vmem:[%s4723 + $0x10] sm:$0x3]
      %v4727 = vld [vmem:[%s4723 + $0x18] sm:$0xff]
      %v4728 = vld [vmem:[%s4723 + $0x20] sm:$0xff]
      %v4729 = vld [vmem:[%s4723 + $0x28] sm:$0x3]
      %v4730 = vld [vmem:[%s4723 + $0x30] sm:$0xff]
      %v4731 = vld [vmem:[%s4723 + $0x38] sm:$0xff]
      %v4732 = vld [vmem:[%s4723 + $0x40] sm:$0x3]
      %v4736 = vrot.slane %v4724, 1
      %v4737 = vrot.slane %v4725, 1
      %v4738 = vsel %vm807, %v4736, %v4737
      %v4739 = vrot.slane %v4726, 1
      %v4740 = vsel %vm807, %v4737, %v4739
      %v4741 = vsel %vm544, %v4738, 0
      %v4743 = vsel %vm544, %v4740, 0
      %4745 = vmatprep.subr.mxu0 0.0
      %4746 = vmatpush1.msra.mxu0 %v819
      %4747 = vmatprep.subr.mxu0 0.0
      %4748 = vmatpush1.msra.mxu0 0.0
      %4749 = vmatprep.subr.mxu0 0.0
      %4750 = vmatpush1.msra.mxu0 0.0
      %4751 = vmatprep.subr.mxu0 0.0
      %4752 = vmatpush1.msra.mxu0 0.0
      %4753 = vmatprep.subr.mxu0 0.0
      %4754 = vmatpush1.msra.mxu0 0.0
      %4755 = vmatprep.subr.mxu0 0.0
      %4756 = vmatpush1.msra.mxu0 0.0
      %4757 = vmatprep.subr.mxu0 0.0
      %4758 = vmatpush1.msra.mxu0 0.0
      %4759 = vmatprep.subr.mxu0 0.0
      %4760 = vmatpush1.msra.mxu0 0.0
      %4761 = vmatprep.subr.mxu0 0.0
      %4762 = vmatpush1.msra.mxu0 0.0
      %4763 = vmatprep.subr.mxu0 0.0
      %4764 = vmatpush1.msra.mxu0 0.0
      %4765 = vmatprep.subr.mxu0 0.0
      %4766 = vmatpush1.msra.mxu0 0.0
      %4767 = vmatprep.subr.mxu0 0.0
      %4768 = vmatpush1.msra.mxu0 0.0
      %4769 = vmatprep.subr.mxu0 0.0
      %4770 = vmatpush1.msra.mxu0 0.0
      %4771 = vmatprep.subr.mxu0 0.0
      %4772 = vmatpush1.msra.mxu0 0.0
      %4773 = vmatprep.subr.mxu0 0.0
      %4774 = vmatpush1.msra.mxu0 0.0
      %4775 = vmatprep.subr.mxu0 0.0
      %4776 = vmatpush1.msra.mxu0 0.0
      %4777 = vmatprep.subr.mxu0 0.0
      %4778 = vmatpush1.msra.mxu0 0.0
      %4779 = vmatprep.subr.mxu0 0.0
      %4780 = vmatpush1.msra.mxu0 0.0
      %4781 = vmatprep.subr.mxu0 0.0
      %4782 = vmatpush1.msra.mxu0 0.0
      %4783 = vmatprep.subr.mxu0 0.0
      %4784 = vmatpush1.msra.mxu0 0.0
      %4785 = vmatprep.subr.mxu0 0.0
      %4786 = vmatpush1.msra.mxu0 0.0
      %4787 = vmatprep.subr.mxu0 0.0
      %4788 = vmatpush1.msra.mxu0 0.0
      %4789 = vmatprep.subr.mxu0 0.0
      %4790 = vmatpush1.msra.mxu0 0.0
      %4791 = vmatprep.subr.mxu0 0.0
      %4792 = vmatpush1.msra.mxu0 0.0
      %4793 = vmatprep.subr.mxu0 0.0
      %4794 = vmatpush1.msra.mxu0 0.0
      %4795 = vmatprep.subr.mxu0 0.0
      %4796 = vmatpush1.msra.mxu0 0.0
      %4797 = vmatprep.subr.mxu0 0.0
      %4798 = vmatpush1.msra.mxu0 0.0
      %4799 = vmatprep.subr.mxu0 0.0
      %4800 = vmatpush1.msra.mxu0 0.0
      %4801 = vmatprep.subr.mxu0 0.0
      %4802 = vmatpush1.msra.mxu0 0.0
      %4803 = vmatprep.subr.mxu0 0.0
      %4804 = vmatpush1.msra.mxu0 0.0
      %4805 = vmatprep.subr.mxu0 0.0
      %4806 = vmatpush1.msra.mxu0 0.0
      %4807 = vmatprep.subr.mxu0 0.0
      %4808 = vmatpush1.msra.mxu0 0.0
      %4809 = vmatprep.mubr.f32.mxu0 0.0
      %4810 = vmatmul.mubr.f32.gmra.mrb[0].mxu0 %v4741
      %v4811 = vpop.f32.mrb[0].mxu0
      %v4812 = vadd.f32 0.0, %v4811
      %v4813 = vpop.f32.mrb[0].mxu0
      %4814 = vmatprep.mubr.f32.mxu0 0.0
      %4815 = vmatmul.mubr.f32.gmra.mrb[0].mxu0 %v4743
      %v4816 = vpop.f32.mrb[0].mxu0
      %v4817 = vadd.f32 0.0, %v4816
      %v4818 = vpop.f32.mrb[0].mxu0
      %4819 = vdwg.mxu0
      %v4820 = vsel %vm544, %v4724, 0
      %v4822 = vsel %vm544, %v4725, 0
      %4824 = vmatprep.subr.mxu0 0.0
      %4825 = vmatpush1.msra.mxu0 %v901
      %4826 = vmatprep.subr.mxu0 0.0
      %4827 = vmatpush1.msra.mxu0 0.0
      %4828 = vmatprep.subr.mxu0 0.0
      %4829 = vmatpush1.msra.mxu0 0.0
      %4830 = vmatprep.subr.mxu0 0.0
      %4831 = vmatpush1.msra.mxu0 0.0
      %4832 = vmatprep.subr.mxu0 0.0
      %4833 = vmatpush1.msra.mxu0 0.0
      %4834 = vmatprep.subr.mxu0 0.0
      %4835 = vmatpush1.msra.mxu0 0.0
      %4836 = vmatprep.subr.mxu0 0.0
      %4837 = vmatpush1.msra.mxu0 0.0
      %4838 = vmatprep.subr.mxu0 0.0
      %4839 = vmatpush1.msra.mxu0 0.0
      %4840 = vmatprep.subr.mxu0 0.0
      %4841 = vmatpush1.msra.mxu0 0.0
      %4842 = vmatprep.subr.mxu0 0.0
      %4843 = vmatpush1.msra.mxu0 0.0
      %4844 = vmatprep.subr.mxu0 0.0
      %4845 = vmatpush1.msra.mxu0 0.0
      %4846 = vmatprep.subr.mxu0 0.0
      %4847 = vmatpush1.msra.mxu0 0.0
      %4848 = vmatprep.subr.mxu0 0.0
      %4849 = vmatpush1.msra.mxu0 0.0
      %4850 = vmatprep.subr.mxu0 0.0
      %4851 = vmatpush1.msra.mxu0 0.0
      %4852 = vmatprep.subr.mxu0 0.0
      %4853 = vmatpush1.msra.mxu0 0.0
      %4854 = vmatprep.subr.mxu0 0.0
      %4855 = vmatpush1.msra.mxu0 0.0
      %4856 = vmatprep.subr.mxu0 0.0
      %4857 = vmatpush1.msra.mxu0 0.0
      %4858 = vmatprep.subr.mxu0 0.0
      %4859 = vmatpush1.msra.mxu0 0.0
      %4860 = vmatprep.subr.mxu0 0.0
      %4861 = vmatpush1.msra.mxu0 0.0
      %4862 = vmatprep.subr.mxu0 0.0
      %4863 = vmatpush1.msra.mxu0 0.0
      %4864 = vmatprep.subr.mxu0 0.0
      %4865 = vmatpush1.msra.mxu0 0.0
      %4866 = vmatprep.subr.mxu0 0.0
      %4867 = vmatpush1.msra.mxu0 0.0
      %4868 = vmatprep.subr.mxu0 0.0
      %4869 = vmatpush1.msra.mxu0 0.0
      %4870 = vmatprep.subr.mxu0 0.0
      %4871 = vmatpush1.msra.mxu0 0.0
      %4872 = vmatprep.subr.mxu0 0.0
      %4873 = vmatpush1.msra.mxu0 0.0
      %4874 = vmatprep.subr.mxu0 0.0
      %4875 = vmatpush1.msra.mxu0 0.0
      %4876 = vmatprep.subr.mxu0 0.0
      %4877 = vmatpush1.msra.mxu0 0.0
      %4878 = vmatprep.subr.mxu0 0.0
      %4879 = vmatpush1.msra.mxu0 0.0
      %4880 = vmatprep.subr.mxu0 0.0
      %4881 = vmatpush1.msra.mxu0 0.0
      %4882 = vmatprep.subr.mxu0 0.0
      %4883 = vmatpush1.msra.mxu0 0.0
      %4884 = vmatprep.subr.mxu0 0.0
      %4885 = vmatpush1.msra.mxu0 0.0
      %4886 = vmatprep.subr.mxu0 0.0
      %4887 = vmatpush1.msra.mxu0 0.0
      %4888 = vmatprep.mubr.f32.mxu0 0.0
      %4889 = vmatmul.mubr.f32.gmra.mrb[0].mxu0 %v4820
      %v4890 = vpop.f32.mrb[0].mxu0
      %v4891 = vadd.f32 %v4812, %v4890
      %v4892 = vpop.f32.mrb[0].mxu0
      %4893 = vmatprep.mubr.f32.mxu0 0.0
      %4894 = vmatmul.mubr.f32.gmra.mrb[0].mxu0 %v4822
      %v4895 = vpop.f32.mrb[0].mxu0
      %v4896 = vadd.f32 %v4817, %v4895
      %v4897 = vpop.f32.mrb[0].mxu0
      %4898 = vdwg.mxu0
      %v4899 = vrot.slane %v4724, 2
      %v4900 = vrot.slane %v4725, 2
      %v4901 = vsel %vm978, %v4899, %v4900
      %v4902 = vrot.slane %v4726, 2
      %v4903 = vsel %vm978, %v4900, %v4902
      %v4904 = vsel %vm544, %v4901, 0
      %v4906 = vsel %vm544, %v4903, 0
      %4908 = vmatprep.subr.mxu0 0.0
      %4909 = vmatpush1.msra.mxu0 %v989
      %4910 = vmatprep.subr.mxu0 0.0
      %4911 = vmatpush1.msra.mxu0 0.0
      %4912 = vmatprep.subr.mxu0 0.0
      %4913 = vmatpush1.msra.mxu0 0.0
      %4914 = vmatprep.subr.mxu0 0.0
      %4915 = vmatpush1.msra.mxu0 0.0
      %4916 = vmatprep.subr.mxu0 0.0
      %4917 = vmatpush1.msra.mxu0 0.0
      %4918 = vmatprep.subr.mxu0 0.0
      %4919 = vmatpush1.msra.mxu0 0.0
      %4920 = vmatprep.subr.mxu0 0.0
      %4921 = vmatpush1.msra.mxu0 0.0
      %4922 = vmatprep.subr.mxu0 0.0
      %4923 = vmatpush1.msra.mxu0 0.0
      %4924 = vmatprep.subr.mxu0 0.0
      %4925 = vmatpush1.msra.mxu0 0.0
      %4926 = vmatprep.subr.mxu0 0.0
      %4927 = vmatpush1.msra.mxu0 0.0
      %4928 = vmatprep.subr.mxu0 0.0
      %4929 = vmatpush1.msra.mxu0 0.0
      %4930 = vmatprep.subr.mxu0 0.0
      %4931 = vmatpush1.msra.mxu0 0.0
      %4932 = vmatprep.subr.mxu0 0.0
      %4933 = vmatpush1.msra.mxu0 0.0
      %4934 = vmatprep.subr.mxu0 0.0
      %4935 = vmatpush1.msra.mxu0 0.0
      %4936 = vmatprep.subr.mxu0 0.0
      %4937 = vmatpush1.msra.mxu0 0.0
      %4938 = vmatprep.subr.mxu0 0.0
      %4939 = vmatpush1.msra.mxu0 0.0
      %4940 = vmatprep.subr.mxu0 0.0
      %4941 = vmatpush1.msra.mxu0 0.0
      %4942 = vmatprep.subr.mxu0 0.0
      %4943 = vmatpush1.msra.mxu0 0.0
      %4944 = vmatprep.subr.mxu0 0.0
      %4945 = vmatpush1.msra.mxu0 0.0
      %4946 = vmatprep.subr.mxu0 0.0
      %4947 = vmatpush1.msra.mxu0 0.0
      %4948 = vmatprep.subr.mxu0 0.0
      %4949 = vmatpush1.msra.mxu0 0.0
      %4950 = vmatprep.subr.mxu0 0.0
      %4951 = vmatpush1.msra.mxu0 0.0
      %4952 = vmatprep.subr.mxu0 0.0
      %4953 = vmatpush1.msra.mxu0 0.0
      %4954 = vmatprep.subr.mxu0 0.0
      %4955 = vmatpush1.msra.mxu0 0.0
      %4956 = vmatprep.subr.mxu0 0.0
      %4957 = vmatpush1.msra.mxu0 0.0
      %4958 = vmatprep.subr.mxu0 0.0
      %4959 = vmatpush1.msra.mxu0 0.0
      %4960 = vmatprep.subr.mxu0 0.0
      %4961 = vmatpush1.msra.mxu0 0.0
      %4962 = vmatprep.subr.mxu0 0.0
      %4963 = vmatpush1.msra.mxu0 0.0
      %4964 = vmatprep.subr.mxu0 0.0
      %4965 = vmatpush1.msra.mxu0 0.0
      %4966 = vmatprep.subr.mxu0 0.0
      %4967 = vmatpush1.msra.mxu0 0.0
      %4968 = vmatprep.subr.mxu0 0.0
      %4969 = vmatpush1.msra.mxu0 0.0
      %4970 = vmatprep.subr.mxu0 0.0
      %4971 = vmatpush1.msra.mxu0 0.0
      %4972 = vmatprep.mubr.f32.mxu0 0.0
      %4973 = vmatmul.mubr.f32.gmra.mrb[0].mxu0 %v4904
      %v4974 = vpop.f32.mrb[0].mxu0
      %v4975 = vadd.f32 0.0, %v4974
      %v4976 = vpop.f32.mrb[0].mxu0
      %4977 = vmatprep.mubr.f32.mxu0 0.0
      %4978 = vmatmul.mubr.f32.gmra.mrb[0].mxu0 %v4906
      %v4979 = vpop.f32.mrb[0].mxu0
      %v4980 = vadd.f32 0.0, %v4979
      %v4981 = vpop.f32.mrb[0].mxu0
      %4982 = vdwg.mxu0
      %v4983 = vadd.f32 %v4891, %v4975
      %v4984 = vadd.f32 %v4896, %v4980
      %v4986 = vsel %vm544, %v4727, 0
      %v4989 = vsel %vm544, %v4728, 0
      %4991 = vmatprep.subr.mxu0 0.0
      %4992 = vmatpush1.msra.mxu0 %v1075
      %4993 = vmatprep.subr.mxu0 0.0
      %4994 = vmatpush1.msra.mxu0 0.0
      %4995 = vmatprep.subr.mxu0 0.0
      %4996 = vmatpush1.msra.mxu0 0.0
      %4997 = vmatprep.subr.mxu0 0.0
      %4998 = vmatpush1.msra.mxu0 0.0
      %4999 = vmatprep.subr.mxu0 0.0
      %5000 = vmatpush1.msra.mxu0 0.0
      %5001 = vmatprep.subr.mxu0 0.0
      %5002 = vmatpush1.msra.mxu0 0.0
      %5003 = vmatprep.subr.mxu0 0.0
      %5004 = vmatpush1.msra.mxu0 0.0
      %5005 = vmatprep.subr.mxu0 0.0
      %5006 = vmatpush1.msra.mxu0 0.0
      %5007 = vmatprep.subr.mxu0 0.0
      %5008 = vmatpush1.msra.mxu0 0.0
      %5009 = vmatprep.subr.mxu0 0.0
      %5010 = vmatpush1.msra.mxu0 0.0
      %5011 = vmatprep.subr.mxu0 0.0
      %5012 = vmatpush1.msra.mxu0 0.0
      %5013 = vmatprep.subr.mxu0 0.0
      %5014 = vmatpush1.msra.mxu0 0.0
      %5015 = vmatprep.subr.mxu0 0.0
      %5016 = vmatpush1.msra.mxu0 0.0
      %5017 = vmatprep.subr.mxu0 0.0
      %5018 = vmatpush1.msra.mxu0 0.0
      %5019 = vmatprep.subr.mxu0 0.0
      %5020 = vmatpush1.msra.mxu0 0.0
      %5021 = vmatprep.subr.mxu0 0.0
      %5022 = vmatpush1.msra.mxu0 0.0
      %5023 = vmatprep.subr.mxu0 0.0
      %5024 = vmatpush1.msra.mxu0 0.0
      %5025 = vmatprep.subr.mxu0 0.0
      %5026 = vmatpush1.msra.mxu0 0.0
      %5027 = vmatprep.subr.mxu0 0.0
      %5028 = vmatpush1.msra.mxu0 0.0
      %5029 = vmatprep.subr.mxu0 0.0
      %5030 = vmatpush1.msra.mxu0 0.0
      %5031 = vmatprep.subr.mxu0 0.0
      %5032 = vmatpush1.msra.mxu0 0.0
      %5033 = vmatprep.subr.mxu0 0.0
      %5034 = vmatpush1.msra.mxu0 0.0
      %5035 = vmatprep.subr.mxu0 0.0
      %5036 = vmatpush1.msra.mxu0 0.0
      %5037 = vmatprep.subr.mxu0 0.0
      %5038 = vmatpush1.msra.mxu0 0.0
      %5039 = vmatprep.subr.mxu0 0.0
      %5040 = vmatpush1.msra.mxu0 0.0
      %5041 = vmatprep.subr.mxu0 0.0
      %5042 = vmatpush1.msra.mxu0 0.0
      %5043 = vmatprep.subr.mxu0 0.0
      %5044 = vmatpush1.msra.mxu0 0.0
      %5045 = vmatprep.subr.mxu0 0.0
      %5046 = vmatpush1.msra.mxu0 0.0
      %5047 = vmatprep.subr.mxu0 0.0
      %5048 = vmatpush1.msra.mxu0 0.0
      %5049 = vmatprep.subr.mxu0 0.0
      %5050 = vmatpush1.msra.mxu0 0.0
      %5051 = vmatprep.subr.mxu0 0.0
      %5052 = vmatpush1.msra.mxu0 0.0
      %5053 = vmatprep.subr.mxu0 0.0
      %5054 = vmatpush1.msra.mxu0 0.0
      %5055 = vmatprep.mubr.f32.mxu0 0.0
      %5056 = vmatmul.mubr.f32.gmra.mrb[0].mxu0 %v4986
      %v5057 = vpop.f32.mrb[0].mxu0
      %v5058 = vadd.f32 0.0, %v5057
      %v5059 = vpop.f32.mrb[0].mxu0
      %5060 = vmatprep.mubr.f32.mxu0 0.0
      %5061 = vmatmul.mubr.f32.gmra.mrb[0].mxu0 %v4989
      %v5062 = vpop.f32.mrb[0].mxu0
      %v5063 = vadd.f32 0.0, %v5062
      %v5064 = vpop.f32.mrb[0].mxu0
      %5065 = vdwg.mxu0
      %v5066 = vadd.f32 %v4983, %v5058
      %v5067 = vadd.f32 %v4984, %v5063
      %v5069 = vrot.slane %v4727, 1
      %v5070 = vrot.slane %v4728, 1
      %v5071 = vsel %vm807, %v5069, %v5070
      %v5072 = vrot.slane %v4729, 1
      %v5073 = vsel %vm807, %v5070, %v5072
      %v5074 = vsel %vm544, %v5071, 0
      %v5076 = vsel %vm544, %v5073, 0
      %5078 = vmatprep.subr.mxu0 0.0
      %5079 = vmatpush1.msra.mxu0 %v1165
      %5080 = vmatprep.subr.mxu0 0.0
      %5081 = vmatpush1.msra.mxu0 0.0
      %5082 = vmatprep.subr.mxu0 0.0
      %5083 = vmatpush1.msra.mxu0 0.0
      %5084 = vmatprep.subr.mxu0 0.0
      %5085 = vmatpush1.msra.mxu0 0.0
      %5086 = vmatprep.subr.mxu0 0.0
      %5087 = vmatpush1.msra.mxu0 0.0
      %5088 = vmatprep.subr.mxu0 0.0
      %5089 = vmatpush1.msra.mxu0 0.0
      %5090 = vmatprep.subr.mxu0 0.0
      %5091 = vmatpush1.msra.mxu0 0.0
      %5092 = vmatprep.subr.mxu0 0.0
      %5093 = vmatpush1.msra.mxu0 0.0
      %5094 = vmatprep.subr.mxu0 0.0
      %5095 = vmatpush1.msra.mxu0 0.0
      %5096 = vmatprep.subr.mxu0 0.0
      %5097 = vmatpush1.msra.mxu0 0.0
      %5098 = vmatprep.subr.mxu0 0.0
      %5099 = vmatpush1.msra.mxu0 0.0
      %5100 = vmatprep.subr.mxu0 0.0
      %5101 = vmatpush1.msra.mxu0 0.0
      %5102 = vmatprep.subr.mxu0 0.0
      %5103 = vmatpush1.msra.mxu0 0.0
      %5104 = vmatprep.subr.mxu0 0.0
      %5105 = vmatpush1.msra.mxu0 0.0
      %5106 = vmatprep.subr.mxu0 0.0
      %5107 = vmatpush1.msra.mxu0 0.0
      %5108 = vmatprep.subr.mxu0 0.0
      %5109 = vmatpush1.msra.mxu0 0.0
      %5110 = vmatprep.subr.mxu0 0.0
      %5111 = vmatpush1.msra.mxu0 0.0
      %5112 = vmatprep.subr.mxu0 0.0
      %5113 = vmatpush1.msra.mxu0 0.0
      %5114 = vmatprep.subr.mxu0 0.0
      %5115 = vmatpush1.msra.mxu0 0.0
      %5116 = vmatprep.subr.mxu0 0.0
      %5117 = vmatpush1.msra.mxu0 0.0
      %5118 = vmatprep.subr.mxu0 0.0
      %5119 = vmatpush1.msra.mxu0 0.0
      %5120 = vmatprep.subr.mxu0 0.0
      %5121 = vmatpush1.msra.mxu0 0.0
      %5122 = vmatprep.subr.mxu0 0.0
      %5123 = vmatpush1.msra.mxu0 0.0
      %5124 = vmatprep.subr.mxu0 0.0
      %5125 = vmatpush1.msra.mxu0 0.0
      %5126 = vmatprep.subr.mxu0 0.0
      %5127 = vmatpush1.msra.mxu0 0.0
      %5128 = vmatprep.subr.mxu0 0.0
      %5129 = vmatpush1.msra.mxu0 0.0
      %5130 = vmatprep.subr.mxu0 0.0
      %5131 = vmatpush1.msra.mxu0 0.0
      %5132 = vmatprep.subr.mxu0 0.0
      %5133 = vmatpush1.msra.mxu0 0.0
      %5134 = vmatprep.subr.mxu0 0.0
      %5135 = vmatpush1.msra.mxu0 0.0
      %5136 = vmatprep.subr.mxu0 0.0
      %5137 = vmatpush1.msra.mxu0 0.0
      %5138 = vmatprep.subr.mxu0 0.0
      %5139 = vmatpush1.msra.mxu0 0.0
      %5140 = vmatprep.subr.mxu0 0.0
      %5141 = vmatpush1.msra.mxu0 0.0
      %5142 = vmatprep.mubr.f32.mxu0 0.0
      %5143 = vmatmul.mubr.f32.gmra.mrb[0].mxu0 %v5074
      %v5144 = vpop.f32.mrb[0].mxu0
      %v5145 = vadd.f32 0.0, %v5144
      %v5146 = vpop.f32.mrb[0].mxu0
      %5147 = vmatprep.mubr.f32.mxu0 0.0
      %5148 = vmatmul.mubr.f32.gmra.mrb[0].mxu0 %v5076
      %v5149 = vpop.f32.mrb[0].mxu0
      %v5150 = vadd.f32 0.0, %v5149
      %v5151 = vpop.f32.mrb[0].mxu0
      %5152 = vdwg.mxu0
      %v5153 = vadd.f32 %v5066, %v5145
      %v5154 = vadd.f32 %v5067, %v5150
      %v5155 = vrot.slane %v4727, 2
      %v5156 = vrot.slane %v4728, 2
      %v5157 = vsel %vm978, %v5155, %v5156
      %v5158 = vrot.slane %v4729, 2
      %v5159 = vsel %vm978, %v5156, %v5158
      %v5160 = vsel %vm544, %v5157, 0
      %v5162 = vsel %vm544, %v5159, 0
      %5164 = vmatprep.subr.mxu0 0.0
      %5165 = vmatpush1.msra.mxu0 %v1254
      %5166 = vmatprep.subr.mxu0 0.0
      %5167 = vmatpush1.msra.mxu0 0.0
      %5168 = vmatprep.subr.mxu0 0.0
      %5169 = vmatpush1.msra.mxu0 0.0
      %5170 = vmatprep.subr.mxu0 0.0
      %5171 = vmatpush1.msra.mxu0 0.0
      %5172 = vmatprep.subr.mxu0 0.0
      %5173 = vmatpush1.msra.mxu0 0.0
      %5174 = vmatprep.subr.mxu0 0.0
      %5175 = vmatpush1.msra.mxu0 0.0
      %5176 = vmatprep.subr.mxu0 0.0
      %5177 = vmatpush1.msra.mxu0 0.0
      %5178 = vmatprep.subr.mxu0 0.0
      %5179 = vmatpush1.msra.mxu0 0.0
      %5180 = vmatprep.subr.mxu0 0.0
      %5181 = vmatpush1.msra.mxu0 0.0
      %5182 = vmatprep.subr.mxu0 0.0
      %5183 = vmatpush1.msra.mxu0 0.0
      %5184 = vmatprep.subr.mxu0 0.0
      %5185 = vmatpush1.msra.mxu0 0.0
      %5186 = vmatprep.subr.mxu0 0.0
      %5187 = vmatpush1.msra.mxu0 0.0
      %5188 = vmatprep.subr.mxu0 0.0
      %5189 = vmatpush1.msra.mxu0 0.0
      %5190 = vmatprep.subr.mxu0 0.0
      %5191 = vmatpush1.msra.mxu0 0.0
      %5192 = vmatprep.subr.mxu0 0.0
      %5193 = vmatpush1.msra.mxu0 0.0
      %5194 = vmatprep.subr.mxu0 0.0
      %5195 = vmatpush1.msra.mxu0 0.0
      %5196 = vmatprep.subr.mxu0 0.0
      %5197 = vmatpush1.msra.mxu0 0.0
      %5198 = vmatprep.subr.mxu0 0.0
      %5199 = vmatpush1.msra.mxu0 0.0
      %5200 = vmatprep.subr.mxu0 0.0
      %5201 = vmatpush1.msra.mxu0 0.0
      %5202 = vmatprep.subr.mxu0 0.0
      %5203 = vmatpush1.msra.mxu0 0.0
      %5204 = vmatprep.subr.mxu0 0.0
      %5205 = vmatpush1.msra.mxu0 0.0
      %5206 = vmatprep.subr.mxu0 0.0
      %5207 = vmatpush1.msra.mxu0 0.0
      %5208 = vmatprep.subr.mxu0 0.0
      %5209 = vmatpush1.msra.mxu0 0.0
      %5210 = vmatprep.subr.mxu0 0.0
      %5211 = vmatpush1.msra.mxu0 0.0
      %5212 = vmatprep.subr.mxu0 0.0
      %5213 = vmatpush1.msra.mxu0 0.0
      %5214 = vmatprep.subr.mxu0 0.0
      %5215 = vmatpush1.msra.mxu0 0.0
      %5216 = vmatprep.subr.mxu0 0.0
      %5217 = vmatpush1.msra.mxu0 0.0
      %5218 = vmatprep.subr.mxu0 0.0
      %5219 = vmatpush1.msra.mxu0 0.0
      %5220 = vmatprep.subr.mxu0 0.0
      %5221 = vmatpush1.msra.mxu0 0.0
      %5222 = vmatprep.subr.mxu0 0.0
      %5223 = vmatpush1.msra.mxu0 0.0
      %5224 = vmatprep.subr.mxu0 0.0
      %5225 = vmatpush1.msra.mxu0 0.0
      %5226 = vmatprep.subr.mxu0 0.0
      %5227 = vmatpush1.msra.mxu0 0.0
      %5228 = vmatprep.mubr.f32.mxu0 0.0
      %5229 = vmatmul.mubr.f32.gmra.mrb[0].mxu0 %v5160
      %v5230 = vpop.f32.mrb[0].mxu0
      %v5231 = vadd.f32 0.0, %v5230
      %v5232 = vpop.f32.mrb[0].mxu0
      %5233 = vmatprep.mubr.f32.mxu0 0.0
      %5234 = vmatmul.mubr.f32.gmra.mrb[0].mxu0 %v5162
      %v5235 = vpop.f32.mrb[0].mxu0
      %v5236 = vadd.f32 0.0, %v5235
      %v5237 = vpop.f32.mrb[0].mxu0
      %5238 = vdwg.mxu0
      %v5239 = vadd.f32 %v5153, %v5231
      %v5240 = vadd.f32 %v5154, %v5236
      %v5242 = vsel %vm544, %v4730, 0
      %v5245 = vsel %vm544, %v4731, 0
      %5247 = vmatprep.subr.mxu0 0.0
      %5248 = vmatpush1.msra.mxu0 %v1340
      %5249 = vmatprep.subr.mxu0 0.0
      %5250 = vmatpush1.msra.mxu0 0.0
      %5251 = vmatprep.subr.mxu0 0.0
      %5252 = vmatpush1.msra.mxu0 0.0
      %5253 = vmatprep.subr.mxu0 0.0
      %5254 = vmatpush1.msra.mxu0 0.0
      %5255 = vmatprep.subr.mxu0 0.0
      %5256 = vmatpush1.msra.mxu0 0.0
      %5257 = vmatprep.subr.mxu0 0.0
      %5258 = vmatpush1.msra.mxu0 0.0
      %5259 = vmatprep.subr.mxu0 0.0
      %5260 = vmatpush1.msra.mxu0 0.0
      %5261 = vmatprep.subr.mxu0 0.0
      %5262 = vmatpush1.msra.mxu0 0.0
      %5263 = vmatprep.subr.mxu0 0.0
      %5264 = vmatpush1.msra.mxu0 0.0
      %5265 = vmatprep.subr.mxu0 0.0
      %5266 = vmatpush1.msra.mxu0 0.0
      %5267 = vmatprep.subr.mxu0 0.0
      %5268 = vmatpush1.msra.mxu0 0.0
      %5269 = vmatprep.subr.mxu0 0.0
      %5270 = vmatpush1.msra.mxu0 0.0
      %5271 = vmatprep.subr.mxu0 0.0
      %5272 = vmatpush1.msra.mxu0 0.0
      %5273 = vmatprep.subr.mxu0 0.0
      %5274 = vmatpush1.msra.mxu0 0.0
      %5275 = vmatprep.subr.mxu0 0.0
      %5276 = vmatpush1.msra.mxu0 0.0
      %5277 = vmatprep.subr.mxu0 0.0
      %5278 = vmatpush1.msra.mxu0 0.0
      %5279 = vmatprep.subr.mxu0 0.0
      %5280 = vmatpush1.msra.mxu0 0.0
      %5281 = vmatprep.subr.mxu0 0.0
      %5282 = vmatpush1.msra.mxu0 0.0
      %5283 = vmatprep.subr.mxu0 0.0
      %5284 = vmatpush1.msra.mxu0 0.0
      %5285 = vmatprep.subr.mxu0 0.0
      %5286 = vmatpush1.msra.mxu0 0.0
      %5287 = vmatprep.subr.mxu0 0.0
      %5288 = vmatpush1.msra.mxu0 0.0
      %5289 = vmatprep.subr.mxu0 0.0
      %5290 = vmatpush1.msra.mxu0 0.0
      %5291 = vmatprep.subr.mxu0 0.0
      %5292 = vmatpush1.msra.mxu0 0.0
      %5293 = vmatprep.subr.mxu0 0.0
      %5294 = vmatpush1.msra.mxu0 0.0
      %5295 = vmatprep.subr.mxu0 0.0
      %5296 = vmatpush1.msra.mxu0 0.0
      %5297 = vmatprep.subr.mxu0 0.0
      %5298 = vmatpush1.msra.mxu0 0.0
      %5299 = vmatprep.subr.mxu0 0.0
      %5300 = vmatpush1.msra.mxu0 0.0
      %5301 = vmatprep.subr.mxu0 0.0
      %5302 = vmatpush1.msra.mxu0 0.0
      %5303 = vmatprep.subr.mxu0 0.0
      %5304 = vmatpush1.msra.mxu0 0.0
      %5305 = vmatprep.subr.mxu0 0.0
      %5306 = vmatpush1.msra.mxu0 0.0
      %5307 = vmatprep.subr.mxu0 0.0
      %5308 = vmatpush1.msra.mxu0 0.0
      %5309 = vmatprep.subr.mxu0 0.0
      %5310 = vmatpush1.msra.mxu0 0.0
      %5311 = vmatprep.mubr.f32.mxu0 0.0
      %5312 = vmatmul.mubr.f32.gmra.mrb[0].mxu0 %v5242
      %v5313 = vpop.f32.mrb[0].mxu0
      %v5314 = vadd.f32 0.0, %v5313
      %v5315 = vpop.f32.mrb[0].mxu0
      %5316 = vmatprep.mubr.f32.mxu0 0.0
      %5317 = vmatmul.mubr.f32.gmra.mrb[0].mxu0 %v5245
      %v5318 = vpop.f32.mrb[0].mxu0
      %v5319 = vadd.f32 0.0, %v5318
      %v5320 = vpop.f32.mrb[0].mxu0
      %5321 = vdwg.mxu0
      %v5322 = vadd.f32 %v5239, %v5314
      %v5323 = vadd.f32 %v5240, %v5319
      %v5325 = vrot.slane %v4730, 1
      %v5326 = vrot.slane %v4731, 1
      %v5327 = vsel %vm807, %v5325, %v5326
      %v5328 = vrot.slane %v4732, 1
      %v5329 = vsel %vm807, %v5326, %v5328
      %v5330 = vsel %vm544, %v5327, 0
      %v5332 = vsel %vm544, %v5329, 0
      %5334 = vmatprep.subr.mxu0 0.0
      %5335 = vmatpush1.msra.mxu0 %v1430
      %5336 = vmatprep.subr.mxu0 0.0
      %5337 = vmatpush1.msra.mxu0 0.0
      %5338 = vmatprep.subr.mxu0 0.0
      %5339 = vmatpush1.msra.mxu0 0.0
      %5340 = vmatprep.subr.mxu0 0.0
      %5341 = vmatpush1.msra.mxu0 0.0
      %5342 = vmatprep.subr.mxu0 0.0
      %5343 = vmatpush1.msra.mxu0 0.0
      %5344 = vmatprep.subr.mxu0 0.0
      %5345 = vmatpush1.msra.mxu0 0.0
      %5346 = vmatprep.subr.mxu0 0.0
      %5347 = vmatpush1.msra.mxu0 0.0
      %5348 = vmatprep.subr.mxu0 0.0
      %5349 = vmatpush1.msra.mxu0 0.0
      %5350 = vmatprep.subr.mxu0 0.0
      %5351 = vmatpush1.msra.mxu0 0.0
      %5352 = vmatprep.subr.mxu0 0.0
      %5353 = vmatpush1.msra.mxu0 0.0
      %5354 = vmatprep.subr.mxu0 0.0
      %5355 = vmatpush1.msra.mxu0 0.0
      %5356 = vmatprep.subr.mxu0 0.0
      %5357 = vmatpush1.msra.mxu0 0.0
      %5358 = vmatprep.subr.mxu0 0.0
      %5359 = vmatpush1.msra.mxu0 0.0
      %5360 = vmatprep.subr.mxu0 0.0
      %5361 = vmatpush1.msra.mxu0 0.0
      %5362 = vmatprep.subr.mxu0 0.0
      %5363 = vmatpush1.msra.mxu0 0.0
      %5364 = vmatprep.subr.mxu0 0.0
      %5365 = vmatpush1.msra.mxu0 0.0
      %5366 = vmatprep.subr.mxu0 0.0
      %5367 = vmatpush1.msra.mxu0 0.0
      %5368 = vmatprep.subr.mxu0 0.0
      %5369 = vmatpush1.msra.mxu0 0.0
      %5370 = vmatprep.subr.mxu0 0.0
      %5371 = vmatpush1.msra.mxu0 0.0
      %5372 = vmatprep.subr.mxu0 0.0
      %5373 = vmatpush1.msra.mxu0 0.0
      %5374 = vmatprep.subr.mxu0 0.0
      %5375 = vmatpush1.msra.mxu0 0.0
      %5376 = vmatprep.subr.mxu0 0.0
      %5377 = vmatpush1.msra.mxu0 0.0
      %5378 = vmatprep.subr.mxu0 0.0
      %5379 = vmatpush1.msra.mxu0 0.0
      %5380 = vmatprep.subr.mxu0 0.0
      %5381 = vmatpush1.msra.mxu0 0.0
      %5382 = vmatprep.subr.mxu0 0.0
      %5383 = vmatpush1.msra.mxu0 0.0
      %5384 = vmatprep.subr.mxu0 0.0
      %5385 = vmatpush1.msra.mxu0 0.0
      %5386 = vmatprep.subr.mxu0 0.0
      %5387 = vmatpush1.msra.mxu0 0.0
      %5388 = vmatprep.subr.mxu0 0.0
      %5389 = vmatpush1.msra.mxu0 0.0
      %5390 = vmatprep.subr.mxu0 0.0
      %5391 = vmatpush1.msra.mxu0 0.0
      %5392 = vmatprep.subr.mxu0 0.0
      %5393 = vmatpush1.msra.mxu0 0.0
      %5394 = vmatprep.subr.mxu0 0.0
      %5395 = vmatpush1.msra.mxu0 0.0
      %5396 = vmatprep.subr.mxu0 0.0
      %5397 = vmatpush1.msra.mxu0 0.0
      %5398 = vmatprep.mubr.f32.mxu0 0.0
      %5399 = vmatmul.mubr.f32.gmra.mrb[0].mxu0 %v5330
      %v5400 = vpop.f32.mrb[0].mxu0
      %v5401 = vadd.f32 0.0, %v5400
      %v5402 = vpop.f32.mrb[0].mxu0
      %5403 = vmatprep.mubr.f32.mxu0 0.0
      %5404 = vmatmul.mubr.f32.gmra.mrb[0].mxu0 %v5332
      %v5405 = vpop.f32.mrb[0].mxu0
      %v5406 = vadd.f32 0.0, %v5405
      %v5407 = vpop.f32.mrb[0].mxu0
      %5408 = vdwg.mxu0
      %v5409 = vadd.f32 %v5322, %v5401
      %v5410 = vadd.f32 %v5323, %v5406
      %v5411 = vrot.slane %v4730, 2
      %v5412 = vrot.slane %v4731, 2
      %v5413 = vsel %vm978, %v5411, %v5412
      %v5414 = vrot.slane %v4732, 2
      %v5415 = vsel %vm978, %v5412, %v5414
      %v5416 = vsel %vm544, %v5413, 0
      %v5418 = vsel %vm544, %v5415, 0
      %5420 = vmatprep.subr.mxu0 0.0
      %5421 = vmatpush1.msra.mxu0 %v1519
      %5422 = vmatprep.subr.mxu0 0.0
      %5423 = vmatpush1.msra.mxu0 0.0
      %5424 = vmatprep.subr.mxu0 0.0
      %5425 = vmatpush1.msra.mxu0 0.0
      %5426 = vmatprep.subr.mxu0 0.0
      %5427 = vmatpush1.msra.mxu0 0.0
      %5428 = vmatprep.subr.mxu0 0.0
      %5429 = vmatpush1.msra.mxu0 0.0
      %5430 = vmatprep.subr.mxu0 0.0
      %5431 = vmatpush1.msra.mxu0 0.0
      %5432 = vmatprep.subr.mxu0 0.0
      %5433 = vmatpush1.msra.mxu0 0.0
      %5434 = vmatprep.subr.mxu0 0.0
      %5435 = vmatpush1.msra.mxu0 0.0
      %5436 = vmatprep.subr.mxu0 0.0
      %5437 = vmatpush1.msra.mxu0 0.0
      %5438 = vmatprep.subr.mxu0 0.0
      %5439 = vmatpush1.msra.mxu0 0.0
      %5440 = vmatprep.subr.mxu0 0.0
      %5441 = vmatpush1.msra.mxu0 0.0
      %5442 = vmatprep.subr.mxu0 0.0
      %5443 = vmatpush1.msra.mxu0 0.0
      %5444 = vmatprep.subr.mxu0 0.0
      %5445 = vmatpush1.msra.mxu0 0.0
      %5446 = vmatprep.subr.mxu0 0.0
      %5447 = vmatpush1.msra.mxu0 0.0
      %5448 = vmatprep.subr.mxu0 0.0
      %5449 = vmatpush1.msra.mxu0 0.0
      %5450 = vmatprep.subr.mxu0 0.0
      %5451 = vmatpush1.msra.mxu0 0.0
      %5452 = vmatprep.subr.mxu0 0.0
      %5453 = vmatpush1.msra.mxu0 0.0
      %5454 = vmatprep.subr.mxu0 0.0
      %5455 = vmatpush1.msra.mxu0 0.0
      %5456 = vmatprep.subr.mxu0 0.0
      %5457 = vmatpush1.msra.mxu0 0.0
      %5458 = vmatprep.subr.mxu0 0.0
      %5459 = vmatpush1.msra.mxu0 0.0
      %5460 = vmatprep.subr.mxu0 0.0
      %5461 = vmatpush1.msra.mxu0 0.0
      %5462 = vmatprep.subr.mxu0 0.0
      %5463 = vmatpush1.msra.mxu0 0.0
      %5464 = vmatprep.subr.mxu0 0.0
      %5465 = vmatpush1.msra.mxu0 0.0
      %5466 = vmatprep.subr.mxu0 0.0
      %5467 = vmatpush1.msra.mxu0 0.0
      %5468 = vmatprep.subr.mxu0 0.0
      %5469 = vmatpush1.msra.mxu0 0.0
      %5470 = vmatprep.subr.mxu0 0.0
      %5471 = vmatpush1.msra.mxu0 0.0
      %5472 = vmatprep.subr.mxu0 0.0
      %5473 = vmatpush1.msra.mxu0 0.0
      %5474 = vmatprep.subr.mxu0 0.0
      %5475 = vmatpush1.msra.mxu0 0.0
      %5476 = vmatprep.subr.mxu0 0.0
      %5477 = vmatpush1.msra.mxu0 0.0
      %5478 = vmatprep.subr.mxu0 0.0
      %5479 = vmatpush1.msra.mxu0 0.0
      %5480 = vmatprep.subr.mxu0 0.0
      %5481 = vmatpush1.msra.mxu0 0.0
      %5482 = vmatprep.subr.mxu0 0.0
      %5483 = vmatpush1.msra.mxu0 0.0
      %5484 = vmatprep.mubr.f32.mxu0 0.0
      %5485 = vmatmul.mubr.f32.gmra.mrb[0].mxu0 %v5416
      %v5486 = vpop.f32.mrb[0].mxu0
      %v5487 = vadd.f32 0.0, %v5486
      %v5488 = vpop.f32.mrb[0].mxu0
      %5489 = vmatprep.mubr.f32.mxu0 0.0
      %5490 = vmatmul.mubr.f32.gmra.mrb[0].mxu0 %v5418
      %v5491 = vpop.f32.mrb[0].mxu0
      %v5492 = vadd.f32 0.0, %v5491
      %v5493 = vpop.f32.mrb[0].mxu0
      %5494 = vdwg.mxu0
      %v5495 = vadd.f32 %v5409, %v5487
      %v5496 = vadd.f32 %v5410, %v5492
      %v5497 = vadd.f32 %v5495, %v1602
      %v5498 = vadd.f32 %v5496, %v1602
      %s5499 = scalar_lea.vmem %s524, 80
      %5500 = vst.msk [vmem:[%s5499] sm:$0xff] %vm544, %v5497
      %5501 = vst.msk [vmem:[%s5499 + $0x8] sm:$0xff] %vm544, %v5498
      %s5502 = scalar_lea.vmem [#allocation2], 144
      %v5503 = vld [vmem:[%s5502] sm:$0xff]
      %v5504 = vld [vmem:[%s5502 + $0x8] sm:$0xff]
      %v5505 = vld [vmem:[%s5502 + $0x10] sm:$0x3]
      %v5506 = vld [vmem:[%s5502 + $0x18] sm:$0xff]
      %v5507 = vld [vmem:[%s5502 + $0x20] sm:$0xff]
      %v5508 = vld [vmem:[%s5502 + $0x28] sm:$0x3]
      %v5509 = vld [vmem:[%s5502 + $0x30] sm:$0xff]
      %v5510 = vld [vmem:[%s5502 + $0x38] sm:$0xff]
      %v5511 = vld [vmem:[%s5502 + $0x40] sm:$0x3]
      %v5515 = vrot.slane %v5503, 1
      %v5516 = vrot.slane %v5504, 1
      %v5517 = vsel %vm807, %v5515, %v5516
      %v5518 = vrot.slane %v5505, 1
      %v5519 = vsel %vm807, %v5516, %v5518
      %v5520 = vsel %vm544, %v5517, 0
      %v5522 = vsel %vm544, %v5519, 0
      %5524 = vmatprep.subr.mxu0 0.0
      %5525 = vmatpush1.msra.mxu0 %v819
      %5526 = vmatprep.subr.mxu0 0.0
      %5527 = vmatpush1.msra.mxu0 0.0
      %5528 = vmatprep.subr.mxu0 0.0
      %5529 = vmatpush1.msra.mxu0 0.0
      %5530 = vmatprep.subr.mxu0 0.0
      %5531 = vmatpush1.msra.mxu0 0.0
      %5532 = vmatprep.subr.mxu0 0.0
      %5533 = vmatpush1.msra.mxu0 0.0
      %5534 = vmatprep.subr.mxu0 0.0
      %5535 = vmatpush1.msra.mxu0 0.0
      %5536 = vmatprep.subr.mxu0 0.0
      %5537 = vmatpush1.msra.mxu0 0.0
      %5538 = vmatprep.subr.mxu0 0.0
      %5539 = vmatpush1.msra.mxu0 0.0
      %5540 = vmatprep.subr.mxu0 0.0
      %5541 = vmatpush1.msra.mxu0 0.0
      %5542 = vmatprep.subr.mxu0 0.0
      %5543 = vmatpush1.msra.mxu0 0.0
      %5544 = vmatprep.subr.mxu0 0.0
      %5545 = vmatpush1.msra.mxu0 0.0
      %5546 = vmatprep.subr.mxu0 0.0
      %5547 = vmatpush1.msra.mxu0 0.0
      %5548 = vmatprep.subr.mxu0 0.0
      %5549 = vmatpush1.msra.mxu0 0.0
      %5550 = vmatprep.subr.mxu0 0.0
      %5551 = vmatpush1.msra.mxu0 0.0
      %5552 = vmatprep.subr.mxu0 0.0
      %5553 = vmatpush1.msra.mxu0 0.0
      %5554 = vmatprep.subr.mxu0 0.0
      %5555 = vmatpush1.msra.mxu0 0.0
      %5556 = vmatprep.subr.mxu0 0.0
      %5557 = vmatpush1.msra.mxu0 0.0
      %5558 = vmatprep.subr.mxu0 0.0
      %5559 = vmatpush1.msra.mxu0 0.0
      %5560 = vmatprep.subr.mxu0 0.0
      %5561 = vmatpush1.msra.mxu0 0.0
      %5562 = vmatprep.subr.mxu0 0.0
      %5563 = vmatpush1.msra.mxu0 0.0
      %5564 = vmatprep.subr.mxu0 0.0
      %5565 = vmatpush1.msra.mxu0 0.0
      %5566 = vmatprep.subr.mxu0 0.0
      %5567 = vmatpush1.msra.mxu0 0.0
      %5568 = vmatprep.subr.mxu0 0.0
      %5569 = vmatpush1.msra.mxu0 0.0
      %5570 = vmatprep.subr.mxu0 0.0
      %5571 = vmatpush1.msra.mxu0 0.0
      %5572 = vmatprep.subr.mxu0 0.0
      %5573 = vmatpush1.msra.mxu0 0.0
      %5574 = vmatprep.subr.mxu0 0.0
      %5575 = vmatpush1.msra.mxu0 0.0
      %5576 = vmatprep.subr.mxu0 0.0
      %5577 = vmatpush1.msra.mxu0 0.0
      %5578 = vmatprep.subr.mxu0 0.0
      %5579 = vmatpush1.msra.mxu0 0.0
      %5580 = vmatprep.subr.mxu0 0.0
      %5581 = vmatpush1.msra.mxu0 0.0
      %5582 = vmatprep.subr.mxu0 0.0
      %5583 = vmatpush1.msra.mxu0 0.0
      %5584 = vmatprep.subr.mxu0 0.0
      %5585 = vmatpush1.msra.mxu0 0.0
      %5586 = vmatprep.subr.mxu0 0.0
      %5587 = vmatpush1.msra.mxu0 0.0
      %5588 = vmatprep.mubr.f32.mxu0 0.0
      %5589 = vmatmul.mubr.f32.gmra.mrb[0].mxu0 %v5520
      %v5590 = vpop.f32.mrb[0].mxu0
      %v5591 = vadd.f32 0.0, %v5590
      %v5592 = vpop.f32.mrb[0].mxu0
      %5593 = vmatprep.mubr.f32.mxu0 0.0
      %5594 = vmatmul.mubr.f32.gmra.mrb[0].mxu0 %v5522
      %v5595 = vpop.f32.mrb[0].mxu0
      %v5596 = vadd.f32 0.0, %v5595
      %v5597 = vpop.f32.mrb[0].mxu0
      %5598 = vdwg.mxu0
      %v5599 = vsel %vm544, %v5503, 0
      %v5601 = vsel %vm544, %v5504, 0
      %5603 = vmatprep.subr.mxu0 0.0
      %5604 = vmatpush1.msra.mxu0 %v901
      %5605 = vmatprep.subr.mxu0 0.0
      %5606 = vmatpush1.msra.mxu0 0.0
      %5607 = vmatprep.subr.mxu0 0.0
      %5608 = vmatpush1.msra.mxu0 0.0
      %5609 = vmatprep.subr.mxu0 0.0
      %5610 = vmatpush1.msra.mxu0 0.0
      %5611 = vmatprep.subr.mxu0 0.0
      %5612 = vmatpush1.msra.mxu0 0.0
      %5613 = vmatprep.subr.mxu0 0.0
      %5614 = vmatpush1.msra.mxu0 0.0
      %5615 = vmatprep.subr.mxu0 0.0
      %5616 = vmatpush1.msra.mxu0 0.0
      %5617 = vmatprep.subr.mxu0 0.0
      %5618 = vmatpush1.msra.mxu0 0.0
      %5619 = vmatprep.subr.mxu0 0.0
      %5620 = vmatpush1.msra.mxu0 0.0
      %5621 = vmatprep.subr.mxu0 0.0
      %5622 = vmatpush1.msra.mxu0 0.0
      %5623 = vmatprep.subr.mxu0 0.0
      %5624 = vmatpush1.msra.mxu0 0.0
      %5625 = vmatprep.subr.mxu0 0.0
      %5626 = vmatpush1.msra.mxu0 0.0
      %5627 = vmatprep.subr.mxu0 0.0
      %5628 = vmatpush1.msra.mxu0 0.0
      %5629 = vmatprep.subr.mxu0 0.0
      %5630 = vmatpush1.msra.mxu0 0.0
      %5631 = vmatprep.subr.mxu0 0.0
      %5632 = vmatpush1.msra.mxu0 0.0
      %5633 = vmatprep.subr.mxu0 0.0
      %5634 = vmatpush1.msra.mxu0 0.0
      %5635 = vmatprep.subr.mxu0 0.0
      %5636 = vmatpush1.msra.mxu0 0.0
      %5637 = vmatprep.subr.mxu0 0.0
      %5638 = vmatpush1.msra.mxu0 0.0
      %5639 = vmatprep.subr.mxu0 0.0
      %5640 = vmatpush1.msra.mxu0 0.0
      %5641 = vmatprep.subr.mxu0 0.0
      %5642 = vmatpush1.msra.mxu0 0.0
      %5643 = vmatprep.subr.mxu0 0.0
      %5644 = vmatpush1.msra.mxu0 0.0
      %5645 = vmatprep.subr.mxu0 0.0
      %5646 = vmatpush1.msra.mxu0 0.0
      %5647 = vmatprep.subr.mxu0 0.0
      %5648 = vmatpush1.msra.mxu0 0.0
      %5649 = vmatprep.subr.mxu0 0.0
      %5650 = vmatpush1.msra.mxu0 0.0
      %5651 = vmatprep.subr.mxu0 0.0
      %5652 = vmatpush1.msra.mxu0 0.0
      %5653 = vmatprep.subr.mxu0 0.0
      %5654 = vmatpush1.msra.mxu0 0.0
      %5655 = vmatprep.subr.mxu0 0.0
      %5656 = vmatpush1.msra.mxu0 0.0
      %5657 = vmatprep.subr.mxu0 0.0
      %5658 = vmatpush1.msra.mxu0 0.0
      %5659 = vmatprep.subr.mxu0 0.0
      %5660 = vmatpush1.msra.mxu0 0.0
      %5661 = vmatprep.subr.mxu0 0.0
      %5662 = vmatpush1.msra.mxu0 0.0
      %5663 = vmatprep.subr.mxu0 0.0
      %5664 = vmatpush1.msra.mxu0 0.0
      %5665 = vmatprep.subr.mxu0 0.0
      %5666 = vmatpush1.msra.mxu0 0.0
      %5667 = vmatprep.mubr.f32.mxu0 0.0
      %5668 = vmatmul.mubr.f32.gmra.mrb[0].mxu0 %v5599
      %v5669 = vpop.f32.mrb[0].mxu0
      %v5670 = vadd.f32 %v5591, %v5669
      %v5671 = vpop.f32.mrb[0].mxu0
      %5672 = vmatprep.mubr.f32.mxu0 0.0
      %5673 = vmatmul.mubr.f32.gmra.mrb[0].mxu0 %v5601
      %v5674 = vpop.f32.mrb[0].mxu0
      %v5675 = vadd.f32 %v5596, %v5674
      %v5676 = vpop.f32.mrb[0].mxu0
      %5677 = vdwg.mxu0
      %v5678 = vrot.slane %v5503, 2
      %v5679 = vrot.slane %v5504, 2
      %v5680 = vsel %vm978, %v5678, %v5679
      %v5681 = vrot.slane %v5505, 2
      %v5682 = vsel %vm978, %v5679, %v5681
      %v5683 = vsel %vm544, %v5680, 0
      %v5685 = vsel %vm544, %v5682, 0
      %5687 = vmatprep.subr.mxu0 0.0
      %5688 = vmatpush1.msra.mxu0 %v989
      %5689 = vmatprep.subr.mxu0 0.0
      %5690 = vmatpush1.msra.mxu0 0.0
      %5691 = vmatprep.subr.mxu0 0.0
      %5692 = vmatpush1.msra.mxu0 0.0
      %5693 = vmatprep.subr.mxu0 0.0
      %5694 = vmatpush1.msra.mxu0 0.0
      %5695 = vmatprep.subr.mxu0 0.0
      %5696 = vmatpush1.msra.mxu0 0.0
      %5697 = vmatprep.subr.mxu0 0.0
      %5698 = vmatpush1.msra.mxu0 0.0
      %5699 = vmatprep.subr.mxu0 0.0
      %5700 = vmatpush1.msra.mxu0 0.0
      %5701 = vmatprep.subr.mxu0 0.0
      %5702 = vmatpush1.msra.mxu0 0.0
      %5703 = vmatprep.subr.mxu0 0.0
      %5704 = vmatpush1.msra.mxu0 0.0
      %5705 = vmatprep.subr.mxu0 0.0
      %5706 = vmatpush1.msra.mxu0 0.0
      %5707 = vmatprep.subr.mxu0 0.0
      %5708 = vmatpush1.msra.mxu0 0.0
      %5709 = vmatprep.subr.mxu0 0.0
      %5710 = vmatpush1.msra.mxu0 0.0
      %5711 = vmatprep.subr.mxu0 0.0
      %5712 = vmatpush1.msra.mxu0 0.0
      %5713 = vmatprep.subr.mxu0 0.0
      %5714 = vmatpush1.msra.mxu0 0.0
      %5715 = vmatprep.subr.mxu0 0.0
      %5716 = vmatpush1.msra.mxu0 0.0
      %5717 = vmatprep.subr.mxu0 0.0
      %5718 = vmatpush1.msra.mxu0 0.0
      %5719 = vmatprep.subr.mxu0 0.0
      %5720 = vmatpush1.msra.mxu0 0.0
      %5721 = vmatprep.subr.mxu0 0.0
      %5722 = vmatpush1.msra.mxu0 0.0
      %5723 = vmatprep.subr.mxu0 0.0
      %5724 = vmatpush1.msra.mxu0 0.0
      %5725 = vmatprep.subr.mxu0 0.0
      %5726 = vmatpush1.msra.mxu0 0.0
      %5727 = vmatprep.subr.mxu0 0.0
      %5728 = vmatpush1.msra.mxu0 0.0
      %5729 = vmatprep.subr.mxu0 0.0
      %5730 = vmatpush1.msra.mxu0 0.0
      %5731 = vmatprep.subr.mxu0 0.0
      %5732 = vmatpush1.msra.mxu0 0.0
      %5733 = vmatprep.subr.mxu0 0.0
      %5734 = vmatpush1.msra.mxu0 0.0
      %5735 = vmatprep.subr.mxu0 0.0
      %5736 = vmatpush1.msra.mxu0 0.0
      %5737 = vmatprep.subr.mxu0 0.0
      %5738 = vmatpush1.msra.mxu0 0.0
      %5739 = vmatprep.subr.mxu0 0.0
      %5740 = vmatpush1.msra.mxu0 0.0
      %5741 = vmatprep.subr.mxu0 0.0
      %5742 = vmatpush1.msra.mxu0 0.0
      %5743 = vmatprep.subr.mxu0 0.0
      %5744 = vmatpush1.msra.mxu0 0.0
      %5745 = vmatprep.subr.mxu0 0.0
      %5746 = vmatpush1.msra.mxu0 0.0
      %5747 = vmatprep.subr.mxu0 0.0
      %5748 = vmatpush1.msra.mxu0 0.0
      %5749 = vmatprep.subr.mxu0 0.0
      %5750 = vmatpush1.msra.mxu0 0.0
      %5751 = vmatprep.mubr.f32.mxu0 0.0
      %5752 = vmatmul.mubr.f32.gmra.mrb[0].mxu0 %v5683
      %v5753 = vpop.f32.mrb[0].mxu0
      %v5754 = vadd.f32 0.0, %v5753
      %v5755 = vpop.f32.mrb[0].mxu0
      %5756 = vmatprep.mubr.f32.mxu0 0.0
      %5757 = vmatmul.mubr.f32.gmra.mrb[0].mxu0 %v5685
      %v5758 = vpop.f32.mrb[0].mxu0
      %v5759 = vadd.f32 0.0, %v5758
      %v5760 = vpop.f32.mrb[0].mxu0
      %5761 = vdwg.mxu0
      %v5762 = vadd.f32 %v5670, %v5754
      %v5763 = vadd.f32 %v5675, %v5759
      %v5765 = vsel %vm544, %v5506, 0
      %v5768 = vsel %vm544, %v5507, 0
      %5770 = vmatprep.subr.mxu0 0.0
      %5771 = vmatpush1.msra.mxu0 %v1075
      %5772 = vmatprep.subr.mxu0 0.0
      %5773 = vmatpush1.msra.mxu0 0.0
      %5774 = vmatprep.subr.mxu0 0.0
      %5775 = vmatpush1.msra.mxu0 0.0
      %5776 = vmatprep.subr.mxu0 0.0
      %5777 = vmatpush1.msra.mxu0 0.0
      %5778 = vmatprep.subr.mxu0 0.0
      %5779 = vmatpush1.msra.mxu0 0.0
      %5780 = vmatprep.subr.mxu0 0.0
      %5781 = vmatpush1.msra.mxu0 0.0
      %5782 = vmatprep.subr.mxu0 0.0
      %5783 = vmatpush1.msra.mxu0 0.0
      %5784 = vmatprep.subr.mxu0 0.0
      %5785 = vmatpush1.msra.mxu0 0.0
      %5786 = vmatprep.subr.mxu0 0.0
      %5787 = vmatpush1.msra.mxu0 0.0
      %5788 = vmatprep.subr.mxu0 0.0
      %5789 = vmatpush1.msra.mxu0 0.0
      %5790 = vmatprep.subr.mxu0 0.0
      %5791 = vmatpush1.msra.mxu0 0.0
      %5792 = vmatprep.subr.mxu0 0.0
      %5793 = vmatpush1.msra.mxu0 0.0
      %5794 = vmatprep.subr.mxu0 0.0
      %5795 = vmatpush1.msra.mxu0 0.0
      %5796 = vmatprep.subr.mxu0 0.0
      %5797 = vmatpush1.msra.mxu0 0.0
      %5798 = vmatprep.subr.mxu0 0.0
      %5799 = vmatpush1.msra.mxu0 0.0
      %5800 = vmatprep.subr.mxu0 0.0
      %5801 = vmatpush1.msra.mxu0 0.0
      %5802 = vmatprep.subr.mxu0 0.0
      %5803 = vmatpush1.msra.mxu0 0.0
      %5804 = vmatprep.subr.mxu0 0.0
      %5805 = vmatpush1.msra.mxu0 0.0
      %5806 = vmatprep.subr.mxu0 0.0
      %5807 = vmatpush1.msra.mxu0 0.0
      %5808 = vmatprep.subr.mxu0 0.0
      %5809 = vmatpush1.msra.mxu0 0.0
      %5810 = vmatprep.subr.mxu0 0.0
      %5811 = vmatpush1.msra.mxu0 0.0
      %5812 = vmatprep.subr.mxu0 0.0
      %5813 = vmatpush1.msra.mxu0 0.0
      %5814 = vmatprep.subr.mxu0 0.0
      %5815 = vmatpush1.msra.mxu0 0.0
      %5816 = vmatprep.subr.mxu0 0.0
      %5817 = vmatpush1.msra.mxu0 0.0
      %5818 = vmatprep.subr.mxu0 0.0
      %5819 = vmatpush1.msra.mxu0 0.0
      %5820 = vmatprep.subr.mxu0 0.0
      %5821 = vmatpush1.msra.mxu0 0.0
      %5822 = vmatprep.subr.mxu0 0.0
      %5823 = vmatpush1.msra.mxu0 0.0
      %5824 = vmatprep.subr.mxu0 0.0
      %5825 = vmatpush1.msra.mxu0 0.0
      %5826 = vmatprep.subr.mxu0 0.0
      %5827 = vmatpush1.msra.mxu0 0.0
      %5828 = vmatprep.subr.mxu0 0.0
      %5829 = vmatpush1.msra.mxu0 0.0
      %5830 = vmatprep.subr.mxu0 0.0
      %5831 = vmatpush1.msra.mxu0 0.0
      %5832 = vmatprep.subr.mxu0 0.0
      %5833 = vmatpush1.msra.mxu0 0.0
      %5834 = vmatprep.mubr.f32.mxu0 0.0
      %5835 = vmatmul.mubr.f32.gmra.mrb[0].mxu0 %v5765
      %v5836 = vpop.f32.mrb[0].mxu0
      %v5837 = vadd.f32 0.0, %v5836
      %v5838 = vpop.f32.mrb[0].mxu0
      %5839 = vmatprep.mubr.f32.mxu0 0.0
      %5840 = vmatmul.mubr.f32.gmra.mrb[0].mxu0 %v5768
      %v5841 = vpop.f32.mrb[0].mxu0
      %v5842 = vadd.f32 0.0, %v5841
      %v5843 = vpop.f32.mrb[0].mxu0
      %5844 = vdwg.mxu0
      %v5845 = vadd.f32 %v5762, %v5837
      %v5846 = vadd.f32 %v5763, %v5842
      %v5848 = vrot.slane %v5506, 1
      %v5849 = vrot.slane %v5507, 1
      %v5850 = vsel %vm807, %v5848, %v5849
      %v5851 = vrot.slane %v5508, 1
      %v5852 = vsel %vm807, %v5849, %v5851
      %v5853 = vsel %vm544, %v5850, 0
      %v5855 = vsel %vm544, %v5852, 0
      %5857 = vmatprep.subr.mxu0 0.0
      %5858 = vmatpush1.msra.mxu0 %v1165
      %5859 = vmatprep.subr.mxu0 0.0
      %5860 = vmatpush1.msra.mxu0 0.0
      %5861 = vmatprep.subr.mxu0 0.0
      %5862 = vmatpush1.msra.mxu0 0.0
      %5863 = vmatprep.subr.mxu0 0.0
      %5864 = vmatpush1.msra.mxu0 0.0
      %5865 = vmatprep.subr.mxu0 0.0
      %5866 = vmatpush1.msra.mxu0 0.0
      %5867 = vmatprep.subr.mxu0 0.0
      %5868 = vmatpush1.msra.mxu0 0.0
      %5869 = vmatprep.subr.mxu0 0.0
      %5870 = vmatpush1.msra.mxu0 0.0
      %5871 = vmatprep.subr.mxu0 0.0
      %5872 = vmatpush1.msra.mxu0 0.0
      %5873 = vmatprep.subr.mxu0 0.0
      %5874 = vmatpush1.msra.mxu0 0.0
      %5875 = vmatprep.subr.mxu0 0.0
      %5876 = vmatpush1.msra.mxu0 0.0
      %5877 = vmatprep.subr.mxu0 0.0
      %5878 = vmatpush1.msra.mxu0 0.0
      %5879 = vmatprep.subr.mxu0 0.0
      %5880 = vmatpush1.msra.mxu0 0.0
      %5881 = vmatprep.subr.mxu0 0.0
      %5882 = vmatpush1.msra.mxu0 0.0
      %5883 = vmatprep.subr.mxu0 0.0
      %5884 = vmatpush1.msra.mxu0 0.0
      %5885 = vmatprep.subr.mxu0 0.0
      %5886 = vmatpush1.msra.mxu0 0.0
      %5887 = vmatprep.subr.mxu0 0.0
      %5888 = vmatpush1.msra.mxu0 0.0
      %5889 = vmatprep.subr.mxu0 0.0
      %5890 = vmatpush1.msra.mxu0 0.0
      %5891 = vmatprep.subr.mxu0 0.0
      %5892 = vmatpush1.msra.mxu0 0.0
      %5893 = vmatprep.subr.mxu0 0.0
      %5894 = vmatpush1.msra.mxu0 0.0
      %5895 = vmatprep.subr.mxu0 0.0
      %5896 = vmatpush1.msra.mxu0 0.0
      %5897 = vmatprep.subr.mxu0 0.0
      %5898 = vmatpush1.msra.mxu0 0.0
      %5899 = vmatprep.subr.mxu0 0.0
      %5900 = vmatpush1.msra.mxu0 0.0
      %5901 = vmatprep.subr.mxu0 0.0
      %5902 = vmatpush1.msra.mxu0 0.0
      %5903 = vmatprep.subr.mxu0 0.0
      %5904 = vmatpush1.msra.mxu0 0.0
      %5905 = vmatprep.subr.mxu0 0.0
      %5906 = vmatpush1.msra.mxu0 0.0
      %5907 = vmatprep.subr.mxu0 0.0
      %5908 = vmatpush1.msra.mxu0 0.0
      %5909 = vmatprep.subr.mxu0 0.0
      %5910 = vmatpush1.msra.mxu0 0.0
      %5911 = vmatprep.subr.mxu0 0.0
      %5912 = vmatpush1.msra.mxu0 0.0
      %5913 = vmatprep.subr.mxu0 0.0
      %5914 = vmatpush1.msra.mxu0 0.0
      %5915 = vmatprep.subr.mxu0 0.0
      %5916 = vmatpush1.msra.mxu0 0.0
      %5917 = vmatprep.subr.mxu0 0.0
      %5918 = vmatpush1.msra.mxu0 0.0
      %5919 = vmatprep.subr.mxu0 0.0
      %5920 = vmatpush1.msra.mxu0 0.0
      %5921 = vmatprep.mubr.f32.mxu0 0.0
      %5922 = vmatmul.mubr.f32.gmra.mrb[0].mxu0 %v5853
      %v5923 = vpop.f32.mrb[0].mxu0
      %v5924 = vadd.f32 0.0, %v5923
      %v5925 = vpop.f32.mrb[0].mxu0
      %5926 = vmatprep.mubr.f32.mxu0 0.0
      %5927 = vmatmul.mubr.f32.gmra.mrb[0].mxu0 %v5855
      %v5928 = vpop.f32.mrb[0].mxu0
      %v5929 = vadd.f32 0.0, %v5928
      %v5930 = vpop.f32.mrb[0].mxu0
      %5931 = vdwg.mxu0
      %v5932 = vadd.f32 %v5845, %v5924
      %v5933 = vadd.f32 %v5846, %v5929
      %v5934 = vrot.slane %v5506, 2
      %v5935 = vrot.slane %v5507, 2
      %v5936 = vsel %vm978, %v5934, %v5935
      %v5937 = vrot.slane %v5508, 2
      %v5938 = vsel %vm978, %v5935, %v5937
      %v5939 = vsel %vm544, %v5936, 0
      %v5941 = vsel %vm544, %v5938, 0
      %5943 = vmatprep.subr.mxu0 0.0
      %5944 = vmatpush1.msra.mxu0 %v1254
      %5945 = vmatprep.subr.mxu0 0.0
      %5946 = vmatpush1.msra.mxu0 0.0
      %5947 = vmatprep.subr.mxu0 0.0
      %5948 = vmatpush1.msra.mxu0 0.0
      %5949 = vmatprep.subr.mxu0 0.0
      %5950 = vmatpush1.msra.mxu0 0.0
      %5951 = vmatprep.subr.mxu0 0.0
      %5952 = vmatpush1.msra.mxu0 0.0
      %5953 = vmatprep.subr.mxu0 0.0
      %5954 = vmatpush1.msra.mxu0 0.0
      %5955 = vmatprep.subr.mxu0 0.0
      %5956 = vmatpush1.msra.mxu0 0.0
      %5957 = vmatprep.subr.mxu0 0.0
      %5958 = vmatpush1.msra.mxu0 0.0
      %5959 = vmatprep.subr.mxu0 0.0
      %5960 = vmatpush1.msra.mxu0 0.0
      %5961 = vmatprep.subr.mxu0 0.0
      %5962 = vmatpush1.msra.mxu0 0.0
      %5963 = vmatprep.subr.mxu0 0.0
      %5964 = vmatpush1.msra.mxu0 0.0
      %5965 = vmatprep.subr.mxu0 0.0
      %5966 = vmatpush1.msra.mxu0 0.0
      %5967 = vmatprep.subr.mxu0 0.0
      %5968 = vmatpush1.msra.mxu0 0.0
      %5969 = vmatprep.subr.mxu0 0.0
      %5970 = vmatpush1.msra.mxu0 0.0
      %5971 = vmatprep.subr.mxu0 0.0
      %5972 = vmatpush1.msra.mxu0 0.0
      %5973 = vmatprep.subr.mxu0 0.0
      %5974 = vmatpush1.msra.mxu0 0.0
      %5975 = vmatprep.subr.mxu0 0.0
      %5976 = vmatpush1.msra.mxu0 0.0
      %5977 = vmatprep.subr.mxu0 0.0
      %5978 = vmatpush1.msra.mxu0 0.0
      %5979 = vmatprep.subr.mxu0 0.0
      %5980 = vmatpush1.msra.mxu0 0.0
      %5981 = vmatprep.subr.mxu0 0.0
      %5982 = vmatpush1.msra.mxu0 0.0
      %5983 = vmatprep.subr.mxu0 0.0
      %5984 = vmatpush1.msra.mxu0 0.0
      %5985 = vmatprep.subr.mxu0 0.0
      %5986 = vmatpush1.msra.mxu0 0.0
      %5987 = vmatprep.subr.mxu0 0.0
      %5988 = vmatpush1.msra.mxu0 0.0
      %5989 = vmatprep.subr.mxu0 0.0
      %5990 = vmatpush1.msra.mxu0 0.0
      %5991 = vmatprep.subr.mxu0 0.0
      %5992 = vmatpush1.msra.mxu0 0.0
      %5993 = vmatprep.subr.mxu0 0.0
      %5994 = vmatpush1.msra.mxu0 0.0
      %5995 = vmatprep.subr.mxu0 0.0
      %5996 = vmatpush1.msra.mxu0 0.0
      %5997 = vmatprep.subr.mxu0 0.0
      %5998 = vmatpush1.msra.mxu0 0.0
      %5999 = vmatprep.subr.mxu0 0.0
      %6000 = vmatpush1.msra.mxu0 0.0
      %6001 = vmatprep.subr.mxu0 0.0
      %6002 = vmatpush1.msra.mxu0 0.0
      %6003 = vmatprep.subr.mxu0 0.0
      %6004 = vmatpush1.msra.mxu0 0.0
      %6005 = vmatprep.subr.mxu0 0.0
      %6006 = vmatpush1.msra.mxu0 0.0
      %6007 = vmatprep.mubr.f32.mxu0 0.0
      %6008 = vmatmul.mubr.f32.gmra.mrb[0].mxu0 %v5939
      %v6009 = vpop.f32.mrb[0].mxu0
      %v6010 = vadd.f32 0.0, %v6009
      %v6011 = vpop.f32.mrb[0].mxu0
      %6012 = vmatprep.mubr.f32.mxu0 0.0
      %6013 = vmatmul.mubr.f32.gmra.mrb[0].mxu0 %v5941
      %v6014 = vpop.f32.mrb[0].mxu0
      %v6015 = vadd.f32 0.0, %v6014
      %v6016 = vpop.f32.mrb[0].mxu0
      %6017 = vdwg.mxu0
      %v6018 = vadd.f32 %v5932, %v6010
      %v6019 = vadd.f32 %v5933, %v6015
      %v6021 = vsel %vm544, %v5509, 0
      %v6024 = vsel %vm544, %v5510, 0
      %6026 = vmatprep.subr.mxu0 0.0
      %6027 = vmatpush1.msra.mxu0 %v1340
      %6028 = vmatprep.subr.mxu0 0.0
      %6029 = vmatpush1.msra.mxu0 0.0
      %6030 = vmatprep.subr.mxu0 0.0
      %6031 = vmatpush1.msra.mxu0 0.0
      %6032 = vmatprep.subr.mxu0 0.0
      %6033 = vmatpush1.msra.mxu0 0.0
      %6034 = vmatprep.subr.mxu0 0.0
      %6035 = vmatpush1.msra.mxu0 0.0
      %6036 = vmatprep.subr.mxu0 0.0
      %6037 = vmatpush1.msra.mxu0 0.0
      %6038 = vmatprep.subr.mxu0 0.0
      %6039 = vmatpush1.msra.mxu0 0.0
      %6040 = vmatprep.subr.mxu0 0.0
      %6041 = vmatpush1.msra.mxu0 0.0
      %6042 = vmatprep.subr.mxu0 0.0
      %6043 = vmatpush1.msra.mxu0 0.0
      %6044 = vmatprep.subr.mxu0 0.0
      %6045 = vmatpush1.msra.mxu0 0.0
      %6046 = vmatprep.subr.mxu0 0.0
      %6047 = vmatpush1.msra.mxu0 0.0
      %6048 = vmatprep.subr.mxu0 0.0
      %6049 = vmatpush1.msra.mxu0 0.0
      %6050 = vmatprep.subr.mxu0 0.0
      %6051 = vmatpush1.msra.mxu0 0.0
      %6052 = vmatprep.subr.mxu0 0.0
      %6053 = vmatpush1.msra.mxu0 0.0
      %6054 = vmatprep.subr.mxu0 0.0
      %6055 = vmatpush1.msra.mxu0 0.0
      %6056 = vmatprep.subr.mxu0 0.0
      %6057 = vmatpush1.msra.mxu0 0.0
      %6058 = vmatprep.subr.mxu0 0.0
      %6059 = vmatpush1.msra.mxu0 0.0
      %6060 = vmatprep.subr.mxu0 0.0
      %6061 = vmatpush1.msra.mxu0 0.0
      %6062 = vmatprep.subr.mxu0 0.0
      %6063 = vmatpush1.msra.mxu0 0.0
      %6064 = vmatprep.subr.mxu0 0.0
      %6065 = vmatpush1.msra.mxu0 0.0
      %6066 = vmatprep.subr.mxu0 0.0
      %6067 = vmatpush1.msra.mxu0 0.0
      %6068 = vmatprep.subr.mxu0 0.0
      %6069 = vmatpush1.msra.mxu0 0.0
      %6070 = vmatprep.subr.mxu0 0.0
      %6071 = vmatpush1.msra.mxu0 0.0
      %6072 = vmatprep.subr.mxu0 0.0
      %6073 = vmatpush1.msra.mxu0 0.0
      %6074 = vmatprep.subr.mxu0 0.0
      %6075 = vmatpush1.msra.mxu0 0.0
      %6076 = vmatprep.subr.mxu0 0.0
      %6077 = vmatpush1.msra.mxu0 0.0
      %6078 = vmatprep.subr.mxu0 0.0
      %6079 = vmatpush1.msra.mxu0 0.0
      %6080 = vmatprep.subr.mxu0 0.0
      %6081 = vmatpush1.msra.mxu0 0.0
      %6082 = vmatprep.subr.mxu0 0.0
      %6083 = vmatpush1.msra.mxu0 0.0
      %6084 = vmatprep.subr.mxu0 0.0
      %6085 = vmatpush1.msra.mxu0 0.0
      %6086 = vmatprep.subr.mxu0 0.0
      %6087 = vmatpush1.msra.mxu0 0.0
      %6088 = vmatprep.subr.mxu0 0.0
      %6089 = vmatpush1.msra.mxu0 0.0
      %6090 = vmatprep.mubr.f32.mxu0 0.0
      %6091 = vmatmul.mubr.f32.gmra.mrb[0].mxu0 %v6021
      %v6092 = vpop.f32.mrb[0].mxu0
      %v6093 = vadd.f32 0.0, %v6092
      %v6094 = vpop.f32.mrb[0].mxu0
      %6095 = vmatprep.mubr.f32.mxu0 0.0
      %6096 = vmatmul.mubr.f32.gmra.mrb[0].mxu0 %v6024
      %v6097 = vpop.f32.mrb[0].mxu0
      %v6098 = vadd.f32 0.0, %v6097
      %v6099 = vpop.f32.mrb[0].mxu0
      %6100 = vdwg.mxu0
      %v6101 = vadd.f32 %v6018, %v6093
      %v6102 = vadd.f32 %v6019, %v6098
      %v6104 = vrot.slane %v5509, 1
      %v6105 = vrot.slane %v5510, 1
      %v6106 = vsel %vm807, %v6104, %v6105
      %v6107 = vrot.slane %v5511, 1
      %v6108 = vsel %vm807, %v6105, %v6107
      %v6109 = vsel %vm544, %v6106, 0
      %v6111 = vsel %vm544, %v6108, 0
      %6113 = vmatprep.subr.mxu0 0.0
      %6114 = vmatpush1.msra.mxu0 %v1430
      %6115 = vmatprep.subr.mxu0 0.0
      %6116 = vmatpush1.msra.mxu0 0.0
      %6117 = vmatprep.subr.mxu0 0.0
      %6118 = vmatpush1.msra.mxu0 0.0
      %6119 = vmatprep.subr.mxu0 0.0
      %6120 = vmatpush1.msra.mxu0 0.0
      %6121 = vmatprep.subr.mxu0 0.0
      %6122 = vmatpush1.msra.mxu0 0.0
      %6123 = vmatprep.subr.mxu0 0.0
      %6124 = vmatpush1.msra.mxu0 0.0
      %6125 = vmatprep.subr.mxu0 0.0
      %6126 = vmatpush1.msra.mxu0 0.0
      %6127 = vmatprep.subr.mxu0 0.0
      %6128 = vmatpush1.msra.mxu0 0.0
      %6129 = vmatprep.subr.mxu0 0.0
      %6130 = vmatpush1.msra.mxu0 0.0
      %6131 = vmatprep.subr.mxu0 0.0
      %6132 = vmatpush1.msra.mxu0 0.0
      %6133 = vmatprep.subr.mxu0 0.0
      %6134 = vmatpush1.msra.mxu0 0.0
      %6135 = vmatprep.subr.mxu0 0.0
      %6136 = vmatpush1.msra.mxu0 0.0
      %6137 = vmatprep.subr.mxu0 0.0
      %6138 = vmatpush1.msra.mxu0 0.0
      %6139 = vmatprep.subr.mxu0 0.0
      %6140 = vmatpush1.msra.mxu0 0.0
      %6141 = vmatprep.subr.mxu0 0.0
      %6142 = vmatpush1.msra.mxu0 0.0
      %6143 = vmatprep.subr.mxu0 0.0
      %6144 = vmatpush1.msra.mxu0 0.0
      %6145 = vmatprep.subr.mxu0 0.0
      %6146 = vmatpush1.msra.mxu0 0.0
      %6147 = vmatprep.subr.mxu0 0.0
      %6148 = vmatpush1.msra.mxu0 0.0
      %6149 = vmatprep.subr.mxu0 0.0
      %6150 = vmatpush1.msra.mxu0 0.0
      %6151 = vmatprep.subr.mxu0 0.0
      %6152 = vmatpush1.msra.mxu0 0.0
      %6153 = vmatprep.subr.mxu0 0.0
      %6154 = vmatpush1.msra.mxu0 0.0
      %6155 = vmatprep.subr.mxu0 0.0
      %6156 = vmatpush1.msra.mxu0 0.0
      %6157 = vmatprep.subr.mxu0 0.0
      %6158 = vmatpush1.msra.mxu0 0.0
      %6159 = vmatprep.subr.mxu0 0.0
      %6160 = vmatpush1.msra.mxu0 0.0
      %6161 = vmatprep.subr.mxu0 0.0
      %6162 = vmatpush1.msra.mxu0 0.0
      %6163 = vmatprep.subr.mxu0 0.0
      %6164 = vmatpush1.msra.mxu0 0.0
      %6165 = vmatprep.subr.mxu0 0.0
      %6166 = vmatpush1.msra.mxu0 0.0
      %6167 = vmatprep.subr.mxu0 0.0
      %6168 = vmatpush1.msra.mxu0 0.0
      %6169 = vmatprep.subr.mxu0 0.0
      %6170 = vmatpush1.msra.mxu0 0.0
      %6171 = vmatprep.subr.mxu0 0.0
      %6172 = vmatpush1.msra.mxu0 0.0
      %6173 = vmatprep.subr.mxu0 0.0
      %6174 = vmatpush1.msra.mxu0 0.0
      %6175 = vmatprep.subr.mxu0 0.0
      %6176 = vmatpush1.msra.mxu0 0.0
      %6177 = vmatprep.mubr.f32.mxu0 0.0
      %6178 = vmatmul.mubr.f32.gmra.mrb[0].mxu0 %v6109
      %v6179 = vpop.f32.mrb[0].mxu0
      %v6180 = vadd.f32 0.0, %v6179
      %v6181 = vpop.f32.mrb[0].mxu0
      %6182 = vmatprep.mubr.f32.mxu0 0.0
      %6183 = vmatmul.mubr.f32.gmra.mrb[0].mxu0 %v6111
      %v6184 = vpop.f32.mrb[0].mxu0
      %v6185 = vadd.f32 0.0, %v6184
      %v6186 = vpop.f32.mrb[0].mxu0
      %6187 = vdwg.mxu0
      %v6188 = vadd.f32 %v6101, %v6180
      %v6189 = vadd.f32 %v6102, %v6185
      %v6190 = vrot.slane %v5509, 2
      %v6191 = vrot.slane %v5510, 2
      %v6192 = vsel %vm978, %v6190, %v6191
      %v6193 = vrot.slane %v5511, 2
      %v6194 = vsel %vm978, %v6191, %v6193
      %v6195 = vsel %vm544, %v6192, 0
      %v6197 = vsel %vm544, %v6194, 0
      %6199 = vmatprep.subr.mxu0 0.0
      %6200 = vmatpush1.msra.mxu0 %v1519
      %6201 = vmatprep.subr.mxu0 0.0
      %6202 = vmatpush1.msra.mxu0 0.0
      %6203 = vmatprep.subr.mxu0 0.0
      %6204 = vmatpush1.msra.mxu0 0.0
      %6205 = vmatprep.subr.mxu0 0.0
      %6206 = vmatpush1.msra.mxu0 0.0
      %6207 = vmatprep.subr.mxu0 0.0
      %6208 = vmatpush1.msra.mxu0 0.0
      %6209 = vmatprep.subr.mxu0 0.0
      %6210 = vmatpush1.msra.mxu0 0.0
      %6211 = vmatprep.subr.mxu0 0.0
      %6212 = vmatpush1.msra.mxu0 0.0
      %6213 = vmatprep.subr.mxu0 0.0
      %6214 = vmatpush1.msra.mxu0 0.0
      %6215 = vmatprep.subr.mxu0 0.0
      %6216 = vmatpush1.msra.mxu0 0.0
      %6217 = vmatprep.subr.mxu0 0.0
      %6218 = vmatpush1.msra.mxu0 0.0
      %6219 = vmatprep.subr.mxu0 0.0
      %6220 = vmatpush1.msra.mxu0 0.0
      %6221 = vmatprep.subr.mxu0 0.0
      %6222 = vmatpush1.msra.mxu0 0.0
      %6223 = vmatprep.subr.mxu0 0.0
      %6224 = vmatpush1.msra.mxu0 0.0
      %6225 = vmatprep.subr.mxu0 0.0
      %6226 = vmatpush1.msra.mxu0 0.0
      %6227 = vmatprep.subr.mxu0 0.0
      %6228 = vmatpush1.msra.mxu0 0.0
      %6229 = vmatprep.subr.mxu0 0.0
      %6230 = vmatpush1.msra.mxu0 0.0
      %6231 = vmatprep.subr.mxu0 0.0
      %6232 = vmatpush1.msra.mxu0 0.0
      %6233 = vmatprep.subr.mxu0 0.0
      %6234 = vmatpush1.msra.mxu0 0.0
      %6235 = vmatprep.subr.mxu0 0.0
      %6236 = vmatpush1.msra.mxu0 0.0
      %6237 = vmatprep.subr.mxu0 0.0
      %6238 = vmatpush1.msra.mxu0 0.0
      %6239 = vmatprep.subr.mxu0 0.0
      %6240 = vmatpush1.msra.mxu0 0.0
      %6241 = vmatprep.subr.mxu0 0.0
      %6242 = vmatpush1.msra.mxu0 0.0
      %6243 = vmatprep.subr.mxu0 0.0
      %6244 = vmatpush1.msra.mxu0 0.0
      %6245 = vmatprep.subr.mxu0 0.0
      %6246 = vmatpush1.msra.mxu0 0.0
      %6247 = vmatprep.subr.mxu0 0.0
      %6248 = vmatpush1.msra.mxu0 0.0
      %6249 = vmatprep.subr.mxu0 0.0
      %6250 = vmatpush1.msra.mxu0 0.0
      %6251 = vmatprep.subr.mxu0 0.0
      %6252 = vmatpush1.msra.mxu0 0.0
      %6253 = vmatprep.subr.mxu0 0.0
      %6254 = vmatpush1.msra.mxu0 0.0
      %6255 = vmatprep.subr.mxu0 0.0
      %6256 = vmatpush1.msra.mxu0 0.0
      %6257 = vmatprep.subr.mxu0 0.0
      %6258 = vmatpush1.msra.mxu0 0.0
      %6259 = vmatprep.subr.mxu0 0.0
      %6260 = vmatpush1.msra.mxu0 0.0
      %6261 = vmatprep.subr.mxu0 0.0
      %6262 = vmatpush1.msra.mxu0 0.0
      %6263 = vmatprep.mubr.f32.mxu0 0.0
      %6264 = vmatmul.mubr.f32.gmra.mrb[0].mxu0 %v6195
      %v6265 = vpop.f32.mrb[0].mxu0
      %v6266 = vadd.f32 0.0, %v6265
      %v6267 = vpop.f32.mrb[0].mxu0
      %6268 = vmatprep.mubr.f32.mxu0 0.0
      %6269 = vmatmul.mubr.f32.gmra.mrb[0].mxu0 %v6197
      %v6270 = vpop.f32.mrb[0].mxu0
      %v6271 = vadd.f32 0.0, %v6270
      %v6272 = vpop.f32.mrb[0].mxu0
      %6273 = vdwg.mxu0
      %v6274 = vadd.f32 %v6188, %v6266
      %v6275 = vadd.f32 %v6189, %v6271
      %v6276 = vadd.f32 %v6274, %v1602
      %v6277 = vadd.f32 %v6275, %v1602
      %s6278 = scalar_lea.vmem %s524, 96
      %6279 = vst.msk [vmem:[%s6278] sm:$0xff] %vm544, %v6276
      %6280 = vst.msk [vmem:[%s6278 + $0x8] sm:$0xff] %vm544, %v6277
      %s6281 = scalar_lea.vmem [#allocation2], 168
      %v6282 = vld [vmem:[%s6281] sm:$0xff]
      %v6283 = vld [vmem:[%s6281 + $0x8] sm:$0xff]
      %v6284 = vld [vmem:[%s6281 + $0x10] sm:$0x3]
      %v6285 = vld [vmem:[%s6281 + $0x18] sm:$0xff]
      %v6286 = vld [vmem:[%s6281 + $0x20] sm:$0xff]
      %v6287 = vld [vmem:[%s6281 + $0x28] sm:$0x3]
      %v6288 = vld [vmem:[%s6281 + $0x30] sm:$0xff]
      %v6289 = vld [vmem:[%s6281 + $0x38] sm:$0xff]
      %v6290 = vld [vmem:[%s6281 + $0x40] sm:$0x3]
      %v6294 = vrot.slane %v6282, 1
      %v6295 = vrot.slane %v6283, 1
      %v6296 = vsel %vm807, %v6294, %v6295
      %v6297 = vrot.slane %v6284, 1
      %v6298 = vsel %vm807, %v6295, %v6297
      %v6299 = vsel %vm544, %v6296, 0
      %v6301 = vsel %vm544, %v6298, 0
      %6303 = vmatprep.subr.mxu0 0.0
      %6304 = vmatpush1.msra.mxu0 %v819
      %6305 = vmatprep.subr.mxu0 0.0
      %6306 = vmatpush1.msra.mxu0 0.0
      %6307 = vmatprep.subr.mxu0 0.0
      %6308 = vmatpush1.msra.mxu0 0.0
      %6309 = vmatprep.subr.mxu0 0.0
      %6310 = vmatpush1.msra.mxu0 0.0
      %6311 = vmatprep.subr.mxu0 0.0
      %6312 = vmatpush1.msra.mxu0 0.0
      %6313 = vmatprep.subr.mxu0 0.0
      %6314 = vmatpush1.msra.mxu0 0.0
      %6315 = vmatprep.subr.mxu0 0.0
      %6316 = vmatpush1.msra.mxu0 0.0
      %6317 = vmatprep.subr.mxu0 0.0
      %6318 = vmatpush1.msra.mxu0 0.0
      %6319 = vmatprep.subr.mxu0 0.0
      %6320 = vmatpush1.msra.mxu0 0.0
      %6321 = vmatprep.subr.mxu0 0.0
      %6322 = vmatpush1.msra.mxu0 0.0
      %6323 = vmatprep.subr.mxu0 0.0
      %6324 = vmatpush1.msra.mxu0 0.0
      %6325 = vmatprep.subr.mxu0 0.0
      %6326 = vmatpush1.msra.mxu0 0.0
      %6327 = vmatprep.subr.mxu0 0.0
      %6328 = vmatpush1.msra.mxu0 0.0
      %6329 = vmatprep.subr.mxu0 0.0
      %6330 = vmatpush1.msra.mxu0 0.0
      %6331 = vmatprep.subr.mxu0 0.0
      %6332 = vmatpush1.msra.mxu0 0.0
      %6333 = vmatprep.subr.mxu0 0.0
      %6334 = vmatpush1.msra.mxu0 0.0
      %6335 = vmatprep.subr.mxu0 0.0
      %6336 = vmatpush1.msra.mxu0 0.0
      %6337 = vmatprep.subr.mxu0 0.0
      %6338 = vmatpush1.msra.mxu0 0.0
      %6339 = vmatprep.subr.mxu0 0.0
      %6340 = vmatpush1.msra.mxu0 0.0
      %6341 = vmatprep.subr.mxu0 0.0
      %6342 = vmatpush1.msra.mxu0 0.0
      %6343 = vmatprep.subr.mxu0 0.0
      %6344 = vmatpush1.msra.mxu0 0.0
      %6345 = vmatprep.subr.mxu0 0.0
      %6346 = vmatpush1.msra.mxu0 0.0
      %6347 = vmatprep.subr.mxu0 0.0
      %6348 = vmatpush1.msra.mxu0 0.0
      %6349 = vmatprep.subr.mxu0 0.0
      %6350 = vmatpush1.msra.mxu0 0.0
      %6351 = vmatprep.subr.mxu0 0.0
      %6352 = vmatpush1.msra.mxu0 0.0
      %6353 = vmatprep.subr.mxu0 0.0
      %6354 = vmatpush1.msra.mxu0 0.0
      %6355 = vmatprep.subr.mxu0 0.0
      %6356 = vmatpush1.msra.mxu0 0.0
      %6357 = vmatprep.subr.mxu0 0.0
      %6358 = vmatpush1.msra.mxu0 0.0
      %6359 = vmatprep.subr.mxu0 0.0
      %6360 = vmatpush1.msra.mxu0 0.0
      %6361 = vmatprep.subr.mxu0 0.0
      %6362 = vmatpush1.msra.mxu0 0.0
      %6363 = vmatprep.subr.mxu0 0.0
      %6364 = vmatpush1.msra.mxu0 0.0
      %6365 = vmatprep.subr.mxu0 0.0
      %6366 = vmatpush1.msra.mxu0 0.0
      %6367 = vmatprep.mubr.f32.mxu0 0.0
      %6368 = vmatmul.mubr.f32.gmra.mrb[0].mxu0 %v6299
      %v6369 = vpop.f32.mrb[0].mxu0
      %v6370 = vadd.f32 0.0, %v6369
      %v6371 = vpop.f32.mrb[0].mxu0
      %6372 = vmatprep.mubr.f32.mxu0 0.0
      %6373 = vmatmul.mubr.f32.gmra.mrb[0].mxu0 %v6301
      %v6374 = vpop.f32.mrb[0].mxu0
      %v6375 = vadd.f32 0.0, %v6374
      %v6376 = vpop.f32.mrb[0].mxu0
      %6377 = vdwg.mxu0
      %v6378 = vsel %vm544, %v6282, 0
      %v6380 = vsel %vm544, %v6283, 0
      %6382 = vmatprep.subr.mxu0 0.0
      %6383 = vmatpush1.msra.mxu0 %v901
      %6384 = vmatprep.subr.mxu0 0.0
      %6385 = vmatpush1.msra.mxu0 0.0
      %6386 = vmatprep.subr.mxu0 0.0
      %6387 = vmatpush1.msra.mxu0 0.0
      %6388 = vmatprep.subr.mxu0 0.0
      %6389 = vmatpush1.msra.mxu0 0.0
      %6390 = vmatprep.subr.mxu0 0.0
      %6391 = vmatpush1.msra.mxu0 0.0
      %6392 = vmatprep.subr.mxu0 0.0
      %6393 = vmatpush1.msra.mxu0 0.0
      %6394 = vmatprep.subr.mxu0 0.0
      %6395 = vmatpush1.msra.mxu0 0.0
      %6396 = vmatprep.subr.mxu0 0.0
      %6397 = vmatpush1.msra.mxu0 0.0
      %6398 = vmatprep.subr.mxu0 0.0
      %6399 = vmatpush1.msra.mxu0 0.0
      %6400 = vmatprep.subr.mxu0 0.0
      %6401 = vmatpush1.msra.mxu0 0.0
      %6402 = vmatprep.subr.mxu0 0.0
      %6403 = vmatpush1.msra.mxu0 0.0
      %6404 = vmatprep.subr.mxu0 0.0
      %6405 = vmatpush1.msra.mxu0 0.0
      %6406 = vmatprep.subr.mxu0 0.0
      %6407 = vmatpush1.msra.mxu0 0.0
      %6408 = vmatprep.subr.mxu0 0.0
      %6409 = vmatpush1.msra.mxu0 0.0
      %6410 = vmatprep.subr.mxu0 0.0
      %6411 = vmatpush1.msra.mxu0 0.0
      %6412 = vmatprep.subr.mxu0 0.0
      %6413 = vmatpush1.msra.mxu0 0.0
      %6414 = vmatprep.subr.mxu0 0.0
      %6415 = vmatpush1.msra.mxu0 0.0
      %6416 = vmatprep.subr.mxu0 0.0
      %6417 = vmatpush1.msra.mxu0 0.0
      %6418 = vmatprep.subr.mxu0 0.0
      %6419 = vmatpush1.msra.mxu0 0.0
      %6420 = vmatprep.subr.mxu0 0.0
      %6421 = vmatpush1.msra.mxu0 0.0
      %6422 = vmatprep.subr.mxu0 0.0
      %6423 = vmatpush1.msra.mxu0 0.0
      %6424 = vmatprep.subr.mxu0 0.0
      %6425 = vmatpush1.msra.mxu0 0.0
      %6426 = vmatprep.subr.mxu0 0.0
      %6427 = vmatpush1.msra.mxu0 0.0
      %6428 = vmatprep.subr.mxu0 0.0
      %6429 = vmatpush1.msra.mxu0 0.0
      %6430 = vmatprep.subr.mxu0 0.0
      %6431 = vmatpush1.msra.mxu0 0.0
      %6432 = vmatprep.subr.mxu0 0.0
      %6433 = vmatpush1.msra.mxu0 0.0
      %6434 = vmatprep.subr.mxu0 0.0
      %6435 = vmatpush1.msra.mxu0 0.0
      %6436 = vmatprep.subr.mxu0 0.0
      %6437 = vmatpush1.msra.mxu0 0.0
      %6438 = vmatprep.subr.mxu0 0.0
      %6439 = vmatpush1.msra.mxu0 0.0
      %6440 = vmatprep.subr.mxu0 0.0
      %6441 = vmatpush1.msra.mxu0 0.0
      %6442 = vmatprep.subr.mxu0 0.0
      %6443 = vmatpush1.msra.mxu0 0.0
      %6444 = vmatprep.subr.mxu0 0.0
      %6445 = vmatpush1.msra.mxu0 0.0
      %6446 = vmatprep.mubr.f32.mxu0 0.0
      %6447 = vmatmul.mubr.f32.gmra.mrb[0].mxu0 %v6378
      %v6448 = vpop.f32.mrb[0].mxu0
      %v6449 = vadd.f32 %v6370, %v6448
      %v6450 = vpop.f32.mrb[0].mxu0
      %6451 = vmatprep.mubr.f32.mxu0 0.0
      %6452 = vmatmul.mubr.f32.gmra.mrb[0].mxu0 %v6380
      %v6453 = vpop.f32.mrb[0].mxu0
      %v6454 = vadd.f32 %v6375, %v6453
      %v6455 = vpop.f32.mrb[0].mxu0
      %6456 = vdwg.mxu0
      %v6457 = vrot.slane %v6282, 2
      %v6458 = vrot.slane %v6283, 2
      %v6459 = vsel %vm978, %v6457, %v6458
      %v6460 = vrot.slane %v6284, 2
      %v6461 = vsel %vm978, %v6458, %v6460
      %v6462 = vsel %vm544, %v6459, 0
      %v6464 = vsel %vm544, %v6461, 0
      %6466 = vmatprep.subr.mxu0 0.0
      %6467 = vmatpush1.msra.mxu0 %v989
      %6468 = vmatprep.subr.mxu0 0.0
      %6469 = vmatpush1.msra.mxu0 0.0
      %6470 = vmatprep.subr.mxu0 0.0
      %6471 = vmatpush1.msra.mxu0 0.0
      %6472 = vmatprep.subr.mxu0 0.0
      %6473 = vmatpush1.msra.mxu0 0.0
      %6474 = vmatprep.subr.mxu0 0.0
      %6475 = vmatpush1.msra.mxu0 0.0
      %6476 = vmatprep.subr.mxu0 0.0
      %6477 = vmatpush1.msra.mxu0 0.0
      %6478 = vmatprep.subr.mxu0 0.0
      %6479 = vmatpush1.msra.mxu0 0.0
      %6480 = vmatprep.subr.mxu0 0.0
      %6481 = vmatpush1.msra.mxu0 0.0
      %6482 = vmatprep.subr.mxu0 0.0
      %6483 = vmatpush1.msra.mxu0 0.0
      %6484 = vmatprep.subr.mxu0 0.0
      %6485 = vmatpush1.msra.mxu0 0.0
      %6486 = vmatprep.subr.mxu0 0.0
      %6487 = vmatpush1.msra.mxu0 0.0
      %6488 = vmatprep.subr.mxu0 0.0
      %6489 = vmatpush1.msra.mxu0 0.0
      %6490 = vmatprep.subr.mxu0 0.0
      %6491 = vmatpush1.msra.mxu0 0.0
      %6492 = vmatprep.subr.mxu0 0.0
      %6493 = vmatpush1.msra.mxu0 0.0
      %6494 = vmatprep.subr.mxu0 0.0
      %6495 = vmatpush1.msra.mxu0 0.0
      %6496 = vmatprep.subr.mxu0 0.0
      %6497 = vmatpush1.msra.mxu0 0.0
      %6498 = vmatprep.subr.mxu0 0.0
      %6499 = vmatpush1.msra.mxu0 0.0
      %6500 = vmatprep.subr.mxu0 0.0
      %6501 = vmatpush1.msra.mxu0 0.0
      %6502 = vmatprep.subr.mxu0 0.0
      %6503 = vmatpush1.msra.mxu0 0.0
      %6504 = vmatprep.subr.mxu0 0.0
      %6505 = vmatpush1.msra.mxu0 0.0
      %6506 = vmatprep.subr.mxu0 0.0
      %6507 = vmatpush1.msra.mxu0 0.0
      %6508 = vmatprep.subr.mxu0 0.0
      %6509 = vmatpush1.msra.mxu0 0.0
      %6510 = vmatprep.subr.mxu0 0.0
      %6511 = vmatpush1.msra.mxu0 0.0
      %6512 = vmatprep.subr.mxu0 0.0
      %6513 = vmatpush1.msra.mxu0 0.0
      %6514 = vmatprep.subr.mxu0 0.0
      %6515 = vmatpush1.msra.mxu0 0.0
      %6516 = vmatprep.subr.mxu0 0.0
      %6517 = vmatpush1.msra.mxu0 0.0
      %6518 = vmatprep.subr.mxu0 0.0
      %6519 = vmatpush1.msra.mxu0 0.0
      %6520 = vmatprep.subr.mxu0 0.0
      %6521 = vmatpush1.msra.mxu0 0.0
      %6522 = vmatprep.subr.mxu0 0.0
      %6523 = vmatpush1.msra.mxu0 0.0
      %6524 = vmatprep.subr.mxu0 0.0
      %6525 = vmatpush1.msra.mxu0 0.0
      %6526 = vmatprep.subr.mxu0 0.0
      %6527 = vmatpush1.msra.mxu0 0.0
      %6528 = vmatprep.subr.mxu0 0.0
      %6529 = vmatpush1.msra.mxu0 0.0
      %6530 = vmatprep.mubr.f32.mxu0 0.0
      %6531 = vmatmul.mubr.f32.gmra.mrb[0].mxu0 %v6462
      %v6532 = vpop.f32.mrb[0].mxu0
      %v6533 = vadd.f32 0.0, %v6532
      %v6534 = vpop.f32.mrb[0].mxu0
      %6535 = vmatprep.mubr.f32.mxu0 0.0
      %6536 = vmatmul.mubr.f32.gmra.mrb[0].mxu0 %v6464
      %v6537 = vpop.f32.mrb[0].mxu0
      %v6538 = vadd.f32 0.0, %v6537
      %v6539 = vpop.f32.mrb[0].mxu0
      %6540 = vdwg.mxu0
      %v6541 = vadd.f32 %v6449, %v6533
      %v6542 = vadd.f32 %v6454, %v6538
      %v6544 = vsel %vm544, %v6285, 0
      %v6547 = vsel %vm544, %v6286, 0
      %6549 = vmatprep.subr.mxu0 0.0
      %6550 = vmatpush1.msra.mxu0 %v1075
      %6551 = vmatprep.subr.mxu0 0.0
      %6552 = vmatpush1.msra.mxu0 0.0
      %6553 = vmatprep.subr.mxu0 0.0
      %6554 = vmatpush1.msra.mxu0 0.0
      %6555 = vmatprep.subr.mxu0 0.0
      %6556 = vmatpush1.msra.mxu0 0.0
      %6557 = vmatprep.subr.mxu0 0.0
      %6558 = vmatpush1.msra.mxu0 0.0
      %6559 = vmatprep.subr.mxu0 0.0
      %6560 = vmatpush1.msra.mxu0 0.0
      %6561 = vmatprep.subr.mxu0 0.0
      %6562 = vmatpush1.msra.mxu0 0.0
      %6563 = vmatprep.subr.mxu0 0.0
      %6564 = vmatpush1.msra.mxu0 0.0
      %6565 = vmatprep.subr.mxu0 0.0
      %6566 = vmatpush1.msra.mxu0 0.0
      %6567 = vmatprep.subr.mxu0 0.0
      %6568 = vmatpush1.msra.mxu0 0.0
      %6569 = vmatprep.subr.mxu0 0.0
      %6570 = vmatpush1.msra.mxu0 0.0
      %6571 = vmatprep.subr.mxu0 0.0
      %6572 = vmatpush1.msra.mxu0 0.0
      %6573 = vmatprep.subr.mxu0 0.0
      %6574 = vmatpush1.msra.mxu0 0.0
      %6575 = vmatprep.subr.mxu0 0.0
      %6576 = vmatpush1.msra.mxu0 0.0
      %6577 = vmatprep.subr.mxu0 0.0
      %6578 = vmatpush1.msra.mxu0 0.0
      %6579 = vmatprep.subr.mxu0 0.0
      %6580 = vmatpush1.msra.mxu0 0.0
      %6581 = vmatprep.subr.mxu0 0.0
      %6582 = vmatpush1.msra.mxu0 0.0
      %6583 = vmatprep.subr.mxu0 0.0
      %6584 = vmatpush1.msra.mxu0 0.0
      %6585 = vmatprep.subr.mxu0 0.0
      %6586 = vmatpush1.msra.mxu0 0.0
      %6587 = vmatprep.subr.mxu0 0.0
      %6588 = vmatpush1.msra.mxu0 0.0
      %6589 = vmatprep.subr.mxu0 0.0
      %6590 = vmatpush1.msra.mxu0 0.0
      %6591 = vmatprep.subr.mxu0 0.0
      %6592 = vmatpush1.msra.mxu0 0.0
      %6593 = vmatprep.subr.mxu0 0.0
      %6594 = vmatpush1.msra.mxu0 0.0
      %6595 = vmatprep.subr.mxu0 0.0
      %6596 = vmatpush1.msra.mxu0 0.0
      %6597 = vmatprep.subr.mxu0 0.0
      %6598 = vmatpush1.msra.mxu0 0.0
      %6599 = vmatprep.subr.mxu0 0.0
      %6600 = vmatpush1.msra.mxu0 0.0
      %6601 = vmatprep.subr.mxu0 0.0
      %6602 = vmatpush1.msra.mxu0 0.0
      %6603 = vmatprep.subr.mxu0 0.0
      %6604 = vmatpush1.msra.mxu0 0.0
      %6605 = vmatprep.subr.mxu0 0.0
      %6606 = vmatpush1.msra.mxu0 0.0
      %6607 = vmatprep.subr.mxu0 0.0
      %6608 = vmatpush1.msra.mxu0 0.0
      %6609 = vmatprep.subr.mxu0 0.0
      %6610 = vmatpush1.msra.mxu0 0.0
      %6611 = vmatprep.subr.mxu0 0.0
      %6612 = vmatpush1.msra.mxu0 0.0
      %6613 = vmatprep.mubr.f32.mxu0 0.0
      %6614 = vmatmul.mubr.f32.gmra.mrb[0].mxu0 %v6544
      %v6615 = vpop.f32.mrb[0].mxu0
      %v6616 = vadd.f32 0.0, %v6615
      %v6617 = vpop.f32.mrb[0].mxu0
      %6618 = vmatprep.mubr.f32.mxu0 0.0
      %6619 = vmatmul.mubr.f32.gmra.mrb[0].mxu0 %v6547
      %v6620 = vpop.f32.mrb[0].mxu0
      %v6621 = vadd.f32 0.0, %v6620
      %v6622 = vpop.f32.mrb[0].mxu0
      %6623 = vdwg.mxu0
      %v6624 = vadd.f32 %v6541, %v6616
      %v6625 = vadd.f32 %v6542, %v6621
      %v6627 = vrot.slane %v6285, 1
      %v6628 = vrot.slane %v6286, 1
      %v6629 = vsel %vm807, %v6627, %v6628
      %v6630 = vrot.slane %v6287, 1
      %v6631 = vsel %vm807, %v6628, %v6630
      %v6632 = vsel %vm544, %v6629, 0
      %v6634 = vsel %vm544, %v6631, 0
      %6636 = vmatprep.subr.mxu0 0.0
      %6637 = vmatpush1.msra.mxu0 %v1165
      %6638 = vmatprep.subr.mxu0 0.0
      %6639 = vmatpush1.msra.mxu0 0.0
      %6640 = vmatprep.subr.mxu0 0.0
      %6641 = vmatpush1.msra.mxu0 0.0
      %6642 = vmatprep.subr.mxu0 0.0
      %6643 = vmatpush1.msra.mxu0 0.0
      %6644 = vmatprep.subr.mxu0 0.0
      %6645 = vmatpush1.msra.mxu0 0.0
      %6646 = vmatprep.subr.mxu0 0.0
      %6647 = vmatpush1.msra.mxu0 0.0
      %6648 = vmatprep.subr.mxu0 0.0
      %6649 = vmatpush1.msra.mxu0 0.0
      %6650 = vmatprep.subr.mxu0 0.0
      %6651 = vmatpush1.msra.mxu0 0.0
      %6652 = vmatprep.subr.mxu0 0.0
      %6653 = vmatpush1.msra.mxu0 0.0
      %6654 = vmatprep.subr.mxu0 0.0
      %6655 = vmatpush1.msra.mxu0 0.0
      %6656 = vmatprep.subr.mxu0 0.0
      %6657 = vmatpush1.msra.mxu0 0.0
      %6658 = vmatprep.subr.mxu0 0.0
      %6659 = vmatpush1.msra.mxu0 0.0
      %6660 = vmatprep.subr.mxu0 0.0
      %6661 = vmatpush1.msra.mxu0 0.0
      %6662 = vmatprep.subr.mxu0 0.0
      %6663 = vmatpush1.msra.mxu0 0.0
      %6664 = vmatprep.subr.mxu0 0.0
      %6665 = vmatpush1.msra.mxu0 0.0
      %6666 = vmatprep.subr.mxu0 0.0
      %6667 = vmatpush1.msra.mxu0 0.0
      %6668 = vmatprep.subr.mxu0 0.0
      %6669 = vmatpush1.msra.mxu0 0.0
      %6670 = vmatprep.subr.mxu0 0.0
      %6671 = vmatpush1.msra.mxu0 0.0
      %6672 = vmatprep.subr.mxu0 0.0
      %6673 = vmatpush1.msra.mxu0 0.0
      %6674 = vmatprep.subr.mxu0 0.0
      %6675 = vmatpush1.msra.mxu0 0.0
      %6676 = vmatprep.subr.mxu0 0.0
      %6677 = vmatpush1.msra.mxu0 0.0
      %6678 = vmatprep.subr.mxu0 0.0
      %6679 = vmatpush1.msra.mxu0 0.0
      %6680 = vmatprep.subr.mxu0 0.0
      %6681 = vmatpush1.msra.mxu0 0.0
      %6682 = vmatprep.subr.mxu0 0.0
      %6683 = vmatpush1.msra.mxu0 0.0
      %6684 = vmatprep.subr.mxu0 0.0
      %6685 = vmatpush1.msra.mxu0 0.0
      %6686 = vmatprep.subr.mxu0 0.0
      %6687 = vmatpush1.msra.mxu0 0.0
      %6688 = vmatprep.subr.mxu0 0.0
      %6689 = vmatpush1.msra.mxu0 0.0
      %6690 = vmatprep.subr.mxu0 0.0
      %6691 = vmatpush1.msra.mxu0 0.0
      %6692 = vmatprep.subr.mxu0 0.0
      %6693 = vmatpush1.msra.mxu0 0.0
      %6694 = vmatprep.subr.mxu0 0.0
      %6695 = vmatpush1.msra.mxu0 0.0
      %6696 = vmatprep.subr.mxu0 0.0
      %6697 = vmatpush1.msra.mxu0 0.0
      %6698 = vmatprep.subr.mxu0 0.0
      %6699 = vmatpush1.msra.mxu0 0.0
      %6700 = vmatprep.mubr.f32.mxu0 0.0
      %6701 = vmatmul.mubr.f32.gmra.mrb[0].mxu0 %v6632
      %v6702 = vpop.f32.mrb[0].mxu0
      %v6703 = vadd.f32 0.0, %v6702
      %v6704 = vpop.f32.mrb[0].mxu0
      %6705 = vmatprep.mubr.f32.mxu0 0.0
      %6706 = vmatmul.mubr.f32.gmra.mrb[0].mxu0 %v6634
      %v6707 = vpop.f32.mrb[0].mxu0
      %v6708 = vadd.f32 0.0, %v6707
      %v6709 = vpop.f32.mrb[0].mxu0
      %6710 = vdwg.mxu0
      %v6711 = vadd.f32 %v6624, %v6703
      %v6712 = vadd.f32 %v6625, %v6708
      %v6713 = vrot.slane %v6285, 2
      %v6714 = vrot.slane %v6286, 2
      %v6715 = vsel %vm978, %v6713, %v6714
      %v6716 = vrot.slane %v6287, 2
      %v6717 = vsel %vm978, %v6714, %v6716
      %v6718 = vsel %vm544, %v6715, 0
      %v6720 = vsel %vm544, %v6717, 0
      %6722 = vmatprep.subr.mxu0 0.0
      %6723 = vmatpush1.msra.mxu0 %v1254
      %6724 = vmatprep.subr.mxu0 0.0
      %6725 = vmatpush1.msra.mxu0 0.0
      %6726 = vmatprep.subr.mxu0 0.0
      %6727 = vmatpush1.msra.mxu0 0.0
      %6728 = vmatprep.subr.mxu0 0.0
      %6729 = vmatpush1.msra.mxu0 0.0
      %6730 = vmatprep.subr.mxu0 0.0
      %6731 = vmatpush1.msra.mxu0 0.0
      %6732 = vmatprep.subr.mxu0 0.0
      %6733 = vmatpush1.msra.mxu0 0.0
      %6734 = vmatprep.subr.mxu0 0.0
      %6735 = vmatpush1.msra.mxu0 0.0
      %6736 = vmatprep.subr.mxu0 0.0
      %6737 = vmatpush1.msra.mxu0 0.0
      %6738 = vmatprep.subr.mxu0 0.0
      %6739 = vmatpush1.msra.mxu0 0.0
      %6740 = vmatprep.subr.mxu0 0.0
      %6741 = vmatpush1.msra.mxu0 0.0
      %6742 = vmatprep.subr.mxu0 0.0
      %6743 = vmatpush1.msra.mxu0 0.0
      %6744 = vmatprep.subr.mxu0 0.0
      %6745 = vmatpush1.msra.mxu0 0.0
      %6746 = vmatprep.subr.mxu0 0.0
      %6747 = vmatpush1.msra.mxu0 0.0
      %6748 = vmatprep.subr.mxu0 0.0
      %6749 = vmatpush1.msra.mxu0 0.0
      %6750 = vmatprep.subr.mxu0 0.0
      %6751 = vmatpush1.msra.mxu0 0.0
      %6752 = vmatprep.subr.mxu0 0.0
      %6753 = vmatpush1.msra.mxu0 0.0
      %6754 = vmatprep.subr.mxu0 0.0
      %6755 = vmatpush1.msra.mxu0 0.0
      %6756 = vmatprep.subr.mxu0 0.0
      %6757 = vmatpush1.msra.mxu0 0.0
      %6758 = vmatprep.subr.mxu0 0.0
      %6759 = vmatpush1.msra.mxu0 0.0
      %6760 = vmatprep.subr.mxu0 0.0
      %6761 = vmatpush1.msra.mxu0 0.0
      %6762 = vmatprep.subr.mxu0 0.0
      %6763 = vmatpush1.msra.mxu0 0.0
      %6764 = vmatprep.subr.mxu0 0.0
      %6765 = vmatpush1.msra.mxu0 0.0
      %6766 = vmatprep.subr.mxu0 0.0
      %6767 = vmatpush1.msra.mxu0 0.0
      %6768 = vmatprep.subr.mxu0 0.0
      %6769 = vmatpush1.msra.mxu0 0.0
      %6770 = vmatprep.subr.mxu0 0.0
      %6771 = vmatpush1.msra.mxu0 0.0
      %6772 = vmatprep.subr.mxu0 0.0
      %6773 = vmatpush1.msra.mxu0 0.0
      %6774 = vmatprep.subr.mxu0 0.0
      %6775 = vmatpush1.msra.mxu0 0.0
      %6776 = vmatprep.subr.mxu0 0.0
      %6777 = vmatpush1.msra.mxu0 0.0
      %6778 = vmatprep.subr.mxu0 0.0
      %6779 = vmatpush1.msra.mxu0 0.0
      %6780 = vmatprep.subr.mxu0 0.0
      %6781 = vmatpush1.msra.mxu0 0.0
      %6782 = vmatprep.subr.mxu0 0.0
      %6783 = vmatpush1.msra.mxu0 0.0
      %6784 = vmatprep.subr.mxu0 0.0
      %6785 = vmatpush1.msra.mxu0 0.0
      %6786 = vmatprep.mubr.f32.mxu0 0.0
      %6787 = vmatmul.mubr.f32.gmra.mrb[0].mxu0 %v6718
      %v6788 = vpop.f32.mrb[0].mxu0
      %v6789 = vadd.f32 0.0, %v6788
      %v6790 = vpop.f32.mrb[0].mxu0
      %6791 = vmatprep.mubr.f32.mxu0 0.0
      %6792 = vmatmul.mubr.f32.gmra.mrb[0].mxu0 %v6720
      %v6793 = vpop.f32.mrb[0].mxu0
      %v6794 = vadd.f32 0.0, %v6793
      %v6795 = vpop.f32.mrb[0].mxu0
      %6796 = vdwg.mxu0
      %v6797 = vadd.f32 %v6711, %v6789
      %v6798 = vadd.f32 %v6712, %v6794
      %v6800 = vsel %vm544, %v6288, 0
      %v6803 = vsel %vm544, %v6289, 0
      %6805 = vmatprep.subr.mxu0 0.0
      %6806 = vmatpush1.msra.mxu0 %v1340
      %6807 = vmatprep.subr.mxu0 0.0
      %6808 = vmatpush1.msra.mxu0 0.0
      %6809 = vmatprep.subr.mxu0 0.0
      %6810 = vmatpush1.msra.mxu0 0.0
      %6811 = vmatprep.subr.mxu0 0.0
      %6812 = vmatpush1.msra.mxu0 0.0
      %6813 = vmatprep.subr.mxu0 0.0
      %6814 = vmatpush1.msra.mxu0 0.0
      %6815 = vmatprep.subr.mxu0 0.0
      %6816 = vmatpush1.msra.mxu0 0.0
      %6817 = vmatprep.subr.mxu0 0.0
      %6818 = vmatpush1.msra.mxu0 0.0
      %6819 = vmatprep.subr.mxu0 0.0
      %6820 = vmatpush1.msra.mxu0 0.0
      %6821 = vmatprep.subr.mxu0 0.0
      %6822 = vmatpush1.msra.mxu0 0.0
      %6823 = vmatprep.subr.mxu0 0.0
      %6824 = vmatpush1.msra.mxu0 0.0
      %6825 = vmatprep.subr.mxu0 0.0
      %6826 = vmatpush1.msra.mxu0 0.0
      %6827 = vmatprep.subr.mxu0 0.0
      %6828 = vmatpush1.msra.mxu0 0.0
      %6829 = vmatprep.subr.mxu0 0.0
      %6830 = vmatpush1.msra.mxu0 0.0
      %6831 = vmatprep.subr.mxu0 0.0
      %6832 = vmatpush1.msra.mxu0 0.0
      %6833 = vmatprep.subr.mxu0 0.0
      %6834 = vmatpush1.msra.mxu0 0.0
      %6835 = vmatprep.subr.mxu0 0.0
      %6836 = vmatpush1.msra.mxu0 0.0
      %6837 = vmatprep.subr.mxu0 0.0
      %6838 = vmatpush1.msra.mxu0 0.0
      %6839 = vmatprep.subr.mxu0 0.0
      %6840 = vmatpush1.msra.mxu0 0.0
      %6841 = vmatprep.subr.mxu0 0.0
      %6842 = vmatpush1.msra.mxu0 0.0
      %6843 = vmatprep.subr.mxu0 0.0
      %6844 = vmatpush1.msra.mxu0 0.0
      %6845 = vmatprep.subr.mxu0 0.0
      %6846 = vmatpush1.msra.mxu0 0.0
      %6847 = vmatprep.subr.mxu0 0.0
      %6848 = vmatpush1.msra.mxu0 0.0
      %6849 = vmatprep.subr.mxu0 0.0
      %6850 = vmatpush1.msra.mxu0 0.0
      %6851 = vmatprep.subr.mxu0 0.0
      %6852 = vmatpush1.msra.mxu0 0.0
      %6853 = vmatprep.subr.mxu0 0.0
      %6854 = vmatpush1.msra.mxu0 0.0
      %6855 = vmatprep.subr.mxu0 0.0
      %6856 = vmatpush1.msra.mxu0 0.0
      %6857 = vmatprep.subr.mxu0 0.0
      %6858 = vmatpush1.msra.mxu0 0.0
      %6859 = vmatprep.subr.mxu0 0.0
      %6860 = vmatpush1.msra.mxu0 0.0
      %6861 = vmatprep.subr.mxu0 0.0
      %6862 = vmatpush1.msra.mxu0 0.0
      %6863 = vmatprep.subr.mxu0 0.0
      %6864 = vmatpush1.msra.mxu0 0.0
      %6865 = vmatprep.subr.mxu0 0.0
      %6866 = vmatpush1.msra.mxu0 0.0
      %6867 = vmatprep.subr.mxu0 0.0
      %6868 = vmatpush1.msra.mxu0 0.0
      %6869 = vmatprep.mubr.f32.mxu0 0.0
      %6870 = vmatmul.mubr.f32.gmra.mrb[0].mxu0 %v6800
      %v6871 = vpop.f32.mrb[0].mxu0
      %v6872 = vadd.f32 0.0, %v6871
      %v6873 = vpop.f32.mrb[0].mxu0
      %6874 = vmatprep.mubr.f32.mxu0 0.0
      %6875 = vmatmul.mubr.f32.gmra.mrb[0].mxu0 %v6803
      %v6876 = vpop.f32.mrb[0].mxu0
      %v6877 = vadd.f32 0.0, %v6876
      %v6878 = vpop.f32.mrb[0].mxu0
      %6879 = vdwg.mxu0
      %v6880 = vadd.f32 %v6797, %v6872
      %v6881 = vadd.f32 %v6798, %v6877
      %v6883 = vrot.slane %v6288, 1
      %v6884 = vrot.slane %v6289, 1
      %v6885 = vsel %vm807, %v6883, %v6884
      %v6886 = vrot.slane %v6290, 1
      %v6887 = vsel %vm807, %v6884, %v6886
      %v6888 = vsel %vm544, %v6885, 0
      %v6890 = vsel %vm544, %v6887, 0
      %6892 = vmatprep.subr.mxu0 0.0
      %6893 = vmatpush1.msra.mxu0 %v1430
      %6894 = vmatprep.subr.mxu0 0.0
      %6895 = vmatpush1.msra.mxu0 0.0
      %6896 = vmatprep.subr.mxu0 0.0
      %6897 = vmatpush1.msra.mxu0 0.0
      %6898 = vmatprep.subr.mxu0 0.0
      %6899 = vmatpush1.msra.mxu0 0.0
      %6900 = vmatprep.subr.mxu0 0.0
      %6901 = vmatpush1.msra.mxu0 0.0
      %6902 = vmatprep.subr.mxu0 0.0
      %6903 = vmatpush1.msra.mxu0 0.0
      %6904 = vmatprep.subr.mxu0 0.0
      %6905 = vmatpush1.msra.mxu0 0.0
      %6906 = vmatprep.subr.mxu0 0.0
      %6907 = vmatpush1.msra.mxu0 0.0
      %6908 = vmatprep.subr.mxu0 0.0
      %6909 = vmatpush1.msra.mxu0 0.0
      %6910 = vmatprep.subr.mxu0 0.0
      %6911 = vmatpush1.msra.mxu0 0.0
      %6912 = vmatprep.subr.mxu0 0.0
      %6913 = vmatpush1.msra.mxu0 0.0
      %6914 = vmatprep.subr.mxu0 0.0
      %6915 = vmatpush1.msra.mxu0 0.0
      %6916 = vmatprep.subr.mxu0 0.0
      %6917 = vmatpush1.msra.mxu0 0.0
      %6918 = vmatprep.subr.mxu0 0.0
      %6919 = vmatpush1.msra.mxu0 0.0
      %6920 = vmatprep.subr.mxu0 0.0
      %6921 = vmatpush1.msra.mxu0 0.0
      %6922 = vmatprep.subr.mxu0 0.0
      %6923 = vmatpush1.msra.mxu0 0.0
      %6924 = vmatprep.subr.mxu0 0.0
      %6925 = vmatpush1.msra.mxu0 0.0
      %6926 = vmatprep.subr.mxu0 0.0
      %6927 = vmatpush1.msra.mxu0 0.0
      %6928 = vmatprep.subr.mxu0 0.0
      %6929 = vmatpush1.msra.mxu0 0.0
      %6930 = vmatprep.subr.mxu0 0.0
      %6931 = vmatpush1.msra.mxu0 0.0
      %6932 = vmatprep.subr.mxu0 0.0
      %6933 = vmatpush1.msra.mxu0 0.0
      %6934 = vmatprep.subr.mxu0 0.0
      %6935 = vmatpush1.msra.mxu0 0.0
      %6936 = vmatprep.subr.mxu0 0.0
      %6937 = vmatpush1.msra.mxu0 0.0
      %6938 = vmatprep.subr.mxu0 0.0
      %6939 = vmatpush1.msra.mxu0 0.0
      %6940 = vmatprep.subr.mxu0 0.0
      %6941 = vmatpush1.msra.mxu0 0.0
      %6942 = vmatprep.subr.mxu0 0.0
      %6943 = vmatpush1.msra.mxu0 0.0
      %6944 = vmatprep.subr.mxu0 0.0
      %6945 = vmatpush1.msra.mxu0 0.0
      %6946 = vmatprep.subr.mxu0 0.0
      %6947 = vmatpush1.msra.mxu0 0.0
      %6948 = vmatprep.subr.mxu0 0.0
      %6949 = vmatpush1.msra.mxu0 0.0
      %6950 = vmatprep.subr.mxu0 0.0
      %6951 = vmatpush1.msra.mxu0 0.0
      %6952 = vmatprep.subr.mxu0 0.0
      %6953 = vmatpush1.msra.mxu0 0.0
      %6954 = vmatprep.subr.mxu0 0.0
      %6955 = vmatpush1.msra.mxu0 0.0
      %6956 = vmatprep.mubr.f32.mxu0 0.0
      %6957 = vmatmul.mubr.f32.gmra.mrb[0].mxu0 %v6888
      %v6958 = vpop.f32.mrb[0].mxu0
      %v6959 = vadd.f32 0.0, %v6958
      %v6960 = vpop.f32.mrb[0].mxu0
      %6961 = vmatprep.mubr.f32.mxu0 0.0
      %6962 = vmatmul.mubr.f32.gmra.mrb[0].mxu0 %v6890
      %v6963 = vpop.f32.mrb[0].mxu0
      %v6964 = vadd.f32 0.0, %v6963
      %v6965 = vpop.f32.mrb[0].mxu0
      %6966 = vdwg.mxu0
      %v6967 = vadd.f32 %v6880, %v6959
      %v6968 = vadd.f32 %v6881, %v6964
      %v6969 = vrot.slane %v6288, 2
      %v6970 = vrot.slane %v6289, 2
      %v6971 = vsel %vm978, %v6969, %v6970
      %v6972 = vrot.slane %v6290, 2
      %v6973 = vsel %vm978, %v6970, %v6972
      %v6974 = vsel %vm544, %v6971, 0
      %v6976 = vsel %vm544, %v6973, 0
      %6978 = vmatprep.subr.mxu0 0.0
      %6979 = vmatpush1.msra.mxu0 %v1519
      %6980 = vmatprep.subr.mxu0 0.0
      %6981 = vmatpush1.msra.mxu0 0.0
      %6982 = vmatprep.subr.mxu0 0.0
      %6983 = vmatpush1.msra.mxu0 0.0
      %6984 = vmatprep.subr.mxu0 0.0
      %6985 = vmatpush1.msra.mxu0 0.0
      %6986 = vmatprep.subr.mxu0 0.0
      %6987 = vmatpush1.msra.mxu0 0.0
      %6988 = vmatprep.subr.mxu0 0.0
      %6989 = vmatpush1.msra.mxu0 0.0
      %6990 = vmatprep.subr.mxu0 0.0
      %6991 = vmatpush1.msra.mxu0 0.0
      %6992 = vmatprep.subr.mxu0 0.0
      %6993 = vmatpush1.msra.mxu0 0.0
      %6994 = vmatprep.subr.mxu0 0.0
      %6995 = vmatpush1.msra.mxu0 0.0
      %6996 = vmatprep.subr.mxu0 0.0
      %6997 = vmatpush1.msra.mxu0 0.0
      %6998 = vmatprep.subr.mxu0 0.0
      %6999 = vmatpush1.msra.mxu0 0.0
      %7000 = vmatprep.subr.mxu0 0.0
      %7001 = vmatpush1.msra.mxu0 0.0
      %7002 = vmatprep.subr.mxu0 0.0
      %7003 = vmatpush1.msra.mxu0 0.0
      %7004 = vmatprep.subr.mxu0 0.0
      %7005 = vmatpush1.msra.mxu0 0.0
      %7006 = vmatprep.subr.mxu0 0.0
      %7007 = vmatpush1.msra.mxu0 0.0
      %7008 = vmatprep.subr.mxu0 0.0
      %7009 = vmatpush1.msra.mxu0 0.0
      %7010 = vmatprep.subr.mxu0 0.0
      %7011 = vmatpush1.msra.mxu0 0.0
      %7012 = vmatprep.subr.mxu0 0.0
      %7013 = vmatpush1.msra.mxu0 0.0
      %7014 = vmatprep.subr.mxu0 0.0
      %7015 = vmatpush1.msra.mxu0 0.0
      %7016 = vmatprep.subr.mxu0 0.0
      %7017 = vmatpush1.msra.mxu0 0.0
      %7018 = vmatprep.subr.mxu0 0.0
      %7019 = vmatpush1.msra.mxu0 0.0
      %7020 = vmatprep.subr.mxu0 0.0
      %7021 = vmatpush1.msra.mxu0 0.0
      %7022 = vmatprep.subr.mxu0 0.0
      %7023 = vmatpush1.msra.mxu0 0.0
      %7024 = vmatprep.subr.mxu0 0.0
      %7025 = vmatpush1.msra.mxu0 0.0
      %7026 = vmatprep.subr.mxu0 0.0
      %7027 = vmatpush1.msra.mxu0 0.0
      %7028 = vmatprep.subr.mxu0 0.0
      %7029 = vmatpush1.msra.mxu0 0.0
      %7030 = vmatprep.subr.mxu0 0.0
      %7031 = vmatpush1.msra.mxu0 0.0
      %7032 = vmatprep.subr.mxu0 0.0
      %7033 = vmatpush1.msra.mxu0 0.0
      %7034 = vmatprep.subr.mxu0 0.0
      %7035 = vmatpush1.msra.mxu0 0.0
      %7036 = vmatprep.subr.mxu0 0.0
      %7037 = vmatpush1.msra.mxu0 0.0
      %7038 = vmatprep.subr.mxu0 0.0
      %7039 = vmatpush1.msra.mxu0 0.0
      %7040 = vmatprep.subr.mxu0 0.0
      %7041 = vmatpush1.msra.mxu0 0.0
      %7042 = vmatprep.mubr.f32.mxu0 0.0
      %7043 = vmatmul.mubr.f32.gmra.mrb[0].mxu0 %v6974
      %v7044 = vpop.f32.mrb[0].mxu0
      %v7045 = vadd.f32 0.0, %v7044
      %v7046 = vpop.f32.mrb[0].mxu0
      %7047 = vmatprep.mubr.f32.mxu0 0.0
      %7048 = vmatmul.mubr.f32.gmra.mrb[0].mxu0 %v6976
      %v7049 = vpop.f32.mrb[0].mxu0
      %v7050 = vadd.f32 0.0, %v7049
      %v7051 = vpop.f32.mrb[0].mxu0
      %7052 = vdwg.mxu0
      %v7053 = vadd.f32 %v6967, %v7045
      %v7054 = vadd.f32 %v6968, %v7050
      %v7055 = vadd.f32 %v7053, %v1602
      %v7056 = vadd.f32 %v7054, %v1602
      %s7057 = scalar_lea.vmem %s524, 112
      %7058 = vst.msk [vmem:[%s7057] sm:$0xff] %vm544, %v7055
      %7059 = vst.msk [vmem:[%s7057 + $0x8] sm:$0xff] %vm544, %v7056
      %v7060 = vld [vmem:[%s524] sm:$0xff]
      %v7061 = vld [vmem:[%s524 + $0x8] sm:$0xff]
      %v7062 = vld [vmem:[%s524 + $0x10] sm:$0xff]
      %v7063 = vld [vmem:[%s524 + $0x18] sm:$0xff]
      %v7064 = vld [vmem:[%s524 + $0x20] sm:$0xff]
      %v7065 = vld [vmem:[%s524 + $0x28] sm:$0xff]
      %v7066 = vld [vmem:[%s524 + $0x30] sm:$0xff]
      %v7067 = vld [vmem:[%s524 + $0x38] sm:$0xff]
      %v7068 = vld [vmem:[%s524 + $0x40] sm:$0xff]
      %v7069 = vld [vmem:[%s524 + $0x48] sm:$0xff]
      %v7070 = vld [vmem:[%s524 + $0x50] sm:$0xff]
      %v7071 = vld [vmem:[%s524 + $0x58] sm:$0xff]
      %v7072 = vld [vmem:[%s524 + $0x60] sm:$0xff]
      %v7073 = vld [vmem:[%s524 + $0x68] sm:$0xff]
      %v7074 = vld [vmem:[%s524 + $0x70] sm:$0xff]
      %v7075 = vld [vmem:[%s524 + $0x78] sm:$0xff]
      %v7076 = vsel %vm544, %v7060, 0.0
      %v7077 = vsel %vm544, %v7061, 0.0
      %v7078 = vadd.f32 %v7076, %v7077
      %v7079 = vsel %vm544, %v7062, 0.0
      %v7080 = vadd.f32 %v7078, %v7079
      %v7081 = vsel %vm544, %v7063, 0.0
      %v7082 = vadd.f32 %v7080, %v7081
      %v7083 = vsel %vm544, %v7064, 0.0
      %v7084 = vadd.f32 %v7082, %v7083
      %v7085 = vsel %vm544, %v7065, 0.0
      %v7086 = vadd.f32 %v7084, %v7085
      %v7087 = vsel %vm544, %v7066, 0.0
      %v7088 = vadd.f32 %v7086, %v7087
      %v7089 = vsel %vm544, %v7067, 0.0
      %v7090 = vadd.f32 %v7088, %v7089
      %v7091 = vsel %vm544, %v7068, 0.0
      %v7092 = vadd.f32 %v7090, %v7091
      %v7093 = vsel %vm544, %v7069, 0.0
      %v7094 = vadd.f32 %v7092, %v7093
      %v7095 = vsel %vm544, %v7070, 0.0
      %v7096 = vadd.f32 %v7094, %v7095
      %v7097 = vsel %vm544, %v7071, 0.0
      %v7098 = vadd.f32 %v7096, %v7097
      %v7099 = vsel %vm544, %v7072, 0.0
      %v7100 = vadd.f32 %v7098, %v7099
      %v7101 = vsel %vm544, %v7073, 0.0
      %v7102 = vadd.f32 %v7100, %v7101
      %v7103 = vsel %vm544, %v7074, 0.0
      %v7104 = vadd.f32 %v7102, %v7103
      %v7105 = vsel %vm544, %v7075, 0.0
      %v7106 = vadd.f32 %v7104, %v7105
      %v7107 = vrot.slane %v7106, 4
      %v7108 = vadd.f32 %v7106, %v7107
      %v7109 = vrot.slane %v7108, 2
      %v7110 = vadd.f32 %v7108, %v7109
      %v7111 = vrot.slane %v7110, 1
      %v7112 = vadd.f32 %v7110, %v7111
      %v7113 = vmul.f32 %v7060, %v7060
      %v7114 = vmul.f32 %v7061, %v7061
      %v7115 = vmul.f32 %v7062, %v7062
      %v7116 = vmul.f32 %v7063, %v7063
      %v7117 = vmul.f32 %v7064, %v7064
      %v7118 = vmul.f32 %v7065, %v7065
      %v7119 = vmul.f32 %v7066, %v7066
      %v7120 = vmul.f32 %v7067, %v7067
      %v7121 = vmul.f32 %v7068, %v7068
      %v7122 = vmul.f32 %v7069, %v7069
      %v7123 = vmul.f32 %v7070, %v7070
      %v7124 = vmul.f32 %v7071, %v7071
      %v7125 = vmul.f32 %v7072, %v7072
      %v7126 = vmul.f32 %v7073, %v7073
      %v7127 = vmul.f32 %v7074, %v7074
      %v7128 = vmul.f32 %v7075, %v7075
      %v7129 = vsel %vm544, %v7113, 0.0
      %v7130 = vsel %vm544, %v7114, 0.0
      %v7131 = vadd.f32 %v7129, %v7130
      %v7132 = vsel %vm544, %v7115, 0.0
      %v7133 = vadd.f32 %v7131, %v7132
      %v7134 = vsel %vm544, %v7116, 0.0
      %v7135 = vadd.f32 %v7133, %v7134
      %v7136 = vsel %vm544, %v7117, 0.0
      %v7137 = vadd.f32 %v7135, %v7136
      %v7138 = vsel %vm544, %v7118, 0.0
      %v7139 = vadd.f32 %v7137, %v7138
      %v7140 = vsel %vm544, %v7119, 0.0
      %v7141 = vadd.f32 %v7139, %v7140
      %v7142 = vsel %vm544, %v7120, 0.0
      %v7143 = vadd.f32 %v7141, %v7142
      %v7144 = vsel %vm544, %v7121, 0.0
      %v7145 = vadd.f32 %v7143, %v7144
      %v7146 = vsel %vm544, %v7122, 0.0
      %v7147 = vadd.f32 %v7145, %v7146
      %v7148 = vsel %vm544, %v7123, 0.0
      %v7149 = vadd.f32 %v7147, %v7148
      %v7150 = vsel %vm544, %v7124, 0.0
      %v7151 = vadd.f32 %v7149, %v7150
      %v7152 = vsel %vm544, %v7125, 0.0
      %v7153 = vadd.f32 %v7151, %v7152
      %v7154 = vsel %vm544, %v7126, 0.0
      %v7155 = vadd.f32 %v7153, %v7154
      %v7156 = vsel %vm544, %v7127, 0.0
      %v7157 = vadd.f32 %v7155, %v7156
      %v7158 = vsel %vm544, %v7128, 0.0
      %v7159 = vadd.f32 %v7157, %v7158
      %v7160 = vrot.slane %v7159, 4
      %v7161 = vadd.f32 %v7159, %v7160
      %v7162 = vrot.slane %v7161, 2
      %v7163 = vadd.f32 %v7161, %v7162
      %v7164 = vrot.slane %v7163, 1
      %v7165 = vadd.f32 %v7163, %v7164
      %7166 = vst.msk [vmem:[%s531] sm:$0xff] %vm544, %v7112
      %7167 = vst.msk [vmem:[%s539] sm:$0xff] %vm544, %v7165
      %s7168 = smul.u32 8, %s26
      %p7169 = scmp.lt.s32.totalorder %s25, 1
      %s7170 = scalar_select %p7169, %s25, 1
      %p7171 = scmp.lt.s32.totalorder %s7168, 15
      %s7172 = scalar_select %p7171, %s7168, 15
      %s7173 = smul.addr %s7172, 2
      %s7174 = smul.addr %s7170, 32
      %s7175 = sadd.s32 %s7173, %s7174
      %s7176 = smul.addr %s7175, 8
      %s7177 = scalar_lea.vmem %s7, %s7176
      %s7178 = smul.u32 %s25, 2
      %s7179 = sadd.s32 %s7178, %s26
      %p7180 = scmp.lt.s32.totalorder %s7179, 3
      %s7181 = scalar_select %p7180, %s7179, 3
      %s7182 = smul.addr %s7181, 8
      %s7183 = scalar_lea.vmem %s8, %s7182
      %s7184 = smul.u32 %s25, 2
      %s7185 = sadd.s32 %s7184, %s26
      %p7186 = scmp.lt.s32.totalorder %s7185, 3
      %s7187 = scalar_select %p7186, %s7185, 3
      %s7188 = smul.addr %s7187, 8
      %s7189 = scalar_lea.vmem %s9, %s7188
      // Predicated region
      $region57: #{bottleneck_forward.6} parent=47 // pred_check
        %p7190 = pneg %p237
      $region58: #{bottleneck_forward.6} parent=47 // pred_check_branch
        %7192 = sbr.rel (%p7190) target = $region60
      $region59: #{bottleneck_forward.6} parent=47 // pred_region
        %s7193 = smul.u32 8, %s26
      $region60: #{bottleneck_forward.6} parent=47 // pred_fallthru
        _
      // Predicated region
      $region61: #{bottleneck_forward.6} parent=47 // pred_check
        %p7194 = pneg %p267
      $region62: #{bottleneck_forward.6} parent=47 // pred_check_branch
        %7196 = sbr.rel (%p7194) target = $region64
      $region63: #{bottleneck_forward.6} parent=47 // pred_region
        %s7197 = smul.u32 %s25, 2
        %s7198 = sadd.s32 %s7197, %s26
      $region64: #{bottleneck_forward.6} parent=47 // pred_fallthru
        _
      // Predicated region
      $region65: #{bottleneck_forward.6} parent=47 // pred_check
        %p7199 = pneg %p297
      $region66: #{bottleneck_forward.6} parent=47 // pred_check_branch
        %7201 = sbr.rel (%p7199) target = $region68
      $region67: #{bottleneck_forward.6} parent=47 // pred_region
        %s7202 = smul.u32 %s25, 2
        %s7203 = sadd.s32 %s7202, %s26
      $region68: #{bottleneck_forward.6} parent=47 // pred_fallthru
        _
    $region48: #{bottleneck_forward.6} parent=5 // pred_fallthru
      _
    %p7204 = scmp.le.s32.totalorder 2, %s16
    // Predicated region
    $region69: #{bottleneck_forward.6} parent=5 // pred_check
      %p7205 = pneg %p7204
    $region70: #{bottleneck_forward.6} parent=5 // pred_check_branch
      %7207 = sbr.rel (%p7205) target = $region72
    $region71: #{bottleneck_forward.6} parent=5 // pred_region
      %s7208 = ssub.s32 %s16, 2
      // Predicated region
      $region73: #{bottleneck_forward.6} parent=71 // pred_check
        %p7209 = pneg %p243
      $region74: #{bottleneck_forward.6} parent=71 // pred_check_branch
        %7211 = sbr.rel (%p7209) target = $region76
      $region75: #{bottleneck_forward.6} parent=71 // pred_region
        %s7212 = smul.u32 8, %s28
        %p7213 = scmp.lt.s32.totalorder %s27, 1
        %s7214 = scalar_select %p7213, %s27, 1
        %p7215 = scmp.lt.s32.totalorder %s7212, 15
        %s7216 = scalar_select %p7215, %s7212, 15
        %s7217 = smul.addr %s7216, 2
        %s7218 = smul.addr %s7214, 32
        %s7219 = sadd.s32 %s7217, %s7218
        %s7220 = smul.addr %s7219, 8
        %s7221 = scalar_lea.vmem %s7, %s7220
      $region76: #{bottleneck_forward.6} parent=71 // pred_fallthru
        _
      // Predicated region
      $region77: #{bottleneck_forward.6} parent=71 // pred_check
        %p7222 = pneg %p273
      $region78: #{bottleneck_forward.6} parent=71 // pred_check_branch
        %7224 = sbr.rel (%p7222) target = $region80
      $region79: #{bottleneck_forward.6} parent=71 // pred_region
        %s7225 = smul.u32 %s27, 2
        %s7226 = sadd.s32 %s7225, %s28
        %p7227 = scmp.lt.s32.totalorder %s7226, 3
        %s7228 = scalar_select %p7227, %s7226, 3
        %s7229 = smul.addr %s7228, 8
        %s7230 = scalar_lea.vmem %s8, %s7229
      $region80: #{bottleneck_forward.6} parent=71 // pred_fallthru
        _
      // Predicated region
      $region81: #{bottleneck_forward.6} parent=71 // pred_check
        %p7231 = pneg %p303
      $region82: #{bottleneck_forward.6} parent=71 // pred_check_branch
        %7233 = sbr.rel (%p7231) target = $region84
      $region83: #{bottleneck_forward.6} parent=71 // pred_region
        %s7234 = smul.u32 %s27, 2
        %s7235 = sadd.s32 %s7234, %s28
        %p7236 = scmp.lt.s32.totalorder %s7235, 3
        %s7237 = scalar_select %p7236, %s7235, 3
        %s7238 = smul.addr %s7237, 8
        %s7239 = scalar_lea.vmem %s9, %s7238
      $region84: #{bottleneck_forward.6} parent=71 // pred_fallthru
        _
    $region72: #{bottleneck_forward.6} parent=5 // pred_fallthru
      _
  $region6: #{bottleneck_forward.6} parent=0 // loop_footer
    %s20 = sadd.s32 1, %s16
  $region7: #{bottleneck_forward.6} parent=0 // loop_footer_branch
    %15 = sbr.rel target = $region3
  $region8: #{bottleneck_forward.6} parent=0 // loop_exit
    _

</llo_original>
